<compile_context>
chip_gen: v5e
topology: v5e:2x2
jax: 0.10.0
libtpu: 0.0.40
codegen_flags: <defaults>
</compile_context>

<pallas_src>
import functools

import jax
import jax.numpy as jnp
from jax.experimental import pallas as pl
from jax.experimental.pallas import tpu as pltpu


def _round_up(x, m):
    return ((x + m - 1) // m) * m


# ---------------------------------------------------------------------------
# Pallas kernels
# ---------------------------------------------------------------------------
def matmul_kernel(a_ref, b_ref, o_ref):
    # Whole K in one block -> single-shot MXU matmul, no accumulator scratch.
    o_ref[...] = jnp.dot(a_ref[...], b_ref[...],
                         preferred_element_type=jnp.float32)


def matmul_pallas(a, b):
    """(M, K) @ (K, N) -> (M, N) float32.

    A is passed through untouched (no padding copy).  Only the tiny weight
    matrix B gets its N dimension padded to a multiple of 128 so every output
    store is lane-dense.  bf16 inputs, f32 accumulation.
    """
    M, K = a.shape
    K2, N = b.shape
    assert K == K2
    a16 = a.astype(jnp.bfloat16)
    b16 = b.astype(jnp.bfloat16)
    Np = _round_up(N, 128)
    if Np != N:
        b16 = jnp.pad(b16, ((0, 0), (0, Np - N)))

    # M tiling: big tiles, but keep >= 2 parallel blocks when M is large so
    # both v7x TensorCores are used.  Otherwise one full-M block (legal for
    # any M because the block equals the full array dim).
    tm = M
    if M >= 1024:
        for cand in (1024, 512, 256, 128, 64, 32, 16, 8):
            if M % cand == 0 and M // cand >= 2:
                tm = cand
                break
    # N tiling: single block up to 2048 lanes (Np is always a multiple of 128).
    tn = next(t for t in (2048, 1024, 512, 256, 128) if Np % t == 0)

    out = pl.pallas_call(
        matmul_kernel,
        out_shape=jax.ShapeDtypeStruct((M, Np), jnp.float32),
        grid=(M // tm, Np // tn),
        in_specs=[pl.BlockSpec((tm, K), lambda i, j: (i, 0)),
                  pl.BlockSpec((K, tn), lambda i, j: (0, j))],
        out_specs=pl.BlockSpec((tm, tn), lambda i, j: (i, j)),
        compiler_params=pltpu.CompilerParams(
            dimension_semantics=("parallel", "parallel")),
    )(a16, b16)
    return out[:, :N] if Np != N else out


def bn_relu_kernel(x_ref, g_ref, b_ref, o_ref):
    # Training-mode BatchNorm2d (biased variance, eps=1e-5) + ReLU, fused.
    # f32 elementwise math (v5e has no bf16 VPU/EUP path).
    x = x_ref[...]
    mean = jnp.mean(x, axis=0, keepdims=True)
    var = jnp.mean(jnp.square(x - mean), axis=0, keepdims=True)
    y = (x - mean) * jax.lax.rsqrt(var + 1e-5)
    o_ref[...] = jnp.maximum(y * g_ref[...] + b_ref[...], 0.0)


def bn_relu_pallas(x2d, gamma, beta):
    R, C = x2d.shape
    return pl.pallas_call(
        bn_relu_kernel,
        out_shape=jax.ShapeDtypeStruct((R, C), jnp.float32),
        grid=(1,),
        in_specs=[pl.BlockSpec((R, C), lambda i: (0, 0)),
                  pl.BlockSpec((1, C), lambda i: (0, 0)),
                  pl.BlockSpec((1, C), lambda i: (0, 0))],
        out_specs=pl.BlockSpec((R, C), lambda i: (0, 0)),
    )(x2d, gamma.reshape(1, C), beta.reshape(1, C))


def tanh_kernel(x_ref, o_ref):
    o_ref[...] = jnp.tanh(x_ref[...])


def tanh_pallas(x):
    """Elementwise tanh on a lane-dense (n/128, 128) view when possible."""
    shape = x.shape
    n = x.size
    if n % (8 * 128) == 0:
        x2 = x.reshape(n // 128, 128)
    else:
        x2 = x.reshape(-1, shape[-1])
    R, C = x2.shape
    out = pl.pallas_call(
        tanh_kernel,
        out_shape=jax.ShapeDtypeStruct((R, C), jnp.float32),
        grid=(1,),
        in_specs=[pl.BlockSpec((R, C), lambda i: (0, 0))],
        out_specs=pl.BlockSpec((R, C), lambda i: (0, 0)),
    )(x2)
    return out.reshape(shape)


# ---------------------------------------------------------------------------
# ConvTranspose2d = per-pixel Pallas matmul + overlap-add col2im (XLA glue)
#   out[b, s*iy + kh - p, s*ix + kw - p, co] += x[b,iy,ix,ci] * w[ci,co,kh,kw]
# ---------------------------------------------------------------------------
def _col2im_stride2(P, B, H, W, KH, KW, Co, padding):
    """Stride-2 overlap-add via sub-pixel parities: dense pad+add per parity,
    then pixel-shuffle interleave.  No scatter, no zero-dilated intermediate."""
    P6 = P.reshape(B, H, W, KH, KW, Co)
    Hf = 2 * (H - 1) + KH
    Wf = 2 * (W - 1) + KW
    Hh, Wh = Hf // 2, Wf // 2
    rows = []
    for qh in range(2):
        cols = []
        for qw in range(2):
            acc = jnp.zeros((B, Hh, Wh, Co), P.dtype)
            for kh in range(qh, KH, 2):
                sh = (kh - qh) // 2
                for kw in range(qw, KW, 2):
                    sw = (kw - qw) // 2
                    acc = acc.at[:, sh:sh + H, sw:sw + W, :].add(
                        P6[:, :, :, kh, kw, :])
            cols.append(acc)
        rows.append(jnp.stack(cols, axis=3))        # (B, Hh, Wh, 2, Co)
    full = jnp.stack(rows, axis=2)                  # (B, Hh, 2, Wh, 2, Co)
    full = full.reshape(B, Hf, Wf, Co)
    return full[:, padding:Hf - padding, padding:Wf - padding, :]


def _col2im_generic(P, B, H, W, KH, KW, Co, stride, padding):
    # Fallback (not hit by this module's configs).
    P6 = P.reshape(B, H, W, KH, KW, Co)
    Hf = (H - 1) * stride + KH
    Wf = (W - 1) * stride + KW
    full = jnp.zeros((B, Hf, Wf, Co), P.dtype)
    for kh in range(KH):
        for kw in range(KW):
            full = full.at[:, kh:kh + (H - 1) * stride + 1:stride,
                           kw:kw + (W - 1) * stride + 1:stride, :].add(
                P6[:, :, :, kh, kw, :])
    return full[:, padding:Hf - padding, padding:Wf - padding, :]


def conv_transpose2d_pallas(x_nhwc, w_iohw, stride, padding):
    """x: (B,H,W,Ci) NHWC; w: (Ci,Co,KH,KW) PyTorch ConvTranspose2d layout."""
    B, H, W, Ci = x_nhwc.shape
    Ci2, Co, KH, KW = w_iohw.shape
    assert Ci == Ci2
    X2d = x_nhwc.reshape(B * H * W, Ci)                        # no copy blow-up
    W2 = jnp.transpose(w_iohw, (0, 2, 3, 1)).reshape(Ci, KH * KW * Co)
    P = matmul_pallas(X2d, W2)                                 # MXU hot path
    if H == 1 and W == 1 and stride == 1:                      # layer 0: pure reshape
        out = P.reshape(B, KH, KW, Co)
        if padding:
            out = out[:, padding:KH - padding, padding:KW - padding, :]
        return out
    if stride == 2 and KH % 2 == 0 and KW % 2 == 0:            # layers 1..4
        return _col2im_stride2(P, B, H, W, KH, KW, Co, padding)
    return _col2im_generic(P, B, H, W, KH, KW, Co, stride, padding)


# ---------------------------------------------------------------------------
# Generator: parameter init + forward (+ pure-XLA reference)
# ---------------------------------------------------------------------------
_STRIDES = (1, 2, 2, 2, 2)
_PADDINGS = (0, 1, 1, 1, 1)


def init_params(key, channels, latent_dim, hidden_dim):
    dims = [(latent_dim, hidden_dim * 8),
            (hidden_dim * 8, hidden_dim * 4),
            (hidden_dim * 4, hidden_dim * 2),
            (hidden_dim * 2, hidden_dim),
            (hidden_dim, channels)]
    params = []
    for idx, (ci, co) in enumerate(dims):
        key, wk = jax.random.split(key)
        layer = {"w": jax.random.normal(wk, (ci, co, 4, 4), jnp.float32) * 0.05}
        if idx < 4:  # BatchNorm2d default init: weight=1, bias=0
            layer["gamma"] = jnp.ones((co,), jnp.float32)
            layer["beta"] = jnp.zeros((co,), jnp.float32)
        params.append(layer)
    return params


def wgan_generator_forward(params, z, latent_dim):
    Bz = z.shape[0]
    # Rearrange 'b d -> b d 1 1' (NCHW) == (b, 1, 1, d) in our NHWC layout.
    x = z.reshape(Bz, 1, 1, latent_dim).astype(jnp.float32)
    for idx, p in enumerate(params):
        x = conv_transpose2d_pallas(x, p["w"], _STRIDES[idx], _PADDINGS[idx])
        Bn, Hn, Wn, Cn = x.shape
        if idx < len(params) - 1:
            x = bn_relu_pallas(x.reshape(Bn * Hn * Wn, Cn),
                               p["gamma"], p["beta"]).reshape(Bn, Hn, Wn, Cn)
        else:
            x = tanh_pallas(x)
    # TODO(synk): BatchNorm running-stat updates (module buffers) are not part
    # of the forward output and are not modeled.
    return jnp.transpose(x, (0, 3, 1, 2))   # back to NCHW like PyTorch


def wgan_generator_ref(params, z, latent_dim):
    """Pure-XLA reference.  Conv inputs are rounded to bf16 to mirror the
    kernel's bf16 MXU inputs, so the comparison isolates structural bugs."""
    Bz = z.shape[0]
    x = z.reshape(Bz, 1, 1, latent_dim).astype(jnp.float32)
    for idx, p in enumerate(params):
        K = p["w"].shape[2]
        w_hwio = jnp.transpose(p["w"][:, :, ::-1, ::-1], (2, 3, 0, 1))
        xb = x.astype(jnp.bfloat16).astype(jnp.float32)
        wb = w_hwio.astype(jnp.bfloat16).astype(jnp.float32)
        pad = K - 1 - _PADDINGS[idx]
        x = jax.lax.conv_general_dilated(
            xb, wb, window_strides=(1, 1), padding=[(pad, pad), (pad, pad)],
            lhs_dilation=(_STRIDES[idx],) * 2,
            dimension_numbers=("NHWC", "HWIO", "NHWC"))
        if idx < len(params) - 1:
            mean = x.mean(axis=(0, 1, 2), keepdims=True)
            var = jnp.mean(jnp.square(x - mean), axis=(0, 1, 2), keepdims=True)
            x = (x - mean) * jax.lax.rsqrt(var + 1e-5)
            x = jnp.maximum(x * p["gamma"] + p["beta"], 0.0)
        else:
            x = jnp.tanh(x)
    return jnp.transpose(x, (0, 3, 1, 2))


if __name__ == "__main__":
    channels, latent_dim, hidden_dim, batch = 3, 32, 8, 2
    key = jax.random.PRNGKey(0)
    pkey, zkey = jax.random.split(key)
    params = init_params(pkey, channels, latent_dim, hidden_dim)
    z = jax.random.normal(zkey, (batch, latent_dim), jnp.float32)

    fwd = jax.jit(functools.partial(wgan_generator_forward, latent_dim=latent_dim))
    out = jax.block_until_ready(fwd(params, z))

    assert out.shape == (batch, channels, 64, 64), out.shape
    assert bool(jnp.all(jnp.isfinite(out)))
    assert bool(jnp.all(jnp.abs(out) <= 1.0 + 1e-6))   # tanh range

    ref = jax.block_until_ready(
        jax.jit(functools.partial(wgan_generator_ref, latent_dim=latent_dim))(params, z))
    max_err = float(jnp.max(jnp.abs(out - ref)))
    assert max_err < 5e-2, max_err
    print("KERNEL_OK")
</pallas_src>

<mosaic_0001>
module attributes {stable_mosaic.version = 11 : i64} {
  func.func @matmul_kernel(%arg0: i32, %arg1: i32, %arg2: memref<2x32xbf16, #tpu.memory_space<vmem>>, %arg3: memref<32x1024xbf16, #tpu.memory_space<vmem>>, %arg4: memref<2x1024xf32, #tpu.memory_space<vmem>>) attributes {dimension_semantics = [#tpu.dimension_semantics<parallel>, #tpu.dimension_semantics<parallel>], iteration_bounds = array<i64: 1, 1>, scalar_prefetch = 0 : i64, scratch_operands = 0 : i64, tpu.core_type = #tpu.core_type<tc>, window_params = [{transform_indices = @transform_0, window_bounds = array<i64: 2, 32>}, {transform_indices = @transform_1, window_bounds = array<i64: 32, 1024>}, {transform_indices = @transform_2, window_bounds = array<i64: 2, 1024>}]} {
    %c0 = arith.constant 0 : index
    %c0_0 = arith.constant 0 : index
    %0 = vector.load %arg2[%c0, %c0_0] : memref<2x32xbf16, #tpu.memory_space<vmem>>, vector<2x32xbf16>
    %c0_1 = arith.constant 0 : index
    %c0_2 = arith.constant 0 : index
    %1 = vector.load %arg3[%c0_1, %c0_2] : memref<32x1024xbf16, #tpu.memory_space<vmem>>, vector<32x1024xbf16>
    %cst = arith.constant dense<0.000000e+00> : vector<2x1024xf32>
    %2 = tpu.matmul %0, %1, %cst {dimension_numbers = #tpu.dot_dimension_numbers<[1], [0], [0], [1], [0, 0, 1, 1], [], []>} : vector<2x32xbf16>, vector<32x1024xbf16>, vector<2x1024xf32> -> vector<2x1024xf32>
    %c0_3 = arith.constant 0 : index
    %c0_4 = arith.constant 0 : index
    %3 = vector.load %arg4[%c0_3, %c0_4] : memref<2x1024xf32, #tpu.memory_space<vmem>>, vector<2x1024xf32>
    tpu.vector_store %arg4[%c0_3, %c0_4], %2 {strides = array<i32>} : memref<2x1024xf32, #tpu.memory_space<vmem>>, vector<2x1024xf32>,
    return
  }
  func.func @transform_0(%arg0: i32, %arg1: i32) -> (i32, i32) {
    %c0_i32 = arith.constant 0 : i32
    %c0_i32_0 = arith.constant 0 : i32
    return %arg0, %c0_i32 : i32, i32
  }
  func.func @transform_1(%arg0: i32, %arg1: i32) -> (i32, i32) {
    %c0_i32 = arith.constant 0 : i32
    %c0_i32_0 = arith.constant 0 : i32
    return %c0_i32, %arg1 : i32, i32
  }
  func.func @transform_2(%arg0: i32, %arg1: i32) -> (i32, i32) {
    %c0_i32 = arith.constant 0 : i32
    return %arg0, %arg1 : i32, i32
  }
}

module attributes {stable_mosaic.version = 11 : i64} {
  func.func @bn_relu_kernel(%arg0: i32, %arg1: memref<32x64xf32, #tpu.memory_space<vmem>>, %arg2: memref<1x64xf32, #tpu.memory_space<vmem>>, %arg3: memref<1x64xf32, #tpu.memory_space<vmem>>, %arg4: memref<32x64xf32, #tpu.memory_space<vmem>>) attributes {dimension_semantics = [#tpu.dimension_semantics<arbitrary>], iteration_bounds = array<i64: 1>, scalar_prefetch = 0 : i64, scratch_operands = 0 : i64, tpu.core_type = #tpu.core_type<tc>, window_params = [{pipeline_mode = #tpu.pipeline_mode<synchronous>, transform_indices = @transform_0, window_bounds = array<i64: 32, 64>}, {pipeline_mode = #tpu.pipeline_mode<synchronous>, transform_indices = @transform_1, window_bounds = array<i64: 1, 64>}, {pipeline_mode = #tpu.pipeline_mode<synchronous>, transform_indices = @transform_2, window_bounds = array<i64: 1, 64>}, {pipeline_mode = #tpu.pipeline_mode<synchronous>, transform_indices = @transform_3, window_bounds = array<i64: 32, 64>}]} {
    %c0 = arith.constant 0 : index
    %c0_0 = arith.constant 0 : index
    %0 = vector.load %arg1[%c0, %c0_0] : memref<32x64xf32, #tpu.memory_space<vmem>>, vector<32x64xf32>
    %cst = arith.constant dense<0.000000e+00> : vector<64xf32>
    %1 = vector.multi_reduction <add>, %0, %cst [0] : vector<32x64xf32> to vector<64xf32>
    %2 = vector.shape_cast %1 : vector<64xf32> to vector<1x64xf32>
    %cst_1 = arith.constant 3.200000e+01 : f32
    %3 = vector.broadcast %cst_1 : f32 to vector<1x64xf32>
    %4 = arith.divf %2, %3 : vector<1x64xf32>
    %5 = vector.broadcast %4 : vector<1x64xf32> to vector<32x64xf32>
    %6 = arith.subf %0, %5 : vector<32x64xf32>
    %7 = arith.mulf %6, %6 : vector<32x64xf32>
    %cst_2 = arith.constant dense<0.000000e+00> : vector<64xf32>
    %8 = vector.multi_reduction <add>, %7, %cst_2 [0] : vector<32x64xf32> to vector<64xf32>
    %9 = vector.shape_cast %8 : vector<64xf32> to vector<1x64xf32>
    %cst_3 = arith.constant 3.200000e+01 : f32
    %10 = vector.broadcast %cst_3 : f32 to vector<1x64xf32>
    %11 = arith.divf %9, %10 : vector<1x64xf32>
    %12 = vector.broadcast %4 : vector<1x64xf32> to vector<32x64xf32>
    %13 = arith.subf %0, %12 : vector<32x64xf32>
    %cst_4 = arith.constant 9.99999974E-6 : f32
    %14 = vector.broadcast %cst_4 : f32 to vector<1x64xf32>
    %15 = arith.addf %11, %14 : vector<1x64xf32>
    %16 = math.rsqrt %15 : vector<1x64xf32>
    %17 = vector.broadcast %16 : vector<1x64xf32> to vector<32x64xf32>
    %18 = arith.mulf %13, %17 : vector<32x64xf32>
    %c0_5 = arith.constant 0 : index
    %c0_6 = arith.constant 0 : index
    %19 = vector.load %arg2[%c0_5, %c0_6] : memref<1x64xf32, #tpu.memory_space<vmem>>, vector<1x64xf32>
    %20 = vector.broadcast %19 : vector<1x64xf32> to vector<32x64xf32>
    %21 = arith.mulf %18, %20 : vector<32x64xf32>
    %c0_7 = arith.constant 0 : index
    %c0_8 = arith.constant 0 : index
    %22 = vector.load %arg3[%c0_7, %c0_8] : memref<1x64xf32, #tpu.memory_space<vmem>>, vector<1x64xf32>
    %23 = vector.broadcast %22 : vector<1x64xf32> to vector<32x64xf32>
    %24 = arith.addf %21, %23 : vector<32x64xf32>
    %cst_9 = arith.constant 0.000000e+00 : f32
    %25 = vector.broadcast %cst_9 : f32 to vector<32x64xf32>
    %26 = arith.maximumf %24, %25 : vector<32x64xf32>
    %c0_10 = arith.constant 0 : index
    %c0_11 = arith.constant 0 : index
    %27 = vector.load %arg4[%c0_10, %c0_11] : memref<32x64xf32, #tpu.memory_space<vmem>>, vector<32x64xf32>
    tpu.vector_store %arg4[%c0_10, %c0_11], %26 {strides = array<i32>} : memref<32x64xf32, #tpu.memory_space<vmem>>, vector<32x64xf32>,
    return
  }
  func.func @transform_0(%arg0: i32) -> (i32, i32) {
    %c0_i32 = arith.constant 0 : i32
    %c0_i32_0 = arith.constant 0 : i32
    %c0_i32_1 = arith.constant 0 : i32
    return %c0_i32, %c0_i32_0 : i32, i32
  }
  func.func @transform_1(%arg0: i32) -> (i32, i32) {
    %c0_i32 = arith.constant 0 : i32
    %c0_i32_0 = arith.constant 0 : i32
    %c0_i32_1 = arith.constant 0 : i32
    return %c0_i32, %c0_i32_0 : i32, i32
  }
  func.func @transform_2(%arg0: i32) -> (i32, i32) {
    %c0_i32 = arith.constant 0 : i32
    %c0_i32_0 = arith.constant 0 : i32
    %c0_i32_1 = arith.constant 0 : i32
    return %c0_i32, %c0_i32_0 : i32, i32
  }
  func.func @transform_3(%arg0: i32) -> (i32, i32) {
    %c0_i32 = arith.constant 0 : i32
    %c0_i32_0 = arith.constant 0 : i32
    %c0_i32_1 = arith.constant 0 : i32
    return %c0_i32, %c0_i32_0 : i32, i32
  }
}

module attributes {stable_mosaic.version = 11 : i64} {
  func.func @matmul_kernel(%arg0: i32, %arg1: i32, %arg2: memref<32x64xbf16, #tpu.memory_space<vmem>>, %arg3: memref<64x512xbf16, #tpu.memory_space<vmem>>, %arg4: memref<32x512xf32, #tpu.memory_space<vmem>>) attributes {dimension_semantics = [#tpu.dimension_semantics<parallel>, #tpu.dimension_semantics<parallel>], iteration_bounds = array<i64: 1, 1>, scalar_prefetch = 0 : i64, scratch_operands = 0 : i64, tpu.core_type = #tpu.core_type<tc>, window_params = [{transform_indices = @transform_0, window_bounds = array<i64: 32, 64>}, {transform_indices = @transform_1, window_bounds = array<i64: 64, 512>}, {transform_indices = @transform_2, window_bounds = array<i64: 32, 512>}]} {
    %c0 = arith.constant 0 : index
    %c0_0 = arith.constant 0 : index
    %0 = vector.load %arg2[%c0, %c0_0] : memref<32x64xbf16, #tpu.memory_space<vmem>>, vector<32x64xbf16>
    %c0_1 = arith.constant 0 : index
    %c0_2 = arith.constant 0 : index
    %1 = vector.load %arg3[%c0_1, %c0_2] : memref<64x512xbf16, #tpu.memory_space<vmem>>, vector<64x512xbf16>
    %cst = arith.constant dense<0.000000e+00> : vector<32x512xf32>
    %2 = tpu.matmul %0, %1, %cst {dimension_numbers = #tpu.dot_dimension_numbers<[1], [0], [0], [1], [0, 0, 1, 1], [], []>} : vector<32x64xbf16>, vector<64x512xbf16>, vector<32x512xf32> -> vector<32x512xf32>
    %c0_3 = arith.constant 0 : index
    %c0_4 = arith.constant 0 : index
    %3 = vector.load %arg4[%c0_3, %c0_4] : memref<32x512xf32, #tpu.memory_space<vmem>>, vector<32x512xf32>
    tpu.vector_store %arg4[%c0_3, %c0_4], %2 {strides = array<i32>} : memref<32x512xf32, #tpu.memory_space<vmem>>, vector<32x512xf32>,
    return
  }
  func.func @transform_0(%arg0: i32, %arg1: i32) -> (i32, i32) {
    %c0_i32 = arith.constant 0 : i32
    %c0_i32_0 = arith.constant 0 : i32
    return %arg0, %c0_i32 : i32, i32
  }
  func.func @transform_1(%arg0: i32, %arg1: i32) -> (i32, i32) {
    %c0_i32 = arith.constant 0 : i32
    %c0_i32_0 = arith.constant 0 : i32
    return %c0_i32, %arg1 : i32, i32
  }
  func.func @transform_2(%arg0: i32, %arg1: i32) -> (i32, i32) {
    %c0_i32 = arith.constant 0 : i32
    return %arg0, %arg1 : i32, i32
  }
}

module attributes {stable_mosaic.version = 11 : i64} {
  func.func @matmul_kernel(%arg0: i32, %arg1: i32, %arg2: memref<128x32xbf16, #tpu.memory_space<vmem>>, %arg3: memref<32x256xbf16, #tpu.memory_space<vmem>>, %arg4: memref<128x256xf32, #tpu.memory_space<vmem>>) attributes {dimension_semantics = [#tpu.dimension_semantics<parallel>, #tpu.dimension_semantics<parallel>], iteration_bounds = array<i64: 1, 1>, scalar_prefetch = 0 : i64, scratch_operands = 0 : i64, tpu.core_type = #tpu.core_type<tc>, window_params = [{transform_indices = @transform_0, window_bounds = array<i64: 128, 32>}, {transform_indices = @transform_1, window_bounds = array<i64: 32, 256>}, {transform_indices = @transform_2, window_bounds = array<i64: 128, 256>}]} {
    %c0 = arith.constant 0 : index
    %c0_0 = arith.constant 0 : index
    %0 = vector.load %arg2[%c0, %c0_0] : memref<128x32xbf16, #tpu.memory_space<vmem>>, vector<128x32xbf16>
    %c0_1 = arith.constant 0 : index
    %c0_2 = arith.constant 0 : index
    %1 = vector.load %arg3[%c0_1, %c0_2] : memref<32x256xbf16, #tpu.memory_space<vmem>>, vector<32x256xbf16>
    %cst = arith.constant dense<0.000000e+00> : vector<128x256xf32>
    %2 = tpu.matmul %0, %1, %cst {dimension_numbers = #tpu.dot_dimension_numbers<[1], [0], [0], [1], [0, 0, 1, 1], [], []>} : vector<128x32xbf16>, vector<32x256xbf16>, vector<128x256xf32> -> vector<128x256xf32>
    %c0_3 = arith.constant 0 : index
    %c0_4 = arith.constant 0 : index
    %3 = vector.load %arg4[%c0_3, %c0_4] : memref<128x256xf32, #tpu.memory_space<vmem>>, vector<128x256xf32>
    tpu.vector_store %arg4[%c0_3, %c0_4], %2 {strides = array<i32>} : memref<128x256xf32, #tpu.memory_space<vmem>>, vector<128x256xf32>,
    return
  }
  func.func @transform_0(%arg0: i32, %arg1: i32) -> (i32, i32) {
    %c0_i32 = arith.constant 0 : i32
    %c0_i32_0 = arith.constant 0 : i32
    return %arg0, %c0_i32 : i32, i32
  }
  func.func @transform_1(%arg0: i32, %arg1: i32) -> (i32, i32) {
    %c0_i32 = arith.constant 0 : i32
    %c0_i32_0 = arith.constant 0 : i32
    return %c0_i32, %arg1 : i32, i32
  }
  func.func @transform_2(%arg0: i32, %arg1: i32) -> (i32, i32) {
    %c0_i32 = arith.constant 0 : i32
    return %arg0, %arg1 : i32, i32
  }
}

module attributes {stable_mosaic.version = 11 : i64} {
  func.func @bn_relu_kernel(%arg0: i32, %arg1: memref<128x32xf32, #tpu.memory_space<vmem>>, %arg2: memref<1x32xf32, #tpu.memory_space<vmem>>, %arg3: memref<1x32xf32, #tpu.memory_space<vmem>>, %arg4: memref<128x32xf32, #tpu.memory_space<vmem>>) attributes {dimension_semantics = [#tpu.dimension_semantics<arbitrary>], iteration_bounds = array<i64: 1>, scalar_prefetch = 0 : i64, scratch_operands = 0 : i64, tpu.core_type = #tpu.core_type<tc>, window_params = [{pipeline_mode = #tpu.pipeline_mode<synchronous>, transform_indices = @transform_0, window_bounds = array<i64: 128, 32>}, {pipeline_mode = #tpu.pipeline_mode<synchronous>, transform_indices = @transform_1, window_bounds = array<i64: 1, 32>}, {pipeline_mode = #tpu.pipeline_mode<synchronous>, transform_indices = @transform_2, window_bounds = array<i64: 1, 32>}, {pipeline_mode = #tpu.pipeline_mode<synchronous>, transform_indices = @transform_3, window_bounds = array<i64: 128, 32>}]} {
    %c0 = arith.constant 0 : index
    %c0_0 = arith.constant 0 : index
    %0 = vector.load %arg1[%c0, %c0_0] : memref<128x32xf32, #tpu.memory_space<vmem>>, vector<128x32xf32>
    %cst = arith.constant dense<0.000000e+00> : vector<32xf32>
    %1 = vector.multi_reduction <add>, %0, %cst [0] : vector<128x32xf32> to vector<32xf32>
    %2 = vector.shape_cast %1 : vector<32xf32> to vector<1x32xf32>
    %cst_1 = arith.constant 1.280000e+02 : f32
    %3 = vector.broadcast %cst_1 : f32 to vector<1x32xf32>
    %4 = arith.divf %2, %3 : vector<1x32xf32>
    %5 = vector.broadcast %4 : vector<1x32xf32> to vector<128x32xf32>
    %6 = arith.subf %0, %5 : vector<128x32xf32>
    %7 = arith.mulf %6, %6 : vector<128x32xf32>
    %cst_2 = arith.constant dense<0.000000e+00> : vector<32xf32>
    %8 = vector.multi_reduction <add>, %7, %cst_2 [0] : vector<128x32xf32> to vector<32xf32>
    %9 = vector.shape_cast %8 : vector<32xf32> to vector<1x32xf32>
    %cst_3 = arith.constant 1.280000e+02 : f32
    %10 = vector.broadcast %cst_3 : f32 to vector<1x32xf32>
    %11 = arith.divf %9, %10 : vector<1x32xf32>
    %12 = vector.broadcast %4 : vector<1x32xf32> to vector<128x32xf32>
    %13 = arith.subf %0, %12 : vector<128x32xf32>
    %cst_4 = arith.constant 9.99999974E-6 : f32
    %14 = vector.broadcast %cst_4 : f32 to vector<1x32xf32>
    %15 = arith.addf %11, %14 : vector<1x32xf32>
    %16 = math.rsqrt %15 : vector<1x32xf32>
    %17 = vector.broadcast %16 : vector<1x32xf32> to vector<128x32xf32>
    %18 = arith.mulf %13, %17 : vector<128x32xf32>
    %c0_5 = arith.constant 0 : index
    %c0_6 = arith.constant 0 : index
    %19 = vector.load %arg2[%c0_5, %c0_6] : memref<1x32xf32, #tpu.memory_space<vmem>>, vector<1x32xf32>
    %20 = vector.broadcast %19 : vector<1x32xf32> to vector<128x32xf32>
    %21 = arith.mulf %18, %20 : vector<128x32xf32>
    %c0_7 = arith.constant 0 : index
    %c0_8 = arith.constant 0 : index
    %22 = vector.load %arg3[%c0_7, %c0_8] : memref<1x32xf32, #tpu.memory_space<vmem>>, vector<1x32xf32>
    %23 = vector.broadcast %22 : vector<1x32xf32> to vector<128x32xf32>
    %24 = arith.addf %21, %23 : vector<128x32xf32>
    %cst_9 = arith.constant 0.000000e+00 : f32
    %25 = vector.broadcast %cst_9 : f32 to vector<128x32xf32>
    %26 = arith.maximumf %24, %25 : vector<128x32xf32>
    %c0_10 = arith.constant 0 : index
    %c0_11 = arith.constant 0 : index
    %27 = vector.load %arg4[%c0_10, %c0_11] : memref<128x32xf32, #tpu.memory_space<vmem>>, vector<128x32xf32>
    tpu.vector_store %arg4[%c0_10, %c0_11], %26 {strides = array<i32>} : memref<128x32xf32, #tpu.memory_space<vmem>>, vector<128x32xf32>,
    return
  }
  func.func @transform_0(%arg0: i32) -> (i32, i32) {
    %c0_i32 = arith.constant 0 : i32
    %c0_i32_0 = arith.constant 0 : i32
    %c0_i32_1 = arith.constant 0 : i32
    return %c0_i32, %c0_i32_0 : i32, i32
  }
  func.func @transform_1(%arg0: i32) -> (i32, i32) {
    %c0_i32 = arith.constant 0 : i32
    %c0_i32_0 = arith.constant 0 : i32
    %c0_i32_1 = arith.constant 0 : i32
    return %c0_i32, %c0_i32_0 : i32, i32
  }
  func.func @transform_2(%arg0: i32) -> (i32, i32) {
    %c0_i32 = arith.constant 0 : i32
    %c0_i32_0 = arith.constant 0 : i32
    %c0_i32_1 = arith.constant 0 : i32
    return %c0_i32, %c0_i32_0 : i32, i32
  }
  func.func @transform_3(%arg0: i32) -> (i32, i32) {
    %c0_i32 = arith.constant 0 : i32
    %c0_i32_0 = arith.constant 0 : i32
    %c0_i32_1 = arith.constant 0 : i32
    return %c0_i32, %c0_i32_0 : i32, i32
  }
}

module attributes {stable_mosaic.version = 11 : i64} {
  func.func @bn_relu_kernel(%arg0: i32, %arg1: memref<512x16xf32, #tpu.memory_space<vmem>>, %arg2: memref<1x16xf32, #tpu.memory_space<vmem>>, %arg3: memref<1x16xf32, #tpu.memory_space<vmem>>, %arg4: memref<512x16xf32, #tpu.memory_space<vmem>>) attributes {dimension_semantics = [#tpu.dimension_semantics<arbitrary>], iteration_bounds = array<i64: 1>, scalar_prefetch = 0 : i64, scratch_operands = 0 : i64, tpu.core_type = #tpu.core_type<tc>, window_params = [{pipeline_mode = #tpu.pipeline_mode<synchronous>, transform_indices = @transform_0, window_bounds = array<i64: 512, 16>}, {pipeline_mode = #tpu.pipeline_mode<synchronous>, transform_indices = @transform_1, window_bounds = array<i64: 1, 16>}, {pipeline_mode = #tpu.pipeline_mode<synchronous>, transform_indices = @transform_2, window_bounds = array<i64: 1, 16>}, {pipeline_mode = #tpu.pipeline_mode<synchronous>, transform_indices = @transform_3, window_bounds = array<i64: 512, 16>}]} {
    %c0 = arith.constant 0 : index
    %c0_0 = arith.constant 0 : index
    %0 = vector.load %arg1[%c0, %c0_0] : memref<512x16xf32, #tpu.memory_space<vmem>>, vector<512x16xf32>
    %cst = arith.constant dense<0.000000e+00> : vector<16xf32>
    %1 = vector.multi_reduction <add>, %0, %cst [0] : vector<512x16xf32> to vector<16xf32>
    %2 = vector.shape_cast %1 : vector<16xf32> to vector<1x16xf32>
    %cst_1 = arith.constant 5.120000e+02 : f32
    %3 = vector.broadcast %cst_1 : f32 to vector<1x16xf32>
    %4 = arith.divf %2, %3 : vector<1x16xf32>
    %5 = vector.broadcast %4 : vector<1x16xf32> to vector<512x16xf32>
    %6 = arith.subf %0, %5 : vector<512x16xf32>
    %7 = arith.mulf %6, %6 : vector<512x16xf32>
    %cst_2 = arith.constant dense<0.000000e+00> : vector<16xf32>
    %8 = vector.multi_reduction <add>, %7, %cst_2 [0] : vector<512x16xf32> to vector<16xf32>
    %9 = vector.shape_cast %8 : vector<16xf32> to vector<1x16xf32>
    %cst_3 = arith.constant 5.120000e+02 : f32
    %10 = vector.broadcast %cst_3 : f32 to vector<1x16xf32>
    %11 = arith.divf %9, %10 : vector<1x16xf32>
    %12 = vector.broadcast %4 : vector<1x16xf32> to vector<512x16xf32>
    %13 = arith.subf %0, %12 : vector<512x16xf32>
    %cst_4 = arith.constant 9.99999974E-6 : f32
    %14 = vector.broadcast %cst_4 : f32 to vector<1x16xf32>
    %15 = arith.addf %11, %14 : vector<1x16xf32>
    %16 = math.rsqrt %15 : vector<1x16xf32>
    %17 = vector.broadcast %16 : vector<1x16xf32> to vector<512x16xf32>
    %18 = arith.mulf %13, %17 : vector<512x16xf32>
    %c0_5 = arith.constant 0 : index
    %c0_6 = arith.constant 0 : index
    %19 = vector.load %arg2[%c0_5, %c0_6] : memref<1x16xf32, #tpu.memory_space<vmem>>, vector<1x16xf32>
    %20 = vector.broadcast %19 : vector<1x16xf32> to vector<512x16xf32>
    %21 = arith.mulf %18, %20 : vector<512x16xf32>
    %c0_7 = arith.constant 0 : index
    %c0_8 = arith.constant 0 : index
    %22 = vector.load %arg3[%c0_7, %c0_8] : memref<1x16xf32, #tpu.memory_space<vmem>>, vector<1x16xf32>
    %23 = vector.broadcast %22 : vector<1x16xf32> to vector<512x16xf32>
    %24 = arith.addf %21, %23 : vector<512x16xf32>
    %cst_9 = arith.constant 0.000000e+00 : f32
    %25 = vector.broadcast %cst_9 : f32 to vector<512x16xf32>
    %26 = arith.maximumf %24, %25 : vector<512x16xf32>
    %c0_10 = arith.constant 0 : index
    %c0_11 = arith.constant 0 : index
    %27 = vector.load %arg4[%c0_10, %c0_11] : memref<512x16xf32, #tpu.memory_space<vmem>>, vector<512x16xf32>
    tpu.vector_store %arg4[%c0_10, %c0_11], %26 {strides = array<i32>} : memref<512x16xf32, #tpu.memory_space<vmem>>, vector<512x16xf32>,
    return
  }
  func.func @transform_0(%arg0: i32) -> (i32, i32) {
    %c0_i32 = arith.constant 0 : i32
    %c0_i32_0 = arith.constant 0 : i32
    %c0_i32_1 = arith.constant 0 : i32
    return %c0_i32, %c0_i32_0 : i32, i32
  }
  func.func @transform_1(%arg0: i32) -> (i32, i32) {
    %c0_i32 = arith.constant 0 : i32
    %c0_i32_0 = arith.constant 0 : i32
    %c0_i32_1 = arith.constant 0 : i32
    return %c0_i32, %c0_i32_0 : i32, i32
  }
  func.func @transform_2(%arg0: i32) -> (i32, i32) {
    %c0_i32 = arith.constant 0 : i32
    %c0_i32_0 = arith.constant 0 : i32
    %c0_i32_1 = arith.constant 0 : i32
    return %c0_i32, %c0_i32_0 : i32, i32
  }
  func.func @transform_3(%arg0: i32) -> (i32, i32) {
    %c0_i32 = arith.constant 0 : i32
    %c0_i32_0 = arith.constant 0 : i32
    %c0_i32_1 = arith.constant 0 : i32
    return %c0_i32, %c0_i32_0 : i32, i32
  }
}

module attributes {stable_mosaic.version = 11 : i64} {
  func.func @matmul_kernel(%arg0: i32, %arg1: i32, %arg2: memref<512x16xbf16, #tpu.memory_space<vmem>>, %arg3: memref<16x128xbf16, #tpu.memory_space<vmem>>, %arg4: memref<512x128xf32, #tpu.memory_space<vmem>>) attributes {dimension_semantics = [#tpu.dimension_semantics<parallel>, #tpu.dimension_semantics<parallel>], iteration_bounds = array<i64: 1, 1>, scalar_prefetch = 0 : i64, scratch_operands = 0 : i64, tpu.core_type = #tpu.core_type<tc>, window_params = [{transform_indices = @transform_0, window_bounds = array<i64: 512, 16>}, {transform_indices = @transform_1, window_bounds = array<i64: 16, 128>}, {transform_indices = @transform_2, window_bounds = array<i64: 512, 128>}]} {
    %c0 = arith.constant 0 : index
    %c0_0 = arith.constant 0 : index
    %0 = vector.load %arg2[%c0, %c0_0] : memref<512x16xbf16, #tpu.memory_space<vmem>>, vector<512x16xbf16>
    %c0_1 = arith.constant 0 : index
    %c0_2 = arith.constant 0 : index
    %1 = vector.load %arg3[%c0_1, %c0_2] : memref<16x128xbf16, #tpu.memory_space<vmem>>, vector<16x128xbf16>
    %cst = arith.constant dense<0.000000e+00> : vector<512x128xf32>
    %2 = tpu.matmul %0, %1, %cst {dimension_numbers = #tpu.dot_dimension_numbers<[1], [0], [0], [1], [0, 0, 1, 1], [], []>} : vector<512x16xbf16>, vector<16x128xbf16>, vector<512x128xf32> -> vector<512x128xf32>
    %c0_3 = arith.constant 0 : index
    %c0_4 = arith.constant 0 : index
    %3 = vector.load %arg4[%c0_3, %c0_4] : memref<512x128xf32, #tpu.memory_space<vmem>>, vector<512x128xf32>
    tpu.vector_store %arg4[%c0_3, %c0_4], %2 {strides = array<i32>} : memref<512x128xf32, #tpu.memory_space<vmem>>, vector<512x128xf32>,
    return
  }
  func.func @transform_0(%arg0: i32, %arg1: i32) -> (i32, i32) {
    %c0_i32 = arith.constant 0 : i32
    %c0_i32_0 = arith.constant 0 : i32
    return %arg0, %c0_i32 : i32, i32
  }
  func.func @transform_1(%arg0: i32, %arg1: i32) -> (i32, i32) {
    %c0_i32 = arith.constant 0 : i32
    %c0_i32_0 = arith.constant 0 : i32
    return %c0_i32, %arg1 : i32, i32
  }
  func.func @transform_2(%arg0: i32, %arg1: i32) -> (i32, i32) {
    %c0_i32 = arith.constant 0 : i32
    return %arg0, %arg1 : i32, i32
  }
}

module attributes {stable_mosaic.version = 11 : i64} {
  func.func @bn_relu_kernel(%arg0: i32, %arg1: memref<2048x8xf32, #tpu.memory_space<vmem>>, %arg2: memref<1x8xf32, #tpu.memory_space<vmem>>, %arg3: memref<1x8xf32, #tpu.memory_space<vmem>>, %arg4: memref<2048x8xf32, #tpu.memory_space<vmem>>) attributes {dimension_semantics = [#tpu.dimension_semantics<arbitrary>], iteration_bounds = array<i64: 1>, scalar_prefetch = 0 : i64, scratch_operands = 0 : i64, tpu.core_type = #tpu.core_type<tc>, window_params = [{pipeline_mode = #tpu.pipeline_mode<synchronous>, transform_indices = @transform_0, window_bounds = array<i64: 2048, 8>}, {pipeline_mode = #tpu.pipeline_mode<synchronous>, transform_indices = @transform_1, window_bounds = array<i64: 1, 8>}, {pipeline_mode = #tpu.pipeline_mode<synchronous>, transform_indices = @transform_2, window_bounds = array<i64: 1, 8>}, {pipeline_mode = #tpu.pipeline_mode<synchronous>, transform_indices = @transform_3, window_bounds = array<i64: 2048, 8>}]} {
    %c0 = arith.constant 0 : index
    %c0_0 = arith.constant 0 : index
    %0 = vector.load %arg1[%c0, %c0_0] : memref<2048x8xf32, #tpu.memory_space<vmem>>, vector<2048x8xf32>
    %cst = arith.constant dense<0.000000e+00> : vector<8xf32>
    %1 = vector.multi_reduction <add>, %0, %cst [0] : vector<2048x8xf32> to vector<8xf32>
    %2 = vector.shape_cast %1 : vector<8xf32> to vector<1x8xf32>
    %cst_1 = arith.constant 2.048000e+03 : f32
    %3 = vector.broadcast %cst_1 : f32 to vector<1x8xf32>
    %4 = arith.divf %2, %3 : vector<1x8xf32>
    %5 = vector.broadcast %4 : vector<1x8xf32> to vector<2048x8xf32>
    %6 = arith.subf %0, %5 : vector<2048x8xf32>
    %7 = arith.mulf %6, %6 : vector<2048x8xf32>
    %cst_2 = arith.constant dense<0.000000e+00> : vector<8xf32>
    %8 = vector.multi_reduction <add>, %7, %cst_2 [0] : vector<2048x8xf32> to vector<8xf32>
    %9 = vector.shape_cast %8 : vector<8xf32> to vector<1x8xf32>
    %cst_3 = arith.constant 2.048000e+03 : f32
    %10 = vector.broadcast %cst_3 : f32 to vector<1x8xf32>
    %11 = arith.divf %9, %10 : vector<1x8xf32>
    %12 = vector.broadcast %4 : vector<1x8xf32> to vector<2048x8xf32>
    %13 = arith.subf %0, %12 : vector<2048x8xf32>
    %cst_4 = arith.constant 9.99999974E-6 : f32
    %14 = vector.broadcast %cst_4 : f32 to vector<1x8xf32>
    %15 = arith.addf %11, %14 : vector<1x8xf32>
    %16 = math.rsqrt %15 : vector<1x8xf32>
    %17 = vector.broadcast %16 : vector<1x8xf32> to vector<2048x8xf32>
    %18 = arith.mulf %13, %17 : vector<2048x8xf32>
    %c0_5 = arith.constant 0 : index
    %c0_6 = arith.constant 0 : index
    %19 = vector.load %arg2[%c0_5, %c0_6] : memref<1x8xf32, #tpu.memory_space<vmem>>, vector<1x8xf32>
    %20 = vector.broadcast %19 : vector<1x8xf32> to vector<2048x8xf32>
    %21 = arith.mulf %18, %20 : vector<2048x8xf32>
    %c0_7 = arith.constant 0 : index
    %c0_8 = arith.constant 0 : index
    %22 = vector.load %arg3[%c0_7, %c0_8] : memref<1x8xf32, #tpu.memory_space<vmem>>, vector<1x8xf32>
    %23 = vector.broadcast %22 : vector<1x8xf32> to vector<2048x8xf32>
    %24 = arith.addf %21, %23 : vector<2048x8xf32>
    %cst_9 = arith.constant 0.000000e+00 : f32
    %25 = vector.broadcast %cst_9 : f32 to vector<2048x8xf32>
    %26 = arith.maximumf %24, %25 : vector<2048x8xf32>
    %c0_10 = arith.constant 0 : index
    %c0_11 = arith.constant 0 : index
    %27 = vector.load %arg4[%c0_10, %c0_11] : memref<2048x8xf32, #tpu.memory_space<vmem>>, vector<2048x8xf32>
    tpu.vector_store %arg4[%c0_10, %c0_11], %26 {strides = array<i32>} : memref<2048x8xf32, #tpu.memory_space<vmem>>, vector<2048x8xf32>,
    return
  }
  func.func @transform_0(%arg0: i32) -> (i32, i32) {
    %c0_i32 = arith.constant 0 : i32
    %c0_i32_0 = arith.constant 0 : i32
    %c0_i32_1 = arith.constant 0 : i32
    return %c0_i32, %c0_i32_0 : i32, i32
  }
  func.func @transform_1(%arg0: i32) -> (i32, i32) {
    %c0_i32 = arith.constant 0 : i32
    %c0_i32_0 = arith.constant 0 : i32
    %c0_i32_1 = arith.constant 0 : i32
    return %c0_i32, %c0_i32_0 : i32, i32
  }
  func.func @transform_2(%arg0: i32) -> (i32, i32) {
    %c0_i32 = arith.constant 0 : i32
    %c0_i32_0 = arith.constant 0 : i32
    %c0_i32_1 = arith.constant 0 : i32
    return %c0_i32, %c0_i32_0 : i32, i32
  }
  func.func @transform_3(%arg0: i32) -> (i32, i32) {
    %c0_i32 = arith.constant 0 : i32
    %c0_i32_0 = arith.constant 0 : i32
    %c0_i32_1 = arith.constant 0 : i32
    return %c0_i32, %c0_i32_0 : i32, i32
  }
}

module attributes {stable_mosaic.version = 11 : i64} {
  func.func @matmul_kernel(%arg0: i32, %arg1: i32, %arg2: memref<1024x8xbf16, #tpu.memory_space<vmem>>, %arg3: memref<8x128xbf16, #tpu.memory_space<vmem>>, %arg4: memref<1024x128xf32, #tpu.memory_space<vmem>>) attributes {dimension_semantics = [#tpu.dimension_semantics<parallel>, #tpu.dimension_semantics<parallel>], iteration_bounds = array<i64: 2, 1>, scalar_prefetch = 0 : i64, scratch_operands = 0 : i64, tpu.core_type = #tpu.core_type<tc>, window_params = [{transform_indices = @transform_0, window_bounds = array<i64: 1024, 8>}, {transform_indices = @transform_1, window_bounds = array<i64: 8, 128>}, {transform_indices = @transform_2, window_bounds = array<i64: 1024, 128>}]} {
    %c0 = arith.constant 0 : index
    %c0_0 = arith.constant 0 : index
    %0 = vector.load %arg2[%c0, %c0_0] : memref<1024x8xbf16, #tpu.memory_space<vmem>>, vector<1024x8xbf16>
    %c0_1 = arith.constant 0 : index
    %c0_2 = arith.constant 0 : index
    %1 = vector.load %arg3[%c0_1, %c0_2] : memref<8x128xbf16, #tpu.memory_space<vmem>>, vector<8x128xbf16>
    %cst = arith.constant dense<0.000000e+00> : vector<1024x128xf32>
    %2 = tpu.matmul %0, %1, %cst {dimension_numbers = #tpu.dot_dimension_numbers<[1], [0], [0], [1], [0, 0, 1, 1], [], []>} : vector<1024x8xbf16>, vector<8x128xbf16>, vector<1024x128xf32> -> vector<1024x128xf32>
    %c0_3 = arith.constant 0 : index
    %c0_4 = arith.constant 0 : index
    %3 = vector.load %arg4[%c0_3, %c0_4] : memref<1024x128xf32, #tpu.memory_space<vmem>>, vector<1024x128xf32>
    tpu.vector_store %arg4[%c0_3, %c0_4], %2 {strides = array<i32>} : memref<1024x128xf32, #tpu.memory_space<vmem>>, vector<1024x128xf32>,
    return
  }
  func.func @transform_0(%arg0: i32, %arg1: i32) -> (i32, i32) {
    %c0_i32 = arith.constant 0 : i32
    %c0_i32_0 = arith.constant 0 : i32
    return %arg0, %c0_i32 : i32, i32
  }
  func.func @transform_1(%arg0: i32, %arg1: i32) -> (i32, i32) {
    %c0_i32 = arith.constant 0 : i32
    %c0_i32_0 = arith.constant 0 : i32
    return %c0_i32, %arg1 : i32, i32
  }
  func.func @transform_2(%arg0: i32, %arg1: i32) -> (i32, i32) {
    %c0_i32 = arith.constant 0 : i32
    return %arg0, %arg1 : i32, i32
  }
}

module attributes {stable_mosaic.version = 11 : i64} {
  func.func @tanh_kernel(%arg0: i32, %arg1: memref<192x128xf32, #tpu.memory_space<vmem>>, %arg2: memref<192x128xf32, #tpu.memory_space<vmem>>) attributes {dimension_semantics = [#tpu.dimension_semantics<arbitrary>], iteration_bounds = array<i64: 1>, scalar_prefetch = 0 : i64, scratch_operands = 0 : i64, tpu.core_type = #tpu.core_type<tc>, window_params = [{pipeline_mode = #tpu.pipeline_mode<synchronous>, transform_indices = @transform_0, window_bounds = array<i64: 192, 128>}, {pipeline_mode = #tpu.pipeline_mode<synchronous>, transform_indices = @transform_1, window_bounds = array<i64: 192, 128>}]} {
    %c0 = arith.constant 0 : index
    %c0_0 = arith.constant 0 : index
    %0 = vector.load %arg1[%c0, %c0_0] : memref<192x128xf32, #tpu.memory_space<vmem>>, vector<192x128xf32>
    %1 = math.tanh %0 : vector<192x128xf32>
    %c0_1 = arith.constant 0 : index
    %c0_2 = arith.constant 0 : index
    %2 = vector.load %arg2[%c0_1, %c0_2] : memref<192x128xf32, #tpu.memory_space<vmem>>, vector<192x128xf32>
    tpu.vector_store %arg2[%c0_1, %c0_2], %1 {strides = array<i32>} : memref<192x128xf32, #tpu.memory_space<vmem>>, vector<192x128xf32>,
    return
  }
  func.func @transform_0(%arg0: i32) -> (i32, i32) {
    %c0_i32 = arith.constant 0 : i32
    %c0_i32_0 = arith.constant 0 : i32
    %c0_i32_1 = arith.constant 0 : i32
    return %c0_i32, %c0_i32_0 : i32, i32
  }
  func.func @transform_1(%arg0: i32) -> (i32, i32) {
    %c0_i32 = arith.constant 0 : i32
    %c0_i32_0 = arith.constant 0 : i32
    %c0_i32_1 = arith.constant 0 : i32
    return %c0_i32, %c0_i32_0 : i32, i32
  }
}

</mosaic_0001>

<llo_original>
// kernel: wgan_generator_forward.11
$region0: #{wgan_generator_forward.11}
  #allocation0 [shape = 'u32[]', space=smem, size = 0x4, offset = 0x4, fixed_abs, tag = 'smem constant byte address 0x4 - core index']
  #allocation1 [shape = 'u32[72,128]{1,0:T(1,128)}', space=vmem, size = 0x9000, scoped, tag = 'internal scratch']
  %s0 = inlined_call_operand.vmem [shape: f32[32,64], index: 0, kind: input, shape index: {}]
  %s1 = inlined_call_operand.hbm [shape: f32[1,64], index: 1, kind: input, shape index: {}]
  %s2 = inlined_call_operand.hbm [shape: f32[1,64], index: 2, kind: input, shape index: {}]
  %s3 = inlined_call_operand.vmem [shape: f32[32,64], index: 3, kind: output, shape index: {}]
  %s4 = sld [smem:[#allocation0]]
  $region30: #{wgan_generator_forward.11} parent=0
    _
  %s6 = ssub.s32 1, %s4
  %s7 = scalar_select 0, %s6, %s4
  $region1: #{wgan_generator_forward.11} parent=0
    #allocation2 [shape = 'u8[512]{0}', space=vmem, size = 0x400, scoped, tag = 'input window, operand 1, single buffered']
    #allocation3 [shape = 's32[1]{0}', space=sflag, size = 0x4, scoped, tag = 'scoped memory for wgan_generator_forward.11']
    #allocation4 [shape = 'u8[512]{0}', space=vmem, size = 0x400, scoped, tag = 'input window, operand 2, single buffered']
    #allocation5 [shape = 's32[1]{0}', space=sflag, size = 0x4, scoped, tag = 'scoped memory for wgan_generator_forward.11']
    %8 = vsyncpa [#allocation3], 0
    %9 = vsyncpa [#allocation5], 0
    // Predicated region
    $region2: #{wgan_generator_forward.11} parent=1 // pred_check
      _
    $region3: #{wgan_generator_forward.11} parent=1 // pred_check_branch
      %11 = sbr.rel (0) target = $region5
    $region4: #{wgan_generator_forward.11} parent=1 // pred_region
      _
    $region5: #{wgan_generator_forward.11} parent=1 // pred_fallthru
      _
    // Predicated region
    $region6: #{wgan_generator_forward.11} parent=1 // pred_check
      _
    $region7: #{wgan_generator_forward.11} parent=1 // pred_check_branch
      %13 = sbr.rel (0) target = $region9
    $region8: #{wgan_generator_forward.11} parent=1 // pred_region
      %15 = vsyncadd [#allocation3], 0
      %s17 = sshll.u32 %s1, 4
      %s18 = int_to_ptr.hbm [resolvable:$true] %s17
      %s19 = sshll.u32 [#allocation2], 4
      %s20 = int_to_ptr.vmem [resolvable:$true] %s19
      %22 = dma.hbm_to_vmem [thread:$0]  %s18, 16, %s20, [#allocation3]
    $region9: #{wgan_generator_forward.11} parent=1 // pred_fallthru
      _
    // Predicated region
    $region10: #{wgan_generator_forward.11} parent=1 // pred_check
      _
    $region11: #{wgan_generator_forward.11} parent=1 // pred_check_branch
      %24 = sbr.rel (0) target = $region13
    $region12: #{wgan_generator_forward.11} parent=1 // pred_region
      %26 = vsyncadd [#allocation5], 0
      %s28 = sshll.u32 %s2, 4
      %s29 = int_to_ptr.hbm [resolvable:$true] %s28
      %s30 = sshll.u32 [#allocation4], 4
      %s31 = int_to_ptr.vmem [resolvable:$true] %s30
      %33 = dma.hbm_to_vmem [thread:$0]  %s29, 16, %s31, [#allocation5]
    $region13: #{wgan_generator_forward.11} parent=1 // pred_fallthru
      _
    // Predicated region
    $region14: #{wgan_generator_forward.11} parent=1 // pred_check
      _
    $region15: #{wgan_generator_forward.11} parent=1 // pred_check_branch
      %35 = sbr.rel (0) target = $region17
    $region16: #{wgan_generator_forward.11} parent=1 // pred_region
      %37 = dma.done [#allocation3], 16
    $region17: #{wgan_generator_forward.11} parent=1 // pred_fallthru
      _
    // Predicated region
    $region18: #{wgan_generator_forward.11} parent=1 // pred_check
      _
    $region19: #{wgan_generator_forward.11} parent=1 // pred_check_branch
      %39 = sbr.rel (0) target = $region21
    $region20: #{wgan_generator_forward.11} parent=1 // pred_region
      %41 = dma.done [#allocation5], 16
    $region21: #{wgan_generator_forward.11} parent=1 // pred_fallthru
      _
    %v42 = vld [vmem:[%s0] sm:$0xff]
    %v43 = vld [vmem:[%s0 + $0x8] sm:$0xff]
    %v44 = vld [vmem:[%s0 + $0x10] sm:$0xff]
    %v45 = vld [vmem:[%s0 + $0x18] sm:$0xff]
    %vm46 = vcmask 523264
    %v47 = vsel %vm46, %v42, 0.0
    %v48 = vsel %vm46, %v43, 0.0
    %v49 = vadd.f32 %v47, %v48
    %v50 = vsel %vm46, %v44, 0.0
    %v51 = vadd.f32 %v49, %v50
    %v52 = vsel %vm46, %v45, 0.0
    %v53 = vadd.f32 %v51, %v52
    %v54 = vrot.slane %v53, 4
    %v55 = vadd.f32 %v53, %v54
    %v56 = vrot.slane %v55, 2
    %v57 = vadd.f32 %v55, %v56
    %v58 = vrot.slane %v57, 1
    %v59 = vadd.f32 %v57, %v58
    %v60 = vrcp.pop 32.0
    %v61 = vmul.f32 32.0, %v60
    %v62 = vsub.f32 1.0, %v61
    %v63 = vmul.f32 %v60, %v62
    %v64 = vadd.f32 %v60, %v63
    %vm65 = vweird.f32 %v60
    %v66 = vsel %vm65, %v60, %v64
    %v67 = vmul.f32 %v59, %v66
    %v68 = vsub.f32 %v42, %v67
    %v69 = vsub.f32 %v43, %v67
    %v70 = vsub.f32 %v44, %v67
    %v71 = vsub.f32 %v45, %v67
    %v72 = vmul.f32 %v68, %v68
    %v73 = vmul.f32 %v69, %v69
    %v74 = vmul.f32 %v70, %v70
    %v75 = vmul.f32 %v71, %v71
    %v76 = vsel %vm46, %v72, 0.0
    %v77 = vsel %vm46, %v73, 0.0
    %v78 = vadd.f32 %v76, %v77
    %v79 = vsel %vm46, %v74, 0.0
    %v80 = vadd.f32 %v78, %v79
    %v81 = vsel %vm46, %v75, 0.0
    %v82 = vadd.f32 %v80, %v81
    %v83 = vrot.slane %v82, 4
    %v84 = vadd.f32 %v82, %v83
    %v85 = vrot.slane %v84, 2
    %v86 = vadd.f32 %v84, %v85
    %v87 = vrot.slane %v86, 1
    %v88 = vadd.f32 %v86, %v87
    %v89 = vmul.f32 %v88, %v66
    %v90 = vadd.f32 %v89, 1e-05
    %v91 = vrsqrt.pop %v90
    %v92 = vmul.f32 %v91, %v90
    %v93 = vmul.f32 %v92, %v91
    %v94 = vmul.f32 0.5, %v93
    %v95 = vsub.f32 1.5, %v94
    %v96 = vmul.f32 %v91, %v95
    %vm97 = vweird.f32 %v90
    %vm98 = vweird.f32 %v91
    %vm99 = vmor %vm97, %vm98
    %v100 = vsel %vm99, %v91, %v96
    %v101 = vmul.f32 %v68, %v100
    %v102 = vmul.f32 %v69, %v100
    %v103 = vmul.f32 %v70, %v100
    %v104 = vmul.f32 %v71, %v100
    %v105 = vld [vmem:[#allocation2] sm:$0x1]
    %v107 = vperm.slane %v105, 0
    %v109 = vmul.f32 %v101, %v107
    %v110 = vmul.f32 %v102, %v107
    %v111 = vmul.f32 %v103, %v107
    %v112 = vmul.f32 %v104, %v107
    %v113 = vld [vmem:[#allocation4] sm:$0x1]
    %v115 = vperm.slane %v113, 0
    %v117 = vadd.f32 %v109, %v115
    %v118 = vadd.f32 %v110, %v115
    %v119 = vadd.f32 %v111, %v115
    %v120 = vadd.f32 %v112, %v115
    %v121 = vmax.f32 %v117, 0.0
    %v122 = vmax.f32 %v118, 0.0
    %v123 = vmax.f32 %v119, 0.0
    %v124 = vmax.f32 %v120, 0.0
    %125 = vst.msk [vmem:[%s3] sm:$0xff] %vm46, %v121
    %126 = vst.msk [vmem:[%s3 + $0x8] sm:$0xff] %vm46, %v122
    %127 = vst.msk [vmem:[%s3 + $0x10] sm:$0xff] %vm46, %v123
    %128 = vst.msk [vmem:[%s3 + $0x18] sm:$0xff] %vm46, %v124
    // Predicated region
    $region22: #{wgan_generator_forward.11} parent=1 // pred_check
      _
    $region23: #{wgan_generator_forward.11} parent=1 // pred_check_branch
      %130 = sbr.rel (0) target = $region25
    $region24: #{wgan_generator_forward.11} parent=1 // pred_region
      _
    $region25: #{wgan_generator_forward.11} parent=1 // pred_fallthru
      _
    // Predicated region
    $region26: #{wgan_generator_forward.11} parent=1 // pred_check
      _
    $region27: #{wgan_generator_forward.11} parent=1 // pred_check_branch
      %132 = sbr.rel (0) target = $region29
    $region28: #{wgan_generator_forward.11} parent=1 // pred_region
      _
    $region29: #{wgan_generator_forward.11} parent=1 // pred_fallthru
      _
    %133 = vsyncpa [#allocation3], 1
    %134 = vsyncpa [#allocation5], 1

// kernel: wgan_generator_forward.10
$region0: #{wgan_generator_forward.10}
  #allocation0 [shape = 'u32[]', space=smem, size = 0x4, offset = 0x4, fixed_abs, tag = 'smem constant byte address 0x4 - core index']
  #allocation1 [shape = 'u32[72,128]{1,0:T(1,128)}', space=vmem, size = 0x9000, scoped, tag = 'internal scratch']
  %s0 = inlined_call_operand.vmem [shape: bf16[2,32], index: 0, kind: input, shape index: {}]
  %s1 = inlined_call_operand.vmem [shape: bf16[32,1024], index: 1, kind: input, shape index: {}]
  %s2 = inlined_call_operand.vmem [shape: f32[2,1024], index: 2, kind: output, shape index: {}]
  %s3 = sld [smem:[#allocation0]]
  $region18: #{wgan_generator_forward.10} parent=0
    _
  %s5 = ssub.s32 1, %s3
  %s6 = scalar_select 0, %s5, %s3
  // Predicated region
  $region2: #{wgan_generator_forward.10} parent=0 // pred_check
    _
  $region3: #{wgan_generator_forward.10} parent=0 // pred_check_branch
    %8 = sbr.rel (0) target = $region5
  $region4: #{wgan_generator_forward.10} parent=0 // pred_region
    _
  $region5: #{wgan_generator_forward.10} parent=0 // pred_fallthru
    _
  // Predicated region
  $region6: #{wgan_generator_forward.10} parent=0 // pred_check
    _
  $region7: #{wgan_generator_forward.10} parent=0 // pred_check_branch
    %10 = sbr.rel (0) target = $region9
  $region8: #{wgan_generator_forward.10} parent=0 // pred_region
    _
  $region9: #{wgan_generator_forward.10} parent=0 // pred_fallthru
    _
  %v12 = vld [vmem:[%s0] sm:$0x1]
  %v13 = vld [vmem:[%s1] sm:$0xff]
  %v14 = vld [vmem:[%s1 + $0x8] sm:$0xff]
  %v15 = vld [vmem:[%s1 + $0x10] sm:$0xff]
  %v16 = vld [vmem:[%s1 + $0x18] sm:$0xff]
  %v17 = vld [vmem:[%s1 + $0x20] sm:$0xff]
  %v18 = vld [vmem:[%s1 + $0x28] sm:$0xff]
  %v19 = vld [vmem:[%s1 + $0x30] sm:$0xff]
  %v20 = vld [vmem:[%s1 + $0x38] sm:$0xff]
  %v21 = vld [vmem:[%s1 + $0x40] sm:$0xff]
  %v22 = vld [vmem:[%s1 + $0x48] sm:$0xff]
  %v23 = vld [vmem:[%s1 + $0x50] sm:$0xff]
  %v24 = vld [vmem:[%s1 + $0x58] sm:$0xff]
  %v25 = vld [vmem:[%s1 + $0x60] sm:$0xff]
  %v26 = vld [vmem:[%s1 + $0x68] sm:$0xff]
  %v27 = vld [vmem:[%s1 + $0x70] sm:$0xff]
  %v28 = vld [vmem:[%s1 + $0x78] sm:$0xff]
  %v45 = vunpack.c.l.b16 %v13
  %v46 = vunpack.c.h.b16 %v13
  %v47 = vunpack.c.l.b16 %v14
  %v48 = vunpack.c.h.b16 %v14
  %v49 = vunpack.c.l.b16 %v15
  %v50 = vunpack.c.h.b16 %v15
  %v51 = vunpack.c.l.b16 %v16
  %v52 = vunpack.c.h.b16 %v16
  %v53 = vunpack.c.l.b16 %v17
  %v54 = vunpack.c.h.b16 %v17
  %v55 = vunpack.c.l.b16 %v18
  %v56 = vunpack.c.h.b16 %v18
  %v57 = vunpack.c.l.b16 %v19
  %v58 = vunpack.c.h.b16 %v19
  %v59 = vunpack.c.l.b16 %v20
  %v60 = vunpack.c.h.b16 %v20
  %v61 = vunpack.c.l.b16 %v21
  %v62 = vunpack.c.h.b16 %v21
  %v63 = vunpack.c.l.b16 %v22
  %v64 = vunpack.c.h.b16 %v22
  %v65 = vunpack.c.l.b16 %v23
  %v66 = vunpack.c.h.b16 %v23
  %v67 = vunpack.c.l.b16 %v24
  %v68 = vunpack.c.h.b16 %v24
  %v69 = vunpack.c.l.b16 %v25
  %v70 = vunpack.c.h.b16 %v25
  %v71 = vunpack.c.l.b16 %v26
  %v72 = vunpack.c.h.b16 %v26
  %v73 = vunpack.c.l.b16 %v27
  %v74 = vunpack.c.h.b16 %v27
  %v75 = vunpack.c.l.b16 %v28
  %v76 = vunpack.c.h.b16 %v28
  %v77 = vpack.c.b16 %v53, %v45
  %v78 = vpack.c.b16 %v54, %v46
  %v79 = vpack.c.b16 %v55, %v47
  %v80 = vpack.c.b16 %v56, %v48
  %v81 = vpack.c.b16 %v57, %v49
  %v82 = vpack.c.b16 %v58, %v50
  %v83 = vpack.c.b16 %v59, %v51
  %v84 = vpack.c.b16 %v60, %v52
  %v85 = vpack.c.b16 %v69, %v61
  %v86 = vpack.c.b16 %v70, %v62
  %v87 = vpack.c.b16 %v71, %v63
  %v88 = vpack.c.b16 %v72, %v64
  %v89 = vpack.c.b16 %v73, %v65
  %v90 = vpack.c.b16 %v74, %v66
  %v91 = vpack.c.b16 %v75, %v67
  %v92 = vpack.c.b16 %v76, %v68
  %vm109 = vcmask 261120
  %v111 = vsel %vm109, %v12, 0
  %113 = vmatpush.bf16.msra.mxu0 0
  %114 = vmatpush.bf16.msra.mxu0 0
  %115 = vmatpush.bf16.msra.mxu0 0
  %116 = vmatpush.bf16.msra.mxu0 0
  %117 = vmatpush.bf16.msra.mxu0 0
  %118 = vmatpush.bf16.msra.mxu0 0
  %119 = vmatpush.bf16.msra.mxu0 %v85
  %120 = vmatpush.bf16.msra.mxu0 %v77
  %121 = vmatmul.bf16.gmra.mxu0 %v111
  %v122 = vpop.f32.mrf.mxu0
  %v123 = vadd.f32 0.0, %v122
  %v124 = vpop.f32.mrf.mxu0
  %125 = vdwg.mxu0
  %126 = vmatpush.bf16.msra.mxu0 0
  %127 = vmatpush.bf16.msra.mxu0 0
  %128 = vmatpush.bf16.msra.mxu0 0
  %129 = vmatpush.bf16.msra.mxu0 0
  %130 = vmatpush.bf16.msra.mxu0 0
  %131 = vmatpush.bf16.msra.mxu0 0
  %132 = vmatpush.bf16.msra.mxu0 %v86
  %133 = vmatpush.bf16.msra.mxu0 %v78
  %134 = vmatmul.bf16.gmra.mxu0 %v111
  %v135 = vpop.f32.mrf.mxu0
  %v136 = vadd.f32 0.0, %v135
  %v137 = vpop.f32.mrf.mxu0
  %138 = vdwg.mxu0
  %139 = vmatpush.bf16.msra.mxu0 0
  %140 = vmatpush.bf16.msra.mxu0 0
  %141 = vmatpush.bf16.msra.mxu0 0
  %142 = vmatpush.bf16.msra.mxu0 0
  %143 = vmatpush.bf16.msra.mxu0 0
  %144 = vmatpush.bf16.msra.mxu0 0
  %145 = vmatpush.bf16.msra.mxu0 %v87
  %146 = vmatpush.bf16.msra.mxu0 %v79
  %147 = vmatmul.bf16.gmra.mxu0 %v111
  %v148 = vpop.f32.mrf.mxu0
  %v149 = vadd.f32 0.0, %v148
  %v150 = vpop.f32.mrf.mxu0
  %151 = vdwg.mxu0
  %152 = vmatpush.bf16.msra.mxu0 0
  %153 = vmatpush.bf16.msra.mxu0 0
  %154 = vmatpush.bf16.msra.mxu0 0
  %155 = vmatpush.bf16.msra.mxu0 0
  %156 = vmatpush.bf16.msra.mxu0 0
  %157 = vmatpush.bf16.msra.mxu0 0
  %158 = vmatpush.bf16.msra.mxu0 %v88
  %159 = vmatpush.bf16.msra.mxu0 %v80
  %160 = vmatmul.bf16.gmra.mxu0 %v111
  %v161 = vpop.f32.mrf.mxu0
  %v162 = vadd.f32 0.0, %v161
  %v163 = vpop.f32.mrf.mxu0
  %164 = vdwg.mxu0
  %165 = vmatpush.bf16.msra.mxu0 0
  %166 = vmatpush.bf16.msra.mxu0 0
  %167 = vmatpush.bf16.msra.mxu0 0
  %168 = vmatpush.bf16.msra.mxu0 0
  %169 = vmatpush.bf16.msra.mxu0 0
  %170 = vmatpush.bf16.msra.mxu0 0
  %171 = vmatpush.bf16.msra.mxu0 %v89
  %172 = vmatpush.bf16.msra.mxu0 %v81
  %173 = vmatmul.bf16.gmra.mxu0 %v111
  %v174 = vpop.f32.mrf.mxu0
  %v175 = vadd.f32 0.0, %v174
  %v176 = vpop.f32.mrf.mxu0
  %177 = vdwg.mxu0
  %178 = vmatpush.bf16.msra.mxu0 0
  %179 = vmatpush.bf16.msra.mxu0 0
  %180 = vmatpush.bf16.msra.mxu0 0
  %181 = vmatpush.bf16.msra.mxu0 0
  %182 = vmatpush.bf16.msra.mxu0 0
  %183 = vmatpush.bf16.msra.mxu0 0
  %184 = vmatpush.bf16.msra.mxu0 %v90
  %185 = vmatpush.bf16.msra.mxu0 %v82
  %186 = vmatmul.bf16.gmra.mxu0 %v111
  %v187 = vpop.f32.mrf.mxu0
  %v188 = vadd.f32 0.0, %v187
  %v189 = vpop.f32.mrf.mxu0
  %190 = vdwg.mxu0
  %191 = vmatpush.bf16.msra.mxu0 0
  %192 = vmatpush.bf16.msra.mxu0 0
  %193 = vmatpush.bf16.msra.mxu0 0
  %194 = vmatpush.bf16.msra.mxu0 0
  %195 = vmatpush.bf16.msra.mxu0 0
  %196 = vmatpush.bf16.msra.mxu0 0
  %197 = vmatpush.bf16.msra.mxu0 %v91
  %198 = vmatpush.bf16.msra.mxu0 %v83
  %199 = vmatmul.bf16.gmra.mxu0 %v111
  %v200 = vpop.f32.mrf.mxu0
  %v201 = vadd.f32 0.0, %v200
  %v202 = vpop.f32.mrf.mxu0
  %203 = vdwg.mxu0
  %204 = vmatpush.bf16.msra.mxu0 0
  %205 = vmatpush.bf16.msra.mxu0 0
  %206 = vmatpush.bf16.msra.mxu0 0
  %207 = vmatpush.bf16.msra.mxu0 0
  %208 = vmatpush.bf16.msra.mxu0 0
  %209 = vmatpush.bf16.msra.mxu0 0
  %210 = vmatpush.bf16.msra.mxu0 %v92
  %211 = vmatpush.bf16.msra.mxu0 %v84
  %212 = vmatmul.bf16.gmra.mxu0 %v111
  %v213 = vpop.f32.mrf.mxu0
  %v214 = vadd.f32 0.0, %v213
  %v215 = vpop.f32.mrf.mxu0
  %216 = vdwg.mxu0
  %v225 = vrot.slane %v136, 6
  %v226 = vrot.slane %v149, 4
  %v227 = vrot.slane %v162, 2
  %v228 = vrot.slane %v188, 6
  %v229 = vrot.slane %v201, 4
  %v230 = vrot.slane %v214, 2
  %vm231 = vcmask 1041408
  %v232 = vsel %vm231, %v123, %v225
  %vm233 = vcmask 1045508
  %v234 = vsel %vm233, %v226, %v227
  %vm235 = vcmask 1043456
  %v236 = vsel %vm235, %v232, %v234
  %v237 = vsel %vm231, %v175, %v228
  %v238 = vsel %vm233, %v229, %v230
  %v239 = vsel %vm235, %v237, %v238
  %242 = vst [vmem:[%s2] sm:$0xff] %v236
  %243 = vst [vmem:[%s2 + $0x8] sm:$0xff] %v239
  // Predicated region
  $region10: #{wgan_generator_forward.10} parent=0 // pred_check
    _
  $region11: #{wgan_generator_forward.10} parent=0 // pred_check_branch
    %245 = sbr.rel (0) target = $region13
  $region12: #{wgan_generator_forward.10} parent=0 // pred_region
    _
  $region13: #{wgan_generator_forward.10} parent=0 // pred_fallthru
    _
  // Predicated region
  $region14: #{wgan_generator_forward.10} parent=0 // pred_check
    _
  $region15: #{wgan_generator_forward.10} parent=0 // pred_check_branch
    %247 = sbr.rel (0) target = $region17
  $region16: #{wgan_generator_forward.10} parent=0 // pred_region
    _
  $region17: #{wgan_generator_forward.10} parent=0 // pred_fallthru
    _

// kernel: wgan_generator_forward.12
$region0: #{wgan_generator_forward.12}
  #allocation0 [shape = 'u32[]', space=smem, size = 0x4, offset = 0x4, fixed_abs, tag = 'smem constant byte address 0x4 - core index']
  #allocation1 [shape = 'u32[72,128]{1,0:T(1,128)}', space=vmem, size = 0x9000, scoped, tag = 'internal scratch']
  %s0 = inlined_call_operand.vmem [shape: bf16[32,64], index: 0, kind: input, shape index: {}]
  %s1 = inlined_call_operand.vmem [shape: bf16[64,512], index: 1, kind: input, shape index: {}]
  %s2 = inlined_call_operand.vmem [shape: f32[32,512], index: 2, kind: output, shape index: {}]
  %s3 = sld [smem:[#allocation0]]
  $region18: #{wgan_generator_forward.12} parent=0
    _
  %s5 = ssub.s32 1, %s3
  %s6 = scalar_select 0, %s5, %s3
  // Predicated region
  $region2: #{wgan_generator_forward.12} parent=0 // pred_check
    _
  $region3: #{wgan_generator_forward.12} parent=0 // pred_check_branch
    %8 = sbr.rel (0) target = $region5
  $region4: #{wgan_generator_forward.12} parent=0 // pred_region
    _
  $region5: #{wgan_generator_forward.12} parent=0 // pred_fallthru
    _
  // Predicated region
  $region6: #{wgan_generator_forward.12} parent=0 // pred_check
    _
  $region7: #{wgan_generator_forward.12} parent=0 // pred_check_branch
    %10 = sbr.rel (0) target = $region9
  $region8: #{wgan_generator_forward.12} parent=0 // pred_region
    _
  $region9: #{wgan_generator_forward.12} parent=0 // pred_fallthru
    _
  %v12 = vld [vmem:[%s0] sm:$0xf]
  %v13 = vld [vmem:[%s0 + $0x4] sm:$0xf]
  %v14 = vld [vmem:[%s0 + $0x8] sm:$0xf]
  %v15 = vld [vmem:[%s0 + $0xc] sm:$0xf]
  %v16 = vld [vmem:[%s1] sm:$0xff]
  %v17 = vld [vmem:[%s1 + $0x8] sm:$0xff]
  %v18 = vld [vmem:[%s1 + $0x10] sm:$0xff]
  %v19 = vld [vmem:[%s1 + $0x18] sm:$0xff]
  %v20 = vld [vmem:[%s1 + $0x20] sm:$0xff]
  %v21 = vld [vmem:[%s1 + $0x28] sm:$0xff]
  %v22 = vld [vmem:[%s1 + $0x30] sm:$0xff]
  %v23 = vld [vmem:[%s1 + $0x38] sm:$0xff]
  %v24 = vld [vmem:[%s1 + $0x40] sm:$0xff]
  %v25 = vld [vmem:[%s1 + $0x48] sm:$0xff]
  %v26 = vld [vmem:[%s1 + $0x50] sm:$0xff]
  %v27 = vld [vmem:[%s1 + $0x58] sm:$0xff]
  %v28 = vld [vmem:[%s1 + $0x60] sm:$0xff]
  %v29 = vld [vmem:[%s1 + $0x68] sm:$0xff]
  %v30 = vld [vmem:[%s1 + $0x70] sm:$0xff]
  %v31 = vld [vmem:[%s1 + $0x78] sm:$0xff]
  %v36 = vunpack.c.l.b16 %v12
  %v37 = vunpack.c.l.b16 %v13
  %v38 = vunpack.c.l.b16 %v14
  %v39 = vunpack.c.l.b16 %v15
  %v40 = vpack.c.b16 %v37, %v36
  %v41 = vpack.c.b16 %v39, %v38
  %v58 = vunpack.c.l.b16 %v16
  %v59 = vunpack.c.h.b16 %v16
  %v60 = vunpack.c.l.b16 %v17
  %v61 = vunpack.c.h.b16 %v17
  %v62 = vunpack.c.l.b16 %v18
  %v63 = vunpack.c.h.b16 %v18
  %v64 = vunpack.c.l.b16 %v19
  %v65 = vunpack.c.h.b16 %v19
  %v66 = vunpack.c.l.b16 %v20
  %v67 = vunpack.c.h.b16 %v20
  %v68 = vunpack.c.l.b16 %v21
  %v69 = vunpack.c.h.b16 %v21
  %v70 = vunpack.c.l.b16 %v22
  %v71 = vunpack.c.h.b16 %v22
  %v72 = vunpack.c.l.b16 %v23
  %v73 = vunpack.c.h.b16 %v23
  %v74 = vunpack.c.l.b16 %v24
  %v75 = vunpack.c.h.b16 %v24
  %v76 = vunpack.c.l.b16 %v25
  %v77 = vunpack.c.h.b16 %v25
  %v78 = vunpack.c.l.b16 %v26
  %v79 = vunpack.c.h.b16 %v26
  %v80 = vunpack.c.l.b16 %v27
  %v81 = vunpack.c.h.b16 %v27
  %v82 = vunpack.c.l.b16 %v28
  %v83 = vunpack.c.h.b16 %v28
  %v84 = vunpack.c.l.b16 %v29
  %v85 = vunpack.c.h.b16 %v29
  %v86 = vunpack.c.l.b16 %v30
  %v87 = vunpack.c.h.b16 %v30
  %v88 = vunpack.c.l.b16 %v31
  %v89 = vunpack.c.h.b16 %v31
  %v90 = vpack.c.b16 %v62, %v58
  %v91 = vpack.c.b16 %v63, %v59
  %v92 = vpack.c.b16 %v64, %v60
  %v93 = vpack.c.b16 %v65, %v61
  %v94 = vpack.c.b16 %v70, %v66
  %v95 = vpack.c.b16 %v71, %v67
  %v96 = vpack.c.b16 %v72, %v68
  %v97 = vpack.c.b16 %v73, %v69
  %v98 = vpack.c.b16 %v78, %v74
  %v99 = vpack.c.b16 %v79, %v75
  %v100 = vpack.c.b16 %v80, %v76
  %v101 = vpack.c.b16 %v81, %v77
  %v102 = vpack.c.b16 %v86, %v82
  %v103 = vpack.c.b16 %v87, %v83
  %v104 = vpack.c.b16 %v88, %v84
  %v105 = vpack.c.b16 %v89, %v85
  %vm122 = vcmask 523264
  %v124 = vsel %vm122, %v40, 0
  %v127 = vsel %vm122, %v41, 0
  %129 = vmatpush.bf16.msra.mxu0 0
  %130 = vmatpush.bf16.msra.mxu0 0
  %131 = vmatpush.bf16.msra.mxu0 0
  %132 = vmatpush.bf16.msra.mxu0 0
  %133 = vmatpush.bf16.msra.mxu0 %v102
  %134 = vmatpush.bf16.msra.mxu0 %v98
  %135 = vmatpush.bf16.msra.mxu0 %v94
  %136 = vmatpush.bf16.msra.mxu0 %v90
  %137 = vmatmul.bf16.gmra.mxu0 %v124
  %v138 = vpop.f32.mrf.mxu0
  %v139 = vadd.f32 0.0, %v138
  %v140 = vpop.f32.mrf.mxu0
  %v141 = vadd.f32 0.0, %v140
  %142 = vmatmul.bf16.gmra.mxu0 %v127
  %v143 = vpop.f32.mrf.mxu0
  %v144 = vadd.f32 0.0, %v143
  %v145 = vpop.f32.mrf.mxu0
  %v146 = vadd.f32 0.0, %v145
  %147 = vdwg.mxu0
  %148 = vmatpush.bf16.msra.mxu0 0
  %149 = vmatpush.bf16.msra.mxu0 0
  %150 = vmatpush.bf16.msra.mxu0 0
  %151 = vmatpush.bf16.msra.mxu0 0
  %152 = vmatpush.bf16.msra.mxu0 %v103
  %153 = vmatpush.bf16.msra.mxu0 %v99
  %154 = vmatpush.bf16.msra.mxu0 %v95
  %155 = vmatpush.bf16.msra.mxu0 %v91
  %156 = vmatmul.bf16.gmra.mxu0 %v124
  %v157 = vpop.f32.mrf.mxu0
  %v158 = vadd.f32 0.0, %v157
  %v159 = vpop.f32.mrf.mxu0
  %v160 = vadd.f32 0.0, %v159
  %161 = vmatmul.bf16.gmra.mxu0 %v127
  %v162 = vpop.f32.mrf.mxu0
  %v163 = vadd.f32 0.0, %v162
  %v164 = vpop.f32.mrf.mxu0
  %v165 = vadd.f32 0.0, %v164
  %166 = vdwg.mxu0
  %167 = vmatpush.bf16.msra.mxu0 0
  %168 = vmatpush.bf16.msra.mxu0 0
  %169 = vmatpush.bf16.msra.mxu0 0
  %170 = vmatpush.bf16.msra.mxu0 0
  %171 = vmatpush.bf16.msra.mxu0 %v104
  %172 = vmatpush.bf16.msra.mxu0 %v100
  %173 = vmatpush.bf16.msra.mxu0 %v96
  %174 = vmatpush.bf16.msra.mxu0 %v92
  %175 = vmatmul.bf16.gmra.mxu0 %v124
  %v176 = vpop.f32.mrf.mxu0
  %v177 = vadd.f32 0.0, %v176
  %v178 = vpop.f32.mrf.mxu0
  %v179 = vadd.f32 0.0, %v178
  %180 = vmatmul.bf16.gmra.mxu0 %v127
  %v181 = vpop.f32.mrf.mxu0
  %v182 = vadd.f32 0.0, %v181
  %v183 = vpop.f32.mrf.mxu0
  %v184 = vadd.f32 0.0, %v183
  %185 = vdwg.mxu0
  %186 = vmatpush.bf16.msra.mxu0 0
  %187 = vmatpush.bf16.msra.mxu0 0
  %188 = vmatpush.bf16.msra.mxu0 0
  %189 = vmatpush.bf16.msra.mxu0 0
  %190 = vmatpush.bf16.msra.mxu0 %v105
  %191 = vmatpush.bf16.msra.mxu0 %v101
  %192 = vmatpush.bf16.msra.mxu0 %v97
  %193 = vmatpush.bf16.msra.mxu0 %v93
  %194 = vmatmul.bf16.gmra.mxu0 %v124
  %v195 = vpop.f32.mrf.mxu0
  %v196 = vadd.f32 0.0, %v195
  %v197 = vpop.f32.mrf.mxu0
  %v198 = vadd.f32 0.0, %v197
  %199 = vmatmul.bf16.gmra.mxu0 %v127
  %v200 = vpop.f32.mrf.mxu0
  %v201 = vadd.f32 0.0, %v200
  %v202 = vpop.f32.mrf.mxu0
  %v203 = vadd.f32 0.0, %v202
  %204 = vdwg.mxu0
  %205 = vst [vmem:[%s2] sm:$0xff] %v139
  %206 = vst [vmem:[%s2 + $0x8] sm:$0xff] %v158
  %207 = vst [vmem:[%s2 + $0x10] sm:$0xff] %v177
  %208 = vst [vmem:[%s2 + $0x18] sm:$0xff] %v196
  %209 = vst [vmem:[%s2 + $0x20] sm:$0xff] %v141
  %210 = vst [vmem:[%s2 + $0x28] sm:$0xff] %v160
  %211 = vst [vmem:[%s2 + $0x30] sm:$0xff] %v179
  %212 = vst [vmem:[%s2 + $0x38] sm:$0xff] %v198
  %213 = vst [vmem:[%s2 + $0x40] sm:$0xff] %v144
  %214 = vst [vmem:[%s2 + $0x48] sm:$0xff] %v163
  %215 = vst [vmem:[%s2 + $0x50] sm:$0xff] %v182
  %216 = vst [vmem:[%s2 + $0x58] sm:$0xff] %v201
  %217 = vst [vmem:[%s2 + $0x60] sm:$0xff] %v146
  %218 = vst [vmem:[%s2 + $0x68] sm:$0xff] %v165
  %219 = vst [vmem:[%s2 + $0x70] sm:$0xff] %v184
  %220 = vst [vmem:[%s2 + $0x78] sm:$0xff] %v203
  // Predicated region
  $region10: #{wgan_generator_forward.12} parent=0 // pred_check
    _
  $region11: #{wgan_generator_forward.12} parent=0 // pred_check_branch
    %222 = sbr.rel (0) target = $region13
  $region12: #{wgan_generator_forward.12} parent=0 // pred_region
    _
  $region13: #{wgan_generator_forward.12} parent=0 // pred_fallthru
    _
  // Predicated region
  $region14: #{wgan_generator_forward.12} parent=0 // pred_check
    _
  $region15: #{wgan_generator_forward.12} parent=0 // pred_check_branch
    %224 = sbr.rel (0) target = $region17
  $region16: #{wgan_generator_forward.12} parent=0 // pred_region
    _
  $region17: #{wgan_generator_forward.12} parent=0 // pred_fallthru
    _

// kernel: wgan_generator_forward.14
$region0: #{wgan_generator_forward.14}
  #allocation0 [shape = 'u32[]', space=smem, size = 0x4, offset = 0x4, fixed_abs, tag = 'smem constant byte address 0x4 - core index']
  #allocation1 [shape = 'u32[72,128]{1,0:T(1,128)}', space=vmem, size = 0x9000, scoped, tag = 'internal scratch']
  %s0 = inlined_call_operand.vmem [shape: bf16[128,32], index: 0, kind: input, shape index: {}]
  %s1 = inlined_call_operand.vmem [shape: bf16[32,256], index: 1, kind: input, shape index: {}]
  %s2 = inlined_call_operand.vmem [shape: f32[128,256], index: 2, kind: output, shape index: {}]
  %s3 = sld [smem:[#allocation0]]
  $region18: #{wgan_generator_forward.14} parent=0
    _
  %s5 = ssub.s32 1, %s3
  %s6 = scalar_select 0, %s5, %s3
  // Predicated region
  $region2: #{wgan_generator_forward.14} parent=0 // pred_check
    _
  $region3: #{wgan_generator_forward.14} parent=0 // pred_check_branch
    %8 = sbr.rel (0) target = $region5
  $region4: #{wgan_generator_forward.14} parent=0 // pred_region
    _
  $region5: #{wgan_generator_forward.14} parent=0 // pred_fallthru
    _
  // Predicated region
  $region6: #{wgan_generator_forward.14} parent=0 // pred_check
    _
  $region7: #{wgan_generator_forward.14} parent=0 // pred_check_branch
    %10 = sbr.rel (0) target = $region9
  $region8: #{wgan_generator_forward.14} parent=0 // pred_region
    _
  $region9: #{wgan_generator_forward.14} parent=0 // pred_fallthru
    _
  %v12 = vld [vmem:[%s0] sm:$0xf]
  %v13 = vld [vmem:[%s0 + $0x4] sm:$0xf]
  %v14 = vld [vmem:[%s0 + $0x8] sm:$0xf]
  %v15 = vld [vmem:[%s0 + $0xc] sm:$0xf]
  %v16 = vld [vmem:[%s0 + $0x10] sm:$0xf]
  %v17 = vld [vmem:[%s0 + $0x14] sm:$0xf]
  %v18 = vld [vmem:[%s0 + $0x18] sm:$0xf]
  %v19 = vld [vmem:[%s0 + $0x1c] sm:$0xf]
  %v20 = vld [vmem:[%s0 + $0x20] sm:$0xf]
  %v21 = vld [vmem:[%s0 + $0x24] sm:$0xf]
  %v22 = vld [vmem:[%s0 + $0x28] sm:$0xf]
  %v23 = vld [vmem:[%s0 + $0x2c] sm:$0xf]
  %v24 = vld [vmem:[%s0 + $0x30] sm:$0xf]
  %v25 = vld [vmem:[%s0 + $0x34] sm:$0xf]
  %v26 = vld [vmem:[%s0 + $0x38] sm:$0xf]
  %v27 = vld [vmem:[%s0 + $0x3c] sm:$0xf]
  %v28 = vld [vmem:[%s1] sm:$0xff]
  %v29 = vld [vmem:[%s1 + $0x8] sm:$0xff]
  %v30 = vld [vmem:[%s1 + $0x10] sm:$0xff]
  %v31 = vld [vmem:[%s1 + $0x18] sm:$0xff]
  %v48 = vunpack.c.l.b16 %v12
  %v49 = vunpack.c.l.b16 %v13
  %v50 = vunpack.c.l.b16 %v14
  %v51 = vunpack.c.l.b16 %v15
  %v52 = vunpack.c.l.b16 %v16
  %v53 = vunpack.c.l.b16 %v17
  %v54 = vunpack.c.l.b16 %v18
  %v55 = vunpack.c.l.b16 %v19
  %v56 = vunpack.c.l.b16 %v20
  %v57 = vunpack.c.l.b16 %v21
  %v58 = vunpack.c.l.b16 %v22
  %v59 = vunpack.c.l.b16 %v23
  %v60 = vunpack.c.l.b16 %v24
  %v61 = vunpack.c.l.b16 %v25
  %v62 = vunpack.c.l.b16 %v26
  %v63 = vunpack.c.l.b16 %v27
  %v64 = vpack.c.b16 %v49, %v48
  %v65 = vpack.c.b16 %v51, %v50
  %v66 = vpack.c.b16 %v53, %v52
  %v67 = vpack.c.b16 %v55, %v54
  %v68 = vpack.c.b16 %v57, %v56
  %v69 = vpack.c.b16 %v59, %v58
  %v70 = vpack.c.b16 %v61, %v60
  %v71 = vpack.c.b16 %v63, %v62
  %v76 = vunpack.c.l.b16 %v28
  %v77 = vunpack.c.h.b16 %v28
  %v78 = vunpack.c.l.b16 %v29
  %v79 = vunpack.c.h.b16 %v29
  %v80 = vunpack.c.l.b16 %v30
  %v81 = vunpack.c.h.b16 %v30
  %v82 = vunpack.c.l.b16 %v31
  %v83 = vunpack.c.h.b16 %v31
  %v84 = vpack.c.b16 %v78, %v76
  %v85 = vpack.c.b16 %v79, %v77
  %v86 = vpack.c.b16 %v82, %v80
  %v87 = vpack.c.b16 %v83, %v81
  %vm92 = vcmask 261120
  %v94 = vsel %vm92, %v64, 0
  %v97 = vsel %vm92, %v65, 0
  %v100 = vsel %vm92, %v66, 0
  %v103 = vsel %vm92, %v67, 0
  %v106 = vsel %vm92, %v68, 0
  %v109 = vsel %vm92, %v69, 0
  %v112 = vsel %vm92, %v70, 0
  %v115 = vsel %vm92, %v71, 0
  %117 = vmatpush.bf16.msra.mxu0 0
  %118 = vmatpush.bf16.msra.mxu0 0
  %119 = vmatpush.bf16.msra.mxu0 0
  %120 = vmatpush.bf16.msra.mxu0 0
  %121 = vmatpush.bf16.msra.mxu0 0
  %122 = vmatpush.bf16.msra.mxu0 0
  %123 = vmatpush.bf16.msra.mxu0 %v86
  %124 = vmatpush.bf16.msra.mxu0 %v84
  %125 = vmatmul.bf16.gmra.mxu0 %v94
  %v126 = vpop.f32.mrf.mxu0
  %v127 = vadd.f32 0.0, %v126
  %v128 = vpop.f32.mrf.mxu0
  %v129 = vadd.f32 0.0, %v128
  %130 = vmatmul.bf16.gmra.mxu0 %v97
  %v131 = vpop.f32.mrf.mxu0
  %v132 = vadd.f32 0.0, %v131
  %v133 = vpop.f32.mrf.mxu0
  %v134 = vadd.f32 0.0, %v133
  %135 = vmatmul.bf16.gmra.mxu0 %v100
  %v136 = vpop.f32.mrf.mxu0
  %v137 = vadd.f32 0.0, %v136
  %v138 = vpop.f32.mrf.mxu0
  %v139 = vadd.f32 0.0, %v138
  %140 = vmatmul.bf16.gmra.mxu0 %v103
  %v141 = vpop.f32.mrf.mxu0
  %v142 = vadd.f32 0.0, %v141
  %v143 = vpop.f32.mrf.mxu0
  %v144 = vadd.f32 0.0, %v143
  %145 = vmatmul.bf16.gmra.mxu0 %v106
  %v146 = vpop.f32.mrf.mxu0
  %v147 = vadd.f32 0.0, %v146
  %v148 = vpop.f32.mrf.mxu0
  %v149 = vadd.f32 0.0, %v148
  %150 = vmatmul.bf16.gmra.mxu0 %v109
  %v151 = vpop.f32.mrf.mxu0
  %v152 = vadd.f32 0.0, %v151
  %v153 = vpop.f32.mrf.mxu0
  %v154 = vadd.f32 0.0, %v153
  %155 = vmatmul.bf16.gmra.mxu0 %v112
  %v156 = vpop.f32.mrf.mxu0
  %v157 = vadd.f32 0.0, %v156
  %v158 = vpop.f32.mrf.mxu0
  %v159 = vadd.f32 0.0, %v158
  %160 = vmatmul.bf16.gmra.mxu0 %v115
  %v161 = vpop.f32.mrf.mxu0
  %v162 = vadd.f32 0.0, %v161
  %v163 = vpop.f32.mrf.mxu0
  %v164 = vadd.f32 0.0, %v163
  %165 = vdwg.mxu0
  %166 = vmatpush.bf16.msra.mxu0 0
  %167 = vmatpush.bf16.msra.mxu0 0
  %168 = vmatpush.bf16.msra.mxu0 0
  %169 = vmatpush.bf16.msra.mxu0 0
  %170 = vmatpush.bf16.msra.mxu0 0
  %171 = vmatpush.bf16.msra.mxu0 0
  %172 = vmatpush.bf16.msra.mxu0 %v87
  %173 = vmatpush.bf16.msra.mxu0 %v85
  %174 = vmatmul.bf16.gmra.mxu0 %v94
  %v175 = vpop.f32.mrf.mxu0
  %v176 = vadd.f32 0.0, %v175
  %v177 = vpop.f32.mrf.mxu0
  %v178 = vadd.f32 0.0, %v177
  %179 = vmatmul.bf16.gmra.mxu0 %v97
  %v180 = vpop.f32.mrf.mxu0
  %v181 = vadd.f32 0.0, %v180
  %v182 = vpop.f32.mrf.mxu0
  %v183 = vadd.f32 0.0, %v182
  %184 = vmatmul.bf16.gmra.mxu0 %v100
  %v185 = vpop.f32.mrf.mxu0
  %v186 = vadd.f32 0.0, %v185
  %v187 = vpop.f32.mrf.mxu0
  %v188 = vadd.f32 0.0, %v187
  %189 = vmatmul.bf16.gmra.mxu0 %v103
  %v190 = vpop.f32.mrf.mxu0
  %v191 = vadd.f32 0.0, %v190
  %v192 = vpop.f32.mrf.mxu0
  %v193 = vadd.f32 0.0, %v192
  %194 = vmatmul.bf16.gmra.mxu0 %v106
  %v195 = vpop.f32.mrf.mxu0
  %v196 = vadd.f32 0.0, %v195
  %v197 = vpop.f32.mrf.mxu0
  %v198 = vadd.f32 0.0, %v197
  %199 = vmatmul.bf16.gmra.mxu0 %v109
  %v200 = vpop.f32.mrf.mxu0
  %v201 = vadd.f32 0.0, %v200
  %v202 = vpop.f32.mrf.mxu0
  %v203 = vadd.f32 0.0, %v202
  %204 = vmatmul.bf16.gmra.mxu0 %v112
  %v205 = vpop.f32.mrf.mxu0
  %v206 = vadd.f32 0.0, %v205
  %v207 = vpop.f32.mrf.mxu0
  %v208 = vadd.f32 0.0, %v207
  %209 = vmatmul.bf16.gmra.mxu0 %v115
  %v210 = vpop.f32.mrf.mxu0
  %v211 = vadd.f32 0.0, %v210
  %v212 = vpop.f32.mrf.mxu0
  %v213 = vadd.f32 0.0, %v212
  %214 = vdwg.mxu0
  %215 = vst [vmem:[%s2] sm:$0xff] %v127
  %216 = vst [vmem:[%s2 + $0x8] sm:$0xff] %v176
  %217 = vst [vmem:[%s2 + $0x10] sm:$0xff] %v129
  %218 = vst [vmem:[%s2 + $0x18] sm:$0xff] %v178
  %219 = vst [vmem:[%s2 + $0x20] sm:$0xff] %v132
  %220 = vst [vmem:[%s2 + $0x28] sm:$0xff] %v181
  %221 = vst [vmem:[%s2 + $0x30] sm:$0xff] %v134
  %222 = vst [vmem:[%s2 + $0x38] sm:$0xff] %v183
  %223 = vst [vmem:[%s2 + $0x40] sm:$0xff] %v137
  %224 = vst [vmem:[%s2 + $0x48] sm:$0xff] %v186
  %225 = vst [vmem:[%s2 + $0x50] sm:$0xff] %v139
  %226 = vst [vmem:[%s2 + $0x58] sm:$0xff] %v188
  %227 = vst [vmem:[%s2 + $0x60] sm:$0xff] %v142
  %228 = vst [vmem:[%s2 + $0x68] sm:$0xff] %v191
  %229 = vst [vmem:[%s2 + $0x70] sm:$0xff] %v144
  %230 = vst [vmem:[%s2 + $0x78] sm:$0xff] %v193
  %231 = vst [vmem:[%s2 + $0x80] sm:$0xff] %v147
  %232 = vst [vmem:[%s2 + $0x88] sm:$0xff] %v196
  %233 = vst [vmem:[%s2 + $0x90] sm:$0xff] %v149
  %234 = vst [vmem:[%s2 + $0x98] sm:$0xff] %v198
  %235 = vst [vmem:[%s2 + $0xa0] sm:$0xff] %v152
  %236 = vst [vmem:[%s2 + $0xa8] sm:$0xff] %v201
  %237 = vst [vmem:[%s2 + $0xb0] sm:$0xff] %v154
  %238 = vst [vmem:[%s2 + $0xb8] sm:$0xff] %v203
  %239 = vst [vmem:[%s2 + $0xc0] sm:$0xff] %v157
  %240 = vst [vmem:[%s2 + $0xc8] sm:$0xff] %v206
  %241 = vst [vmem:[%s2 + $0xd0] sm:$0xff] %v159
  %242 = vst [vmem:[%s2 + $0xd8] sm:$0xff] %v208
  %243 = vst [vmem:[%s2 + $0xe0] sm:$0xff] %v162
  %244 = vst [vmem:[%s2 + $0xe8] sm:$0xff] %v211
  %245 = vst [vmem:[%s2 + $0xf0] sm:$0xff] %v164
  %246 = vst [vmem:[%s2 + $0xf8] sm:$0xff] %v213
  // Predicated region
  $region10: #{wgan_generator_forward.14} parent=0 // pred_check
    _
  $region11: #{wgan_generator_forward.14} parent=0 // pred_check_branch
    %248 = sbr.rel (0) target = $region13
  $region12: #{wgan_generator_forward.14} parent=0 // pred_region
    _
  $region13: #{wgan_generator_forward.14} parent=0 // pred_fallthru
    _
  // Predicated region
  $region14: #{wgan_generator_forward.14} parent=0 // pred_check
    _
  $region15: #{wgan_generator_forward.14} parent=0 // pred_check_branch
    %250 = sbr.rel (0) target = $region17
  $region16: #{wgan_generator_forward.14} parent=0 // pred_region
    _
  $region17: #{wgan_generator_forward.14} parent=0 // pred_fallthru
    _

// kernel: wgan_generator_forward.13
$region0: #{wgan_generator_forward.13}
  #allocation0 [shape = 'u32[]', space=smem, size = 0x4, offset = 0x4, fixed_abs, tag = 'smem constant byte address 0x4 - core index']
  #allocation1 [shape = 'u32[72,128]{1,0:T(1,128)}', space=vmem, size = 0x9000, scoped, tag = 'internal scratch']
  %s0 = inlined_call_operand.vmem [shape: f32[128,32], index: 0, kind: input, shape index: {}]
  %s1 = inlined_call_operand.vmem [shape: f32[1,32], index: 1, kind: input, shape index: {}]
  %s2 = inlined_call_operand.vmem [shape: f32[1,32], index: 2, kind: input, shape index: {}]
  %s3 = inlined_call_operand.vmem [shape: f32[128,32], index: 3, kind: output, shape index: {}]
  %s4 = sld [smem:[#allocation0]]
  $region22: #{wgan_generator_forward.13} parent=0
    _
  %s6 = ssub.s32 1, %s4
  %s7 = scalar_select 0, %s6, %s4
  // Predicated region
  $region2: #{wgan_generator_forward.13} parent=0 // pred_check
    _
  $region3: #{wgan_generator_forward.13} parent=0 // pred_check_branch
    %9 = sbr.rel (0) target = $region5
  $region4: #{wgan_generator_forward.13} parent=0 // pred_region
    _
  $region5: #{wgan_generator_forward.13} parent=0 // pred_fallthru
    _
  // Predicated region
  $region6: #{wgan_generator_forward.13} parent=0 // pred_check
    _
  $region7: #{wgan_generator_forward.13} parent=0 // pred_check_branch
    %11 = sbr.rel (0) target = $region9
  $region8: #{wgan_generator_forward.13} parent=0 // pred_region
    _
  $region9: #{wgan_generator_forward.13} parent=0 // pred_fallthru
    _
  // Predicated region
  $region10: #{wgan_generator_forward.13} parent=0 // pred_check
    _
  $region11: #{wgan_generator_forward.13} parent=0 // pred_check_branch
    %13 = sbr.rel (0) target = $region13
  $region12: #{wgan_generator_forward.13} parent=0 // pred_region
    _
  $region13: #{wgan_generator_forward.13} parent=0 // pred_fallthru
    _
  %v14 = vld [vmem:[%s0] sm:$0xff]
  %v15 = vld [vmem:[%s0 + $0x8] sm:$0xff]
  %v16 = vld [vmem:[%s0 + $0x10] sm:$0xff]
  %v17 = vld [vmem:[%s0 + $0x18] sm:$0xff]
  %v18 = vld [vmem:[%s0 + $0x20] sm:$0xff]
  %v19 = vld [vmem:[%s0 + $0x28] sm:$0xff]
  %v20 = vld [vmem:[%s0 + $0x30] sm:$0xff]
  %v21 = vld [vmem:[%s0 + $0x38] sm:$0xff]
  %v22 = vld [vmem:[%s0 + $0x40] sm:$0xff]
  %v23 = vld [vmem:[%s0 + $0x48] sm:$0xff]
  %v24 = vld [vmem:[%s0 + $0x50] sm:$0xff]
  %v25 = vld [vmem:[%s0 + $0x58] sm:$0xff]
  %v26 = vld [vmem:[%s0 + $0x60] sm:$0xff]
  %v27 = vld [vmem:[%s0 + $0x68] sm:$0xff]
  %v28 = vld [vmem:[%s0 + $0x70] sm:$0xff]
  %v29 = vld [vmem:[%s0 + $0x78] sm:$0xff]
  %vm30 = vcmask 261120
  %v31 = vsel %vm30, %v14, 0.0
  %v32 = vsel %vm30, %v15, 0.0
  %v33 = vadd.f32 %v31, %v32
  %v34 = vsel %vm30, %v16, 0.0
  %v35 = vadd.f32 %v33, %v34
  %v36 = vsel %vm30, %v17, 0.0
  %v37 = vadd.f32 %v35, %v36
  %v38 = vsel %vm30, %v18, 0.0
  %v39 = vadd.f32 %v37, %v38
  %v40 = vsel %vm30, %v19, 0.0
  %v41 = vadd.f32 %v39, %v40
  %v42 = vsel %vm30, %v20, 0.0
  %v43 = vadd.f32 %v41, %v42
  %v44 = vsel %vm30, %v21, 0.0
  %v45 = vadd.f32 %v43, %v44
  %v46 = vsel %vm30, %v22, 0.0
  %v47 = vadd.f32 %v45, %v46
  %v48 = vsel %vm30, %v23, 0.0
  %v49 = vadd.f32 %v47, %v48
  %v50 = vsel %vm30, %v24, 0.0
  %v51 = vadd.f32 %v49, %v50
  %v52 = vsel %vm30, %v25, 0.0
  %v53 = vadd.f32 %v51, %v52
  %v54 = vsel %vm30, %v26, 0.0
  %v55 = vadd.f32 %v53, %v54
  %v56 = vsel %vm30, %v27, 0.0
  %v57 = vadd.f32 %v55, %v56
  %v58 = vsel %vm30, %v28, 0.0
  %v59 = vadd.f32 %v57, %v58
  %v60 = vsel %vm30, %v29, 0.0
  %v61 = vadd.f32 %v59, %v60
  %v62 = vrot.slane %v61, 4
  %v63 = vadd.f32 %v61, %v62
  %v64 = vrot.slane %v63, 2
  %v65 = vadd.f32 %v63, %v64
  %v66 = vrot.slane %v65, 1
  %v67 = vadd.f32 %v65, %v66
  %v68 = vrcp.pop 128.0
  %v69 = vmul.f32 128.0, %v68
  %v70 = vsub.f32 1.0, %v69
  %v71 = vmul.f32 %v68, %v70
  %v72 = vadd.f32 %v68, %v71
  %vm73 = vweird.f32 %v68
  %v74 = vsel %vm73, %v68, %v72
  %v75 = vmul.f32 %v67, %v74
  %v76 = vsub.f32 %v14, %v75
  %v77 = vsub.f32 %v15, %v75
  %v78 = vsub.f32 %v16, %v75
  %v79 = vsub.f32 %v17, %v75
  %v80 = vsub.f32 %v18, %v75
  %v81 = vsub.f32 %v19, %v75
  %v82 = vsub.f32 %v20, %v75
  %v83 = vsub.f32 %v21, %v75
  %v84 = vsub.f32 %v22, %v75
  %v85 = vsub.f32 %v23, %v75
  %v86 = vsub.f32 %v24, %v75
  %v87 = vsub.f32 %v25, %v75
  %v88 = vsub.f32 %v26, %v75
  %v89 = vsub.f32 %v27, %v75
  %v90 = vsub.f32 %v28, %v75
  %v91 = vsub.f32 %v29, %v75
  %v92 = vmul.f32 %v76, %v76
  %v93 = vmul.f32 %v77, %v77
  %v94 = vmul.f32 %v78, %v78
  %v95 = vmul.f32 %v79, %v79
  %v96 = vmul.f32 %v80, %v80
  %v97 = vmul.f32 %v81, %v81
  %v98 = vmul.f32 %v82, %v82
  %v99 = vmul.f32 %v83, %v83
  %v100 = vmul.f32 %v84, %v84
  %v101 = vmul.f32 %v85, %v85
  %v102 = vmul.f32 %v86, %v86
  %v103 = vmul.f32 %v87, %v87
  %v104 = vmul.f32 %v88, %v88
  %v105 = vmul.f32 %v89, %v89
  %v106 = vmul.f32 %v90, %v90
  %v107 = vmul.f32 %v91, %v91
  %v108 = vsel %vm30, %v92, 0.0
  %v109 = vsel %vm30, %v93, 0.0
  %v110 = vadd.f32 %v108, %v109
  %v111 = vsel %vm30, %v94, 0.0
  %v112 = vadd.f32 %v110, %v111
  %v113 = vsel %vm30, %v95, 0.0
  %v114 = vadd.f32 %v112, %v113
  %v115 = vsel %vm30, %v96, 0.0
  %v116 = vadd.f32 %v114, %v115
  %v117 = vsel %vm30, %v97, 0.0
  %v118 = vadd.f32 %v116, %v117
  %v119 = vsel %vm30, %v98, 0.0
  %v120 = vadd.f32 %v118, %v119
  %v121 = vsel %vm30, %v99, 0.0
  %v122 = vadd.f32 %v120, %v121
  %v123 = vsel %vm30, %v100, 0.0
  %v124 = vadd.f32 %v122, %v123
  %v125 = vsel %vm30, %v101, 0.0
  %v126 = vadd.f32 %v124, %v125
  %v127 = vsel %vm30, %v102, 0.0
  %v128 = vadd.f32 %v126, %v127
  %v129 = vsel %vm30, %v103, 0.0
  %v130 = vadd.f32 %v128, %v129
  %v131 = vsel %vm30, %v104, 0.0
  %v132 = vadd.f32 %v130, %v131
  %v133 = vsel %vm30, %v105, 0.0
  %v134 = vadd.f32 %v132, %v133
  %v135 = vsel %vm30, %v106, 0.0
  %v136 = vadd.f32 %v134, %v135
  %v137 = vsel %vm30, %v107, 0.0
  %v138 = vadd.f32 %v136, %v137
  %v139 = vrot.slane %v138, 4
  %v140 = vadd.f32 %v138, %v139
  %v141 = vrot.slane %v140, 2
  %v142 = vadd.f32 %v140, %v141
  %v143 = vrot.slane %v142, 1
  %v144 = vadd.f32 %v142, %v143
  %v145 = vmul.f32 %v144, %v74
  %v146 = vadd.f32 %v145, 1e-05
  %v147 = vrsqrt.pop %v146
  %v148 = vmul.f32 %v147, %v146
  %v149 = vmul.f32 %v148, %v147
  %v150 = vmul.f32 0.5, %v149
  %v151 = vsub.f32 1.5, %v150
  %v152 = vmul.f32 %v147, %v151
  %vm153 = vweird.f32 %v146
  %vm154 = vweird.f32 %v147
  %vm155 = vmor %vm153, %vm154
  %v156 = vsel %vm155, %v147, %v152
  %v157 = vmul.f32 %v76, %v156
  %v158 = vmul.f32 %v77, %v156
  %v159 = vmul.f32 %v78, %v156
  %v160 = vmul.f32 %v79, %v156
  %v161 = vmul.f32 %v80, %v156
  %v162 = vmul.f32 %v81, %v156
  %v163 = vmul.f32 %v82, %v156
  %v164 = vmul.f32 %v83, %v156
  %v165 = vmul.f32 %v84, %v156
  %v166 = vmul.f32 %v85, %v156
  %v167 = vmul.f32 %v86, %v156
  %v168 = vmul.f32 %v87, %v156
  %v169 = vmul.f32 %v88, %v156
  %v170 = vmul.f32 %v89, %v156
  %v171 = vmul.f32 %v90, %v156
  %v172 = vmul.f32 %v91, %v156
  %v173 = vld [vmem:[%s1] sm:$0x1]
  %v175 = vperm.slane %v173, 0
  %v177 = vmul.f32 %v157, %v175
  %v178 = vmul.f32 %v158, %v175
  %v179 = vmul.f32 %v159, %v175
  %v180 = vmul.f32 %v160, %v175
  %v181 = vmul.f32 %v161, %v175
  %v182 = vmul.f32 %v162, %v175
  %v183 = vmul.f32 %v163, %v175
  %v184 = vmul.f32 %v164, %v175
  %v185 = vmul.f32 %v165, %v175
  %v186 = vmul.f32 %v166, %v175
  %v187 = vmul.f32 %v167, %v175
  %v188 = vmul.f32 %v168, %v175
  %v189 = vmul.f32 %v169, %v175
  %v190 = vmul.f32 %v170, %v175
  %v191 = vmul.f32 %v171, %v175
  %v192 = vmul.f32 %v172, %v175
  %v193 = vld [vmem:[%s2] sm:$0x1]
  %v195 = vperm.slane %v193, 0
  %v197 = vadd.f32 %v177, %v195
  %v198 = vadd.f32 %v178, %v195
  %v199 = vadd.f32 %v179, %v195
  %v200 = vadd.f32 %v180, %v195
  %v201 = vadd.f32 %v181, %v195
  %v202 = vadd.f32 %v182, %v195
  %v203 = vadd.f32 %v183, %v195
  %v204 = vadd.f32 %v184, %v195
  %v205 = vadd.f32 %v185, %v195
  %v206 = vadd.f32 %v186, %v195
  %v207 = vadd.f32 %v187, %v195
  %v208 = vadd.f32 %v188, %v195
  %v209 = vadd.f32 %v189, %v195
  %v210 = vadd.f32 %v190, %v195
  %v211 = vadd.f32 %v191, %v195
  %v212 = vadd.f32 %v192, %v195
  %v213 = vmax.f32 %v197, 0.0
  %v214 = vmax.f32 %v198, 0.0
  %v215 = vmax.f32 %v199, 0.0
  %v216 = vmax.f32 %v200, 0.0
  %v217 = vmax.f32 %v201, 0.0
  %v218 = vmax.f32 %v202, 0.0
  %v219 = vmax.f32 %v203, 0.0
  %v220 = vmax.f32 %v204, 0.0
  %v221 = vmax.f32 %v205, 0.0
  %v222 = vmax.f32 %v206, 0.0
  %v223 = vmax.f32 %v207, 0.0
  %v224 = vmax.f32 %v208, 0.0
  %v225 = vmax.f32 %v209, 0.0
  %v226 = vmax.f32 %v210, 0.0
  %v227 = vmax.f32 %v211, 0.0
  %v228 = vmax.f32 %v212, 0.0
  %229 = vst.msk [vmem:[%s3] sm:$0xff] %vm30, %v213
  %230 = vst.msk [vmem:[%s3 + $0x8] sm:$0xff] %vm30, %v214
  %231 = vst.msk [vmem:[%s3 + $0x10] sm:$0xff] %vm30, %v215
  %232 = vst.msk [vmem:[%s3 + $0x18] sm:$0xff] %vm30, %v216
  %233 = vst.msk [vmem:[%s3 + $0x20] sm:$0xff] %vm30, %v217
  %234 = vst.msk [vmem:[%s3 + $0x28] sm:$0xff] %vm30, %v218
  %235 = vst.msk [vmem:[%s3 + $0x30] sm:$0xff] %vm30, %v219
  %236 = vst.msk [vmem:[%s3 + $0x38] sm:$0xff] %vm30, %v220
  %237 = vst.msk [vmem:[%s3 + $0x40] sm:$0xff] %vm30, %v221
  %238 = vst.msk [vmem:[%s3 + $0x48] sm:$0xff] %vm30, %v222
  %239 = vst.msk [vmem:[%s3 + $0x50] sm:$0xff] %vm30, %v223
  %240 = vst.msk [vmem:[%s3 + $0x58] sm:$0xff] %vm30, %v224
  %241 = vst.msk [vmem:[%s3 + $0x60] sm:$0xff] %vm30, %v225
  %242 = vst.msk [vmem:[%s3 + $0x68] sm:$0xff] %vm30, %v226
  %243 = vst.msk [vmem:[%s3 + $0x70] sm:$0xff] %vm30, %v227
  %244 = vst.msk [vmem:[%s3 + $0x78] sm:$0xff] %vm30, %v228
  // Predicated region
  $region14: #{wgan_generator_forward.13} parent=0 // pred_check
    _
  $region15: #{wgan_generator_forward.13} parent=0 // pred_check_branch
    %246 = sbr.rel (0) target = $region17
  $region16: #{wgan_generator_forward.13} parent=0 // pred_region
    _
  $region17: #{wgan_generator_forward.13} parent=0 // pred_fallthru
    _
  // Predicated region
  $region18: #{wgan_generator_forward.13} parent=0 // pred_check
    _
  $region19: #{wgan_generator_forward.13} parent=0 // pred_check_branch
    %248 = sbr.rel (0) target = $region21
  $region20: #{wgan_generator_forward.13} parent=0 // pred_region
    _
  $region21: #{wgan_generator_forward.13} parent=0 // pred_fallthru
    _

// kernel: wgan_generator_forward.16
$region0: #{wgan_generator_forward.16}
  #allocation0 [shape = 'u32[]', space=smem, size = 0x4, offset = 0x4, fixed_abs, tag = 'smem constant byte address 0x4 - core index']
  #allocation1 [shape = 'u32[72,128]{1,0:T(1,128)}', space=vmem, size = 0x9000, scoped, tag = 'internal scratch']
  %s0 = inlined_call_operand.vmem [shape: bf16[512,16], index: 0, kind: input, shape index: {}]
  %s1 = inlined_call_operand.vmem [shape: bf16[16,128], index: 1, kind: input, shape index: {}]
  %s2 = inlined_call_operand.vmem [shape: f32[512,128], index: 2, kind: output, shape index: {}]
  %s3 = sld [smem:[#allocation0]]
  $region18: #{wgan_generator_forward.16} parent=0
    _
  %s5 = ssub.s32 1, %s3
  %s6 = scalar_select 0, %s5, %s3
  // Predicated region
  $region2: #{wgan_generator_forward.16} parent=0 // pred_check
    _
  $region3: #{wgan_generator_forward.16} parent=0 // pred_check_branch
    %8 = sbr.rel (0) target = $region5
  $region4: #{wgan_generator_forward.16} parent=0 // pred_region
    _
  $region5: #{wgan_generator_forward.16} parent=0 // pred_fallthru
    _
  // Predicated region
  $region6: #{wgan_generator_forward.16} parent=0 // pred_check
    _
  $region7: #{wgan_generator_forward.16} parent=0 // pred_check_branch
    %10 = sbr.rel (0) target = $region9
  $region8: #{wgan_generator_forward.16} parent=0 // pred_region
    _
  $region9: #{wgan_generator_forward.16} parent=0 // pred_fallthru
    _
  %v12 = vld [vmem:[%s0] sm:$0xf]
  %v13 = vld [vmem:[%s0 + $0x4] sm:$0xf]
  %v14 = vld [vmem:[%s0 + $0x8] sm:$0xf]
  %v15 = vld [vmem:[%s0 + $0xc] sm:$0xf]
  %v16 = vld [vmem:[%s0 + $0x10] sm:$0xf]
  %v17 = vld [vmem:[%s0 + $0x14] sm:$0xf]
  %v18 = vld [vmem:[%s0 + $0x18] sm:$0xf]
  %v19 = vld [vmem:[%s0 + $0x1c] sm:$0xf]
  %v20 = vld [vmem:[%s0 + $0x20] sm:$0xf]
  %v21 = vld [vmem:[%s0 + $0x24] sm:$0xf]
  %v22 = vld [vmem:[%s0 + $0x28] sm:$0xf]
  %v23 = vld [vmem:[%s0 + $0x2c] sm:$0xf]
  %v24 = vld [vmem:[%s0 + $0x30] sm:$0xf]
  %v25 = vld [vmem:[%s0 + $0x34] sm:$0xf]
  %v26 = vld [vmem:[%s0 + $0x38] sm:$0xf]
  %v27 = vld [vmem:[%s0 + $0x3c] sm:$0xf]
  %v28 = vld [vmem:[%s0 + $0x40] sm:$0xf]
  %v29 = vld [vmem:[%s0 + $0x44] sm:$0xf]
  %v30 = vld [vmem:[%s0 + $0x48] sm:$0xf]
  %v31 = vld [vmem:[%s0 + $0x4c] sm:$0xf]
  %v32 = vld [vmem:[%s0 + $0x50] sm:$0xf]
  %v33 = vld [vmem:[%s0 + $0x54] sm:$0xf]
  %v34 = vld [vmem:[%s0 + $0x58] sm:$0xf]
  %v35 = vld [vmem:[%s0 + $0x5c] sm:$0xf]
  %v36 = vld [vmem:[%s0 + $0x60] sm:$0xf]
  %v37 = vld [vmem:[%s0 + $0x64] sm:$0xf]
  %v38 = vld [vmem:[%s0 + $0x68] sm:$0xf]
  %v39 = vld [vmem:[%s0 + $0x6c] sm:$0xf]
  %v40 = vld [vmem:[%s0 + $0x70] sm:$0xf]
  %v41 = vld [vmem:[%s0 + $0x74] sm:$0xf]
  %v42 = vld [vmem:[%s0 + $0x78] sm:$0xf]
  %v43 = vld [vmem:[%s0 + $0x7c] sm:$0xf]
  %v44 = vld [vmem:[%s0 + $0x80] sm:$0xf]
  %v45 = vld [vmem:[%s0 + $0x84] sm:$0xf]
  %v46 = vld [vmem:[%s0 + $0x88] sm:$0xf]
  %v47 = vld [vmem:[%s0 + $0x8c] sm:$0xf]
  %v48 = vld [vmem:[%s0 + $0x90] sm:$0xf]
  %v49 = vld [vmem:[%s0 + $0x94] sm:$0xf]
  %v50 = vld [vmem:[%s0 + $0x98] sm:$0xf]
  %v51 = vld [vmem:[%s0 + $0x9c] sm:$0xf]
  %v52 = vld [vmem:[%s0 + $0xa0] sm:$0xf]
  %v53 = vld [vmem:[%s0 + $0xa4] sm:$0xf]
  %v54 = vld [vmem:[%s0 + $0xa8] sm:$0xf]
  %v55 = vld [vmem:[%s0 + $0xac] sm:$0xf]
  %v56 = vld [vmem:[%s0 + $0xb0] sm:$0xf]
  %v57 = vld [vmem:[%s0 + $0xb4] sm:$0xf]
  %v58 = vld [vmem:[%s0 + $0xb8] sm:$0xf]
  %v59 = vld [vmem:[%s0 + $0xbc] sm:$0xf]
  %v60 = vld [vmem:[%s0 + $0xc0] sm:$0xf]
  %v61 = vld [vmem:[%s0 + $0xc4] sm:$0xf]
  %v62 = vld [vmem:[%s0 + $0xc8] sm:$0xf]
  %v63 = vld [vmem:[%s0 + $0xcc] sm:$0xf]
  %v64 = vld [vmem:[%s0 + $0xd0] sm:$0xf]
  %v65 = vld [vmem:[%s0 + $0xd4] sm:$0xf]
  %v66 = vld [vmem:[%s0 + $0xd8] sm:$0xf]
  %v67 = vld [vmem:[%s0 + $0xdc] sm:$0xf]
  %v68 = vld [vmem:[%s0 + $0xe0] sm:$0xf]
  %v69 = vld [vmem:[%s0 + $0xe4] sm:$0xf]
  %v70 = vld [vmem:[%s0 + $0xe8] sm:$0xf]
  %v71 = vld [vmem:[%s0 + $0xec] sm:$0xf]
  %v72 = vld [vmem:[%s0 + $0xf0] sm:$0xf]
  %v73 = vld [vmem:[%s0 + $0xf4] sm:$0xf]
  %v74 = vld [vmem:[%s0 + $0xf8] sm:$0xf]
  %v75 = vld [vmem:[%s0 + $0xfc] sm:$0xf]
  %v76 = vld [vmem:[%s1] sm:$0xf]
  %v77 = vld [vmem:[%s1 + $0x4] sm:$0xf]
  %v142 = vunpack.c.l.b16 %v12
  %v143 = vunpack.c.l.b16 %v13
  %v144 = vunpack.c.l.b16 %v14
  %v145 = vunpack.c.l.b16 %v15
  %v146 = vunpack.c.l.b16 %v16
  %v147 = vunpack.c.l.b16 %v17
  %v148 = vunpack.c.l.b16 %v18
  %v149 = vunpack.c.l.b16 %v19
  %v150 = vunpack.c.l.b16 %v20
  %v151 = vunpack.c.l.b16 %v21
  %v152 = vunpack.c.l.b16 %v22
  %v153 = vunpack.c.l.b16 %v23
  %v154 = vunpack.c.l.b16 %v24
  %v155 = vunpack.c.l.b16 %v25
  %v156 = vunpack.c.l.b16 %v26
  %v157 = vunpack.c.l.b16 %v27
  %v158 = vunpack.c.l.b16 %v28
  %v159 = vunpack.c.l.b16 %v29
  %v160 = vunpack.c.l.b16 %v30
  %v161 = vunpack.c.l.b16 %v31
  %v162 = vunpack.c.l.b16 %v32
  %v163 = vunpack.c.l.b16 %v33
  %v164 = vunpack.c.l.b16 %v34
  %v165 = vunpack.c.l.b16 %v35
  %v166 = vunpack.c.l.b16 %v36
  %v167 = vunpack.c.l.b16 %v37
  %v168 = vunpack.c.l.b16 %v38
  %v169 = vunpack.c.l.b16 %v39
  %v170 = vunpack.c.l.b16 %v40
  %v171 = vunpack.c.l.b16 %v41
  %v172 = vunpack.c.l.b16 %v42
  %v173 = vunpack.c.l.b16 %v43
  %v174 = vunpack.c.l.b16 %v44
  %v175 = vunpack.c.l.b16 %v45
  %v176 = vunpack.c.l.b16 %v46
  %v177 = vunpack.c.l.b16 %v47
  %v178 = vunpack.c.l.b16 %v48
  %v179 = vunpack.c.l.b16 %v49
  %v180 = vunpack.c.l.b16 %v50
  %v181 = vunpack.c.l.b16 %v51
  %v182 = vunpack.c.l.b16 %v52
  %v183 = vunpack.c.l.b16 %v53
  %v184 = vunpack.c.l.b16 %v54
  %v185 = vunpack.c.l.b16 %v55
  %v186 = vunpack.c.l.b16 %v56
  %v187 = vunpack.c.l.b16 %v57
  %v188 = vunpack.c.l.b16 %v58
  %v189 = vunpack.c.l.b16 %v59
  %v190 = vunpack.c.l.b16 %v60
  %v191 = vunpack.c.l.b16 %v61
  %v192 = vunpack.c.l.b16 %v62
  %v193 = vunpack.c.l.b16 %v63
  %v194 = vunpack.c.l.b16 %v64
  %v195 = vunpack.c.l.b16 %v65
  %v196 = vunpack.c.l.b16 %v66
  %v197 = vunpack.c.l.b16 %v67
  %v198 = vunpack.c.l.b16 %v68
  %v199 = vunpack.c.l.b16 %v69
  %v200 = vunpack.c.l.b16 %v70
  %v201 = vunpack.c.l.b16 %v71
  %v202 = vunpack.c.l.b16 %v72
  %v203 = vunpack.c.l.b16 %v73
  %v204 = vunpack.c.l.b16 %v74
  %v205 = vunpack.c.l.b16 %v75
  %v206 = vpack.c.b16 %v143, %v142
  %v207 = vpack.c.b16 %v145, %v144
  %v208 = vpack.c.b16 %v147, %v146
  %v209 = vpack.c.b16 %v149, %v148
  %v210 = vpack.c.b16 %v151, %v150
  %v211 = vpack.c.b16 %v153, %v152
  %v212 = vpack.c.b16 %v155, %v154
  %v213 = vpack.c.b16 %v157, %v156
  %v214 = vpack.c.b16 %v159, %v158
  %v215 = vpack.c.b16 %v161, %v160
  %v216 = vpack.c.b16 %v163, %v162
  %v217 = vpack.c.b16 %v165, %v164
  %v218 = vpack.c.b16 %v167, %v166
  %v219 = vpack.c.b16 %v169, %v168
  %v220 = vpack.c.b16 %v171, %v170
  %v221 = vpack.c.b16 %v173, %v172
  %v222 = vpack.c.b16 %v175, %v174
  %v223 = vpack.c.b16 %v177, %v176
  %v224 = vpack.c.b16 %v179, %v178
  %v225 = vpack.c.b16 %v181, %v180
  %v226 = vpack.c.b16 %v183, %v182
  %v227 = vpack.c.b16 %v185, %v184
  %v228 = vpack.c.b16 %v187, %v186
  %v229 = vpack.c.b16 %v189, %v188
  %v230 = vpack.c.b16 %v191, %v190
  %v231 = vpack.c.b16 %v193, %v192
  %v232 = vpack.c.b16 %v195, %v194
  %v233 = vpack.c.b16 %v197, %v196
  %v234 = vpack.c.b16 %v199, %v198
  %v235 = vpack.c.b16 %v201, %v200
  %v236 = vpack.c.b16 %v203, %v202
  %v237 = vpack.c.b16 %v205, %v204
  %v240 = vunpack.c.l.b16 %v76
  %v241 = vunpack.c.l.b16 %v77
  %v242 = vpack.c.b16 %v241, %v240
  %vm244 = vcmask 130048
  %v246 = vsel %vm244, %v206, 0
  %v249 = vsel %vm244, %v207, 0
  %v252 = vsel %vm244, %v208, 0
  %v255 = vsel %vm244, %v209, 0
  %v258 = vsel %vm244, %v210, 0
  %v261 = vsel %vm244, %v211, 0
  %v264 = vsel %vm244, %v212, 0
  %v267 = vsel %vm244, %v213, 0
  %v270 = vsel %vm244, %v214, 0
  %v273 = vsel %vm244, %v215, 0
  %v276 = vsel %vm244, %v216, 0
  %v279 = vsel %vm244, %v217, 0
  %v282 = vsel %vm244, %v218, 0
  %v285 = vsel %vm244, %v219, 0
  %v288 = vsel %vm244, %v220, 0
  %v291 = vsel %vm244, %v221, 0
  %v294 = vsel %vm244, %v222, 0
  %v297 = vsel %vm244, %v223, 0
  %v300 = vsel %vm244, %v224, 0
  %v303 = vsel %vm244, %v225, 0
  %v306 = vsel %vm244, %v226, 0
  %v309 = vsel %vm244, %v227, 0
  %v312 = vsel %vm244, %v228, 0
  %v315 = vsel %vm244, %v229, 0
  %v318 = vsel %vm244, %v230, 0
  %v321 = vsel %vm244, %v231, 0
  %v324 = vsel %vm244, %v232, 0
  %v327 = vsel %vm244, %v233, 0
  %v330 = vsel %vm244, %v234, 0
  %v333 = vsel %vm244, %v235, 0
  %v336 = vsel %vm244, %v236, 0
  %v339 = vsel %vm244, %v237, 0
  %341 = vmatpush.bf16.msra.mxu0 0
  %342 = vmatpush.bf16.msra.mxu0 0
  %343 = vmatpush.bf16.msra.mxu0 0
  %344 = vmatpush.bf16.msra.mxu0 0
  %345 = vmatpush.bf16.msra.mxu0 0
  %346 = vmatpush.bf16.msra.mxu0 0
  %347 = vmatpush.bf16.msra.mxu0 0
  %348 = vmatpush.bf16.msra.mxu0 %v242
  %349 = vmatmul.bf16.gmra.mxu0 %v246
  %v350 = vpop.f32.mrf.mxu0
  %v351 = vadd.f32 0.0, %v350
  %v352 = vpop.f32.mrf.mxu0
  %v353 = vadd.f32 0.0, %v352
  %354 = vmatmul.bf16.gmra.mxu0 %v249
  %v355 = vpop.f32.mrf.mxu0
  %v356 = vadd.f32 0.0, %v355
  %v357 = vpop.f32.mrf.mxu0
  %v358 = vadd.f32 0.0, %v357
  %359 = vmatmul.bf16.gmra.mxu0 %v252
  %v360 = vpop.f32.mrf.mxu0
  %v361 = vadd.f32 0.0, %v360
  %v362 = vpop.f32.mrf.mxu0
  %v363 = vadd.f32 0.0, %v362
  %364 = vmatmul.bf16.gmra.mxu0 %v255
  %v365 = vpop.f32.mrf.mxu0
  %v366 = vadd.f32 0.0, %v365
  %v367 = vpop.f32.mrf.mxu0
  %v368 = vadd.f32 0.0, %v367
  %369 = vmatmul.bf16.gmra.mxu0 %v258
  %v370 = vpop.f32.mrf.mxu0
  %v371 = vadd.f32 0.0, %v370
  %v372 = vpop.f32.mrf.mxu0
  %v373 = vadd.f32 0.0, %v372
  %374 = vmatmul.bf16.gmra.mxu0 %v261
  %v375 = vpop.f32.mrf.mxu0
  %v376 = vadd.f32 0.0, %v375
  %v377 = vpop.f32.mrf.mxu0
  %v378 = vadd.f32 0.0, %v377
  %379 = vmatmul.bf16.gmra.mxu0 %v264
  %v380 = vpop.f32.mrf.mxu0
  %v381 = vadd.f32 0.0, %v380
  %v382 = vpop.f32.mrf.mxu0
  %v383 = vadd.f32 0.0, %v382
  %384 = vmatmul.bf16.gmra.mxu0 %v267
  %v385 = vpop.f32.mrf.mxu0
  %v386 = vadd.f32 0.0, %v385
  %v387 = vpop.f32.mrf.mxu0
  %v388 = vadd.f32 0.0, %v387
  %389 = vmatmul.bf16.gmra.mxu0 %v270
  %v390 = vpop.f32.mrf.mxu0
  %v391 = vadd.f32 0.0, %v390
  %v392 = vpop.f32.mrf.mxu0
  %v393 = vadd.f32 0.0, %v392
  %394 = vmatmul.bf16.gmra.mxu0 %v273
  %v395 = vpop.f32.mrf.mxu0
  %v396 = vadd.f32 0.0, %v395
  %v397 = vpop.f32.mrf.mxu0
  %v398 = vadd.f32 0.0, %v397
  %399 = vmatmul.bf16.gmra.mxu0 %v276
  %v400 = vpop.f32.mrf.mxu0
  %v401 = vadd.f32 0.0, %v400
  %v402 = vpop.f32.mrf.mxu0
  %v403 = vadd.f32 0.0, %v402
  %404 = vmatmul.bf16.gmra.mxu0 %v279
  %v405 = vpop.f32.mrf.mxu0
  %v406 = vadd.f32 0.0, %v405
  %v407 = vpop.f32.mrf.mxu0
  %v408 = vadd.f32 0.0, %v407
  %409 = vmatmul.bf16.gmra.mxu0 %v282
  %v410 = vpop.f32.mrf.mxu0
  %v411 = vadd.f32 0.0, %v410
  %v412 = vpop.f32.mrf.mxu0
  %v413 = vadd.f32 0.0, %v412
  %414 = vmatmul.bf16.gmra.mxu0 %v285
  %v415 = vpop.f32.mrf.mxu0
  %v416 = vadd.f32 0.0, %v415
  %v417 = vpop.f32.mrf.mxu0
  %v418 = vadd.f32 0.0, %v417
  %419 = vmatmul.bf16.gmra.mxu0 %v288
  %v420 = vpop.f32.mrf.mxu0
  %v421 = vadd.f32 0.0, %v420
  %v422 = vpop.f32.mrf.mxu0
  %v423 = vadd.f32 0.0, %v422
  %424 = vmatmul.bf16.gmra.mxu0 %v291
  %v425 = vpop.f32.mrf.mxu0
  %v426 = vadd.f32 0.0, %v425
  %v427 = vpop.f32.mrf.mxu0
  %v428 = vadd.f32 0.0, %v427
  %429 = vmatmul.bf16.gmra.mxu0 %v294
  %v430 = vpop.f32.mrf.mxu0
  %v431 = vadd.f32 0.0, %v430
  %v432 = vpop.f32.mrf.mxu0
  %v433 = vadd.f32 0.0, %v432
  %434 = vmatmul.bf16.gmra.mxu0 %v297
  %v435 = vpop.f32.mrf.mxu0
  %v436 = vadd.f32 0.0, %v435
  %v437 = vpop.f32.mrf.mxu0
  %v438 = vadd.f32 0.0, %v437
  %439 = vmatmul.bf16.gmra.mxu0 %v300
  %v440 = vpop.f32.mrf.mxu0
  %v441 = vadd.f32 0.0, %v440
  %v442 = vpop.f32.mrf.mxu0
  %v443 = vadd.f32 0.0, %v442
  %444 = vmatmul.bf16.gmra.mxu0 %v303
  %v445 = vpop.f32.mrf.mxu0
  %v446 = vadd.f32 0.0, %v445
  %v447 = vpop.f32.mrf.mxu0
  %v448 = vadd.f32 0.0, %v447
  %449 = vmatmul.bf16.gmra.mxu0 %v306
  %v450 = vpop.f32.mrf.mxu0
  %v451 = vadd.f32 0.0, %v450
  %v452 = vpop.f32.mrf.mxu0
  %v453 = vadd.f32 0.0, %v452
  %454 = vmatmul.bf16.gmra.mxu0 %v309
  %v455 = vpop.f32.mrf.mxu0
  %v456 = vadd.f32 0.0, %v455
  %v457 = vpop.f32.mrf.mxu0
  %v458 = vadd.f32 0.0, %v457
  %459 = vmatmul.bf16.gmra.mxu0 %v312
  %v460 = vpop.f32.mrf.mxu0
  %v461 = vadd.f32 0.0, %v460
  %v462 = vpop.f32.mrf.mxu0
  %v463 = vadd.f32 0.0, %v462
  %464 = vmatmul.bf16.gmra.mxu0 %v315
  %v465 = vpop.f32.mrf.mxu0
  %v466 = vadd.f32 0.0, %v465
  %v467 = vpop.f32.mrf.mxu0
  %v468 = vadd.f32 0.0, %v467
  %469 = vmatmul.bf16.gmra.mxu0 %v318
  %v470 = vpop.f32.mrf.mxu0
  %v471 = vadd.f32 0.0, %v470
  %v472 = vpop.f32.mrf.mxu0
  %v473 = vadd.f32 0.0, %v472
  %474 = vmatmul.bf16.gmra.mxu0 %v321
  %v475 = vpop.f32.mrf.mxu0
  %v476 = vadd.f32 0.0, %v475
  %v477 = vpop.f32.mrf.mxu0
  %v478 = vadd.f32 0.0, %v477
  %479 = vmatmul.bf16.gmra.mxu0 %v324
  %v480 = vpop.f32.mrf.mxu0
  %v481 = vadd.f32 0.0, %v480
  %v482 = vpop.f32.mrf.mxu0
  %v483 = vadd.f32 0.0, %v482
  %484 = vmatmul.bf16.gmra.mxu0 %v327
  %v485 = vpop.f32.mrf.mxu0
  %v486 = vadd.f32 0.0, %v485
  %v487 = vpop.f32.mrf.mxu0
  %v488 = vadd.f32 0.0, %v487
  %489 = vmatmul.bf16.gmra.mxu0 %v330
  %v490 = vpop.f32.mrf.mxu0
  %v491 = vadd.f32 0.0, %v490
  %v492 = vpop.f32.mrf.mxu0
  %v493 = vadd.f32 0.0, %v492
  %494 = vmatmul.bf16.gmra.mxu0 %v333
  %v495 = vpop.f32.mrf.mxu0
  %v496 = vadd.f32 0.0, %v495
  %v497 = vpop.f32.mrf.mxu0
  %v498 = vadd.f32 0.0, %v497
  %499 = vmatmul.bf16.gmra.mxu0 %v336
  %v500 = vpop.f32.mrf.mxu0
  %v501 = vadd.f32 0.0, %v500
  %v502 = vpop.f32.mrf.mxu0
  %v503 = vadd.f32 0.0, %v502
  %504 = vmatmul.bf16.gmra.mxu0 %v339
  %v505 = vpop.f32.mrf.mxu0
  %v506 = vadd.f32 0.0, %v505
  %v507 = vpop.f32.mrf.mxu0
  %v508 = vadd.f32 0.0, %v507
  %509 = vdwg.mxu0
  %510 = vst [vmem:[%s2] sm:$0xff] %v351
  %511 = vst [vmem:[%s2 + $0x8] sm:$0xff] %v353
  %512 = vst [vmem:[%s2 + $0x10] sm:$0xff] %v356
  %513 = vst [vmem:[%s2 + $0x18] sm:$0xff] %v358
  %514 = vst [vmem:[%s2 + $0x20] sm:$0xff] %v361
  %515 = vst [vmem:[%s2 + $0x28] sm:$0xff] %v363
  %516 = vst [vmem:[%s2 + $0x30] sm:$0xff] %v366
  %517 = vst [vmem:[%s2 + $0x38] sm:$0xff] %v368
  %518 = vst [vmem:[%s2 + $0x40] sm:$0xff] %v371
  %519 = vst [vmem:[%s2 + $0x48] sm:$0xff] %v373
  %520 = vst [vmem:[%s2 + $0x50] sm:$0xff] %v376
  %521 = vst [vmem:[%s2 + $0x58] sm:$0xff] %v378
  %522 = vst [vmem:[%s2 + $0x60] sm:$0xff] %v381
  %523 = vst [vmem:[%s2 + $0x68] sm:$0xff] %v383
  %524 = vst [vmem:[%s2 + $0x70] sm:$0xff] %v386
  %525 = vst [vmem:[%s2 + $0x78] sm:$0xff] %v388
  %526 = vst [vmem:[%s2 + $0x80] sm:$0xff] %v391
  %527 = vst [vmem:[%s2 + $0x88] sm:$0xff] %v393
  %528 = vst [vmem:[%s2 + $0x90] sm:$0xff] %v396
  %529 = vst [vmem:[%s2 + $0x98] sm:$0xff] %v398
  %530 = vst [vmem:[%s2 + $0xa0] sm:$0xff] %v401
  %531 = vst [vmem:[%s2 + $0xa8] sm:$0xff] %v403
  %532 = vst [vmem:[%s2 + $0xb0] sm:$0xff] %v406
  %533 = vst [vmem:[%s2 + $0xb8] sm:$0xff] %v408
  %534 = vst [vmem:[%s2 + $0xc0] sm:$0xff] %v411
  %535 = vst [vmem:[%s2 + $0xc8] sm:$0xff] %v413
  %536 = vst [vmem:[%s2 + $0xd0] sm:$0xff] %v416
  %537 = vst [vmem:[%s2 + $0xd8] sm:$0xff] %v418
  %538 = vst [vmem:[%s2 + $0xe0] sm:$0xff] %v421
  %539 = vst [vmem:[%s2 + $0xe8] sm:$0xff] %v423
  %540 = vst [vmem:[%s2 + $0xf0] sm:$0xff] %v426
  %541 = vst [vmem:[%s2 + $0xf8] sm:$0xff] %v428
  %542 = vst [vmem:[%s2 + $0x100] sm:$0xff] %v431
  %543 = vst [vmem:[%s2 + $0x108] sm:$0xff] %v433
  %544 = vst [vmem:[%s2 + $0x110] sm:$0xff] %v436
  %545 = vst [vmem:[%s2 + $0x118] sm:$0xff] %v438
  %546 = vst [vmem:[%s2 + $0x120] sm:$0xff] %v441
  %547 = vst [vmem:[%s2 + $0x128] sm:$0xff] %v443
  %548 = vst [vmem:[%s2 + $0x130] sm:$0xff] %v446
  %549 = vst [vmem:[%s2 + $0x138] sm:$0xff] %v448
  %550 = vst [vmem:[%s2 + $0x140] sm:$0xff] %v451
  %551 = vst [vmem:[%s2 + $0x148] sm:$0xff] %v453
  %552 = vst [vmem:[%s2 + $0x150] sm:$0xff] %v456
  %553 = vst [vmem:[%s2 + $0x158] sm:$0xff] %v458
  %554 = vst [vmem:[%s2 + $0x160] sm:$0xff] %v461
  %555 = vst [vmem:[%s2 + $0x168] sm:$0xff] %v463
  %556 = vst [vmem:[%s2 + $0x170] sm:$0xff] %v466
  %557 = vst [vmem:[%s2 + $0x178] sm:$0xff] %v468
  %558 = vst [vmem:[%s2 + $0x180] sm:$0xff] %v471
  %559 = vst [vmem:[%s2 + $0x188] sm:$0xff] %v473
  %560 = vst [vmem:[%s2 + $0x190] sm:$0xff] %v476
  %561 = vst [vmem:[%s2 + $0x198] sm:$0xff] %v478
  %562 = vst [vmem:[%s2 + $0x1a0] sm:$0xff] %v481
  %563 = vst [vmem:[%s2 + $0x1a8] sm:$0xff] %v483
  %564 = vst [vmem:[%s2 + $0x1b0] sm:$0xff] %v486
  %565 = vst [vmem:[%s2 + $0x1b8] sm:$0xff] %v488
  %566 = vst [vmem:[%s2 + $0x1c0] sm:$0xff] %v491
  %567 = vst [vmem:[%s2 + $0x1c8] sm:$0xff] %v493
  %568 = vst [vmem:[%s2 + $0x1d0] sm:$0xff] %v496
  %569 = vst [vmem:[%s2 + $0x1d8] sm:$0xff] %v498
  %570 = vst [vmem:[%s2 + $0x1e0] sm:$0xff] %v501
  %571 = vst [vmem:[%s2 + $0x1e8] sm:$0xff] %v503
  %572 = vst [vmem:[%s2 + $0x1f0] sm:$0xff] %v506
  %573 = vst [vmem:[%s2 + $0x1f8] sm:$0xff] %v508
  // Predicated region
  $region10: #{wgan_generator_forward.16} parent=0 // pred_check
    _
  $region11: #{wgan_generator_forward.16} parent=0 // pred_check_branch
    %575 = sbr.rel (0) target = $region13
  $region12: #{wgan_generator_forward.16} parent=0 // pred_region
    _
  $region13: #{wgan_generator_forward.16} parent=0 // pred_fallthru
    _
  // Predicated region
  $region14: #{wgan_generator_forward.16} parent=0 // pred_check
    _
  $region15: #{wgan_generator_forward.16} parent=0 // pred_check_branch
    %577 = sbr.rel (0) target = $region17
  $region16: #{wgan_generator_forward.16} parent=0 // pred_region
    _
  $region17: #{wgan_generator_forward.16} parent=0 // pred_fallthru
    _

// kernel: wgan_generator_forward.15
$region0: #{wgan_generator_forward.15}
  #allocation0 [shape = 'u32[]', space=smem, size = 0x4, offset = 0x4, fixed_abs, tag = 'smem constant byte address 0x4 - core index']
  #allocation1 [shape = 'u32[72,128]{1,0:T(1,128)}', space=vmem, size = 0x9000, scoped, tag = 'internal scratch']
  %s0 = inlined_call_operand.vmem [shape: f32[512,16], index: 0, kind: input, shape index: {}]
  %s1 = inlined_call_operand.vmem [shape: f32[1,16], index: 1, kind: input, shape index: {}]
  %s2 = inlined_call_operand.vmem [shape: f32[1,16], index: 2, kind: input, shape index: {}]
  %s3 = inlined_call_operand.vmem [shape: f32[512,16], index: 3, kind: output, shape index: {}]
  %s4 = sld [smem:[#allocation0]]
  $region22: #{wgan_generator_forward.15} parent=0
    _
  %s6 = ssub.s32 1, %s4
  %s7 = scalar_select 0, %s6, %s4
  // Predicated region
  $region2: #{wgan_generator_forward.15} parent=0 // pred_check
    _
  $region3: #{wgan_generator_forward.15} parent=0 // pred_check_branch
    %9 = sbr.rel (0) target = $region5
  $region4: #{wgan_generator_forward.15} parent=0 // pred_region
    _
  $region5: #{wgan_generator_forward.15} parent=0 // pred_fallthru
    _
  // Predicated region
  $region6: #{wgan_generator_forward.15} parent=0 // pred_check
    _
  $region7: #{wgan_generator_forward.15} parent=0 // pred_check_branch
    %11 = sbr.rel (0) target = $region9
  $region8: #{wgan_generator_forward.15} parent=0 // pred_region
    _
  $region9: #{wgan_generator_forward.15} parent=0 // pred_fallthru
    _
  // Predicated region
  $region10: #{wgan_generator_forward.15} parent=0 // pred_check
    _
  $region11: #{wgan_generator_forward.15} parent=0 // pred_check_branch
    %13 = sbr.rel (0) target = $region13
  $region12: #{wgan_generator_forward.15} parent=0 // pred_region
    _
  $region13: #{wgan_generator_forward.15} parent=0 // pred_fallthru
    _
  %v14 = vld [vmem:[%s0] sm:$0xff]
  %v15 = vld [vmem:[%s0 + $0x8] sm:$0xff]
  %v16 = vld [vmem:[%s0 + $0x10] sm:$0xff]
  %v17 = vld [vmem:[%s0 + $0x18] sm:$0xff]
  %v18 = vld [vmem:[%s0 + $0x20] sm:$0xff]
  %v19 = vld [vmem:[%s0 + $0x28] sm:$0xff]
  %v20 = vld [vmem:[%s0 + $0x30] sm:$0xff]
  %v21 = vld [vmem:[%s0 + $0x38] sm:$0xff]
  %v22 = vld [vmem:[%s0 + $0x40] sm:$0xff]
  %v23 = vld [vmem:[%s0 + $0x48] sm:$0xff]
  %v24 = vld [vmem:[%s0 + $0x50] sm:$0xff]
  %v25 = vld [vmem:[%s0 + $0x58] sm:$0xff]
  %v26 = vld [vmem:[%s0 + $0x60] sm:$0xff]
  %v27 = vld [vmem:[%s0 + $0x68] sm:$0xff]
  %v28 = vld [vmem:[%s0 + $0x70] sm:$0xff]
  %v29 = vld [vmem:[%s0 + $0x78] sm:$0xff]
  %v30 = vld [vmem:[%s0 + $0x80] sm:$0xff]
  %v31 = vld [vmem:[%s0 + $0x88] sm:$0xff]
  %v32 = vld [vmem:[%s0 + $0x90] sm:$0xff]
  %v33 = vld [vmem:[%s0 + $0x98] sm:$0xff]
  %v34 = vld [vmem:[%s0 + $0xa0] sm:$0xff]
  %v35 = vld [vmem:[%s0 + $0xa8] sm:$0xff]
  %v36 = vld [vmem:[%s0 + $0xb0] sm:$0xff]
  %v37 = vld [vmem:[%s0 + $0xb8] sm:$0xff]
  %v38 = vld [vmem:[%s0 + $0xc0] sm:$0xff]
  %v39 = vld [vmem:[%s0 + $0xc8] sm:$0xff]
  %v40 = vld [vmem:[%s0 + $0xd0] sm:$0xff]
  %v41 = vld [vmem:[%s0 + $0xd8] sm:$0xff]
  %v42 = vld [vmem:[%s0 + $0xe0] sm:$0xff]
  %v43 = vld [vmem:[%s0 + $0xe8] sm:$0xff]
  %v44 = vld [vmem:[%s0 + $0xf0] sm:$0xff]
  %v45 = vld [vmem:[%s0 + $0xf8] sm:$0xff]
  %v46 = vld [vmem:[%s0 + $0x100] sm:$0xff]
  %v47 = vld [vmem:[%s0 + $0x108] sm:$0xff]
  %v48 = vld [vmem:[%s0 + $0x110] sm:$0xff]
  %v49 = vld [vmem:[%s0 + $0x118] sm:$0xff]
  %v50 = vld [vmem:[%s0 + $0x120] sm:$0xff]
  %v51 = vld [vmem:[%s0 + $0x128] sm:$0xff]
  %v52 = vld [vmem:[%s0 + $0x130] sm:$0xff]
  %v53 = vld [vmem:[%s0 + $0x138] sm:$0xff]
  %v54 = vld [vmem:[%s0 + $0x140] sm:$0xff]
  %v55 = vld [vmem:[%s0 + $0x148] sm:$0xff]
  %v56 = vld [vmem:[%s0 + $0x150] sm:$0xff]
  %v57 = vld [vmem:[%s0 + $0x158] sm:$0xff]
  %v58 = vld [vmem:[%s0 + $0x160] sm:$0xff]
  %v59 = vld [vmem:[%s0 + $0x168] sm:$0xff]
  %v60 = vld [vmem:[%s0 + $0x170] sm:$0xff]
  %v61 = vld [vmem:[%s0 + $0x178] sm:$0xff]
  %v62 = vld [vmem:[%s0 + $0x180] sm:$0xff]
  %v63 = vld [vmem:[%s0 + $0x188] sm:$0xff]
  %v64 = vld [vmem:[%s0 + $0x190] sm:$0xff]
  %v65 = vld [vmem:[%s0 + $0x198] sm:$0xff]
  %v66 = vld [vmem:[%s0 + $0x1a0] sm:$0xff]
  %v67 = vld [vmem:[%s0 + $0x1a8] sm:$0xff]
  %v68 = vld [vmem:[%s0 + $0x1b0] sm:$0xff]
  %v69 = vld [vmem:[%s0 + $0x1b8] sm:$0xff]
  %v70 = vld [vmem:[%s0 + $0x1c0] sm:$0xff]
  %v71 = vld [vmem:[%s0 + $0x1c8] sm:$0xff]
  %v72 = vld [vmem:[%s0 + $0x1d0] sm:$0xff]
  %v73 = vld [vmem:[%s0 + $0x1d8] sm:$0xff]
  %v74 = vld [vmem:[%s0 + $0x1e0] sm:$0xff]
  %v75 = vld [vmem:[%s0 + $0x1e8] sm:$0xff]
  %v76 = vld [vmem:[%s0 + $0x1f0] sm:$0xff]
  %v77 = vld [vmem:[%s0 + $0x1f8] sm:$0xff]
  %vm78 = vcmask 130048
  %v79 = vsel %vm78, %v14, 0.0
  %v80 = vsel %vm78, %v15, 0.0
  %v81 = vadd.f32 %v79, %v80
  %v82 = vsel %vm78, %v16, 0.0
  %v83 = vadd.f32 %v81, %v82
  %v84 = vsel %vm78, %v17, 0.0
  %v85 = vadd.f32 %v83, %v84
  %v86 = vsel %vm78, %v18, 0.0
  %v87 = vadd.f32 %v85, %v86
  %v88 = vsel %vm78, %v19, 0.0
  %v89 = vadd.f32 %v87, %v88
  %v90 = vsel %vm78, %v20, 0.0
  %v91 = vadd.f32 %v89, %v90
  %v92 = vsel %vm78, %v21, 0.0
  %v93 = vadd.f32 %v91, %v92
  %v94 = vsel %vm78, %v22, 0.0
  %v95 = vadd.f32 %v93, %v94
  %v96 = vsel %vm78, %v23, 0.0
  %v97 = vadd.f32 %v95, %v96
  %v98 = vsel %vm78, %v24, 0.0
  %v99 = vadd.f32 %v97, %v98
  %v100 = vsel %vm78, %v25, 0.0
  %v101 = vadd.f32 %v99, %v100
  %v102 = vsel %vm78, %v26, 0.0
  %v103 = vadd.f32 %v101, %v102
  %v104 = vsel %vm78, %v27, 0.0
  %v105 = vadd.f32 %v103, %v104
  %v106 = vsel %vm78, %v28, 0.0
  %v107 = vadd.f32 %v105, %v106
  %v108 = vsel %vm78, %v29, 0.0
  %v109 = vadd.f32 %v107, %v108
  %v110 = vsel %vm78, %v30, 0.0
  %v111 = vadd.f32 %v109, %v110
  %v112 = vsel %vm78, %v31, 0.0
  %v113 = vadd.f32 %v111, %v112
  %v114 = vsel %vm78, %v32, 0.0
  %v115 = vadd.f32 %v113, %v114
  %v116 = vsel %vm78, %v33, 0.0
  %v117 = vadd.f32 %v115, %v116
  %v118 = vsel %vm78, %v34, 0.0
  %v119 = vadd.f32 %v117, %v118
  %v120 = vsel %vm78, %v35, 0.0
  %v121 = vadd.f32 %v119, %v120
  %v122 = vsel %vm78, %v36, 0.0
  %v123 = vadd.f32 %v121, %v122
  %v124 = vsel %vm78, %v37, 0.0
  %v125 = vadd.f32 %v123, %v124
  %v126 = vsel %vm78, %v38, 0.0
  %v127 = vadd.f32 %v125, %v126
  %v128 = vsel %vm78, %v39, 0.0
  %v129 = vadd.f32 %v127, %v128
  %v130 = vsel %vm78, %v40, 0.0
  %v131 = vadd.f32 %v129, %v130
  %v132 = vsel %vm78, %v41, 0.0
  %v133 = vadd.f32 %v131, %v132
  %v134 = vsel %vm78, %v42, 0.0
  %v135 = vadd.f32 %v133, %v134
  %v136 = vsel %vm78, %v43, 0.0
  %v137 = vadd.f32 %v135, %v136
  %v138 = vsel %vm78, %v44, 0.0
  %v139 = vadd.f32 %v137, %v138
  %v140 = vsel %vm78, %v45, 0.0
  %v141 = vadd.f32 %v139, %v140
  %v142 = vsel %vm78, %v46, 0.0
  %v143 = vadd.f32 %v141, %v142
  %v144 = vsel %vm78, %v47, 0.0
  %v145 = vadd.f32 %v143, %v144
  %v146 = vsel %vm78, %v48, 0.0
  %v147 = vadd.f32 %v145, %v146
  %v148 = vsel %vm78, %v49, 0.0
  %v149 = vadd.f32 %v147, %v148
  %v150 = vsel %vm78, %v50, 0.0
  %v151 = vadd.f32 %v149, %v150
  %v152 = vsel %vm78, %v51, 0.0
  %v153 = vadd.f32 %v151, %v152
  %v154 = vsel %vm78, %v52, 0.0
  %v155 = vadd.f32 %v153, %v154
  %v156 = vsel %vm78, %v53, 0.0
  %v157 = vadd.f32 %v155, %v156
  %v158 = vsel %vm78, %v54, 0.0
  %v159 = vadd.f32 %v157, %v158
  %v160 = vsel %vm78, %v55, 0.0
  %v161 = vadd.f32 %v159, %v160
  %v162 = vsel %vm78, %v56, 0.0
  %v163 = vadd.f32 %v161, %v162
  %v164 = vsel %vm78, %v57, 0.0
  %v165 = vadd.f32 %v163, %v164
  %v166 = vsel %vm78, %v58, 0.0
  %v167 = vadd.f32 %v165, %v166
  %v168 = vsel %vm78, %v59, 0.0
  %v169 = vadd.f32 %v167, %v168
  %v170 = vsel %vm78, %v60, 0.0
  %v171 = vadd.f32 %v169, %v170
  %v172 = vsel %vm78, %v61, 0.0
  %v173 = vadd.f32 %v171, %v172
  %v174 = vsel %vm78, %v62, 0.0
  %v175 = vadd.f32 %v173, %v174
  %v176 = vsel %vm78, %v63, 0.0
  %v177 = vadd.f32 %v175, %v176
  %v178 = vsel %vm78, %v64, 0.0
  %v179 = vadd.f32 %v177, %v178
  %v180 = vsel %vm78, %v65, 0.0
  %v181 = vadd.f32 %v179, %v180
  %v182 = vsel %vm78, %v66, 0.0
  %v183 = vadd.f32 %v181, %v182
  %v184 = vsel %vm78, %v67, 0.0
  %v185 = vadd.f32 %v183, %v184
  %v186 = vsel %vm78, %v68, 0.0
  %v187 = vadd.f32 %v185, %v186
  %v188 = vsel %vm78, %v69, 0.0
  %v189 = vadd.f32 %v187, %v188
  %v190 = vsel %vm78, %v70, 0.0
  %v191 = vadd.f32 %v189, %v190
  %v192 = vsel %vm78, %v71, 0.0
  %v193 = vadd.f32 %v191, %v192
  %v194 = vsel %vm78, %v72, 0.0
  %v195 = vadd.f32 %v193, %v194
  %v196 = vsel %vm78, %v73, 0.0
  %v197 = vadd.f32 %v195, %v196
  %v198 = vsel %vm78, %v74, 0.0
  %v199 = vadd.f32 %v197, %v198
  %v200 = vsel %vm78, %v75, 0.0
  %v201 = vadd.f32 %v199, %v200
  %v202 = vsel %vm78, %v76, 0.0
  %v203 = vadd.f32 %v201, %v202
  %v204 = vsel %vm78, %v77, 0.0
  %v205 = vadd.f32 %v203, %v204
  %v206 = vrot.slane %v205, 4
  %v207 = vadd.f32 %v205, %v206
  %v208 = vrot.slane %v207, 2
  %v209 = vadd.f32 %v207, %v208
  %v210 = vrot.slane %v209, 1
  %v211 = vadd.f32 %v209, %v210
  %v212 = vrcp.pop 512.0
  %v213 = vmul.f32 512.0, %v212
  %v214 = vsub.f32 1.0, %v213
  %v215 = vmul.f32 %v212, %v214
  %v216 = vadd.f32 %v212, %v215
  %vm217 = vweird.f32 %v212
  %v218 = vsel %vm217, %v212, %v216
  %v219 = vmul.f32 %v211, %v218
  %v220 = vsub.f32 %v14, %v219
  %v221 = vsub.f32 %v15, %v219
  %v222 = vsub.f32 %v16, %v219
  %v223 = vsub.f32 %v17, %v219
  %v224 = vsub.f32 %v18, %v219
  %v225 = vsub.f32 %v19, %v219
  %v226 = vsub.f32 %v20, %v219
  %v227 = vsub.f32 %v21, %v219
  %v228 = vsub.f32 %v22, %v219
  %v229 = vsub.f32 %v23, %v219
  %v230 = vsub.f32 %v24, %v219
  %v231 = vsub.f32 %v25, %v219
  %v232 = vsub.f32 %v26, %v219
  %v233 = vsub.f32 %v27, %v219
  %v234 = vsub.f32 %v28, %v219
  %v235 = vsub.f32 %v29, %v219
  %v236 = vsub.f32 %v30, %v219
  %v237 = vsub.f32 %v31, %v219
  %v238 = vsub.f32 %v32, %v219
  %v239 = vsub.f32 %v33, %v219
  %v240 = vsub.f32 %v34, %v219
  %v241 = vsub.f32 %v35, %v219
  %v242 = vsub.f32 %v36, %v219
  %v243 = vsub.f32 %v37, %v219
  %v244 = vsub.f32 %v38, %v219
  %v245 = vsub.f32 %v39, %v219
  %v246 = vsub.f32 %v40, %v219
  %v247 = vsub.f32 %v41, %v219
  %v248 = vsub.f32 %v42, %v219
  %v249 = vsub.f32 %v43, %v219
  %v250 = vsub.f32 %v44, %v219
  %v251 = vsub.f32 %v45, %v219
  %v252 = vsub.f32 %v46, %v219
  %v253 = vsub.f32 %v47, %v219
  %v254 = vsub.f32 %v48, %v219
  %v255 = vsub.f32 %v49, %v219
  %v256 = vsub.f32 %v50, %v219
  %v257 = vsub.f32 %v51, %v219
  %v258 = vsub.f32 %v52, %v219
  %v259 = vsub.f32 %v53, %v219
  %v260 = vsub.f32 %v54, %v219
  %v261 = vsub.f32 %v55, %v219
  %v262 = vsub.f32 %v56, %v219
  %v263 = vsub.f32 %v57, %v219
  %v264 = vsub.f32 %v58, %v219
  %v265 = vsub.f32 %v59, %v219
  %v266 = vsub.f32 %v60, %v219
  %v267 = vsub.f32 %v61, %v219
  %v268 = vsub.f32 %v62, %v219
  %v269 = vsub.f32 %v63, %v219
  %v270 = vsub.f32 %v64, %v219
  %v271 = vsub.f32 %v65, %v219
  %v272 = vsub.f32 %v66, %v219
  %v273 = vsub.f32 %v67, %v219
  %v274 = vsub.f32 %v68, %v219
  %v275 = vsub.f32 %v69, %v219
  %v276 = vsub.f32 %v70, %v219
  %v277 = vsub.f32 %v71, %v219
  %v278 = vsub.f32 %v72, %v219
  %v279 = vsub.f32 %v73, %v219
  %v280 = vsub.f32 %v74, %v219
  %v281 = vsub.f32 %v75, %v219
  %v282 = vsub.f32 %v76, %v219
  %v283 = vsub.f32 %v77, %v219
  %v284 = vmul.f32 %v220, %v220
  %v285 = vmul.f32 %v221, %v221
  %v286 = vmul.f32 %v222, %v222
  %v287 = vmul.f32 %v223, %v223
  %v288 = vmul.f32 %v224, %v224
  %v289 = vmul.f32 %v225, %v225
  %v290 = vmul.f32 %v226, %v226
  %v291 = vmul.f32 %v227, %v227
  %v292 = vmul.f32 %v228, %v228
  %v293 = vmul.f32 %v229, %v229
  %v294 = vmul.f32 %v230, %v230
  %v295 = vmul.f32 %v231, %v231
  %v296 = vmul.f32 %v232, %v232
  %v297 = vmul.f32 %v233, %v233
  %v298 = vmul.f32 %v234, %v234
  %v299 = vmul.f32 %v235, %v235
  %v300 = vmul.f32 %v236, %v236
  %v301 = vmul.f32 %v237, %v237
  %v302 = vmul.f32 %v238, %v238
  %v303 = vmul.f32 %v239, %v239
  %v304 = vmul.f32 %v240, %v240
  %v305 = vmul.f32 %v241, %v241
  %v306 = vmul.f32 %v242, %v242
  %v307 = vmul.f32 %v243, %v243
  %v308 = vmul.f32 %v244, %v244
  %v309 = vmul.f32 %v245, %v245
  %v310 = vmul.f32 %v246, %v246
  %v311 = vmul.f32 %v247, %v247
  %v312 = vmul.f32 %v248, %v248
  %v313 = vmul.f32 %v249, %v249
  %v314 = vmul.f32 %v250, %v250
  %v315 = vmul.f32 %v251, %v251
  %v316 = vmul.f32 %v252, %v252
  %v317 = vmul.f32 %v253, %v253
  %v318 = vmul.f32 %v254, %v254
  %v319 = vmul.f32 %v255, %v255
  %v320 = vmul.f32 %v256, %v256
  %v321 = vmul.f32 %v257, %v257
  %v322 = vmul.f32 %v258, %v258
  %v323 = vmul.f32 %v259, %v259
  %v324 = vmul.f32 %v260, %v260
  %v325 = vmul.f32 %v261, %v261
  %v326 = vmul.f32 %v262, %v262
  %v327 = vmul.f32 %v263, %v263
  %v328 = vmul.f32 %v264, %v264
  %v329 = vmul.f32 %v265, %v265
  %v330 = vmul.f32 %v266, %v266
  %v331 = vmul.f32 %v267, %v267
  %v332 = vmul.f32 %v268, %v268
  %v333 = vmul.f32 %v269, %v269
  %v334 = vmul.f32 %v270, %v270
  %v335 = vmul.f32 %v271, %v271
  %v336 = vmul.f32 %v272, %v272
  %v337 = vmul.f32 %v273, %v273
  %v338 = vmul.f32 %v274, %v274
  %v339 = vmul.f32 %v275, %v275
  %v340 = vmul.f32 %v276, %v276
  %v341 = vmul.f32 %v277, %v277
  %v342 = vmul.f32 %v278, %v278
  %v343 = vmul.f32 %v279, %v279
  %v344 = vmul.f32 %v280, %v280
  %v345 = vmul.f32 %v281, %v281
  %v346 = vmul.f32 %v282, %v282
  %v347 = vmul.f32 %v283, %v283
  %v348 = vsel %vm78, %v284, 0.0
  %v349 = vsel %vm78, %v285, 0.0
  %v350 = vadd.f32 %v348, %v349
  %v351 = vsel %vm78, %v286, 0.0
  %v352 = vadd.f32 %v350, %v351
  %v353 = vsel %vm78, %v287, 0.0
  %v354 = vadd.f32 %v352, %v353
  %v355 = vsel %vm78, %v288, 0.0
  %v356 = vadd.f32 %v354, %v355
  %v357 = vsel %vm78, %v289, 0.0
  %v358 = vadd.f32 %v356, %v357
  %v359 = vsel %vm78, %v290, 0.0
  %v360 = vadd.f32 %v358, %v359
  %v361 = vsel %vm78, %v291, 0.0
  %v362 = vadd.f32 %v360, %v361
  %v363 = vsel %vm78, %v292, 0.0
  %v364 = vadd.f32 %v362, %v363
  %v365 = vsel %vm78, %v293, 0.0
  %v366 = vadd.f32 %v364, %v365
  %v367 = vsel %vm78, %v294, 0.0
  %v368 = vadd.f32 %v366, %v367
  %v369 = vsel %vm78, %v295, 0.0
  %v370 = vadd.f32 %v368, %v369
  %v371 = vsel %vm78, %v296, 0.0
  %v372 = vadd.f32 %v370, %v371
  %v373 = vsel %vm78, %v297, 0.0
  %v374 = vadd.f32 %v372, %v373
  %v375 = vsel %vm78, %v298, 0.0
  %v376 = vadd.f32 %v374, %v375
  %v377 = vsel %vm78, %v299, 0.0
  %v378 = vadd.f32 %v376, %v377
  %v379 = vsel %vm78, %v300, 0.0
  %v380 = vadd.f32 %v378, %v379
  %v381 = vsel %vm78, %v301, 0.0
  %v382 = vadd.f32 %v380, %v381
  %v383 = vsel %vm78, %v302, 0.0
  %v384 = vadd.f32 %v382, %v383
  %v385 = vsel %vm78, %v303, 0.0
  %v386 = vadd.f32 %v384, %v385
  %v387 = vsel %vm78, %v304, 0.0
  %v388 = vadd.f32 %v386, %v387
  %v389 = vsel %vm78, %v305, 0.0
  %v390 = vadd.f32 %v388, %v389
  %v391 = vsel %vm78, %v306, 0.0
  %v392 = vadd.f32 %v390, %v391
  %v393 = vsel %vm78, %v307, 0.0
  %v394 = vadd.f32 %v392, %v393
  %v395 = vsel %vm78, %v308, 0.0
  %v396 = vadd.f32 %v394, %v395
  %v397 = vsel %vm78, %v309, 0.0
  %v398 = vadd.f32 %v396, %v397
  %v399 = vsel %vm78, %v310, 0.0
  %v400 = vadd.f32 %v398, %v399
  %v401 = vsel %vm78, %v311, 0.0
  %v402 = vadd.f32 %v400, %v401
  %v403 = vsel %vm78, %v312, 0.0
  %v404 = vadd.f32 %v402, %v403
  %v405 = vsel %vm78, %v313, 0.0
  %v406 = vadd.f32 %v404, %v405
  %v407 = vsel %vm78, %v314, 0.0
  %v408 = vadd.f32 %v406, %v407
  %v409 = vsel %vm78, %v315, 0.0
  %v410 = vadd.f32 %v408, %v409
  %v411 = vsel %vm78, %v316, 0.0
  %v412 = vadd.f32 %v410, %v411
  %v413 = vsel %vm78, %v317, 0.0
  %v414 = vadd.f32 %v412, %v413
  %v415 = vsel %vm78, %v318, 0.0
  %v416 = vadd.f32 %v414, %v415
  %v417 = vsel %vm78, %v319, 0.0
  %v418 = vadd.f32 %v416, %v417
  %v419 = vsel %vm78, %v320, 0.0
  %v420 = vadd.f32 %v418, %v419
  %v421 = vsel %vm78, %v321, 0.0
  %v422 = vadd.f32 %v420, %v421
  %v423 = vsel %vm78, %v322, 0.0
  %v424 = vadd.f32 %v422, %v423
  %v425 = vsel %vm78, %v323, 0.0
  %v426 = vadd.f32 %v424, %v425
  %v427 = vsel %vm78, %v324, 0.0
  %v428 = vadd.f32 %v426, %v427
  %v429 = vsel %vm78, %v325, 0.0
  %v430 = vadd.f32 %v428, %v429
  %v431 = vsel %vm78, %v326, 0.0
  %v432 = vadd.f32 %v430, %v431
  %v433 = vsel %vm78, %v327, 0.0
  %v434 = vadd.f32 %v432, %v433
  %v435 = vsel %vm78, %v328, 0.0
  %v436 = vadd.f32 %v434, %v435
  %v437 = vsel %vm78, %v329, 0.0
  %v438 = vadd.f32 %v436, %v437
  %v439 = vsel %vm78, %v330, 0.0
  %v440 = vadd.f32 %v438, %v439
  %v441 = vsel %vm78, %v331, 0.0
  %v442 = vadd.f32 %v440, %v441
  %v443 = vsel %vm78, %v332, 0.0
  %v444 = vadd.f32 %v442, %v443
  %v445 = vsel %vm78, %v333, 0.0
  %v446 = vadd.f32 %v444, %v445
  %v447 = vsel %vm78, %v334, 0.0
  %v448 = vadd.f32 %v446, %v447
  %v449 = vsel %vm78, %v335, 0.0
  %v450 = vadd.f32 %v448, %v449
  %v451 = vsel %vm78, %v336, 0.0
  %v452 = vadd.f32 %v450, %v451
  %v453 = vsel %vm78, %v337, 0.0
  %v454 = vadd.f32 %v452, %v453
  %v455 = vsel %vm78, %v338, 0.0
  %v456 = vadd.f32 %v454, %v455
  %v457 = vsel %vm78, %v339, 0.0
  %v458 = vadd.f32 %v456, %v457
  %v459 = vsel %vm78, %v340, 0.0
  %v460 = vadd.f32 %v458, %v459
  %v461 = vsel %vm78, %v341, 0.0
  %v462 = vadd.f32 %v460, %v461
  %v463 = vsel %vm78, %v342, 0.0
  %v464 = vadd.f32 %v462, %v463
  %v465 = vsel %vm78, %v343, 0.0
  %v466 = vadd.f32 %v464, %v465
  %v467 = vsel %vm78, %v344, 0.0
  %v468 = vadd.f32 %v466, %v467
  %v469 = vsel %vm78, %v345, 0.0
  %v470 = vadd.f32 %v468, %v469
  %v471 = vsel %vm78, %v346, 0.0
  %v472 = vadd.f32 %v470, %v471
  %v473 = vsel %vm78, %v347, 0.0
  %v474 = vadd.f32 %v472, %v473
  %v475 = vrot.slane %v474, 4
  %v476 = vadd.f32 %v474, %v475
  %v477 = vrot.slane %v476, 2
  %v478 = vadd.f32 %v476, %v477
  %v479 = vrot.slane %v478, 1
  %v480 = vadd.f32 %v478, %v479
  %v481 = vmul.f32 %v480, %v218
  %v482 = vadd.f32 %v481, 1e-05
  %v483 = vrsqrt.pop %v482
  %v484 = vmul.f32 %v483, %v482
  %v485 = vmul.f32 %v484, %v483
  %v486 = vmul.f32 0.5, %v485
  %v487 = vsub.f32 1.5, %v486
  %v488 = vmul.f32 %v483, %v487
  %vm489 = vweird.f32 %v482
  %vm490 = vweird.f32 %v483
  %vm491 = vmor %vm489, %vm490
  %v492 = vsel %vm491, %v483, %v488
  %v493 = vmul.f32 %v220, %v492
  %v494 = vmul.f32 %v221, %v492
  %v495 = vmul.f32 %v222, %v492
  %v496 = vmul.f32 %v223, %v492
  %v497 = vmul.f32 %v224, %v492
  %v498 = vmul.f32 %v225, %v492
  %v499 = vmul.f32 %v226, %v492
  %v500 = vmul.f32 %v227, %v492
  %v501 = vmul.f32 %v228, %v492
  %v502 = vmul.f32 %v229, %v492
  %v503 = vmul.f32 %v230, %v492
  %v504 = vmul.f32 %v231, %v492
  %v505 = vmul.f32 %v232, %v492
  %v506 = vmul.f32 %v233, %v492
  %v507 = vmul.f32 %v234, %v492
  %v508 = vmul.f32 %v235, %v492
  %v509 = vmul.f32 %v236, %v492
  %v510 = vmul.f32 %v237, %v492
  %v511 = vmul.f32 %v238, %v492
  %v512 = vmul.f32 %v239, %v492
  %v513 = vmul.f32 %v240, %v492
  %v514 = vmul.f32 %v241, %v492
  %v515 = vmul.f32 %v242, %v492
  %v516 = vmul.f32 %v243, %v492
  %v517 = vmul.f32 %v244, %v492
  %v518 = vmul.f32 %v245, %v492
  %v519 = vmul.f32 %v246, %v492
  %v520 = vmul.f32 %v247, %v492
  %v521 = vmul.f32 %v248, %v492
  %v522 = vmul.f32 %v249, %v492
  %v523 = vmul.f32 %v250, %v492
  %v524 = vmul.f32 %v251, %v492
  %v525 = vmul.f32 %v252, %v492
  %v526 = vmul.f32 %v253, %v492
  %v527 = vmul.f32 %v254, %v492
  %v528 = vmul.f32 %v255, %v492
  %v529 = vmul.f32 %v256, %v492
  %v530 = vmul.f32 %v257, %v492
  %v531 = vmul.f32 %v258, %v492
  %v532 = vmul.f32 %v259, %v492
  %v533 = vmul.f32 %v260, %v492
  %v534 = vmul.f32 %v261, %v492
  %v535 = vmul.f32 %v262, %v492
  %v536 = vmul.f32 %v263, %v492
  %v537 = vmul.f32 %v264, %v492
  %v538 = vmul.f32 %v265, %v492
  %v539 = vmul.f32 %v266, %v492
  %v540 = vmul.f32 %v267, %v492
  %v541 = vmul.f32 %v268, %v492
  %v542 = vmul.f32 %v269, %v492
  %v543 = vmul.f32 %v270, %v492
  %v544 = vmul.f32 %v271, %v492
  %v545 = vmul.f32 %v272, %v492
  %v546 = vmul.f32 %v273, %v492
  %v547 = vmul.f32 %v274, %v492
  %v548 = vmul.f32 %v275, %v492
  %v549 = vmul.f32 %v276, %v492
  %v550 = vmul.f32 %v277, %v492
  %v551 = vmul.f32 %v278, %v492
  %v552 = vmul.f32 %v279, %v492
  %v553 = vmul.f32 %v280, %v492
  %v554 = vmul.f32 %v281, %v492
  %v555 = vmul.f32 %v282, %v492
  %v556 = vmul.f32 %v283, %v492
  %v557 = vld [vmem:[%s1] sm:$0x1]
  %v559 = vperm.slane %v557, 0
  %v561 = vmul.f32 %v493, %v559
  %v562 = vmul.f32 %v494, %v559
  %v563 = vmul.f32 %v495, %v559
  %v564 = vmul.f32 %v496, %v559
  %v565 = vmul.f32 %v497, %v559
  %v566 = vmul.f32 %v498, %v559
  %v567 = vmul.f32 %v499, %v559
  %v568 = vmul.f32 %v500, %v559
  %v569 = vmul.f32 %v501, %v559
  %v570 = vmul.f32 %v502, %v559
  %v571 = vmul.f32 %v503, %v559
  %v572 = vmul.f32 %v504, %v559
  %v573 = vmul.f32 %v505, %v559
  %v574 = vmul.f32 %v506, %v559
  %v575 = vmul.f32 %v507, %v559
  %v576 = vmul.f32 %v508, %v559
  %v577 = vmul.f32 %v509, %v559
  %v578 = vmul.f32 %v510, %v559
  %v579 = vmul.f32 %v511, %v559
  %v580 = vmul.f32 %v512, %v559
  %v581 = vmul.f32 %v513, %v559
  %v582 = vmul.f32 %v514, %v559
  %v583 = vmul.f32 %v515, %v559
  %v584 = vmul.f32 %v516, %v559
  %v585 = vmul.f32 %v517, %v559
  %v586 = vmul.f32 %v518, %v559
  %v587 = vmul.f32 %v519, %v559
  %v588 = vmul.f32 %v520, %v559
  %v589 = vmul.f32 %v521, %v559
  %v590 = vmul.f32 %v522, %v559
  %v591 = vmul.f32 %v523, %v559
  %v592 = vmul.f32 %v524, %v559
  %v593 = vmul.f32 %v525, %v559
  %v594 = vmul.f32 %v526, %v559
  %v595 = vmul.f32 %v527, %v559
  %v596 = vmul.f32 %v528, %v559
  %v597 = vmul.f32 %v529, %v559
  %v598 = vmul.f32 %v530, %v559
  %v599 = vmul.f32 %v531, %v559
  %v600 = vmul.f32 %v532, %v559
  %v601 = vmul.f32 %v533, %v559
  %v602 = vmul.f32 %v534, %v559
  %v603 = vmul.f32 %v535, %v559
  %v604 = vmul.f32 %v536, %v559
  %v605 = vmul.f32 %v537, %v559
  %v606 = vmul.f32 %v538, %v559
  %v607 = vmul.f32 %v539, %v559
  %v608 = vmul.f32 %v540, %v559
  %v609 = vmul.f32 %v541, %v559
  %v610 = vmul.f32 %v542, %v559
  %v611 = vmul.f32 %v543, %v559
  %v612 = vmul.f32 %v544, %v559
  %v613 = vmul.f32 %v545, %v559
  %v614 = vmul.f32 %v546, %v559
  %v615 = vmul.f32 %v547, %v559
  %v616 = vmul.f32 %v548, %v559
  %v617 = vmul.f32 %v549, %v559
  %v618 = vmul.f32 %v550, %v559
  %v619 = vmul.f32 %v551, %v559
  %v620 = vmul.f32 %v552, %v559
  %v621 = vmul.f32 %v553, %v559
  %v622 = vmul.f32 %v554, %v559
  %v623 = vmul.f32 %v555, %v559
  %v624 = vmul.f32 %v556, %v559
  %v625 = vld [vmem:[%s2] sm:$0x1]
  %v627 = vperm.slane %v625, 0
  %v629 = vadd.f32 %v561, %v627
  %v630 = vadd.f32 %v562, %v627
  %v631 = vadd.f32 %v563, %v627
  %v632 = vadd.f32 %v564, %v627
  %v633 = vadd.f32 %v565, %v627
  %v634 = vadd.f32 %v566, %v627
  %v635 = vadd.f32 %v567, %v627
  %v636 = vadd.f32 %v568, %v627
  %v637 = vadd.f32 %v569, %v627
  %v638 = vadd.f32 %v570, %v627
  %v639 = vadd.f32 %v571, %v627
  %v640 = vadd.f32 %v572, %v627
  %v641 = vadd.f32 %v573, %v627
  %v642 = vadd.f32 %v574, %v627
  %v643 = vadd.f32 %v575, %v627
  %v644 = vadd.f32 %v576, %v627
  %v645 = vadd.f32 %v577, %v627
  %v646 = vadd.f32 %v578, %v627
  %v647 = vadd.f32 %v579, %v627
  %v648 = vadd.f32 %v580, %v627
  %v649 = vadd.f32 %v581, %v627
  %v650 = vadd.f32 %v582, %v627
  %v651 = vadd.f32 %v583, %v627
  %v652 = vadd.f32 %v584, %v627
  %v653 = vadd.f32 %v585, %v627
  %v654 = vadd.f32 %v586, %v627
  %v655 = vadd.f32 %v587, %v627
  %v656 = vadd.f32 %v588, %v627
  %v657 = vadd.f32 %v589, %v627
  %v658 = vadd.f32 %v590, %v627
  %v659 = vadd.f32 %v591, %v627
  %v660 = vadd.f32 %v592, %v627
  %v661 = vadd.f32 %v593, %v627
  %v662 = vadd.f32 %v594, %v627
  %v663 = vadd.f32 %v595, %v627
  %v664 = vadd.f32 %v596, %v627
  %v665 = vadd.f32 %v597, %v627
  %v666 = vadd.f32 %v598, %v627
  %v667 = vadd.f32 %v599, %v627
  %v668 = vadd.f32 %v600, %v627
  %v669 = vadd.f32 %v601, %v627
  %v670 = vadd.f32 %v602, %v627
  %v671 = vadd.f32 %v603, %v627
  %v672 = vadd.f32 %v604, %v627
  %v673 = vadd.f32 %v605, %v627
  %v674 = vadd.f32 %v606, %v627
  %v675 = vadd.f32 %v607, %v627
  %v676 = vadd.f32 %v608, %v627
  %v677 = vadd.f32 %v609, %v627
  %v678 = vadd.f32 %v610, %v627
  %v679 = vadd.f32 %v611, %v627
  %v680 = vadd.f32 %v612, %v627
  %v681 = vadd.f32 %v613, %v627
  %v682 = vadd.f32 %v614, %v627
  %v683 = vadd.f32 %v615, %v627
  %v684 = vadd.f32 %v616, %v627
  %v685 = vadd.f32 %v617, %v627
  %v686 = vadd.f32 %v618, %v627
  %v687 = vadd.f32 %v619, %v627
  %v688 = vadd.f32 %v620, %v627
  %v689 = vadd.f32 %v621, %v627
  %v690 = vadd.f32 %v622, %v627
  %v691 = vadd.f32 %v623, %v627
  %v692 = vadd.f32 %v624, %v627
  %v693 = vmax.f32 %v629, 0.0
  %v694 = vmax.f32 %v630, 0.0
  %v695 = vmax.f32 %v631, 0.0
  %v696 = vmax.f32 %v632, 0.0
  %v697 = vmax.f32 %v633, 0.0
  %v698 = vmax.f32 %v634, 0.0
  %v699 = vmax.f32 %v635, 0.0
  %v700 = vmax.f32 %v636, 0.0
  %v701 = vmax.f32 %v637, 0.0
  %v702 = vmax.f32 %v638, 0.0
  %v703 = vmax.f32 %v639, 0.0
  %v704 = vmax.f32 %v640, 0.0
  %v705 = vmax.f32 %v641, 0.0
  %v706 = vmax.f32 %v642, 0.0
  %v707 = vmax.f32 %v643, 0.0
  %v708 = vmax.f32 %v644, 0.0
  %v709 = vmax.f32 %v645, 0.0
  %v710 = vmax.f32 %v646, 0.0
  %v711 = vmax.f32 %v647, 0.0
  %v712 = vmax.f32 %v648, 0.0
  %v713 = vmax.f32 %v649, 0.0
  %v714 = vmax.f32 %v650, 0.0
  %v715 = vmax.f32 %v651, 0.0
  %v716 = vmax.f32 %v652, 0.0
  %v717 = vmax.f32 %v653, 0.0
  %v718 = vmax.f32 %v654, 0.0
  %v719 = vmax.f32 %v655, 0.0
  %v720 = vmax.f32 %v656, 0.0
  %v721 = vmax.f32 %v657, 0.0
  %v722 = vmax.f32 %v658, 0.0
  %v723 = vmax.f32 %v659, 0.0
  %v724 = vmax.f32 %v660, 0.0
  %v725 = vmax.f32 %v661, 0.0
  %v726 = vmax.f32 %v662, 0.0
  %v727 = vmax.f32 %v663, 0.0
  %v728 = vmax.f32 %v664, 0.0
  %v729 = vmax.f32 %v665, 0.0
  %v730 = vmax.f32 %v666, 0.0
  %v731 = vmax.f32 %v667, 0.0
  %v732 = vmax.f32 %v668, 0.0
  %v733 = vmax.f32 %v669, 0.0
  %v734 = vmax.f32 %v670, 0.0
  %v735 = vmax.f32 %v671, 0.0
  %v736 = vmax.f32 %v672, 0.0
  %v737 = vmax.f32 %v673, 0.0
  %v738 = vmax.f32 %v674, 0.0
  %v739 = vmax.f32 %v675, 0.0
  %v740 = vmax.f32 %v676, 0.0
  %v741 = vmax.f32 %v677, 0.0
  %v742 = vmax.f32 %v678, 0.0
  %v743 = vmax.f32 %v679, 0.0
  %v744 = vmax.f32 %v680, 0.0
  %v745 = vmax.f32 %v681, 0.0
  %v746 = vmax.f32 %v682, 0.0
  %v747 = vmax.f32 %v683, 0.0
  %v748 = vmax.f32 %v684, 0.0
  %v749 = vmax.f32 %v685, 0.0
  %v750 = vmax.f32 %v686, 0.0
  %v751 = vmax.f32 %v687, 0.0
  %v752 = vmax.f32 %v688, 0.0
  %v753 = vmax.f32 %v689, 0.0
  %v754 = vmax.f32 %v690, 0.0
  %v755 = vmax.f32 %v691, 0.0
  %v756 = vmax.f32 %v692, 0.0
  %757 = vst.msk [vmem:[%s3] sm:$0xff] %vm78, %v693
  %758 = vst.msk [vmem:[%s3 + $0x8] sm:$0xff] %vm78, %v694
  %759 = vst.msk [vmem:[%s3 + $0x10] sm:$0xff] %vm78, %v695
  %760 = vst.msk [vmem:[%s3 + $0x18] sm:$0xff] %vm78, %v696
  %761 = vst.msk [vmem:[%s3 + $0x20] sm:$0xff] %vm78, %v697
  %762 = vst.msk [vmem:[%s3 + $0x28] sm:$0xff] %vm78, %v698
  %763 = vst.msk [vmem:[%s3 + $0x30] sm:$0xff] %vm78, %v699
  %764 = vst.msk [vmem:[%s3 + $0x38] sm:$0xff] %vm78, %v700
  %765 = vst.msk [vmem:[%s3 + $0x40] sm:$0xff] %vm78, %v701
  %766 = vst.msk [vmem:[%s3 + $0x48] sm:$0xff] %vm78, %v702
  %767 = vst.msk [vmem:[%s3 + $0x50] sm:$0xff] %vm78, %v703
  %768 = vst.msk [vmem:[%s3 + $0x58] sm:$0xff] %vm78, %v704
  %769 = vst.msk [vmem:[%s3 + $0x60] sm:$0xff] %vm78, %v705
  %770 = vst.msk [vmem:[%s3 + $0x68] sm:$0xff] %vm78, %v706
  %771 = vst.msk [vmem:[%s3 + $0x70] sm:$0xff] %vm78, %v707
  %772 = vst.msk [vmem:[%s3 + $0x78] sm:$0xff] %vm78, %v708
  %773 = vst.msk [vmem:[%s3 + $0x80] sm:$0xff] %vm78, %v709
  %774 = vst.msk [vmem:[%s3 + $0x88] sm:$0xff] %vm78, %v710
  %775 = vst.msk [vmem:[%s3 + $0x90] sm:$0xff] %vm78, %v711
  %776 = vst.msk [vmem:[%s3 + $0x98] sm:$0xff] %vm78, %v712
  %777 = vst.msk [vmem:[%s3 + $0xa0] sm:$0xff] %vm78, %v713
  %778 = vst.msk [vmem:[%s3 + $0xa8] sm:$0xff] %vm78, %v714
  %779 = vst.msk [vmem:[%s3 + $0xb0] sm:$0xff] %vm78, %v715
  %780 = vst.msk [vmem:[%s3 + $0xb8] sm:$0xff] %vm78, %v716
  %781 = vst.msk [vmem:[%s3 + $0xc0] sm:$0xff] %vm78, %v717
  %782 = vst.msk [vmem:[%s3 + $0xc8] sm:$0xff] %vm78, %v718
  %783 = vst.msk [vmem:[%s3 + $0xd0] sm:$0xff] %vm78, %v719
  %784 = vst.msk [vmem:[%s3 + $0xd8] sm:$0xff] %vm78, %v720
  %785 = vst.msk [vmem:[%s3 + $0xe0] sm:$0xff] %vm78, %v721
  %786 = vst.msk [vmem:[%s3 + $0xe8] sm:$0xff] %vm78, %v722
  %787 = vst.msk [vmem:[%s3 + $0xf0] sm:$0xff] %vm78, %v723
  %788 = vst.msk [vmem:[%s3 + $0xf8] sm:$0xff] %vm78, %v724
  %789 = vst.msk [vmem:[%s3 + $0x100] sm:$0xff] %vm78, %v725
  %790 = vst.msk [vmem:[%s3 + $0x108] sm:$0xff] %vm78, %v726
  %791 = vst.msk [vmem:[%s3 + $0x110] sm:$0xff] %vm78, %v727
  %792 = vst.msk [vmem:[%s3 + $0x118] sm:$0xff] %vm78, %v728
  %793 = vst.msk [vmem:[%s3 + $0x120] sm:$0xff] %vm78, %v729
  %794 = vst.msk [vmem:[%s3 + $0x128] sm:$0xff] %vm78, %v730
  %795 = vst.msk [vmem:[%s3 + $0x130] sm:$0xff] %vm78, %v731
  %796 = vst.msk [vmem:[%s3 + $0x138] sm:$0xff] %vm78, %v732
  %797 = vst.msk [vmem:[%s3 + $0x140] sm:$0xff] %vm78, %v733
  %798 = vst.msk [vmem:[%s3 + $0x148] sm:$0xff] %vm78, %v734
  %799 = vst.msk [vmem:[%s3 + $0x150] sm:$0xff] %vm78, %v735
  %800 = vst.msk [vmem:[%s3 + $0x158] sm:$0xff] %vm78, %v736
  %801 = vst.msk [vmem:[%s3 + $0x160] sm:$0xff] %vm78, %v737
  %802 = vst.msk [vmem:[%s3 + $0x168] sm:$0xff] %vm78, %v738
  %803 = vst.msk [vmem:[%s3 + $0x170] sm:$0xff] %vm78, %v739
  %804 = vst.msk [vmem:[%s3 + $0x178] sm:$0xff] %vm78, %v740
  %805 = vst.msk [vmem:[%s3 + $0x180] sm:$0xff] %vm78, %v741
  %806 = vst.msk [vmem:[%s3 + $0x188] sm:$0xff] %vm78, %v742
  %807 = vst.msk [vmem:[%s3 + $0x190] sm:$0xff] %vm78, %v743
  %808 = vst.msk [vmem:[%s3 + $0x198] sm:$0xff] %vm78, %v744
  %809 = vst.msk [vmem:[%s3 + $0x1a0] sm:$0xff] %vm78, %v745
  %810 = vst.msk [vmem:[%s3 + $0x1a8] sm:$0xff] %vm78, %v746
  %811 = vst.msk [vmem:[%s3 + $0x1b0] sm:$0xff] %vm78, %v747
  %812 = vst.msk [vmem:[%s3 + $0x1b8] sm:$0xff] %vm78, %v748
  %813 = vst.msk [vmem:[%s3 + $0x1c0] sm:$0xff] %vm78, %v749
  %814 = vst.msk [vmem:[%s3 + $0x1c8] sm:$0xff] %vm78, %v750
  %815 = vst.msk [vmem:[%s3 + $0x1d0] sm:$0xff] %vm78, %v751
  %816 = vst.msk [vmem:[%s3 + $0x1d8] sm:$0xff] %vm78, %v752
  %817 = vst.msk [vmem:[%s3 + $0x1e0] sm:$0xff] %vm78, %v753
  %818 = vst.msk [vmem:[%s3 + $0x1e8] sm:$0xff] %vm78, %v754
  %819 = vst.msk [vmem:[%s3 + $0x1f0] sm:$0xff] %vm78, %v755
  %820 = vst.msk [vmem:[%s3 + $0x1f8] sm:$0xff] %vm78, %v756
  // Predicated region
  $region14: #{wgan_generator_forward.15} parent=0 // pred_check
    _
  $region15: #{wgan_generator_forward.15} parent=0 // pred_check_branch
    %822 = sbr.rel (0) target = $region17
  $region16: #{wgan_generator_forward.15} parent=0 // pred_region
    _
  $region17: #{wgan_generator_forward.15} parent=0 // pred_fallthru
    _
  // Predicated region
  $region18: #{wgan_generator_forward.15} parent=0 // pred_check
    _
  $region19: #{wgan_generator_forward.15} parent=0 // pred_check_branch
    %824 = sbr.rel (0) target = $region21
  $region20: #{wgan_generator_forward.15} parent=0 // pred_region
    _
  $region21: #{wgan_generator_forward.15} parent=0 // pred_fallthru
    _

// kernel: wgan_generator_forward.18
$region0: #{wgan_generator_forward.18}
  #allocation0 [shape = 'u32[]', space=smem, size = 0x4, offset = 0x4, fixed_abs, tag = 'smem constant byte address 0x4 - core index']
  #allocation1 [shape = 'u32[72,128]{1,0:T(1,128)}', space=vmem, size = 0x9000, scoped, tag = 'internal scratch']
  %s0 = inlined_call_operand.vmem [shape: bf16[2048,8], index: 0, kind: input, shape index: {}]
  %s1 = inlined_call_operand.vmem [shape: bf16[8,128], index: 1, kind: input, shape index: {}]
  %s2 = inlined_call_operand.vmem [shape: f32[2048,128], index: 2, kind: output, shape index: {}]
  %s3 = sld [smem:[#allocation0]]
  $region41: #{wgan_generator_forward.18} parent=0
    _
  %s5 = ssub.s32 1, %s3
  %s6 = scalar_select 0, %s5, %s3
  loop: start=0, step=1, limit=4
  $region2: #{wgan_generator_forward.18} parent=0 // loop_pre_header
    _
  $region3: #{wgan_generator_forward.18} parent=0 // loop_header
    %s8 = sphi 0, %s12
    %p9 = scmp.ge.s32.totalorder %s8, 4
    %s15 = sphi 0, %s27
    %s16 = sphi 0, %s23
    %s17 = sphi 0, %s15
    %s18 = sphi 0, %s16
    %s19 = sphi 0, %s17
    %s20 = sphi 0, %s18
    %s30 = sphi 0, %s32
    %s33 = sphi 0, %s30
    %s34 = sphi 0, %s33
    %s50 = sphi 0, %s34
    %s56 = sphi 0, %s58
    %s59 = sphi 0, %s56
    %s60 = sphi 0, %s59
    %s76 = sphi 0, %s60
    %s84 = sphi 0, %s86
    %s87 = sphi 0, %s84
    %s88 = sphi 0, %s87
    %s104 = sphi 0, %s88
  $region4: #{wgan_generator_forward.18} parent=0 // loop_header_branch
    %11 = sbr.rel (%p9) target = $region8
  $region5: #{wgan_generator_forward.18} parent=0 // loop_body
    %s13 = ssub.s32 %s8, 1
    %s14 = ssub.s32 %s8, 2
    %s21 = sadd.s32 1, %s16
    %p22 = scmp.ge.s32.totalorder %s21, 1
    %s23 = scalar_select %p22, 0, %s21
    %s24 = sadd.s32 1, %s15
    %s25 = scalar_select %p22, %s24, %s15
    %p26 = scmp.ge.s32.totalorder %s25, 2
    %s27 = scalar_select %p26, 0, %s25
    %s28 = ssub.s32 %s15, %s27
    %p29 = scmp.eq.s32.totalorder %s28, 0
    %s31 = sadd.s32 %s30, 1
    %s32 = scalar_select %p29, %s30, %s31
    %p35 = pneg %p29
    %p36 = scmp.eq.s32.totalorder %s8, 1
    %p37 = por %p35, %p36
    %p38 = scmp.ne.s32.totalorder %s30, %s33
    %p39 = scmp.eq.s32.totalorder %s8, 0
    %p40 = por %p38, %p39
    %p41 = scmp.ne.s32.totalorder %s30, %s33
    %p42 = scmp.eq.s32.totalorder %s13, 1
    %p43 = por %p41, %p42
    %p44 = scmp.ne.s32.totalorder %s33, %s34
    %p45 = scmp.eq.s32.totalorder %s13, 0
    %p46 = por %p44, %p45
    %p47 = scmp.ne.s32.totalorder %s33, %s34
    %p48 = scmp.eq.s32.totalorder %s14, 1
    %p49 = por %p47, %p48
    %p51 = scmp.ne.s32.totalorder %s34, %s50
    %p52 = scmp.eq.s32.totalorder %s14, 0
    %p53 = por %p51, %p52
    %s54 = ssub.s32 %s16, %s23
    %p55 = scmp.eq.s32.totalorder %s54, 0
    %s57 = sadd.s32 %s56, 1
    %s58 = scalar_select %p55, %s56, %s57
    %p61 = pneg %p55
    %p62 = scmp.eq.s32.totalorder %s8, 1
    %p63 = por %p61, %p62
    %p64 = scmp.ne.s32.totalorder %s56, %s59
    %p65 = scmp.eq.s32.totalorder %s8, 0
    %p66 = por %p64, %p65
    %p67 = scmp.ne.s32.totalorder %s56, %s59
    %p68 = scmp.eq.s32.totalorder %s13, 1
    %p69 = por %p67, %p68
    %p70 = scmp.ne.s32.totalorder %s59, %s60
    %p71 = scmp.eq.s32.totalorder %s13, 0
    %p72 = por %p70, %p71
    %p73 = scmp.ne.s32.totalorder %s59, %s60
    %p74 = scmp.eq.s32.totalorder %s14, 1
    %p75 = por %p73, %p74
    %p77 = scmp.ne.s32.totalorder %s60, %s76
    %p78 = scmp.eq.s32.totalorder %s14, 0
    %p79 = por %p77, %p78
    %s80 = ssub.s32 %s15, %s27
    %s81 = ssub.s32 %s16, %s23
    %s82 = sor.u32 %s80, %s81
    %p83 = scmp.eq.s32.totalorder %s82, 0
    %s85 = sadd.s32 %s84, 1
    %s86 = scalar_select %p83, %s84, %s85
    %p89 = pneg %p83
    %p90 = scmp.eq.s32.totalorder %s8, 1
    %p91 = por %p89, %p90
    %p92 = scmp.ne.s32.totalorder %s84, %s87
    %p93 = scmp.eq.s32.totalorder %s8, 0
    %p94 = por %p92, %p93
    %p95 = scmp.ne.s32.totalorder %s84, %s87
    %p96 = scmp.eq.s32.totalorder %s13, 1
    %p97 = por %p95, %p96
    %p98 = scmp.ne.s32.totalorder %s87, %s88
    %p99 = scmp.eq.s32.totalorder %s13, 0
    %p100 = por %p98, %p99
    %p101 = scmp.ne.s32.totalorder %s87, %s88
    %p102 = scmp.eq.s32.totalorder %s14, 1
    %p103 = por %p101, %p102
    %p105 = scmp.ne.s32.totalorder %s88, %s104
    %p106 = scmp.eq.s32.totalorder %s14, 0
    %p107 = por %p105, %p106
    %p108 = scmp.le.s32.totalorder 1, %s8
    %p109 = scmp.lt.s32.totalorder %s8, 3
    %p110 = pnand %p108, %p109
    %p111 = pneg %p110
    // Predicated region
    $region9: #{wgan_generator_forward.18} parent=5 // pred_check
      _
    $region10: #{wgan_generator_forward.18} parent=5 // pred_check_branch
      %113 = sbr.rel (%p110) target = $region12
    $region11: #{wgan_generator_forward.18} parent=5 // pred_region
      %s114 = ssub.s32 %s8, 1
      // Predicated region
      $region13: #{wgan_generator_forward.18} parent=11 // pred_check
        %p115 = pneg %p72
      $region14: #{wgan_generator_forward.18} parent=11 // pred_check_branch
        %117 = sbr.rel (%p115) target = $region16
      $region15: #{wgan_generator_forward.18} parent=11 // pred_region
        %p118 = scmp.lt.s32.totalorder %s18, 0
        %s119 = scalar_select %p118, %s18, 0
        %s120 = smul.addr %s119, 4
        %s121 = scalar_lea.vmem %s1, %s120
      $region16: #{wgan_generator_forward.18} parent=11 // pred_fallthru
        _
    $region12: #{wgan_generator_forward.18} parent=5 // pred_fallthru
      _
    %p122 = scmp.lt.s32.totalorder %s8, 2
    // Predicated region
    $region17: #{wgan_generator_forward.18} parent=5 // pred_check
      %p123 = pneg %p122
    $region18: #{wgan_generator_forward.18} parent=5 // pred_check_branch
      %125 = sbr.rel (%p123) target = $region20
    $region19: #{wgan_generator_forward.18} parent=5 // pred_region
      // Predicated region
      $region21: #{wgan_generator_forward.18} parent=19 // pred_check
        %p126 = pneg %p40
      $region22: #{wgan_generator_forward.18} parent=19 // pred_check_branch
        %128 = sbr.rel (%p126) target = $region24
      $region23: #{wgan_generator_forward.18} parent=19 // pred_region
        %s129 = smul.u32 128, %s15
        %p130 = scmp.lt.s32.totalorder %s129, 255
        %s131 = scalar_select %p130, %s129, 255
        %s132 = smul.addr %s131, 4
        %s133 = scalar_lea.vmem %s0, %s132
        %s134 = smul.u32 128, %s15
      $region24: #{wgan_generator_forward.18} parent=19 // pred_fallthru
        _
    $region20: #{wgan_generator_forward.18} parent=5 // pred_fallthru
      _
    %p135 = scmp.le.s32.totalorder 1, %s8
    %p136 = scmp.lt.s32.totalorder %s8, 3
    %p137 = pnand %p135, %p136
    %p138 = pneg %p137
    // Predicated region
    $region25: #{wgan_generator_forward.18} parent=5 // pred_check
      _
    $region26: #{wgan_generator_forward.18} parent=5 // pred_check_branch
      %140 = sbr.rel (%p137) target = $region28
    $region27: #{wgan_generator_forward.18} parent=5 // pred_region
      %s141 = ssub.s32 %s8, 1
      %s142 = smul.u32 128, %s17
      %p143 = scmp.lt.s32.totalorder %s142, 255
      %s144 = scalar_select %p143, %s142, 255
      %s145 = smul.addr %s144, 4
      %s146 = scalar_lea.vmem %s0, %s145
      %p147 = pneg %p46
      %p148 = pneg %p43
      %p149 = scmp.lt.s32.totalorder %s18, 0
      %s150 = scalar_select %p149, %s18, 0
      %s151 = smul.addr %s150, 4
      %s152 = scalar_lea.vmem %s1, %s151
      %p153 = pneg %p72
      %p154 = pneg %p69
      %p155 = pneg %p100
      %p156 = pneg %p97
      %s157 = smul.u32 128, %s17
      %p158 = scmp.lt.s32.totalorder %s157, 255
      %s159 = scalar_select %p158, %s157, 255
      %p160 = scmp.lt.s32.totalorder %s18, 0
      %s161 = scalar_select %p160, %s18, 0
      %s162 = sadd.s32 %s161, %s159
      %s163 = smul.addr %s162, 8
      %s164 = scalar_lea.vmem %s2, %s163
      %s165 = smul.u32 128, %s17
      %p166 = scmp.lt.s32.totalorder %s165, 255
      %s167 = scalar_select %p166, %s165, 255
      %s168 = smul.addr %s167, 4
      %s169 = scalar_lea.vmem %s0, %s168
      %s170 = smul.u32 128, %s17
      %p171 = scmp.lt.s32.totalorder %s18, 0
      %s172 = scalar_select %p171, %s18, 0
      %s173 = smul.addr %s172, 4
      %s174 = scalar_lea.vmem %s1, %s173
      %s175 = smul.u32 128, %s17
      %p176 = scmp.lt.s32.totalorder %s175, 255
      %s177 = scalar_select %p176, %s175, 255
      %p178 = scmp.lt.s32.totalorder %s18, 0
      %s179 = scalar_select %p178, %s18, 0
      %s180 = sadd.s32 %s179, %s177
      %s181 = smul.addr %s180, 8
      %s182 = scalar_lea.vmem %s2, %s181
      %s183 = smul.u32 128, %s17
      %v185 = vld [vmem:[%s169] sm:$0xf]
      %v186 = vld [vmem:[%s169 + $0x4] sm:$0xf]
      %v187 = vld [vmem:[%s169 + $0x8] sm:$0xf]
      %v188 = vld [vmem:[%s169 + $0xc] sm:$0xf]
      %v189 = vld [vmem:[%s169 + $0x10] sm:$0xf]
      %v190 = vld [vmem:[%s169 + $0x14] sm:$0xf]
      %v191 = vld [vmem:[%s169 + $0x18] sm:$0xf]
      %v192 = vld [vmem:[%s169 + $0x1c] sm:$0xf]
      %v193 = vld [vmem:[%s169 + $0x20] sm:$0xf]
      %v194 = vld [vmem:[%s169 + $0x24] sm:$0xf]
      %v195 = vld [vmem:[%s169 + $0x28] sm:$0xf]
      %v196 = vld [vmem:[%s169 + $0x2c] sm:$0xf]
      %v197 = vld [vmem:[%s169 + $0x30] sm:$0xf]
      %v198 = vld [vmem:[%s169 + $0x34] sm:$0xf]
      %v199 = vld [vmem:[%s169 + $0x38] sm:$0xf]
      %v200 = vld [vmem:[%s169 + $0x3c] sm:$0xf]
      %v201 = vld [vmem:[%s169 + $0x40] sm:$0xf]
      %v202 = vld [vmem:[%s169 + $0x44] sm:$0xf]
      %v203 = vld [vmem:[%s169 + $0x48] sm:$0xf]
      %v204 = vld [vmem:[%s169 + $0x4c] sm:$0xf]
      %v205 = vld [vmem:[%s169 + $0x50] sm:$0xf]
      %v206 = vld [vmem:[%s169 + $0x54] sm:$0xf]
      %v207 = vld [vmem:[%s169 + $0x58] sm:$0xf]
      %v208 = vld [vmem:[%s169 + $0x5c] sm:$0xf]
      %v209 = vld [vmem:[%s169 + $0x60] sm:$0xf]
      %v210 = vld [vmem:[%s169 + $0x64] sm:$0xf]
      %v211 = vld [vmem:[%s169 + $0x68] sm:$0xf]
      %v212 = vld [vmem:[%s169 + $0x6c] sm:$0xf]
      %v213 = vld [vmem:[%s169 + $0x70] sm:$0xf]
      %v214 = vld [vmem:[%s169 + $0x74] sm:$0xf]
      %v215 = vld [vmem:[%s169 + $0x78] sm:$0xf]
      %v216 = vld [vmem:[%s169 + $0x7c] sm:$0xf]
      %v217 = vld [vmem:[%s169 + $0x80] sm:$0xf]
      %v218 = vld [vmem:[%s169 + $0x84] sm:$0xf]
      %v219 = vld [vmem:[%s169 + $0x88] sm:$0xf]
      %v220 = vld [vmem:[%s169 + $0x8c] sm:$0xf]
      %v221 = vld [vmem:[%s169 + $0x90] sm:$0xf]
      %v222 = vld [vmem:[%s169 + $0x94] sm:$0xf]
      %v223 = vld [vmem:[%s169 + $0x98] sm:$0xf]
      %v224 = vld [vmem:[%s169 + $0x9c] sm:$0xf]
      %v225 = vld [vmem:[%s169 + $0xa0] sm:$0xf]
      %v226 = vld [vmem:[%s169 + $0xa4] sm:$0xf]
      %v227 = vld [vmem:[%s169 + $0xa8] sm:$0xf]
      %v228 = vld [vmem:[%s169 + $0xac] sm:$0xf]
      %v229 = vld [vmem:[%s169 + $0xb0] sm:$0xf]
      %v230 = vld [vmem:[%s169 + $0xb4] sm:$0xf]
      %v231 = vld [vmem:[%s169 + $0xb8] sm:$0xf]
      %v232 = vld [vmem:[%s169 + $0xbc] sm:$0xf]
      %v233 = vld [vmem:[%s169 + $0xc0] sm:$0xf]
      %v234 = vld [vmem:[%s169 + $0xc4] sm:$0xf]
      %v235 = vld [vmem:[%s169 + $0xc8] sm:$0xf]
      %v236 = vld [vmem:[%s169 + $0xcc] sm:$0xf]
      %v237 = vld [vmem:[%s169 + $0xd0] sm:$0xf]
      %v238 = vld [vmem:[%s169 + $0xd4] sm:$0xf]
      %v239 = vld [vmem:[%s169 + $0xd8] sm:$0xf]
      %v240 = vld [vmem:[%s169 + $0xdc] sm:$0xf]
      %v241 = vld [vmem:[%s169 + $0xe0] sm:$0xf]
      %v242 = vld [vmem:[%s169 + $0xe4] sm:$0xf]
      %v243 = vld [vmem:[%s169 + $0xe8] sm:$0xf]
      %v244 = vld [vmem:[%s169 + $0xec] sm:$0xf]
      %v245 = vld [vmem:[%s169 + $0xf0] sm:$0xf]
      %v246 = vld [vmem:[%s169 + $0xf4] sm:$0xf]
      %v247 = vld [vmem:[%s169 + $0xf8] sm:$0xf]
      %v248 = vld [vmem:[%s169 + $0xfc] sm:$0xf]
      %v249 = vld [vmem:[%s169 + $0x100] sm:$0xf]
      %v250 = vld [vmem:[%s169 + $0x104] sm:$0xf]
      %v251 = vld [vmem:[%s169 + $0x108] sm:$0xf]
      %v252 = vld [vmem:[%s169 + $0x10c] sm:$0xf]
      %v253 = vld [vmem:[%s169 + $0x110] sm:$0xf]
      %v254 = vld [vmem:[%s169 + $0x114] sm:$0xf]
      %v255 = vld [vmem:[%s169 + $0x118] sm:$0xf]
      %v256 = vld [vmem:[%s169 + $0x11c] sm:$0xf]
      %v257 = vld [vmem:[%s169 + $0x120] sm:$0xf]
      %v258 = vld [vmem:[%s169 + $0x124] sm:$0xf]
      %v259 = vld [vmem:[%s169 + $0x128] sm:$0xf]
      %v260 = vld [vmem:[%s169 + $0x12c] sm:$0xf]
      %v261 = vld [vmem:[%s169 + $0x130] sm:$0xf]
      %v262 = vld [vmem:[%s169 + $0x134] sm:$0xf]
      %v263 = vld [vmem:[%s169 + $0x138] sm:$0xf]
      %v264 = vld [vmem:[%s169 + $0x13c] sm:$0xf]
      %v265 = vld [vmem:[%s169 + $0x140] sm:$0xf]
      %v266 = vld [vmem:[%s169 + $0x144] sm:$0xf]
      %v267 = vld [vmem:[%s169 + $0x148] sm:$0xf]
      %v268 = vld [vmem:[%s169 + $0x14c] sm:$0xf]
      %v269 = vld [vmem:[%s169 + $0x150] sm:$0xf]
      %v270 = vld [vmem:[%s169 + $0x154] sm:$0xf]
      %v271 = vld [vmem:[%s169 + $0x158] sm:$0xf]
      %v272 = vld [vmem:[%s169 + $0x15c] sm:$0xf]
      %v273 = vld [vmem:[%s169 + $0x160] sm:$0xf]
      %v274 = vld [vmem:[%s169 + $0x164] sm:$0xf]
      %v275 = vld [vmem:[%s169 + $0x168] sm:$0xf]
      %v276 = vld [vmem:[%s169 + $0x16c] sm:$0xf]
      %v277 = vld [vmem:[%s169 + $0x170] sm:$0xf]
      %v278 = vld [vmem:[%s169 + $0x174] sm:$0xf]
      %v279 = vld [vmem:[%s169 + $0x178] sm:$0xf]
      %v280 = vld [vmem:[%s169 + $0x17c] sm:$0xf]
      %v281 = vld [vmem:[%s169 + $0x180] sm:$0xf]
      %v282 = vld [vmem:[%s169 + $0x184] sm:$0xf]
      %v283 = vld [vmem:[%s169 + $0x188] sm:$0xf]
      %v284 = vld [vmem:[%s169 + $0x18c] sm:$0xf]
      %v285 = vld [vmem:[%s169 + $0x190] sm:$0xf]
      %v286 = vld [vmem:[%s169 + $0x194] sm:$0xf]
      %v287 = vld [vmem:[%s169 + $0x198] sm:$0xf]
      %v288 = vld [vmem:[%s169 + $0x19c] sm:$0xf]
      %v289 = vld [vmem:[%s169 + $0x1a0] sm:$0xf]
      %v290 = vld [vmem:[%s169 + $0x1a4] sm:$0xf]
      %v291 = vld [vmem:[%s169 + $0x1a8] sm:$0xf]
      %v292 = vld [vmem:[%s169 + $0x1ac] sm:$0xf]
      %v293 = vld [vmem:[%s169 + $0x1b0] sm:$0xf]
      %v294 = vld [vmem:[%s169 + $0x1b4] sm:$0xf]
      %v295 = vld [vmem:[%s169 + $0x1b8] sm:$0xf]
      %v296 = vld [vmem:[%s169 + $0x1bc] sm:$0xf]
      %v297 = vld [vmem:[%s169 + $0x1c0] sm:$0xf]
      %v298 = vld [vmem:[%s169 + $0x1c4] sm:$0xf]
      %v299 = vld [vmem:[%s169 + $0x1c8] sm:$0xf]
      %v300 = vld [vmem:[%s169 + $0x1cc] sm:$0xf]
      %v301 = vld [vmem:[%s169 + $0x1d0] sm:$0xf]
      %v302 = vld [vmem:[%s169 + $0x1d4] sm:$0xf]
      %v303 = vld [vmem:[%s169 + $0x1d8] sm:$0xf]
      %v304 = vld [vmem:[%s169 + $0x1dc] sm:$0xf]
      %v305 = vld [vmem:[%s169 + $0x1e0] sm:$0xf]
      %v306 = vld [vmem:[%s169 + $0x1e4] sm:$0xf]
      %v307 = vld [vmem:[%s169 + $0x1e8] sm:$0xf]
      %v308 = vld [vmem:[%s169 + $0x1ec] sm:$0xf]
      %v309 = vld [vmem:[%s169 + $0x1f0] sm:$0xf]
      %v310 = vld [vmem:[%s169 + $0x1f4] sm:$0xf]
      %v311 = vld [vmem:[%s169 + $0x1f8] sm:$0xf]
      %v312 = vld [vmem:[%s169 + $0x1fc] sm:$0xf]
      %v313 = vld [vmem:[%s174] sm:$0xf]
      %v442 = vunpack.c.l.b16 %v185
      %v443 = vunpack.c.l.b16 %v186
      %v444 = vunpack.c.l.b16 %v187
      %v445 = vunpack.c.l.b16 %v188
      %v446 = vunpack.c.l.b16 %v189
      %v447 = vunpack.c.l.b16 %v190
      %v448 = vunpack.c.l.b16 %v191
      %v449 = vunpack.c.l.b16 %v192
      %v450 = vunpack.c.l.b16 %v193
      %v451 = vunpack.c.l.b16 %v194
      %v452 = vunpack.c.l.b16 %v195
      %v453 = vunpack.c.l.b16 %v196
      %v454 = vunpack.c.l.b16 %v197
      %v455 = vunpack.c.l.b16 %v198
      %v456 = vunpack.c.l.b16 %v199
      %v457 = vunpack.c.l.b16 %v200
      %v458 = vunpack.c.l.b16 %v201
      %v459 = vunpack.c.l.b16 %v202
      %v460 = vunpack.c.l.b16 %v203
      %v461 = vunpack.c.l.b16 %v204
      %v462 = vunpack.c.l.b16 %v205
      %v463 = vunpack.c.l.b16 %v206
      %v464 = vunpack.c.l.b16 %v207
      %v465 = vunpack.c.l.b16 %v208
      %v466 = vunpack.c.l.b16 %v209
      %v467 = vunpack.c.l.b16 %v210
      %v468 = vunpack.c.l.b16 %v211
      %v469 = vunpack.c.l.b16 %v212
      %v470 = vunpack.c.l.b16 %v213
      %v471 = vunpack.c.l.b16 %v214
      %v472 = vunpack.c.l.b16 %v215
      %v473 = vunpack.c.l.b16 %v216
      %v474 = vunpack.c.l.b16 %v217
      %v475 = vunpack.c.l.b16 %v218
      %v476 = vunpack.c.l.b16 %v219
      %v477 = vunpack.c.l.b16 %v220
      %v478 = vunpack.c.l.b16 %v221
      %v479 = vunpack.c.l.b16 %v222
      %v480 = vunpack.c.l.b16 %v223
      %v481 = vunpack.c.l.b16 %v224
      %v482 = vunpack.c.l.b16 %v225
      %v483 = vunpack.c.l.b16 %v226
      %v484 = vunpack.c.l.b16 %v227
      %v485 = vunpack.c.l.b16 %v228
      %v486 = vunpack.c.l.b16 %v229
      %v487 = vunpack.c.l.b16 %v230
      %v488 = vunpack.c.l.b16 %v231
      %v489 = vunpack.c.l.b16 %v232
      %v490 = vunpack.c.l.b16 %v233
      %v491 = vunpack.c.l.b16 %v234
      %v492 = vunpack.c.l.b16 %v235
      %v493 = vunpack.c.l.b16 %v236
      %v494 = vunpack.c.l.b16 %v237
      %v495 = vunpack.c.l.b16 %v238
      %v496 = vunpack.c.l.b16 %v239
      %v497 = vunpack.c.l.b16 %v240
      %v498 = vunpack.c.l.b16 %v241
      %v499 = vunpack.c.l.b16 %v242
      %v500 = vunpack.c.l.b16 %v243
      %v501 = vunpack.c.l.b16 %v244
      %v502 = vunpack.c.l.b16 %v245
      %v503 = vunpack.c.l.b16 %v246
      %v504 = vunpack.c.l.b16 %v247
      %v505 = vunpack.c.l.b16 %v248
      %v506 = vunpack.c.l.b16 %v249
      %v507 = vunpack.c.l.b16 %v250
      %v508 = vunpack.c.l.b16 %v251
      %v509 = vunpack.c.l.b16 %v252
      %v510 = vunpack.c.l.b16 %v253
      %v511 = vunpack.c.l.b16 %v254
      %v512 = vunpack.c.l.b16 %v255
      %v513 = vunpack.c.l.b16 %v256
      %v514 = vunpack.c.l.b16 %v257
      %v515 = vunpack.c.l.b16 %v258
      %v516 = vunpack.c.l.b16 %v259
      %v517 = vunpack.c.l.b16 %v260
      %v518 = vunpack.c.l.b16 %v261
      %v519 = vunpack.c.l.b16 %v262
      %v520 = vunpack.c.l.b16 %v263
      %v521 = vunpack.c.l.b16 %v264
      %v522 = vunpack.c.l.b16 %v265
      %v523 = vunpack.c.l.b16 %v266
      %v524 = vunpack.c.l.b16 %v267
      %v525 = vunpack.c.l.b16 %v268
      %v526 = vunpack.c.l.b16 %v269
      %v527 = vunpack.c.l.b16 %v270
      %v528 = vunpack.c.l.b16 %v271
      %v529 = vunpack.c.l.b16 %v272
      %v530 = vunpack.c.l.b16 %v273
      %v531 = vunpack.c.l.b16 %v274
      %v532 = vunpack.c.l.b16 %v275
      %v533 = vunpack.c.l.b16 %v276
      %v534 = vunpack.c.l.b16 %v277
      %v535 = vunpack.c.l.b16 %v278
      %v536 = vunpack.c.l.b16 %v279
      %v537 = vunpack.c.l.b16 %v280
      %v538 = vunpack.c.l.b16 %v281
      %v539 = vunpack.c.l.b16 %v282
      %v540 = vunpack.c.l.b16 %v283
      %v541 = vunpack.c.l.b16 %v284
      %v542 = vunpack.c.l.b16 %v285
      %v543 = vunpack.c.l.b16 %v286
      %v544 = vunpack.c.l.b16 %v287
      %v545 = vunpack.c.l.b16 %v288
      %v546 = vunpack.c.l.b16 %v289
      %v547 = vunpack.c.l.b16 %v290
      %v548 = vunpack.c.l.b16 %v291
      %v549 = vunpack.c.l.b16 %v292
      %v550 = vunpack.c.l.b16 %v293
      %v551 = vunpack.c.l.b16 %v294
      %v552 = vunpack.c.l.b16 %v295
      %v553 = vunpack.c.l.b16 %v296
      %v554 = vunpack.c.l.b16 %v297
      %v555 = vunpack.c.l.b16 %v298
      %v556 = vunpack.c.l.b16 %v299
      %v557 = vunpack.c.l.b16 %v300
      %v558 = vunpack.c.l.b16 %v301
      %v559 = vunpack.c.l.b16 %v302
      %v560 = vunpack.c.l.b16 %v303
      %v561 = vunpack.c.l.b16 %v304
      %v562 = vunpack.c.l.b16 %v305
      %v563 = vunpack.c.l.b16 %v306
      %v564 = vunpack.c.l.b16 %v307
      %v565 = vunpack.c.l.b16 %v308
      %v566 = vunpack.c.l.b16 %v309
      %v567 = vunpack.c.l.b16 %v310
      %v568 = vunpack.c.l.b16 %v311
      %v569 = vunpack.c.l.b16 %v312
      %v570 = vpack.c.b16 %v443, %v442
      %v571 = vpack.c.b16 %v445, %v444
      %v572 = vpack.c.b16 %v447, %v446
      %v573 = vpack.c.b16 %v449, %v448
      %v574 = vpack.c.b16 %v451, %v450
      %v575 = vpack.c.b16 %v453, %v452
      %v576 = vpack.c.b16 %v455, %v454
      %v577 = vpack.c.b16 %v457, %v456
      %v578 = vpack.c.b16 %v459, %v458
      %v579 = vpack.c.b16 %v461, %v460
      %v580 = vpack.c.b16 %v463, %v462
      %v581 = vpack.c.b16 %v465, %v464
      %v582 = vpack.c.b16 %v467, %v466
      %v583 = vpack.c.b16 %v469, %v468
      %v584 = vpack.c.b16 %v471, %v470
      %v585 = vpack.c.b16 %v473, %v472
      %v586 = vpack.c.b16 %v475, %v474
      %v587 = vpack.c.b16 %v477, %v476
      %v588 = vpack.c.b16 %v479, %v478
      %v589 = vpack.c.b16 %v481, %v480
      %v590 = vpack.c.b16 %v483, %v482
      %v591 = vpack.c.b16 %v485, %v484
      %v592 = vpack.c.b16 %v487, %v486
      %v593 = vpack.c.b16 %v489, %v488
      %v594 = vpack.c.b16 %v491, %v490
      %v595 = vpack.c.b16 %v493, %v492
      %v596 = vpack.c.b16 %v495, %v494
      %v597 = vpack.c.b16 %v497, %v496
      %v598 = vpack.c.b16 %v499, %v498
      %v599 = vpack.c.b16 %v501, %v500
      %v600 = vpack.c.b16 %v503, %v502
      %v601 = vpack.c.b16 %v505, %v504
      %v602 = vpack.c.b16 %v507, %v506
      %v603 = vpack.c.b16 %v509, %v508
      %v604 = vpack.c.b16 %v511, %v510
      %v605 = vpack.c.b16 %v513, %v512
      %v606 = vpack.c.b16 %v515, %v514
      %v607 = vpack.c.b16 %v517, %v516
      %v608 = vpack.c.b16 %v519, %v518
      %v609 = vpack.c.b16 %v521, %v520
      %v610 = vpack.c.b16 %v523, %v522
      %v611 = vpack.c.b16 %v525, %v524
      %v612 = vpack.c.b16 %v527, %v526
      %v613 = vpack.c.b16 %v529, %v528
      %v614 = vpack.c.b16 %v531, %v530
      %v615 = vpack.c.b16 %v533, %v532
      %v616 = vpack.c.b16 %v535, %v534
      %v617 = vpack.c.b16 %v537, %v536
      %v618 = vpack.c.b16 %v539, %v538
      %v619 = vpack.c.b16 %v541, %v540
      %v620 = vpack.c.b16 %v543, %v542
      %v621 = vpack.c.b16 %v545, %v544
      %v622 = vpack.c.b16 %v547, %v546
      %v623 = vpack.c.b16 %v549, %v548
      %v624 = vpack.c.b16 %v551, %v550
      %v625 = vpack.c.b16 %v553, %v552
      %v626 = vpack.c.b16 %v555, %v554
      %v627 = vpack.c.b16 %v557, %v556
      %v628 = vpack.c.b16 %v559, %v558
      %v629 = vpack.c.b16 %v561, %v560
      %v630 = vpack.c.b16 %v563, %v562
      %v631 = vpack.c.b16 %v565, %v564
      %v632 = vpack.c.b16 %v567, %v566
      %v633 = vpack.c.b16 %v569, %v568
      %vm634 = vcmask 64512
      %v636 = vsel %vm634, %v570, 0
      %v639 = vsel %vm634, %v571, 0
      %v642 = vsel %vm634, %v572, 0
      %v645 = vsel %vm634, %v573, 0
      %v648 = vsel %vm634, %v574, 0
      %v651 = vsel %vm634, %v575, 0
      %v654 = vsel %vm634, %v576, 0
      %v657 = vsel %vm634, %v577, 0
      %v660 = vsel %vm634, %v578, 0
      %v663 = vsel %vm634, %v579, 0
      %v666 = vsel %vm634, %v580, 0
      %v669 = vsel %vm634, %v581, 0
      %v672 = vsel %vm634, %v582, 0
      %v675 = vsel %vm634, %v583, 0
      %v678 = vsel %vm634, %v584, 0
      %v681 = vsel %vm634, %v585, 0
      %v684 = vsel %vm634, %v586, 0
      %v687 = vsel %vm634, %v587, 0
      %v690 = vsel %vm634, %v588, 0
      %v693 = vsel %vm634, %v589, 0
      %v696 = vsel %vm634, %v590, 0
      %v699 = vsel %vm634, %v591, 0
      %v702 = vsel %vm634, %v592, 0
      %v705 = vsel %vm634, %v593, 0
      %v708 = vsel %vm634, %v594, 0
      %v711 = vsel %vm634, %v595, 0
      %v714 = vsel %vm634, %v596, 0
      %v717 = vsel %vm634, %v597, 0
      %v720 = vsel %vm634, %v598, 0
      %v723 = vsel %vm634, %v599, 0
      %v726 = vsel %vm634, %v600, 0
      %v729 = vsel %vm634, %v601, 0
      %v732 = vsel %vm634, %v602, 0
      %v735 = vsel %vm634, %v603, 0
      %v738 = vsel %vm634, %v604, 0
      %v741 = vsel %vm634, %v605, 0
      %v744 = vsel %vm634, %v606, 0
      %v747 = vsel %vm634, %v607, 0
      %v750 = vsel %vm634, %v608, 0
      %v753 = vsel %vm634, %v609, 0
      %v756 = vsel %vm634, %v610, 0
      %v759 = vsel %vm634, %v611, 0
      %v762 = vsel %vm634, %v612, 0
      %v765 = vsel %vm634, %v613, 0
      %v768 = vsel %vm634, %v614, 0
      %v771 = vsel %vm634, %v615, 0
      %v774 = vsel %vm634, %v616, 0
      %v777 = vsel %vm634, %v617, 0
      %v780 = vsel %vm634, %v618, 0
      %v783 = vsel %vm634, %v619, 0
      %v786 = vsel %vm634, %v620, 0
      %v789 = vsel %vm634, %v621, 0
      %v792 = vsel %vm634, %v622, 0
      %v795 = vsel %vm634, %v623, 0
      %v798 = vsel %vm634, %v624, 0
      %v801 = vsel %vm634, %v625, 0
      %v804 = vsel %vm634, %v626, 0
      %v807 = vsel %vm634, %v627, 0
      %v810 = vsel %vm634, %v628, 0
      %v813 = vsel %vm634, %v629, 0
      %v816 = vsel %vm634, %v630, 0
      %v819 = vsel %vm634, %v631, 0
      %v822 = vsel %vm634, %v632, 0
      %v825 = vsel %vm634, %v633, 0
      %vm827 = vcmask 1043456
      %v829 = vsel %vm827, %v313, 0
      %831 = vmatpush.bf16.msra.mxu0 0
      %832 = vmatpush.bf16.msra.mxu0 0
      %833 = vmatpush.bf16.msra.mxu0 0
      %834 = vmatpush.bf16.msra.mxu0 0
      %835 = vmatpush.bf16.msra.mxu0 0
      %836 = vmatpush.bf16.msra.mxu0 0
      %837 = vmatpush.bf16.msra.mxu0 0
      %838 = vmatpush.bf16.msra.mxu0 %v829
      %839 = vmatmul.bf16.gmra.mxu0 %v636
      %v840 = vpop.f32.mrf.mxu0
      %v841 = vadd.f32 0.0, %v840
      %v842 = vpop.f32.mrf.mxu0
      %v843 = vadd.f32 0.0, %v842
      %844 = vmatmul.bf16.gmra.mxu0 %v639
      %v845 = vpop.f32.mrf.mxu0
      %v846 = vadd.f32 0.0, %v845
      %v847 = vpop.f32.mrf.mxu0
      %v848 = vadd.f32 0.0, %v847
      %849 = vmatmul.bf16.gmra.mxu0 %v642
      %v850 = vpop.f32.mrf.mxu0
      %v851 = vadd.f32 0.0, %v850
      %v852 = vpop.f32.mrf.mxu0
      %v853 = vadd.f32 0.0, %v852
      %854 = vmatmul.bf16.gmra.mxu0 %v645
      %v855 = vpop.f32.mrf.mxu0
      %v856 = vadd.f32 0.0, %v855
      %v857 = vpop.f32.mrf.mxu0
      %v858 = vadd.f32 0.0, %v857
      %859 = vmatmul.bf16.gmra.mxu0 %v648
      %v860 = vpop.f32.mrf.mxu0
      %v861 = vadd.f32 0.0, %v860
      %v862 = vpop.f32.mrf.mxu0
      %v863 = vadd.f32 0.0, %v862
      %864 = vmatmul.bf16.gmra.mxu0 %v651
      %v865 = vpop.f32.mrf.mxu0
      %v866 = vadd.f32 0.0, %v865
      %v867 = vpop.f32.mrf.mxu0
      %v868 = vadd.f32 0.0, %v867
      %869 = vmatmul.bf16.gmra.mxu0 %v654
      %v870 = vpop.f32.mrf.mxu0
      %v871 = vadd.f32 0.0, %v870
      %v872 = vpop.f32.mrf.mxu0
      %v873 = vadd.f32 0.0, %v872
      %874 = vmatmul.bf16.gmra.mxu0 %v657
      %v875 = vpop.f32.mrf.mxu0
      %v876 = vadd.f32 0.0, %v875
      %v877 = vpop.f32.mrf.mxu0
      %v878 = vadd.f32 0.0, %v877
      %879 = vmatmul.bf16.gmra.mxu0 %v660
      %v880 = vpop.f32.mrf.mxu0
      %v881 = vadd.f32 0.0, %v880
      %v882 = vpop.f32.mrf.mxu0
      %v883 = vadd.f32 0.0, %v882
      %884 = vmatmul.bf16.gmra.mxu0 %v663
      %v885 = vpop.f32.mrf.mxu0
      %v886 = vadd.f32 0.0, %v885
      %v887 = vpop.f32.mrf.mxu0
      %v888 = vadd.f32 0.0, %v887
      %889 = vmatmul.bf16.gmra.mxu0 %v666
      %v890 = vpop.f32.mrf.mxu0
      %v891 = vadd.f32 0.0, %v890
      %v892 = vpop.f32.mrf.mxu0
      %v893 = vadd.f32 0.0, %v892
      %894 = vmatmul.bf16.gmra.mxu0 %v669
      %v895 = vpop.f32.mrf.mxu0
      %v896 = vadd.f32 0.0, %v895
      %v897 = vpop.f32.mrf.mxu0
      %v898 = vadd.f32 0.0, %v897
      %899 = vmatmul.bf16.gmra.mxu0 %v672
      %v900 = vpop.f32.mrf.mxu0
      %v901 = vadd.f32 0.0, %v900
      %v902 = vpop.f32.mrf.mxu0
      %v903 = vadd.f32 0.0, %v902
      %904 = vmatmul.bf16.gmra.mxu0 %v675
      %v905 = vpop.f32.mrf.mxu0
      %v906 = vadd.f32 0.0, %v905
      %v907 = vpop.f32.mrf.mxu0
      %v908 = vadd.f32 0.0, %v907
      %909 = vmatmul.bf16.gmra.mxu0 %v678
      %v910 = vpop.f32.mrf.mxu0
      %v911 = vadd.f32 0.0, %v910
      %v912 = vpop.f32.mrf.mxu0
      %v913 = vadd.f32 0.0, %v912
      %914 = vmatmul.bf16.gmra.mxu0 %v681
      %v915 = vpop.f32.mrf.mxu0
      %v916 = vadd.f32 0.0, %v915
      %v917 = vpop.f32.mrf.mxu0
      %v918 = vadd.f32 0.0, %v917
      %919 = vmatmul.bf16.gmra.mxu0 %v684
      %v920 = vpop.f32.mrf.mxu0
      %v921 = vadd.f32 0.0, %v920
      %v922 = vpop.f32.mrf.mxu0
      %v923 = vadd.f32 0.0, %v922
      %924 = vmatmul.bf16.gmra.mxu0 %v687
      %v925 = vpop.f32.mrf.mxu0
      %v926 = vadd.f32 0.0, %v925
      %v927 = vpop.f32.mrf.mxu0
      %v928 = vadd.f32 0.0, %v927
      %929 = vmatmul.bf16.gmra.mxu0 %v690
      %v930 = vpop.f32.mrf.mxu0
      %v931 = vadd.f32 0.0, %v930
      %v932 = vpop.f32.mrf.mxu0
      %v933 = vadd.f32 0.0, %v932
      %934 = vmatmul.bf16.gmra.mxu0 %v693
      %v935 = vpop.f32.mrf.mxu0
      %v936 = vadd.f32 0.0, %v935
      %v937 = vpop.f32.mrf.mxu0
      %v938 = vadd.f32 0.0, %v937
      %939 = vmatmul.bf16.gmra.mxu0 %v696
      %v940 = vpop.f32.mrf.mxu0
      %v941 = vadd.f32 0.0, %v940
      %v942 = vpop.f32.mrf.mxu0
      %v943 = vadd.f32 0.0, %v942
      %944 = vmatmul.bf16.gmra.mxu0 %v699
      %v945 = vpop.f32.mrf.mxu0
      %v946 = vadd.f32 0.0, %v945
      %v947 = vpop.f32.mrf.mxu0
      %v948 = vadd.f32 0.0, %v947
      %949 = vmatmul.bf16.gmra.mxu0 %v702
      %v950 = vpop.f32.mrf.mxu0
      %v951 = vadd.f32 0.0, %v950
      %v952 = vpop.f32.mrf.mxu0
      %v953 = vadd.f32 0.0, %v952
      %954 = vmatmul.bf16.gmra.mxu0 %v705
      %v955 = vpop.f32.mrf.mxu0
      %v956 = vadd.f32 0.0, %v955
      %v957 = vpop.f32.mrf.mxu0
      %v958 = vadd.f32 0.0, %v957
      %959 = vmatmul.bf16.gmra.mxu0 %v708
      %v960 = vpop.f32.mrf.mxu0
      %v961 = vadd.f32 0.0, %v960
      %v962 = vpop.f32.mrf.mxu0
      %v963 = vadd.f32 0.0, %v962
      %964 = vmatmul.bf16.gmra.mxu0 %v711
      %v965 = vpop.f32.mrf.mxu0
      %v966 = vadd.f32 0.0, %v965
      %v967 = vpop.f32.mrf.mxu0
      %v968 = vadd.f32 0.0, %v967
      %969 = vmatmul.bf16.gmra.mxu0 %v714
      %v970 = vpop.f32.mrf.mxu0
      %v971 = vadd.f32 0.0, %v970
      %v972 = vpop.f32.mrf.mxu0
      %v973 = vadd.f32 0.0, %v972
      %974 = vmatmul.bf16.gmra.mxu0 %v717
      %v975 = vpop.f32.mrf.mxu0
      %v976 = vadd.f32 0.0, %v975
      %v977 = vpop.f32.mrf.mxu0
      %v978 = vadd.f32 0.0, %v977
      %979 = vmatmul.bf16.gmra.mxu0 %v720
      %v980 = vpop.f32.mrf.mxu0
      %v981 = vadd.f32 0.0, %v980
      %v982 = vpop.f32.mrf.mxu0
      %v983 = vadd.f32 0.0, %v982
      %984 = vmatmul.bf16.gmra.mxu0 %v723
      %v985 = vpop.f32.mrf.mxu0
      %v986 = vadd.f32 0.0, %v985
      %v987 = vpop.f32.mrf.mxu0
      %v988 = vadd.f32 0.0, %v987
      %989 = vmatmul.bf16.gmra.mxu0 %v726
      %v990 = vpop.f32.mrf.mxu0
      %v991 = vadd.f32 0.0, %v990
      %v992 = vpop.f32.mrf.mxu0
      %v993 = vadd.f32 0.0, %v992
      %994 = vmatmul.bf16.gmra.mxu0 %v729
      %v995 = vpop.f32.mrf.mxu0
      %v996 = vadd.f32 0.0, %v995
      %v997 = vpop.f32.mrf.mxu0
      %v998 = vadd.f32 0.0, %v997
      %999 = vmatmul.bf16.gmra.mxu0 %v732
      %v1000 = vpop.f32.mrf.mxu0
      %v1001 = vadd.f32 0.0, %v1000
      %v1002 = vpop.f32.mrf.mxu0
      %v1003 = vadd.f32 0.0, %v1002
      %1004 = vmatmul.bf16.gmra.mxu0 %v735
      %v1005 = vpop.f32.mrf.mxu0
      %v1006 = vadd.f32 0.0, %v1005
      %v1007 = vpop.f32.mrf.mxu0
      %v1008 = vadd.f32 0.0, %v1007
      %1009 = vmatmul.bf16.gmra.mxu0 %v738
      %v1010 = vpop.f32.mrf.mxu0
      %v1011 = vadd.f32 0.0, %v1010
      %v1012 = vpop.f32.mrf.mxu0
      %v1013 = vadd.f32 0.0, %v1012
      %1014 = vmatmul.bf16.gmra.mxu0 %v741
      %v1015 = vpop.f32.mrf.mxu0
      %v1016 = vadd.f32 0.0, %v1015
      %v1017 = vpop.f32.mrf.mxu0
      %v1018 = vadd.f32 0.0, %v1017
      %1019 = vmatmul.bf16.gmra.mxu0 %v744
      %v1020 = vpop.f32.mrf.mxu0
      %v1021 = vadd.f32 0.0, %v1020
      %v1022 = vpop.f32.mrf.mxu0
      %v1023 = vadd.f32 0.0, %v1022
      %1024 = vmatmul.bf16.gmra.mxu0 %v747
      %v1025 = vpop.f32.mrf.mxu0
      %v1026 = vadd.f32 0.0, %v1025
      %v1027 = vpop.f32.mrf.mxu0
      %v1028 = vadd.f32 0.0, %v1027
      %1029 = vmatmul.bf16.gmra.mxu0 %v750
      %v1030 = vpop.f32.mrf.mxu0
      %v1031 = vadd.f32 0.0, %v1030
      %v1032 = vpop.f32.mrf.mxu0
      %v1033 = vadd.f32 0.0, %v1032
      %1034 = vmatmul.bf16.gmra.mxu0 %v753
      %v1035 = vpop.f32.mrf.mxu0
      %v1036 = vadd.f32 0.0, %v1035
      %v1037 = vpop.f32.mrf.mxu0
      %v1038 = vadd.f32 0.0, %v1037
      %1039 = vmatmul.bf16.gmra.mxu0 %v756
      %v1040 = vpop.f32.mrf.mxu0
      %v1041 = vadd.f32 0.0, %v1040
      %v1042 = vpop.f32.mrf.mxu0
      %v1043 = vadd.f32 0.0, %v1042
      %1044 = vmatmul.bf16.gmra.mxu0 %v759
      %v1045 = vpop.f32.mrf.mxu0
      %v1046 = vadd.f32 0.0, %v1045
      %v1047 = vpop.f32.mrf.mxu0
      %v1048 = vadd.f32 0.0, %v1047
      %1049 = vmatmul.bf16.gmra.mxu0 %v762
      %v1050 = vpop.f32.mrf.mxu0
      %v1051 = vadd.f32 0.0, %v1050
      %v1052 = vpop.f32.mrf.mxu0
      %v1053 = vadd.f32 0.0, %v1052
      %1054 = vmatmul.bf16.gmra.mxu0 %v765
      %v1055 = vpop.f32.mrf.mxu0
      %v1056 = vadd.f32 0.0, %v1055
      %v1057 = vpop.f32.mrf.mxu0
      %v1058 = vadd.f32 0.0, %v1057
      %1059 = vmatmul.bf16.gmra.mxu0 %v768
      %v1060 = vpop.f32.mrf.mxu0
      %v1061 = vadd.f32 0.0, %v1060
      %v1062 = vpop.f32.mrf.mxu0
      %v1063 = vadd.f32 0.0, %v1062
      %1064 = vmatmul.bf16.gmra.mxu0 %v771
      %v1065 = vpop.f32.mrf.mxu0
      %v1066 = vadd.f32 0.0, %v1065
      %v1067 = vpop.f32.mrf.mxu0
      %v1068 = vadd.f32 0.0, %v1067
      %1069 = vmatmul.bf16.gmra.mxu0 %v774
      %v1070 = vpop.f32.mrf.mxu0
      %v1071 = vadd.f32 0.0, %v1070
      %v1072 = vpop.f32.mrf.mxu0
      %v1073 = vadd.f32 0.0, %v1072
      %1074 = vmatmul.bf16.gmra.mxu0 %v777
      %v1075 = vpop.f32.mrf.mxu0
      %v1076 = vadd.f32 0.0, %v1075
      %v1077 = vpop.f32.mrf.mxu0
      %v1078 = vadd.f32 0.0, %v1077
      %1079 = vmatmul.bf16.gmra.mxu0 %v780
      %v1080 = vpop.f32.mrf.mxu0
      %v1081 = vadd.f32 0.0, %v1080
      %v1082 = vpop.f32.mrf.mxu0
      %v1083 = vadd.f32 0.0, %v1082
      %1084 = vmatmul.bf16.gmra.mxu0 %v783
      %v1085 = vpop.f32.mrf.mxu0
      %v1086 = vadd.f32 0.0, %v1085
      %v1087 = vpop.f32.mrf.mxu0
      %v1088 = vadd.f32 0.0, %v1087
      %1089 = vmatmul.bf16.gmra.mxu0 %v786
      %v1090 = vpop.f32.mrf.mxu0
      %v1091 = vadd.f32 0.0, %v1090
      %v1092 = vpop.f32.mrf.mxu0
      %v1093 = vadd.f32 0.0, %v1092
      %1094 = vmatmul.bf16.gmra.mxu0 %v789
      %v1095 = vpop.f32.mrf.mxu0
      %v1096 = vadd.f32 0.0, %v1095
      %v1097 = vpop.f32.mrf.mxu0
      %v1098 = vadd.f32 0.0, %v1097
      %1099 = vmatmul.bf16.gmra.mxu0 %v792
      %v1100 = vpop.f32.mrf.mxu0
      %v1101 = vadd.f32 0.0, %v1100
      %v1102 = vpop.f32.mrf.mxu0
      %v1103 = vadd.f32 0.0, %v1102
      %1104 = vmatmul.bf16.gmra.mxu0 %v795
      %v1105 = vpop.f32.mrf.mxu0
      %v1106 = vadd.f32 0.0, %v1105
      %v1107 = vpop.f32.mrf.mxu0
      %v1108 = vadd.f32 0.0, %v1107
      %1109 = vmatmul.bf16.gmra.mxu0 %v798
      %v1110 = vpop.f32.mrf.mxu0
      %v1111 = vadd.f32 0.0, %v1110
      %v1112 = vpop.f32.mrf.mxu0
      %v1113 = vadd.f32 0.0, %v1112
      %1114 = vmatmul.bf16.gmra.mxu0 %v801
      %v1115 = vpop.f32.mrf.mxu0
      %v1116 = vadd.f32 0.0, %v1115
      %v1117 = vpop.f32.mrf.mxu0
      %v1118 = vadd.f32 0.0, %v1117
      %1119 = vmatmul.bf16.gmra.mxu0 %v804
      %v1120 = vpop.f32.mrf.mxu0
      %v1121 = vadd.f32 0.0, %v1120
      %v1122 = vpop.f32.mrf.mxu0
      %v1123 = vadd.f32 0.0, %v1122
      %1124 = vmatmul.bf16.gmra.mxu0 %v807
      %v1125 = vpop.f32.mrf.mxu0
      %v1126 = vadd.f32 0.0, %v1125
      %v1127 = vpop.f32.mrf.mxu0
      %v1128 = vadd.f32 0.0, %v1127
      %1129 = vmatmul.bf16.gmra.mxu0 %v810
      %v1130 = vpop.f32.mrf.mxu0
      %v1131 = vadd.f32 0.0, %v1130
      %v1132 = vpop.f32.mrf.mxu0
      %v1133 = vadd.f32 0.0, %v1132
      %1134 = vmatmul.bf16.gmra.mxu0 %v813
      %v1135 = vpop.f32.mrf.mxu0
      %v1136 = vadd.f32 0.0, %v1135
      %v1137 = vpop.f32.mrf.mxu0
      %v1138 = vadd.f32 0.0, %v1137
      %1139 = vmatmul.bf16.gmra.mxu0 %v816
      %v1140 = vpop.f32.mrf.mxu0
      %v1141 = vadd.f32 0.0, %v1140
      %v1142 = vpop.f32.mrf.mxu0
      %v1143 = vadd.f32 0.0, %v1142
      %1144 = vmatmul.bf16.gmra.mxu0 %v819
      %v1145 = vpop.f32.mrf.mxu0
      %v1146 = vadd.f32 0.0, %v1145
      %v1147 = vpop.f32.mrf.mxu0
      %v1148 = vadd.f32 0.0, %v1147
      %1149 = vmatmul.bf16.gmra.mxu0 %v822
      %v1150 = vpop.f32.mrf.mxu0
      %v1151 = vadd.f32 0.0, %v1150
      %v1152 = vpop.f32.mrf.mxu0
      %v1153 = vadd.f32 0.0, %v1152
      %1154 = vmatmul.bf16.gmra.mxu0 %v825
      %v1155 = vpop.f32.mrf.mxu0
      %v1156 = vadd.f32 0.0, %v1155
      %v1157 = vpop.f32.mrf.mxu0
      %v1158 = vadd.f32 0.0, %v1157
      %1159 = vdwg.mxu0
      %1160 = vst [vmem:[%s182] sm:$0xff] %v841
      %1161 = vst [vmem:[%s182 + $0x8] sm:$0xff] %v843
      %1162 = vst [vmem:[%s182 + $0x10] sm:$0xff] %v846
      %1163 = vst [vmem:[%s182 + $0x18] sm:$0xff] %v848
      %1164 = vst [vmem:[%s182 + $0x20] sm:$0xff] %v851
      %1165 = vst [vmem:[%s182 + $0x28] sm:$0xff] %v853
      %1166 = vst [vmem:[%s182 + $0x30] sm:$0xff] %v856
      %1167 = vst [vmem:[%s182 + $0x38] sm:$0xff] %v858
      %1168 = vst [vmem:[%s182 + $0x40] sm:$0xff] %v861
      %1169 = vst [vmem:[%s182 + $0x48] sm:$0xff] %v863
      %1170 = vst [vmem:[%s182 + $0x50] sm:$0xff] %v866
      %1171 = vst [vmem:[%s182 + $0x58] sm:$0xff] %v868
      %1172 = vst [vmem:[%s182 + $0x60] sm:$0xff] %v871
      %1173 = vst [vmem:[%s182 + $0x68] sm:$0xff] %v873
      %1174 = vst [vmem:[%s182 + $0x70] sm:$0xff] %v876
      %1175 = vst [vmem:[%s182 + $0x78] sm:$0xff] %v878
      %1176 = vst [vmem:[%s182 + $0x80] sm:$0xff] %v881
      %1177 = vst [vmem:[%s182 + $0x88] sm:$0xff] %v883
      %1178 = vst [vmem:[%s182 + $0x90] sm:$0xff] %v886
      %1179 = vst [vmem:[%s182 + $0x98] sm:$0xff] %v888
      %1180 = vst [vmem:[%s182 + $0xa0] sm:$0xff] %v891
      %1181 = vst [vmem:[%s182 + $0xa8] sm:$0xff] %v893
      %1182 = vst [vmem:[%s182 + $0xb0] sm:$0xff] %v896
      %1183 = vst [vmem:[%s182 + $0xb8] sm:$0xff] %v898
      %1184 = vst [vmem:[%s182 + $0xc0] sm:$0xff] %v901
      %1185 = vst [vmem:[%s182 + $0xc8] sm:$0xff] %v903
      %1186 = vst [vmem:[%s182 + $0xd0] sm:$0xff] %v906
      %1187 = vst [vmem:[%s182 + $0xd8] sm:$0xff] %v908
      %1188 = vst [vmem:[%s182 + $0xe0] sm:$0xff] %v911
      %1189 = vst [vmem:[%s182 + $0xe8] sm:$0xff] %v913
      %1190 = vst [vmem:[%s182 + $0xf0] sm:$0xff] %v916
      %1191 = vst [vmem:[%s182 + $0xf8] sm:$0xff] %v918
      %1192 = vst [vmem:[%s182 + $0x100] sm:$0xff] %v921
      %1193 = vst [vmem:[%s182 + $0x108] sm:$0xff] %v923
      %1194 = vst [vmem:[%s182 + $0x110] sm:$0xff] %v926
      %1195 = vst [vmem:[%s182 + $0x118] sm:$0xff] %v928
      %1196 = vst [vmem:[%s182 + $0x120] sm:$0xff] %v931
      %1197 = vst [vmem:[%s182 + $0x128] sm:$0xff] %v933
      %1198 = vst [vmem:[%s182 + $0x130] sm:$0xff] %v936
      %1199 = vst [vmem:[%s182 + $0x138] sm:$0xff] %v938
      %1200 = vst [vmem:[%s182 + $0x140] sm:$0xff] %v941
      %1201 = vst [vmem:[%s182 + $0x148] sm:$0xff] %v943
      %1202 = vst [vmem:[%s182 + $0x150] sm:$0xff] %v946
      %1203 = vst [vmem:[%s182 + $0x158] sm:$0xff] %v948
      %1204 = vst [vmem:[%s182 + $0x160] sm:$0xff] %v951
      %1205 = vst [vmem:[%s182 + $0x168] sm:$0xff] %v953
      %1206 = vst [vmem:[%s182 + $0x170] sm:$0xff] %v956
      %1207 = vst [vmem:[%s182 + $0x178] sm:$0xff] %v958
      %1208 = vst [vmem:[%s182 + $0x180] sm:$0xff] %v961
      %1209 = vst [vmem:[%s182 + $0x188] sm:$0xff] %v963
      %1210 = vst [vmem:[%s182 + $0x190] sm:$0xff] %v966
      %1211 = vst [vmem:[%s182 + $0x198] sm:$0xff] %v968
      %1212 = vst [vmem:[%s182 + $0x1a0] sm:$0xff] %v971
      %1213 = vst [vmem:[%s182 + $0x1a8] sm:$0xff] %v973
      %1214 = vst [vmem:[%s182 + $0x1b0] sm:$0xff] %v976
      %1215 = vst [vmem:[%s182 + $0x1b8] sm:$0xff] %v978
      %1216 = vst [vmem:[%s182 + $0x1c0] sm:$0xff] %v981
      %1217 = vst [vmem:[%s182 + $0x1c8] sm:$0xff] %v983
      %1218 = vst [vmem:[%s182 + $0x1d0] sm:$0xff] %v986
      %1219 = vst [vmem:[%s182 + $0x1d8] sm:$0xff] %v988
      %1220 = vst [vmem:[%s182 + $0x1e0] sm:$0xff] %v991
      %1221 = vst [vmem:[%s182 + $0x1e8] sm:$0xff] %v993
      %1222 = vst [vmem:[%s182 + $0x1f0] sm:$0xff] %v996
      %1223 = vst [vmem:[%s182 + $0x1f8] sm:$0xff] %v998
      %1224 = vst [vmem:[%s182 + $0x200] sm:$0xff] %v1001
      %1225 = vst [vmem:[%s182 + $0x208] sm:$0xff] %v1003
      %1226 = vst [vmem:[%s182 + $0x210] sm:$0xff] %v1006
      %1227 = vst [vmem:[%s182 + $0x218] sm:$0xff] %v1008
      %1228 = vst [vmem:[%s182 + $0x220] sm:$0xff] %v1011
      %1229 = vst [vmem:[%s182 + $0x228] sm:$0xff] %v1013
      %1230 = vst [vmem:[%s182 + $0x230] sm:$0xff] %v1016
      %1231 = vst [vmem:[%s182 + $0x238] sm:$0xff] %v1018
      %1232 = vst [vmem:[%s182 + $0x240] sm:$0xff] %v1021
      %1233 = vst [vmem:[%s182 + $0x248] sm:$0xff] %v1023
      %1234 = vst [vmem:[%s182 + $0x250] sm:$0xff] %v1026
      %1235 = vst [vmem:[%s182 + $0x258] sm:$0xff] %v1028
      %1236 = vst [vmem:[%s182 + $0x260] sm:$0xff] %v1031
      %1237 = vst [vmem:[%s182 + $0x268] sm:$0xff] %v1033
      %1238 = vst [vmem:[%s182 + $0x270] sm:$0xff] %v1036
      %1239 = vst [vmem:[%s182 + $0x278] sm:$0xff] %v1038
      %1240 = vst [vmem:[%s182 + $0x280] sm:$0xff] %v1041
      %1241 = vst [vmem:[%s182 + $0x288] sm:$0xff] %v1043
      %1242 = vst [vmem:[%s182 + $0x290] sm:$0xff] %v1046
      %1243 = vst [vmem:[%s182 + $0x298] sm:$0xff] %v1048
      %1244 = vst [vmem:[%s182 + $0x2a0] sm:$0xff] %v1051
      %1245 = vst [vmem:[%s182 + $0x2a8] sm:$0xff] %v1053
      %1246 = vst [vmem:[%s182 + $0x2b0] sm:$0xff] %v1056
      %1247 = vst [vmem:[%s182 + $0x2b8] sm:$0xff] %v1058
      %1248 = vst [vmem:[%s182 + $0x2c0] sm:$0xff] %v1061
      %1249 = vst [vmem:[%s182 + $0x2c8] sm:$0xff] %v1063
      %1250 = vst [vmem:[%s182 + $0x2d0] sm:$0xff] %v1066
      %1251 = vst [vmem:[%s182 + $0x2d8] sm:$0xff] %v1068
      %1252 = vst [vmem:[%s182 + $0x2e0] sm:$0xff] %v1071
      %1253 = vst [vmem:[%s182 + $0x2e8] sm:$0xff] %v1073
      %1254 = vst [vmem:[%s182 + $0x2f0] sm:$0xff] %v1076
      %1255 = vst [vmem:[%s182 + $0x2f8] sm:$0xff] %v1078
      %1256 = vst [vmem:[%s182 + $0x300] sm:$0xff] %v1081
      %1257 = vst [vmem:[%s182 + $0x308] sm:$0xff] %v1083
      %1258 = vst [vmem:[%s182 + $0x310] sm:$0xff] %v1086
      %1259 = vst [vmem:[%s182 + $0x318] sm:$0xff] %v1088
      %1260 = vst [vmem:[%s182 + $0x320] sm:$0xff] %v1091
      %1261 = vst [vmem:[%s182 + $0x328] sm:$0xff] %v1093
      %1262 = vst [vmem:[%s182 + $0x330] sm:$0xff] %v1096
      %1263 = vst [vmem:[%s182 + $0x338] sm:$0xff] %v1098
      %1264 = vst [vmem:[%s182 + $0x340] sm:$0xff] %v1101
      %1265 = vst [vmem:[%s182 + $0x348] sm:$0xff] %v1103
      %1266 = vst [vmem:[%s182 + $0x350] sm:$0xff] %v1106
      %1267 = vst [vmem:[%s182 + $0x358] sm:$0xff] %v1108
      %1268 = vst [vmem:[%s182 + $0x360] sm:$0xff] %v1111
      %1269 = vst [vmem:[%s182 + $0x368] sm:$0xff] %v1113
      %1270 = vst [vmem:[%s182 + $0x370] sm:$0xff] %v1116
      %1271 = vst [vmem:[%s182 + $0x378] sm:$0xff] %v1118
      %1272 = vst [vmem:[%s182 + $0x380] sm:$0xff] %v1121
      %1273 = vst [vmem:[%s182 + $0x388] sm:$0xff] %v1123
      %1274 = vst [vmem:[%s182 + $0x390] sm:$0xff] %v1126
      %1275 = vst [vmem:[%s182 + $0x398] sm:$0xff] %v1128
      %1276 = vst [vmem:[%s182 + $0x3a0] sm:$0xff] %v1131
      %1277 = vst [vmem:[%s182 + $0x3a8] sm:$0xff] %v1133
      %1278 = vst [vmem:[%s182 + $0x3b0] sm:$0xff] %v1136
      %1279 = vst [vmem:[%s182 + $0x3b8] sm:$0xff] %v1138
      %1280 = vst [vmem:[%s182 + $0x3c0] sm:$0xff] %v1141
      %1281 = vst [vmem:[%s182 + $0x3c8] sm:$0xff] %v1143
      %1282 = vst [vmem:[%s182 + $0x3d0] sm:$0xff] %v1146
      %1283 = vst [vmem:[%s182 + $0x3d8] sm:$0xff] %v1148
      %1284 = vst [vmem:[%s182 + $0x3e0] sm:$0xff] %v1151
      %1285 = vst [vmem:[%s182 + $0x3e8] sm:$0xff] %v1153
      %1286 = vst [vmem:[%s182 + $0x3f0] sm:$0xff] %v1156
      %1287 = vst [vmem:[%s182 + $0x3f8] sm:$0xff] %v1158
      %s1288 = smul.u32 128, %s17
      %p1289 = scmp.lt.s32.totalorder %s1288, 255
      %s1290 = scalar_select %p1289, %s1288, 255
      %p1291 = scmp.lt.s32.totalorder %s18, 0
      %s1292 = scalar_select %p1291, %s18, 0
      %s1293 = sadd.s32 %s1292, %s1290
      %s1294 = smul.addr %s1293, 8
      %s1295 = scalar_lea.vmem %s2, %s1294
      // Predicated region
      $region29: #{wgan_generator_forward.18} parent=27 // pred_check
        %p1296 = pneg %p97
      $region30: #{wgan_generator_forward.18} parent=27 // pred_check_branch
        %1298 = sbr.rel (%p1296) target = $region32
      $region31: #{wgan_generator_forward.18} parent=27 // pred_region
        %s1299 = smul.u32 128, %s17
      $region32: #{wgan_generator_forward.18} parent=27 // pred_fallthru
        _
    $region28: #{wgan_generator_forward.18} parent=5 // pred_fallthru
      _
    %p1300 = scmp.le.s32.totalorder 2, %s8
    // Predicated region
    $region33: #{wgan_generator_forward.18} parent=5 // pred_check
      %p1301 = pneg %p1300
    $region34: #{wgan_generator_forward.18} parent=5 // pred_check_branch
      %1303 = sbr.rel (%p1301) target = $region36
    $region35: #{wgan_generator_forward.18} parent=5 // pred_region
      %s1304 = ssub.s32 %s8, 2
      // Predicated region
      $region37: #{wgan_generator_forward.18} parent=35 // pred_check
        %p1305 = pneg %p103
      $region38: #{wgan_generator_forward.18} parent=35 // pred_check_branch
        %1307 = sbr.rel (%p1305) target = $region40
      $region39: #{wgan_generator_forward.18} parent=35 // pred_region
        %s1308 = smul.u32 128, %s19
        %p1309 = scmp.lt.s32.totalorder %s1308, 255
        %s1310 = scalar_select %p1309, %s1308, 255
        %p1311 = scmp.lt.s32.totalorder %s20, 0
        %s1312 = scalar_select %p1311, %s20, 0
        %s1313 = sadd.s32 %s1312, %s1310
        %s1314 = smul.addr %s1313, 8
        %s1315 = scalar_lea.vmem %s2, %s1314
      $region40: #{wgan_generator_forward.18} parent=35 // pred_fallthru
        _
    $region36: #{wgan_generator_forward.18} parent=5 // pred_fallthru
      _
  $region6: #{wgan_generator_forward.18} parent=0 // loop_footer
    %s12 = sadd.s32 1, %s8
  $region7: #{wgan_generator_forward.18} parent=0 // loop_footer_branch
    %7 = sbr.rel target = $region3
  $region8: #{wgan_generator_forward.18} parent=0 // loop_exit
    _

// kernel: wgan_generator_forward.17
$region0: #{wgan_generator_forward.17}
  #allocation0 [shape = 'u32[]', space=smem, size = 0x4, offset = 0x4, fixed_abs, tag = 'smem constant byte address 0x4 - core index']
  #allocation1 [shape = 'u32[72,128]{1,0:T(1,128)}', space=vmem, size = 0x9000, scoped, tag = 'internal scratch']
  %s0 = inlined_call_operand.vmem [shape: f32[2048,8], index: 0, kind: input, shape index: {}]
  %s1 = inlined_call_operand.vmem [shape: f32[1,8], index: 1, kind: input, shape index: {}]
  %s2 = inlined_call_operand.vmem [shape: f32[1,8], index: 2, kind: input, shape index: {}]
  %s3 = inlined_call_operand.vmem [shape: f32[2048,8], index: 3, kind: output, shape index: {}]
  %s4 = sld [smem:[#allocation0]]
  $region22: #{wgan_generator_forward.17} parent=0
    _
  %s6 = ssub.s32 1, %s4
  %s7 = scalar_select 0, %s6, %s4
  // Predicated region
  $region2: #{wgan_generator_forward.17} parent=0 // pred_check
    _
  $region3: #{wgan_generator_forward.17} parent=0 // pred_check_branch
    %9 = sbr.rel (0) target = $region5
  $region4: #{wgan_generator_forward.17} parent=0 // pred_region
    _
  $region5: #{wgan_generator_forward.17} parent=0 // pred_fallthru
    _
  // Predicated region
  $region6: #{wgan_generator_forward.17} parent=0 // pred_check
    _
  $region7: #{wgan_generator_forward.17} parent=0 // pred_check_branch
    %11 = sbr.rel (0) target = $region9
  $region8: #{wgan_generator_forward.17} parent=0 // pred_region
    _
  $region9: #{wgan_generator_forward.17} parent=0 // pred_fallthru
    _
  // Predicated region
  $region10: #{wgan_generator_forward.17} parent=0 // pred_check
    _
  $region11: #{wgan_generator_forward.17} parent=0 // pred_check_branch
    %13 = sbr.rel (0) target = $region13
  $region12: #{wgan_generator_forward.17} parent=0 // pred_region
    _
  $region13: #{wgan_generator_forward.17} parent=0 // pred_fallthru
    _
  %v14 = vld [vmem:[%s0] sm:$0xff]
  %v15 = vld [vmem:[%s0 + $0x8] sm:$0xff]
  %v16 = vld [vmem:[%s0 + $0x10] sm:$0xff]
  %v17 = vld [vmem:[%s0 + $0x18] sm:$0xff]
  %v18 = vld [vmem:[%s0 + $0x20] sm:$0xff]
  %v19 = vld [vmem:[%s0 + $0x28] sm:$0xff]
  %v20 = vld [vmem:[%s0 + $0x30] sm:$0xff]
  %v21 = vld [vmem:[%s0 + $0x38] sm:$0xff]
  %v22 = vld [vmem:[%s0 + $0x40] sm:$0xff]
  %v23 = vld [vmem:[%s0 + $0x48] sm:$0xff]
  %v24 = vld [vmem:[%s0 + $0x50] sm:$0xff]
  %v25 = vld [vmem:[%s0 + $0x58] sm:$0xff]
  %v26 = vld [vmem:[%s0 + $0x60] sm:$0xff]
  %v27 = vld [vmem:[%s0 + $0x68] sm:$0xff]
  %v28 = vld [vmem:[%s0 + $0x70] sm:$0xff]
  %v29 = vld [vmem:[%s0 + $0x78] sm:$0xff]
  %v30 = vld [vmem:[%s0 + $0x80] sm:$0xff]
  %v31 = vld [vmem:[%s0 + $0x88] sm:$0xff]
  %v32 = vld [vmem:[%s0 + $0x90] sm:$0xff]
  %v33 = vld [vmem:[%s0 + $0x98] sm:$0xff]
  %v34 = vld [vmem:[%s0 + $0xa0] sm:$0xff]
  %v35 = vld [vmem:[%s0 + $0xa8] sm:$0xff]
  %v36 = vld [vmem:[%s0 + $0xb0] sm:$0xff]
  %v37 = vld [vmem:[%s0 + $0xb8] sm:$0xff]
  %v38 = vld [vmem:[%s0 + $0xc0] sm:$0xff]
  %v39 = vld [vmem:[%s0 + $0xc8] sm:$0xff]
  %v40 = vld [vmem:[%s0 + $0xd0] sm:$0xff]
  %v41 = vld [vmem:[%s0 + $0xd8] sm:$0xff]
  %v42 = vld [vmem:[%s0 + $0xe0] sm:$0xff]
  %v43 = vld [vmem:[%s0 + $0xe8] sm:$0xff]
  %v44 = vld [vmem:[%s0 + $0xf0] sm:$0xff]
  %v45 = vld [vmem:[%s0 + $0xf8] sm:$0xff]
  %v46 = vld [vmem:[%s0 + $0x100] sm:$0xff]
  %v47 = vld [vmem:[%s0 + $0x108] sm:$0xff]
  %v48 = vld [vmem:[%s0 + $0x110] sm:$0xff]
  %v49 = vld [vmem:[%s0 + $0x118] sm:$0xff]
  %v50 = vld [vmem:[%s0 + $0x120] sm:$0xff]
  %v51 = vld [vmem:[%s0 + $0x128] sm:$0xff]
  %v52 = vld [vmem:[%s0 + $0x130] sm:$0xff]
  %v53 = vld [vmem:[%s0 + $0x138] sm:$0xff]
  %v54 = vld [vmem:[%s0 + $0x140] sm:$0xff]
  %v55 = vld [vmem:[%s0 + $0x148] sm:$0xff]
  %v56 = vld [vmem:[%s0 + $0x150] sm:$0xff]
  %v57 = vld [vmem:[%s0 + $0x158] sm:$0xff]
  %v58 = vld [vmem:[%s0 + $0x160] sm:$0xff]
  %v59 = vld [vmem:[%s0 + $0x168] sm:$0xff]
  %v60 = vld [vmem:[%s0 + $0x170] sm:$0xff]
  %v61 = vld [vmem:[%s0 + $0x178] sm:$0xff]
  %v62 = vld [vmem:[%s0 + $0x180] sm:$0xff]
  %v63 = vld [vmem:[%s0 + $0x188] sm:$0xff]
  %v64 = vld [vmem:[%s0 + $0x190] sm:$0xff]
  %v65 = vld [vmem:[%s0 + $0x198] sm:$0xff]
  %v66 = vld [vmem:[%s0 + $0x1a0] sm:$0xff]
  %v67 = vld [vmem:[%s0 + $0x1a8] sm:$0xff]
  %v68 = vld [vmem:[%s0 + $0x1b0] sm:$0xff]
  %v69 = vld [vmem:[%s0 + $0x1b8] sm:$0xff]
  %v70 = vld [vmem:[%s0 + $0x1c0] sm:$0xff]
  %v71 = vld [vmem:[%s0 + $0x1c8] sm:$0xff]
  %v72 = vld [vmem:[%s0 + $0x1d0] sm:$0xff]
  %v73 = vld [vmem:[%s0 + $0x1d8] sm:$0xff]
  %v74 = vld [vmem:[%s0 + $0x1e0] sm:$0xff]
  %v75 = vld [vmem:[%s0 + $0x1e8] sm:$0xff]
  %v76 = vld [vmem:[%s0 + $0x1f0] sm:$0xff]
  %v77 = vld [vmem:[%s0 + $0x1f8] sm:$0xff]
  %v78 = vld [vmem:[%s0 + $0x200] sm:$0xff]
  %v79 = vld [vmem:[%s0 + $0x208] sm:$0xff]
  %v80 = vld [vmem:[%s0 + $0x210] sm:$0xff]
  %v81 = vld [vmem:[%s0 + $0x218] sm:$0xff]
  %v82 = vld [vmem:[%s0 + $0x220] sm:$0xff]
  %v83 = vld [vmem:[%s0 + $0x228] sm:$0xff]
  %v84 = vld [vmem:[%s0 + $0x230] sm:$0xff]
  %v85 = vld [vmem:[%s0 + $0x238] sm:$0xff]
  %v86 = vld [vmem:[%s0 + $0x240] sm:$0xff]
  %v87 = vld [vmem:[%s0 + $0x248] sm:$0xff]
  %v88 = vld [vmem:[%s0 + $0x250] sm:$0xff]
  %v89 = vld [vmem:[%s0 + $0x258] sm:$0xff]
  %v90 = vld [vmem:[%s0 + $0x260] sm:$0xff]
  %v91 = vld [vmem:[%s0 + $0x268] sm:$0xff]
  %v92 = vld [vmem:[%s0 + $0x270] sm:$0xff]
  %v93 = vld [vmem:[%s0 + $0x278] sm:$0xff]
  %v94 = vld [vmem:[%s0 + $0x280] sm:$0xff]
  %v95 = vld [vmem:[%s0 + $0x288] sm:$0xff]
  %v96 = vld [vmem:[%s0 + $0x290] sm:$0xff]
  %v97 = vld [vmem:[%s0 + $0x298] sm:$0xff]
  %v98 = vld [vmem:[%s0 + $0x2a0] sm:$0xff]
  %v99 = vld [vmem:[%s0 + $0x2a8] sm:$0xff]
  %v100 = vld [vmem:[%s0 + $0x2b0] sm:$0xff]
  %v101 = vld [vmem:[%s0 + $0x2b8] sm:$0xff]
  %v102 = vld [vmem:[%s0 + $0x2c0] sm:$0xff]
  %v103 = vld [vmem:[%s0 + $0x2c8] sm:$0xff]
  %v104 = vld [vmem:[%s0 + $0x2d0] sm:$0xff]
  %v105 = vld [vmem:[%s0 + $0x2d8] sm:$0xff]
  %v106 = vld [vmem:[%s0 + $0x2e0] sm:$0xff]
  %v107 = vld [vmem:[%s0 + $0x2e8] sm:$0xff]
  %v108 = vld [vmem:[%s0 + $0x2f0] sm:$0xff]
  %v109 = vld [vmem:[%s0 + $0x2f8] sm:$0xff]
  %v110 = vld [vmem:[%s0 + $0x300] sm:$0xff]
  %v111 = vld [vmem:[%s0 + $0x308] sm:$0xff]
  %v112 = vld [vmem:[%s0 + $0x310] sm:$0xff]
  %v113 = vld [vmem:[%s0 + $0x318] sm:$0xff]
  %v114 = vld [vmem:[%s0 + $0x320] sm:$0xff]
  %v115 = vld [vmem:[%s0 + $0x328] sm:$0xff]
  %v116 = vld [vmem:[%s0 + $0x330] sm:$0xff]
  %v117 = vld [vmem:[%s0 + $0x338] sm:$0xff]
  %v118 = vld [vmem:[%s0 + $0x340] sm:$0xff]
  %v119 = vld [vmem:[%s0 + $0x348] sm:$0xff]
  %v120 = vld [vmem:[%s0 + $0x350] sm:$0xff]
  %v121 = vld [vmem:[%s0 + $0x358] sm:$0xff]
  %v122 = vld [vmem:[%s0 + $0x360] sm:$0xff]
  %v123 = vld [vmem:[%s0 + $0x368] sm:$0xff]
  %v124 = vld [vmem:[%s0 + $0x370] sm:$0xff]
  %v125 = vld [vmem:[%s0 + $0x378] sm:$0xff]
  %v126 = vld [vmem:[%s0 + $0x380] sm:$0xff]
  %v127 = vld [vmem:[%s0 + $0x388] sm:$0xff]
  %v128 = vld [vmem:[%s0 + $0x390] sm:$0xff]
  %v129 = vld [vmem:[%s0 + $0x398] sm:$0xff]
  %v130 = vld [vmem:[%s0 + $0x3a0] sm:$0xff]
  %v131 = vld [vmem:[%s0 + $0x3a8] sm:$0xff]
  %v132 = vld [vmem:[%s0 + $0x3b0] sm:$0xff]
  %v133 = vld [vmem:[%s0 + $0x3b8] sm:$0xff]
  %v134 = vld [vmem:[%s0 + $0x3c0] sm:$0xff]
  %v135 = vld [vmem:[%s0 + $0x3c8] sm:$0xff]
  %v136 = vld [vmem:[%s0 + $0x3d0] sm:$0xff]
  %v137 = vld [vmem:[%s0 + $0x3d8] sm:$0xff]
  %v138 = vld [vmem:[%s0 + $0x3e0] sm:$0xff]
  %v139 = vld [vmem:[%s0 + $0x3e8] sm:$0xff]
  %v140 = vld [vmem:[%s0 + $0x3f0] sm:$0xff]
  %v141 = vld [vmem:[%s0 + $0x3f8] sm:$0xff]
  %v142 = vld [vmem:[%s0 + $0x400] sm:$0xff]
  %v143 = vld [vmem:[%s0 + $0x408] sm:$0xff]
  %v144 = vld [vmem:[%s0 + $0x410] sm:$0xff]
  %v145 = vld [vmem:[%s0 + $0x418] sm:$0xff]
  %v146 = vld [vmem:[%s0 + $0x420] sm:$0xff]
  %v147 = vld [vmem:[%s0 + $0x428] sm:$0xff]
  %v148 = vld [vmem:[%s0 + $0x430] sm:$0xff]
  %v149 = vld [vmem:[%s0 + $0x438] sm:$0xff]
  %v150 = vld [vmem:[%s0 + $0x440] sm:$0xff]
  %v151 = vld [vmem:[%s0 + $0x448] sm:$0xff]
  %v152 = vld [vmem:[%s0 + $0x450] sm:$0xff]
  %v153 = vld [vmem:[%s0 + $0x458] sm:$0xff]
  %v154 = vld [vmem:[%s0 + $0x460] sm:$0xff]
  %v155 = vld [vmem:[%s0 + $0x468] sm:$0xff]
  %v156 = vld [vmem:[%s0 + $0x470] sm:$0xff]
  %v157 = vld [vmem:[%s0 + $0x478] sm:$0xff]
  %v158 = vld [vmem:[%s0 + $0x480] sm:$0xff]
  %v159 = vld [vmem:[%s0 + $0x488] sm:$0xff]
  %v160 = vld [vmem:[%s0 + $0x490] sm:$0xff]
  %v161 = vld [vmem:[%s0 + $0x498] sm:$0xff]
  %v162 = vld [vmem:[%s0 + $0x4a0] sm:$0xff]
  %v163 = vld [vmem:[%s0 + $0x4a8] sm:$0xff]
  %v164 = vld [vmem:[%s0 + $0x4b0] sm:$0xff]
  %v165 = vld [vmem:[%s0 + $0x4b8] sm:$0xff]
  %v166 = vld [vmem:[%s0 + $0x4c0] sm:$0xff]
  %v167 = vld [vmem:[%s0 + $0x4c8] sm:$0xff]
  %v168 = vld [vmem:[%s0 + $0x4d0] sm:$0xff]
  %v169 = vld [vmem:[%s0 + $0x4d8] sm:$0xff]
  %v170 = vld [vmem:[%s0 + $0x4e0] sm:$0xff]
  %v171 = vld [vmem:[%s0 + $0x4e8] sm:$0xff]
  %v172 = vld [vmem:[%s0 + $0x4f0] sm:$0xff]
  %v173 = vld [vmem:[%s0 + $0x4f8] sm:$0xff]
  %v174 = vld [vmem:[%s0 + $0x500] sm:$0xff]
  %v175 = vld [vmem:[%s0 + $0x508] sm:$0xff]
  %v176 = vld [vmem:[%s0 + $0x510] sm:$0xff]
  %v177 = vld [vmem:[%s0 + $0x518] sm:$0xff]
  %v178 = vld [vmem:[%s0 + $0x520] sm:$0xff]
  %v179 = vld [vmem:[%s0 + $0x528] sm:$0xff]
  %v180 = vld [vmem:[%s0 + $0x530] sm:$0xff]
  %v181 = vld [vmem:[%s0 + $0x538] sm:$0xff]
  %v182 = vld [vmem:[%s0 + $0x540] sm:$0xff]
  %v183 = vld [vmem:[%s0 + $0x548] sm:$0xff]
  %v184 = vld [vmem:[%s0 + $0x550] sm:$0xff]
  %v185 = vld [vmem:[%s0 + $0x558] sm:$0xff]
  %v186 = vld [vmem:[%s0 + $0x560] sm:$0xff]
  %v187 = vld [vmem:[%s0 + $0x568] sm:$0xff]
  %v188 = vld [vmem:[%s0 + $0x570] sm:$0xff]
  %v189 = vld [vmem:[%s0 + $0x578] sm:$0xff]
  %v190 = vld [vmem:[%s0 + $0x580] sm:$0xff]
  %v191 = vld [vmem:[%s0 + $0x588] sm:$0xff]
  %v192 = vld [vmem:[%s0 + $0x590] sm:$0xff]
  %v193 = vld [vmem:[%s0 + $0x598] sm:$0xff]
  %v194 = vld [vmem:[%s0 + $0x5a0] sm:$0xff]
  %v195 = vld [vmem:[%s0 + $0x5a8] sm:$0xff]
  %v196 = vld [vmem:[%s0 + $0x5b0] sm:$0xff]
  %v197 = vld [vmem:[%s0 + $0x5b8] sm:$0xff]
  %v198 = vld [vmem:[%s0 + $0x5c0] sm:$0xff]
  %v199 = vld [vmem:[%s0 + $0x5c8] sm:$0xff]
  %v200 = vld [vmem:[%s0 + $0x5d0] sm:$0xff]
  %v201 = vld [vmem:[%s0 + $0x5d8] sm:$0xff]
  %v202 = vld [vmem:[%s0 + $0x5e0] sm:$0xff]
  %v203 = vld [vmem:[%s0 + $0x5e8] sm:$0xff]
  %v204 = vld [vmem:[%s0 + $0x5f0] sm:$0xff]
  %v205 = vld [vmem:[%s0 + $0x5f8] sm:$0xff]
  %v206 = vld [vmem:[%s0 + $0x600] sm:$0xff]
  %v207 = vld [vmem:[%s0 + $0x608] sm:$0xff]
  %v208 = vld [vmem:[%s0 + $0x610] sm:$0xff]
  %v209 = vld [vmem:[%s0 + $0x618] sm:$0xff]
  %v210 = vld [vmem:[%s0 + $0x620] sm:$0xff]
  %v211 = vld [vmem:[%s0 + $0x628] sm:$0xff]
  %v212 = vld [vmem:[%s0 + $0x630] sm:$0xff]
  %v213 = vld [vmem:[%s0 + $0x638] sm:$0xff]
  %v214 = vld [vmem:[%s0 + $0x640] sm:$0xff]
  %v215 = vld [vmem:[%s0 + $0x648] sm:$0xff]
  %v216 = vld [vmem:[%s0 + $0x650] sm:$0xff]
  %v217 = vld [vmem:[%s0 + $0x658] sm:$0xff]
  %v218 = vld [vmem:[%s0 + $0x660] sm:$0xff]
  %v219 = vld [vmem:[%s0 + $0x668] sm:$0xff]
  %v220 = vld [vmem:[%s0 + $0x670] sm:$0xff]
  %v221 = vld [vmem:[%s0 + $0x678] sm:$0xff]
  %v222 = vld [vmem:[%s0 + $0x680] sm:$0xff]
  %v223 = vld [vmem:[%s0 + $0x688] sm:$0xff]
  %v224 = vld [vmem:[%s0 + $0x690] sm:$0xff]
  %v225 = vld [vmem:[%s0 + $0x698] sm:$0xff]
  %v226 = vld [vmem:[%s0 + $0x6a0] sm:$0xff]
  %v227 = vld [vmem:[%s0 + $0x6a8] sm:$0xff]
  %v228 = vld [vmem:[%s0 + $0x6b0] sm:$0xff]
  %v229 = vld [vmem:[%s0 + $0x6b8] sm:$0xff]
  %v230 = vld [vmem:[%s0 + $0x6c0] sm:$0xff]
  %v231 = vld [vmem:[%s0 + $0x6c8] sm:$0xff]
  %v232 = vld [vmem:[%s0 + $0x6d0] sm:$0xff]
  %v233 = vld [vmem:[%s0 + $0x6d8] sm:$0xff]
  %v234 = vld [vmem:[%s0 + $0x6e0] sm:$0xff]
  %v235 = vld [vmem:[%s0 + $0x6e8] sm:$0xff]
  %v236 = vld [vmem:[%s0 + $0x6f0] sm:$0xff]
  %v237 = vld [vmem:[%s0 + $0x6f8] sm:$0xff]
  %v238 = vld [vmem:[%s0 + $0x700] sm:$0xff]
  %v239 = vld [vmem:[%s0 + $0x708] sm:$0xff]
  %v240 = vld [vmem:[%s0 + $0x710] sm:$0xff]
  %v241 = vld [vmem:[%s0 + $0x718] sm:$0xff]
  %v242 = vld [vmem:[%s0 + $0x720] sm:$0xff]
  %v243 = vld [vmem:[%s0 + $0x728] sm:$0xff]
  %v244 = vld [vmem:[%s0 + $0x730] sm:$0xff]
  %v245 = vld [vmem:[%s0 + $0x738] sm:$0xff]
  %v246 = vld [vmem:[%s0 + $0x740] sm:$0xff]
  %v247 = vld [vmem:[%s0 + $0x748] sm:$0xff]
  %v248 = vld [vmem:[%s0 + $0x750] sm:$0xff]
  %v249 = vld [vmem:[%s0 + $0x758] sm:$0xff]
  %v250 = vld [vmem:[%s0 + $0x760] sm:$0xff]
  %v251 = vld [vmem:[%s0 + $0x768] sm:$0xff]
  %v252 = vld [vmem:[%s0 + $0x770] sm:$0xff]
  %v253 = vld [vmem:[%s0 + $0x778] sm:$0xff]
  %v254 = vld [vmem:[%s0 + $0x780] sm:$0xff]
  %v255 = vld [vmem:[%s0 + $0x788] sm:$0xff]
  %v256 = vld [vmem:[%s0 + $0x790] sm:$0xff]
  %v257 = vld [vmem:[%s0 + $0x798] sm:$0xff]
  %v258 = vld [vmem:[%s0 + $0x7a0] sm:$0xff]
  %v259 = vld [vmem:[%s0 + $0x7a8] sm:$0xff]
  %v260 = vld [vmem:[%s0 + $0x7b0] sm:$0xff]
  %v261 = vld [vmem:[%s0 + $0x7b8] sm:$0xff]
  %v262 = vld [vmem:[%s0 + $0x7c0] sm:$0xff]
  %v263 = vld [vmem:[%s0 + $0x7c8] sm:$0xff]
  %v264 = vld [vmem:[%s0 + $0x7d0] sm:$0xff]
  %v265 = vld [vmem:[%s0 + $0x7d8] sm:$0xff]
  %v266 = vld [vmem:[%s0 + $0x7e0] sm:$0xff]
  %v267 = vld [vmem:[%s0 + $0x7e8] sm:$0xff]
  %v268 = vld [vmem:[%s0 + $0x7f0] sm:$0xff]
  %v269 = vld [vmem:[%s0 + $0x7f8] sm:$0xff]
  %vm270 = vcmask 64512
  %v271 = vsel %vm270, %v14, 0.0
  %v272 = vsel %vm270, %v15, 0.0
  %v273 = vadd.f32 %v271, %v272
  %v274 = vsel %vm270, %v16, 0.0
  %v275 = vadd.f32 %v273, %v274
  %v276 = vsel %vm270, %v17, 0.0
  %v277 = vadd.f32 %v275, %v276
  %v278 = vsel %vm270, %v18, 0.0
  %v279 = vadd.f32 %v277, %v278
  %v280 = vsel %vm270, %v19, 0.0
  %v281 = vadd.f32 %v279, %v280
  %v282 = vsel %vm270, %v20, 0.0
  %v283 = vadd.f32 %v281, %v282
  %v284 = vsel %vm270, %v21, 0.0
  %v285 = vadd.f32 %v283, %v284
  %v286 = vsel %vm270, %v22, 0.0
  %v287 = vadd.f32 %v285, %v286
  %v288 = vsel %vm270, %v23, 0.0
  %v289 = vadd.f32 %v287, %v288
  %v290 = vsel %vm270, %v24, 0.0
  %v291 = vadd.f32 %v289, %v290
  %v292 = vsel %vm270, %v25, 0.0
  %v293 = vadd.f32 %v291, %v292
  %v294 = vsel %vm270, %v26, 0.0
  %v295 = vadd.f32 %v293, %v294
  %v296 = vsel %vm270, %v27, 0.0
  %v297 = vadd.f32 %v295, %v296
  %v298 = vsel %vm270, %v28, 0.0
  %v299 = vadd.f32 %v297, %v298
  %v300 = vsel %vm270, %v29, 0.0
  %v301 = vadd.f32 %v299, %v300
  %v302 = vsel %vm270, %v30, 0.0
  %v303 = vadd.f32 %v301, %v302
  %v304 = vsel %vm270, %v31, 0.0
  %v305 = vadd.f32 %v303, %v304
  %v306 = vsel %vm270, %v32, 0.0
  %v307 = vadd.f32 %v305, %v306
  %v308 = vsel %vm270, %v33, 0.0
  %v309 = vadd.f32 %v307, %v308
  %v310 = vsel %vm270, %v34, 0.0
  %v311 = vadd.f32 %v309, %v310
  %v312 = vsel %vm270, %v35, 0.0
  %v313 = vadd.f32 %v311, %v312
  %v314 = vsel %vm270, %v36, 0.0
  %v315 = vadd.f32 %v313, %v314
  %v316 = vsel %vm270, %v37, 0.0
  %v317 = vadd.f32 %v315, %v316
  %v318 = vsel %vm270, %v38, 0.0
  %v319 = vadd.f32 %v317, %v318
  %v320 = vsel %vm270, %v39, 0.0
  %v321 = vadd.f32 %v319, %v320
  %v322 = vsel %vm270, %v40, 0.0
  %v323 = vadd.f32 %v321, %v322
  %v324 = vsel %vm270, %v41, 0.0
  %v325 = vadd.f32 %v323, %v324
  %v326 = vsel %vm270, %v42, 0.0
  %v327 = vadd.f32 %v325, %v326
  %v328 = vsel %vm270, %v43, 0.0
  %v329 = vadd.f32 %v327, %v328
  %v330 = vsel %vm270, %v44, 0.0
  %v331 = vadd.f32 %v329, %v330
  %v332 = vsel %vm270, %v45, 0.0
  %v333 = vadd.f32 %v331, %v332
  %v334 = vsel %vm270, %v46, 0.0
  %v335 = vadd.f32 %v333, %v334
  %v336 = vsel %vm270, %v47, 0.0
  %v337 = vadd.f32 %v335, %v336
  %v338 = vsel %vm270, %v48, 0.0
  %v339 = vadd.f32 %v337, %v338
  %v340 = vsel %vm270, %v49, 0.0
  %v341 = vadd.f32 %v339, %v340
  %v342 = vsel %vm270, %v50, 0.0
  %v343 = vadd.f32 %v341, %v342
  %v344 = vsel %vm270, %v51, 0.0
  %v345 = vadd.f32 %v343, %v344
  %v346 = vsel %vm270, %v52, 0.0
  %v347 = vadd.f32 %v345, %v346
  %v348 = vsel %vm270, %v53, 0.0
  %v349 = vadd.f32 %v347, %v348
  %v350 = vsel %vm270, %v54, 0.0
  %v351 = vadd.f32 %v349, %v350
  %v352 = vsel %vm270, %v55, 0.0
  %v353 = vadd.f32 %v351, %v352
  %v354 = vsel %vm270, %v56, 0.0
  %v355 = vadd.f32 %v353, %v354
  %v356 = vsel %vm270, %v57, 0.0
  %v357 = vadd.f32 %v355, %v356
  %v358 = vsel %vm270, %v58, 0.0
  %v359 = vadd.f32 %v357, %v358
  %v360 = vsel %vm270, %v59, 0.0
  %v361 = vadd.f32 %v359, %v360
  %v362 = vsel %vm270, %v60, 0.0
  %v363 = vadd.f32 %v361, %v362
  %v364 = vsel %vm270, %v61, 0.0
  %v365 = vadd.f32 %v363, %v364
  %v366 = vsel %vm270, %v62, 0.0
  %v367 = vadd.f32 %v365, %v366
  %v368 = vsel %vm270, %v63, 0.0
  %v369 = vadd.f32 %v367, %v368
  %v370 = vsel %vm270, %v64, 0.0
  %v371 = vadd.f32 %v369, %v370
  %v372 = vsel %vm270, %v65, 0.0
  %v373 = vadd.f32 %v371, %v372
  %v374 = vsel %vm270, %v66, 0.0
  %v375 = vadd.f32 %v373, %v374
  %v376 = vsel %vm270, %v67, 0.0
  %v377 = vadd.f32 %v375, %v376
  %v378 = vsel %vm270, %v68, 0.0
  %v379 = vadd.f32 %v377, %v378
  %v380 = vsel %vm270, %v69, 0.0
  %v381 = vadd.f32 %v379, %v380
  %v382 = vsel %vm270, %v70, 0.0
  %v383 = vadd.f32 %v381, %v382
  %v384 = vsel %vm270, %v71, 0.0
  %v385 = vadd.f32 %v383, %v384
  %v386 = vsel %vm270, %v72, 0.0
  %v387 = vadd.f32 %v385, %v386
  %v388 = vsel %vm270, %v73, 0.0
  %v389 = vadd.f32 %v387, %v388
  %v390 = vsel %vm270, %v74, 0.0
  %v391 = vadd.f32 %v389, %v390
  %v392 = vsel %vm270, %v75, 0.0
  %v393 = vadd.f32 %v391, %v392
  %v394 = vsel %vm270, %v76, 0.0
  %v395 = vadd.f32 %v393, %v394
  %v396 = vsel %vm270, %v77, 0.0
  %v397 = vadd.f32 %v395, %v396
  %v398 = vsel %vm270, %v78, 0.0
  %v399 = vadd.f32 %v397, %v398
  %v400 = vsel %vm270, %v79, 0.0
  %v401 = vadd.f32 %v399, %v400
  %v402 = vsel %vm270, %v80, 0.0
  %v403 = vadd.f32 %v401, %v402
  %v404 = vsel %vm270, %v81, 0.0
  %v405 = vadd.f32 %v403, %v404
  %v406 = vsel %vm270, %v82, 0.0
  %v407 = vadd.f32 %v405, %v406
  %v408 = vsel %vm270, %v83, 0.0
  %v409 = vadd.f32 %v407, %v408
  %v410 = vsel %vm270, %v84, 0.0
  %v411 = vadd.f32 %v409, %v410
  %v412 = vsel %vm270, %v85, 0.0
  %v413 = vadd.f32 %v411, %v412
  %v414 = vsel %vm270, %v86, 0.0
  %v415 = vadd.f32 %v413, %v414
  %v416 = vsel %vm270, %v87, 0.0
  %v417 = vadd.f32 %v415, %v416
  %v418 = vsel %vm270, %v88, 0.0
  %v419 = vadd.f32 %v417, %v418
  %v420 = vsel %vm270, %v89, 0.0
  %v421 = vadd.f32 %v419, %v420
  %v422 = vsel %vm270, %v90, 0.0
  %v423 = vadd.f32 %v421, %v422
  %v424 = vsel %vm270, %v91, 0.0
  %v425 = vadd.f32 %v423, %v424
  %v426 = vsel %vm270, %v92, 0.0
  %v427 = vadd.f32 %v425, %v426
  %v428 = vsel %vm270, %v93, 0.0
  %v429 = vadd.f32 %v427, %v428
  %v430 = vsel %vm270, %v94, 0.0
  %v431 = vadd.f32 %v429, %v430
  %v432 = vsel %vm270, %v95, 0.0
  %v433 = vadd.f32 %v431, %v432
  %v434 = vsel %vm270, %v96, 0.0
  %v435 = vadd.f32 %v433, %v434
  %v436 = vsel %vm270, %v97, 0.0
  %v437 = vadd.f32 %v435, %v436
  %v438 = vsel %vm270, %v98, 0.0
  %v439 = vadd.f32 %v437, %v438
  %v440 = vsel %vm270, %v99, 0.0
  %v441 = vadd.f32 %v439, %v440
  %v442 = vsel %vm270, %v100, 0.0
  %v443 = vadd.f32 %v441, %v442
  %v444 = vsel %vm270, %v101, 0.0
  %v445 = vadd.f32 %v443, %v444
  %v446 = vsel %vm270, %v102, 0.0
  %v447 = vadd.f32 %v445, %v446
  %v448 = vsel %vm270, %v103, 0.0
  %v449 = vadd.f32 %v447, %v448
  %v450 = vsel %vm270, %v104, 0.0
  %v451 = vadd.f32 %v449, %v450
  %v452 = vsel %vm270, %v105, 0.0
  %v453 = vadd.f32 %v451, %v452
  %v454 = vsel %vm270, %v106, 0.0
  %v455 = vadd.f32 %v453, %v454
  %v456 = vsel %vm270, %v107, 0.0
  %v457 = vadd.f32 %v455, %v456
  %v458 = vsel %vm270, %v108, 0.0
  %v459 = vadd.f32 %v457, %v458
  %v460 = vsel %vm270, %v109, 0.0
  %v461 = vadd.f32 %v459, %v460
  %v462 = vsel %vm270, %v110, 0.0
  %v463 = vadd.f32 %v461, %v462
  %v464 = vsel %vm270, %v111, 0.0
  %v465 = vadd.f32 %v463, %v464
  %v466 = vsel %vm270, %v112, 0.0
  %v467 = vadd.f32 %v465, %v466
  %v468 = vsel %vm270, %v113, 0.0
  %v469 = vadd.f32 %v467, %v468
  %v470 = vsel %vm270, %v114, 0.0
  %v471 = vadd.f32 %v469, %v470
  %v472 = vsel %vm270, %v115, 0.0
  %v473 = vadd.f32 %v471, %v472
  %v474 = vsel %vm270, %v116, 0.0
  %v475 = vadd.f32 %v473, %v474
  %v476 = vsel %vm270, %v117, 0.0
  %v477 = vadd.f32 %v475, %v476
  %v478 = vsel %vm270, %v118, 0.0
  %v479 = vadd.f32 %v477, %v478
  %v480 = vsel %vm270, %v119, 0.0
  %v481 = vadd.f32 %v479, %v480
  %v482 = vsel %vm270, %v120, 0.0
  %v483 = vadd.f32 %v481, %v482
  %v484 = vsel %vm270, %v121, 0.0
  %v485 = vadd.f32 %v483, %v484
  %v486 = vsel %vm270, %v122, 0.0
  %v487 = vadd.f32 %v485, %v486
  %v488 = vsel %vm270, %v123, 0.0
  %v489 = vadd.f32 %v487, %v488
  %v490 = vsel %vm270, %v124, 0.0
  %v491 = vadd.f32 %v489, %v490
  %v492 = vsel %vm270, %v125, 0.0
  %v493 = vadd.f32 %v491, %v492
  %v494 = vsel %vm270, %v126, 0.0
  %v495 = vadd.f32 %v493, %v494
  %v496 = vsel %vm270, %v127, 0.0
  %v497 = vadd.f32 %v495, %v496
  %v498 = vsel %vm270, %v128, 0.0
  %v499 = vadd.f32 %v497, %v498
  %v500 = vsel %vm270, %v129, 0.0
  %v501 = vadd.f32 %v499, %v500
  %v502 = vsel %vm270, %v130, 0.0
  %v503 = vadd.f32 %v501, %v502
  %v504 = vsel %vm270, %v131, 0.0
  %v505 = vadd.f32 %v503, %v504
  %v506 = vsel %vm270, %v132, 0.0
  %v507 = vadd.f32 %v505, %v506
  %v508 = vsel %vm270, %v133, 0.0
  %v509 = vadd.f32 %v507, %v508
  %v510 = vsel %vm270, %v134, 0.0
  %v511 = vadd.f32 %v509, %v510
  %v512 = vsel %vm270, %v135, 0.0
  %v513 = vadd.f32 %v511, %v512
  %v514 = vsel %vm270, %v136, 0.0
  %v515 = vadd.f32 %v513, %v514
  %v516 = vsel %vm270, %v137, 0.0
  %v517 = vadd.f32 %v515, %v516
  %v518 = vsel %vm270, %v138, 0.0
  %v519 = vadd.f32 %v517, %v518
  %v520 = vsel %vm270, %v139, 0.0
  %v521 = vadd.f32 %v519, %v520
  %v522 = vsel %vm270, %v140, 0.0
  %v523 = vadd.f32 %v521, %v522
  %v524 = vsel %vm270, %v141, 0.0
  %v525 = vadd.f32 %v523, %v524
  %v526 = vsel %vm270, %v142, 0.0
  %v527 = vadd.f32 %v525, %v526
  %v528 = vsel %vm270, %v143, 0.0
  %v529 = vadd.f32 %v527, %v528
  %v530 = vsel %vm270, %v144, 0.0
  %v531 = vadd.f32 %v529, %v530
  %v532 = vsel %vm270, %v145, 0.0
  %v533 = vadd.f32 %v531, %v532
  %v534 = vsel %vm270, %v146, 0.0
  %v535 = vadd.f32 %v533, %v534
  %v536 = vsel %vm270, %v147, 0.0
  %v537 = vadd.f32 %v535, %v536
  %v538 = vsel %vm270, %v148, 0.0
  %v539 = vadd.f32 %v537, %v538
  %v540 = vsel %vm270, %v149, 0.0
  %v541 = vadd.f32 %v539, %v540
  %v542 = vsel %vm270, %v150, 0.0
  %v543 = vadd.f32 %v541, %v542
  %v544 = vsel %vm270, %v151, 0.0
  %v545 = vadd.f32 %v543, %v544
  %v546 = vsel %vm270, %v152, 0.0
  %v547 = vadd.f32 %v545, %v546
  %v548 = vsel %vm270, %v153, 0.0
  %v549 = vadd.f32 %v547, %v548
  %v550 = vsel %vm270, %v154, 0.0
  %v551 = vadd.f32 %v549, %v550
  %v552 = vsel %vm270, %v155, 0.0
  %v553 = vadd.f32 %v551, %v552
  %v554 = vsel %vm270, %v156, 0.0
  %v555 = vadd.f32 %v553, %v554
  %v556 = vsel %vm270, %v157, 0.0
  %v557 = vadd.f32 %v555, %v556
  %v558 = vsel %vm270, %v158, 0.0
  %v559 = vadd.f32 %v557, %v558
  %v560 = vsel %vm270, %v159, 0.0
  %v561 = vadd.f32 %v559, %v560
  %v562 = vsel %vm270, %v160, 0.0
  %v563 = vadd.f32 %v561, %v562
  %v564 = vsel %vm270, %v161, 0.0
  %v565 = vadd.f32 %v563, %v564
  %v566 = vsel %vm270, %v162, 0.0
  %v567 = vadd.f32 %v565, %v566
  %v568 = vsel %vm270, %v163, 0.0
  %v569 = vadd.f32 %v567, %v568
  %v570 = vsel %vm270, %v164, 0.0
  %v571 = vadd.f32 %v569, %v570
  %v572 = vsel %vm270, %v165, 0.0
  %v573 = vadd.f32 %v571, %v572
  %v574 = vsel %vm270, %v166, 0.0
  %v575 = vadd.f32 %v573, %v574
  %v576 = vsel %vm270, %v167, 0.0
  %v577 = vadd.f32 %v575, %v576
  %v578 = vsel %vm270, %v168, 0.0
  %v579 = vadd.f32 %v577, %v578
  %v580 = vsel %vm270, %v169, 0.0
  %v581 = vadd.f32 %v579, %v580
  %v582 = vsel %vm270, %v170, 0.0
  %v583 = vadd.f32 %v581, %v582
  %v584 = vsel %vm270, %v171, 0.0
  %v585 = vadd.f32 %v583, %v584
  %v586 = vsel %vm270, %v172, 0.0
  %v587 = vadd.f32 %v585, %v586
  %v588 = vsel %vm270, %v173, 0.0
  %v589 = vadd.f32 %v587, %v588
  %v590 = vsel %vm270, %v174, 0.0
  %v591 = vadd.f32 %v589, %v590
  %v592 = vsel %vm270, %v175, 0.0
  %v593 = vadd.f32 %v591, %v592
  %v594 = vsel %vm270, %v176, 0.0
  %v595 = vadd.f32 %v593, %v594
  %v596 = vsel %vm270, %v177, 0.0
  %v597 = vadd.f32 %v595, %v596
  %v598 = vsel %vm270, %v178, 0.0
  %v599 = vadd.f32 %v597, %v598
  %v600 = vsel %vm270, %v179, 0.0
  %v601 = vadd.f32 %v599, %v600
  %v602 = vsel %vm270, %v180, 0.0
  %v603 = vadd.f32 %v601, %v602
  %v604 = vsel %vm270, %v181, 0.0
  %v605 = vadd.f32 %v603, %v604
  %v606 = vsel %vm270, %v182, 0.0
  %v607 = vadd.f32 %v605, %v606
  %v608 = vsel %vm270, %v183, 0.0
  %v609 = vadd.f32 %v607, %v608
  %v610 = vsel %vm270, %v184, 0.0
  %v611 = vadd.f32 %v609, %v610
  %v612 = vsel %vm270, %v185, 0.0
  %v613 = vadd.f32 %v611, %v612
  %v614 = vsel %vm270, %v186, 0.0
  %v615 = vadd.f32 %v613, %v614
  %v616 = vsel %vm270, %v187, 0.0
  %v617 = vadd.f32 %v615, %v616
  %v618 = vsel %vm270, %v188, 0.0
  %v619 = vadd.f32 %v617, %v618
  %v620 = vsel %vm270, %v189, 0.0
  %v621 = vadd.f32 %v619, %v620
  %v622 = vsel %vm270, %v190, 0.0
  %v623 = vadd.f32 %v621, %v622
  %v624 = vsel %vm270, %v191, 0.0
  %v625 = vadd.f32 %v623, %v624
  %v626 = vsel %vm270, %v192, 0.0
  %v627 = vadd.f32 %v625, %v626
  %v628 = vsel %vm270, %v193, 0.0
  %v629 = vadd.f32 %v627, %v628
  %v630 = vsel %vm270, %v194, 0.0
  %v631 = vadd.f32 %v629, %v630
  %v632 = vsel %vm270, %v195, 0.0
  %v633 = vadd.f32 %v631, %v632
  %v634 = vsel %vm270, %v196, 0.0
  %v635 = vadd.f32 %v633, %v634
  %v636 = vsel %vm270, %v197, 0.0
  %v637 = vadd.f32 %v635, %v636
  %v638 = vsel %vm270, %v198, 0.0
  %v639 = vadd.f32 %v637, %v638
  %v640 = vsel %vm270, %v199, 0.0
  %v641 = vadd.f32 %v639, %v640
  %v642 = vsel %vm270, %v200, 0.0
  %v643 = vadd.f32 %v641, %v642
  %v644 = vsel %vm270, %v201, 0.0
  %v645 = vadd.f32 %v643, %v644
  %v646 = vsel %vm270, %v202, 0.0
  %v647 = vadd.f32 %v645, %v646
  %v648 = vsel %vm270, %v203, 0.0
  %v649 = vadd.f32 %v647, %v648
  %v650 = vsel %vm270, %v204, 0.0
  %v651 = vadd.f32 %v649, %v650
  %v652 = vsel %vm270, %v205, 0.0
  %v653 = vadd.f32 %v651, %v652
  %v654 = vsel %vm270, %v206, 0.0
  %v655 = vadd.f32 %v653, %v654
  %v656 = vsel %vm270, %v207, 0.0
  %v657 = vadd.f32 %v655, %v656
  %v658 = vsel %vm270, %v208, 0.0
  %v659 = vadd.f32 %v657, %v658
  %v660 = vsel %vm270, %v209, 0.0
  %v661 = vadd.f32 %v659, %v660
  %v662 = vsel %vm270, %v210, 0.0
  %v663 = vadd.f32 %v661, %v662
  %v664 = vsel %vm270, %v211, 0.0
  %v665 = vadd.f32 %v663, %v664
  %v666 = vsel %vm270, %v212, 0.0
  %v667 = vadd.f32 %v665, %v666
  %v668 = vsel %vm270, %v213, 0.0
  %v669 = vadd.f32 %v667, %v668
  %v670 = vsel %vm270, %v214, 0.0
  %v671 = vadd.f32 %v669, %v670
  %v672 = vsel %vm270, %v215, 0.0
  %v673 = vadd.f32 %v671, %v672
  %v674 = vsel %vm270, %v216, 0.0
  %v675 = vadd.f32 %v673, %v674
  %v676 = vsel %vm270, %v217, 0.0
  %v677 = vadd.f32 %v675, %v676
  %v678 = vsel %vm270, %v218, 0.0
  %v679 = vadd.f32 %v677, %v678
  %v680 = vsel %vm270, %v219, 0.0
  %v681 = vadd.f32 %v679, %v680
  %v682 = vsel %vm270, %v220, 0.0
  %v683 = vadd.f32 %v681, %v682
  %v684 = vsel %vm270, %v221, 0.0
  %v685 = vadd.f32 %v683, %v684
  %v686 = vsel %vm270, %v222, 0.0
  %v687 = vadd.f32 %v685, %v686
  %v688 = vsel %vm270, %v223, 0.0
  %v689 = vadd.f32 %v687, %v688
  %v690 = vsel %vm270, %v224, 0.0
  %v691 = vadd.f32 %v689, %v690
  %v692 = vsel %vm270, %v225, 0.0
  %v693 = vadd.f32 %v691, %v692
  %v694 = vsel %vm270, %v226, 0.0
  %v695 = vadd.f32 %v693, %v694
  %v696 = vsel %vm270, %v227, 0.0
  %v697 = vadd.f32 %v695, %v696
  %v698 = vsel %vm270, %v228, 0.0
  %v699 = vadd.f32 %v697, %v698
  %v700 = vsel %vm270, %v229, 0.0
  %v701 = vadd.f32 %v699, %v700
  %v702 = vsel %vm270, %v230, 0.0
  %v703 = vadd.f32 %v701, %v702
  %v704 = vsel %vm270, %v231, 0.0
  %v705 = vadd.f32 %v703, %v704
  %v706 = vsel %vm270, %v232, 0.0
  %v707 = vadd.f32 %v705, %v706
  %v708 = vsel %vm270, %v233, 0.0
  %v709 = vadd.f32 %v707, %v708
  %v710 = vsel %vm270, %v234, 0.0
  %v711 = vadd.f32 %v709, %v710
  %v712 = vsel %vm270, %v235, 0.0
  %v713 = vadd.f32 %v711, %v712
  %v714 = vsel %vm270, %v236, 0.0
  %v715 = vadd.f32 %v713, %v714
  %v716 = vsel %vm270, %v237, 0.0
  %v717 = vadd.f32 %v715, %v716
  %v718 = vsel %vm270, %v238, 0.0
  %v719 = vadd.f32 %v717, %v718
  %v720 = vsel %vm270, %v239, 0.0
  %v721 = vadd.f32 %v719, %v720
  %v722 = vsel %vm270, %v240, 0.0
  %v723 = vadd.f32 %v721, %v722
  %v724 = vsel %vm270, %v241, 0.0
  %v725 = vadd.f32 %v723, %v724
  %v726 = vsel %vm270, %v242, 0.0
  %v727 = vadd.f32 %v725, %v726
  %v728 = vsel %vm270, %v243, 0.0
  %v729 = vadd.f32 %v727, %v728
  %v730 = vsel %vm270, %v244, 0.0
  %v731 = vadd.f32 %v729, %v730
  %v732 = vsel %vm270, %v245, 0.0
  %v733 = vadd.f32 %v731, %v732
  %v734 = vsel %vm270, %v246, 0.0
  %v735 = vadd.f32 %v733, %v734
  %v736 = vsel %vm270, %v247, 0.0
  %v737 = vadd.f32 %v735, %v736
  %v738 = vsel %vm270, %v248, 0.0
  %v739 = vadd.f32 %v737, %v738
  %v740 = vsel %vm270, %v249, 0.0
  %v741 = vadd.f32 %v739, %v740
  %v742 = vsel %vm270, %v250, 0.0
  %v743 = vadd.f32 %v741, %v742
  %v744 = vsel %vm270, %v251, 0.0
  %v745 = vadd.f32 %v743, %v744
  %v746 = vsel %vm270, %v252, 0.0
  %v747 = vadd.f32 %v745, %v746
  %v748 = vsel %vm270, %v253, 0.0
  %v749 = vadd.f32 %v747, %v748
  %v750 = vsel %vm270, %v254, 0.0
  %v751 = vadd.f32 %v749, %v750
  %v752 = vsel %vm270, %v255, 0.0
  %v753 = vadd.f32 %v751, %v752
  %v754 = vsel %vm270, %v256, 0.0
  %v755 = vadd.f32 %v753, %v754
  %v756 = vsel %vm270, %v257, 0.0
  %v757 = vadd.f32 %v755, %v756
  %v758 = vsel %vm270, %v258, 0.0
  %v759 = vadd.f32 %v757, %v758
  %v760 = vsel %vm270, %v259, 0.0
  %v761 = vadd.f32 %v759, %v760
  %v762 = vsel %vm270, %v260, 0.0
  %v763 = vadd.f32 %v761, %v762
  %v764 = vsel %vm270, %v261, 0.0
  %v765 = vadd.f32 %v763, %v764
  %v766 = vsel %vm270, %v262, 0.0
  %v767 = vadd.f32 %v765, %v766
  %v768 = vsel %vm270, %v263, 0.0
  %v769 = vadd.f32 %v767, %v768
  %v770 = vsel %vm270, %v264, 0.0
  %v771 = vadd.f32 %v769, %v770
  %v772 = vsel %vm270, %v265, 0.0
  %v773 = vadd.f32 %v771, %v772
  %v774 = vsel %vm270, %v266, 0.0
  %v775 = vadd.f32 %v773, %v774
  %v776 = vsel %vm270, %v267, 0.0
  %v777 = vadd.f32 %v775, %v776
  %v778 = vsel %vm270, %v268, 0.0
  %v779 = vadd.f32 %v777, %v778
  %v780 = vsel %vm270, %v269, 0.0
  %v781 = vadd.f32 %v779, %v780
  %v782 = vrot.slane %v781, 4
  %v783 = vadd.f32 %v781, %v782
  %v784 = vrot.slane %v783, 2
  %v785 = vadd.f32 %v783, %v784
  %v786 = vrot.slane %v785, 1
  %v787 = vadd.f32 %v785, %v786
  %v788 = vrcp.pop 2048.0
  %v789 = vmul.f32 2048.0, %v788
  %v790 = vsub.f32 1.0, %v789
  %v791 = vmul.f32 %v788, %v790
  %v792 = vadd.f32 %v788, %v791
  %vm793 = vweird.f32 %v788
  %v794 = vsel %vm793, %v788, %v792
  %v795 = vmul.f32 %v787, %v794
  %v796 = vsub.f32 %v14, %v795
  %v797 = vsub.f32 %v15, %v795
  %v798 = vsub.f32 %v16, %v795
  %v799 = vsub.f32 %v17, %v795
  %v800 = vsub.f32 %v18, %v795
  %v801 = vsub.f32 %v19, %v795
  %v802 = vsub.f32 %v20, %v795
  %v803 = vsub.f32 %v21, %v795
  %v804 = vsub.f32 %v22, %v795
  %v805 = vsub.f32 %v23, %v795
  %v806 = vsub.f32 %v24, %v795
  %v807 = vsub.f32 %v25, %v795
  %v808 = vsub.f32 %v26, %v795
  %v809 = vsub.f32 %v27, %v795
  %v810 = vsub.f32 %v28, %v795
  %v811 = vsub.f32 %v29, %v795
  %v812 = vsub.f32 %v30, %v795
  %v813 = vsub.f32 %v31, %v795
  %v814 = vsub.f32 %v32, %v795
  %v815 = vsub.f32 %v33, %v795
  %v816 = vsub.f32 %v34, %v795
  %v817 = vsub.f32 %v35, %v795
  %v818 = vsub.f32 %v36, %v795
  %v819 = vsub.f32 %v37, %v795
  %v820 = vsub.f32 %v38, %v795
  %v821 = vsub.f32 %v39, %v795
  %v822 = vsub.f32 %v40, %v795
  %v823 = vsub.f32 %v41, %v795
  %v824 = vsub.f32 %v42, %v795
  %v825 = vsub.f32 %v43, %v795
  %v826 = vsub.f32 %v44, %v795
  %v827 = vsub.f32 %v45, %v795
  %v828 = vsub.f32 %v46, %v795
  %v829 = vsub.f32 %v47, %v795
  %v830 = vsub.f32 %v48, %v795
  %v831 = vsub.f32 %v49, %v795
  %v832 = vsub.f32 %v50, %v795
  %v833 = vsub.f32 %v51, %v795
  %v834 = vsub.f32 %v52, %v795
  %v835 = vsub.f32 %v53, %v795
  %v836 = vsub.f32 %v54, %v795
  %v837 = vsub.f32 %v55, %v795
  %v838 = vsub.f32 %v56, %v795
  %v839 = vsub.f32 %v57, %v795
  %v840 = vsub.f32 %v58, %v795
  %v841 = vsub.f32 %v59, %v795
  %v842 = vsub.f32 %v60, %v795
  %v843 = vsub.f32 %v61, %v795
  %v844 = vsub.f32 %v62, %v795
  %v845 = vsub.f32 %v63, %v795
  %v846 = vsub.f32 %v64, %v795
  %v847 = vsub.f32 %v65, %v795
  %v848 = vsub.f32 %v66, %v795
  %v849 = vsub.f32 %v67, %v795
  %v850 = vsub.f32 %v68, %v795
  %v851 = vsub.f32 %v69, %v795
  %v852 = vsub.f32 %v70, %v795
  %v853 = vsub.f32 %v71, %v795
  %v854 = vsub.f32 %v72, %v795
  %v855 = vsub.f32 %v73, %v795
  %v856 = vsub.f32 %v74, %v795
  %v857 = vsub.f32 %v75, %v795
  %v858 = vsub.f32 %v76, %v795
  %v859 = vsub.f32 %v77, %v795
  %v860 = vsub.f32 %v78, %v795
  %v861 = vsub.f32 %v79, %v795
  %v862 = vsub.f32 %v80, %v795
  %v863 = vsub.f32 %v81, %v795
  %v864 = vsub.f32 %v82, %v795
  %v865 = vsub.f32 %v83, %v795
  %v866 = vsub.f32 %v84, %v795
  %v867 = vsub.f32 %v85, %v795
  %v868 = vsub.f32 %v86, %v795
  %v869 = vsub.f32 %v87, %v795
  %v870 = vsub.f32 %v88, %v795
  %v871 = vsub.f32 %v89, %v795
  %v872 = vsub.f32 %v90, %v795
  %v873 = vsub.f32 %v91, %v795
  %v874 = vsub.f32 %v92, %v795
  %v875 = vsub.f32 %v93, %v795
  %v876 = vsub.f32 %v94, %v795
  %v877 = vsub.f32 %v95, %v795
  %v878 = vsub.f32 %v96, %v795
  %v879 = vsub.f32 %v97, %v795
  %v880 = vsub.f32 %v98, %v795
  %v881 = vsub.f32 %v99, %v795
  %v882 = vsub.f32 %v100, %v795
  %v883 = vsub.f32 %v101, %v795
  %v884 = vsub.f32 %v102, %v795
  %v885 = vsub.f32 %v103, %v795
  %v886 = vsub.f32 %v104, %v795
  %v887 = vsub.f32 %v105, %v795
  %v888 = vsub.f32 %v106, %v795
  %v889 = vsub.f32 %v107, %v795
  %v890 = vsub.f32 %v108, %v795
  %v891 = vsub.f32 %v109, %v795
  %v892 = vsub.f32 %v110, %v795
  %v893 = vsub.f32 %v111, %v795
  %v894 = vsub.f32 %v112, %v795
  %v895 = vsub.f32 %v113, %v795
  %v896 = vsub.f32 %v114, %v795
  %v897 = vsub.f32 %v115, %v795
  %v898 = vsub.f32 %v116, %v795
  %v899 = vsub.f32 %v117, %v795
  %v900 = vsub.f32 %v118, %v795
  %v901 = vsub.f32 %v119, %v795
  %v902 = vsub.f32 %v120, %v795
  %v903 = vsub.f32 %v121, %v795
  %v904 = vsub.f32 %v122, %v795
  %v905 = vsub.f32 %v123, %v795
  %v906 = vsub.f32 %v124, %v795
  %v907 = vsub.f32 %v125, %v795
  %v908 = vsub.f32 %v126, %v795
  %v909 = vsub.f32 %v127, %v795
  %v910 = vsub.f32 %v128, %v795
  %v911 = vsub.f32 %v129, %v795
  %v912 = vsub.f32 %v130, %v795
  %v913 = vsub.f32 %v131, %v795
  %v914 = vsub.f32 %v132, %v795
  %v915 = vsub.f32 %v133, %v795
  %v916 = vsub.f32 %v134, %v795
  %v917 = vsub.f32 %v135, %v795
  %v918 = vsub.f32 %v136, %v795
  %v919 = vsub.f32 %v137, %v795
  %v920 = vsub.f32 %v138, %v795
  %v921 = vsub.f32 %v139, %v795
  %v922 = vsub.f32 %v140, %v795
  %v923 = vsub.f32 %v141, %v795
  %v924 = vsub.f32 %v142, %v795
  %v925 = vsub.f32 %v143, %v795
  %v926 = vsub.f32 %v144, %v795
  %v927 = vsub.f32 %v145, %v795
  %v928 = vsub.f32 %v146, %v795
  %v929 = vsub.f32 %v147, %v795
  %v930 = vsub.f32 %v148, %v795
  %v931 = vsub.f32 %v149, %v795
  %v932 = vsub.f32 %v150, %v795
  %v933 = vsub.f32 %v151, %v795
  %v934 = vsub.f32 %v152, %v795
  %v935 = vsub.f32 %v153, %v795
  %v936 = vsub.f32 %v154, %v795
  %v937 = vsub.f32 %v155, %v795
  %v938 = vsub.f32 %v156, %v795
  %v939 = vsub.f32 %v157, %v795
  %v940 = vsub.f32 %v158, %v795
  %v941 = vsub.f32 %v159, %v795
  %v942 = vsub.f32 %v160, %v795
  %v943 = vsub.f32 %v161, %v795
  %v944 = vsub.f32 %v162, %v795
  %v945 = vsub.f32 %v163, %v795
  %v946 = vsub.f32 %v164, %v795
  %v947 = vsub.f32 %v165, %v795
  %v948 = vsub.f32 %v166, %v795
  %v949 = vsub.f32 %v167, %v795
  %v950 = vsub.f32 %v168, %v795
  %v951 = vsub.f32 %v169, %v795
  %v952 = vsub.f32 %v170, %v795
  %v953 = vsub.f32 %v171, %v795
  %v954 = vsub.f32 %v172, %v795
  %v955 = vsub.f32 %v173, %v795
  %v956 = vsub.f32 %v174, %v795
  %v957 = vsub.f32 %v175, %v795
  %v958 = vsub.f32 %v176, %v795
  %v959 = vsub.f32 %v177, %v795
  %v960 = vsub.f32 %v178, %v795
  %v961 = vsub.f32 %v179, %v795
  %v962 = vsub.f32 %v180, %v795
  %v963 = vsub.f32 %v181, %v795
  %v964 = vsub.f32 %v182, %v795
  %v965 = vsub.f32 %v183, %v795
  %v966 = vsub.f32 %v184, %v795
  %v967 = vsub.f32 %v185, %v795
  %v968 = vsub.f32 %v186, %v795
  %v969 = vsub.f32 %v187, %v795
  %v970 = vsub.f32 %v188, %v795
  %v971 = vsub.f32 %v189, %v795
  %v972 = vsub.f32 %v190, %v795
  %v973 = vsub.f32 %v191, %v795
  %v974 = vsub.f32 %v192, %v795
  %v975 = vsub.f32 %v193, %v795
  %v976 = vsub.f32 %v194, %v795
  %v977 = vsub.f32 %v195, %v795
  %v978 = vsub.f32 %v196, %v795
  %v979 = vsub.f32 %v197, %v795
  %v980 = vsub.f32 %v198, %v795
  %v981 = vsub.f32 %v199, %v795
  %v982 = vsub.f32 %v200, %v795
  %v983 = vsub.f32 %v201, %v795
  %v984 = vsub.f32 %v202, %v795
  %v985 = vsub.f32 %v203, %v795
  %v986 = vsub.f32 %v204, %v795
  %v987 = vsub.f32 %v205, %v795
  %v988 = vsub.f32 %v206, %v795
  %v989 = vsub.f32 %v207, %v795
  %v990 = vsub.f32 %v208, %v795
  %v991 = vsub.f32 %v209, %v795
  %v992 = vsub.f32 %v210, %v795
  %v993 = vsub.f32 %v211, %v795
  %v994 = vsub.f32 %v212, %v795
  %v995 = vsub.f32 %v213, %v795
  %v996 = vsub.f32 %v214, %v795
  %v997 = vsub.f32 %v215, %v795
  %v998 = vsub.f32 %v216, %v795
  %v999 = vsub.f32 %v217, %v795
  %v1000 = vsub.f32 %v218, %v795
  %v1001 = vsub.f32 %v219, %v795
  %v1002 = vsub.f32 %v220, %v795
  %v1003 = vsub.f32 %v221, %v795
  %v1004 = vsub.f32 %v222, %v795
  %v1005 = vsub.f32 %v223, %v795
  %v1006 = vsub.f32 %v224, %v795
  %v1007 = vsub.f32 %v225, %v795
  %v1008 = vsub.f32 %v226, %v795
  %v1009 = vsub.f32 %v227, %v795
  %v1010 = vsub.f32 %v228, %v795
  %v1011 = vsub.f32 %v229, %v795
  %v1012 = vsub.f32 %v230, %v795
  %v1013 = vsub.f32 %v231, %v795
  %v1014 = vsub.f32 %v232, %v795
  %v1015 = vsub.f32 %v233, %v795
  %v1016 = vsub.f32 %v234, %v795
  %v1017 = vsub.f32 %v235, %v795
  %v1018 = vsub.f32 %v236, %v795
  %v1019 = vsub.f32 %v237, %v795
  %v1020 = vsub.f32 %v238, %v795
  %v1021 = vsub.f32 %v239, %v795
  %v1022 = vsub.f32 %v240, %v795
  %v1023 = vsub.f32 %v241, %v795
  %v1024 = vsub.f32 %v242, %v795
  %v1025 = vsub.f32 %v243, %v795
  %v1026 = vsub.f32 %v244, %v795
  %v1027 = vsub.f32 %v245, %v795
  %v1028 = vsub.f32 %v246, %v795
  %v1029 = vsub.f32 %v247, %v795
  %v1030 = vsub.f32 %v248, %v795
  %v1031 = vsub.f32 %v249, %v795
  %v1032 = vsub.f32 %v250, %v795
  %v1033 = vsub.f32 %v251, %v795
  %v1034 = vsub.f32 %v252, %v795
  %v1035 = vsub.f32 %v253, %v795
  %v1036 = vsub.f32 %v254, %v795
  %v1037 = vsub.f32 %v255, %v795
  %v1038 = vsub.f32 %v256, %v795
  %v1039 = vsub.f32 %v257, %v795
  %v1040 = vsub.f32 %v258, %v795
  %v1041 = vsub.f32 %v259, %v795
  %v1042 = vsub.f32 %v260, %v795
  %v1043 = vsub.f32 %v261, %v795
  %v1044 = vsub.f32 %v262, %v795
  %v1045 = vsub.f32 %v263, %v795
  %v1046 = vsub.f32 %v264, %v795
  %v1047 = vsub.f32 %v265, %v795
  %v1048 = vsub.f32 %v266, %v795
  %v1049 = vsub.f32 %v267, %v795
  %v1050 = vsub.f32 %v268, %v795
  %v1051 = vsub.f32 %v269, %v795
  %v1052 = vmul.f32 %v796, %v796
  %v1053 = vmul.f32 %v797, %v797
  %v1054 = vmul.f32 %v798, %v798
  %v1055 = vmul.f32 %v799, %v799
  %v1056 = vmul.f32 %v800, %v800
  %v1057 = vmul.f32 %v801, %v801
  %v1058 = vmul.f32 %v802, %v802
  %v1059 = vmul.f32 %v803, %v803
  %v1060 = vmul.f32 %v804, %v804
  %v1061 = vmul.f32 %v805, %v805
  %v1062 = vmul.f32 %v806, %v806
  %v1063 = vmul.f32 %v807, %v807
  %v1064 = vmul.f32 %v808, %v808
  %v1065 = vmul.f32 %v809, %v809
  %v1066 = vmul.f32 %v810, %v810
  %v1067 = vmul.f32 %v811, %v811
  %v1068 = vmul.f32 %v812, %v812
  %v1069 = vmul.f32 %v813, %v813
  %v1070 = vmul.f32 %v814, %v814
  %v1071 = vmul.f32 %v815, %v815
  %v1072 = vmul.f32 %v816, %v816
  %v1073 = vmul.f32 %v817, %v817
  %v1074 = vmul.f32 %v818, %v818
  %v1075 = vmul.f32 %v819, %v819
  %v1076 = vmul.f32 %v820, %v820
  %v1077 = vmul.f32 %v821, %v821
  %v1078 = vmul.f32 %v822, %v822
  %v1079 = vmul.f32 %v823, %v823
  %v1080 = vmul.f32 %v824, %v824
  %v1081 = vmul.f32 %v825, %v825
  %v1082 = vmul.f32 %v826, %v826
  %v1083 = vmul.f32 %v827, %v827
  %v1084 = vmul.f32 %v828, %v828
  %v1085 = vmul.f32 %v829, %v829
  %v1086 = vmul.f32 %v830, %v830
  %v1087 = vmul.f32 %v831, %v831
  %v1088 = vmul.f32 %v832, %v832
  %v1089 = vmul.f32 %v833, %v833
  %v1090 = vmul.f32 %v834, %v834
  %v1091 = vmul.f32 %v835, %v835
  %v1092 = vmul.f32 %v836, %v836
  %v1093 = vmul.f32 %v837, %v837
  %v1094 = vmul.f32 %v838, %v838
  %v1095 = vmul.f32 %v839, %v839
  %v1096 = vmul.f32 %v840, %v840
  %v1097 = vmul.f32 %v841, %v841
  %v1098 = vmul.f32 %v842, %v842
  %v1099 = vmul.f32 %v843, %v843
  %v1100 = vmul.f32 %v844, %v844
  %v1101 = vmul.f32 %v845, %v845
  %v1102 = vmul.f32 %v846, %v846
  %v1103 = vmul.f32 %v847, %v847
  %v1104 = vmul.f32 %v848, %v848
  %v1105 = vmul.f32 %v849, %v849
  %v1106 = vmul.f32 %v850, %v850
  %v1107 = vmul.f32 %v851, %v851
  %v1108 = vmul.f32 %v852, %v852
  %v1109 = vmul.f32 %v853, %v853
  %v1110 = vmul.f32 %v854, %v854
  %v1111 = vmul.f32 %v855, %v855
  %v1112 = vmul.f32 %v856, %v856
  %v1113 = vmul.f32 %v857, %v857
  %v1114 = vmul.f32 %v858, %v858
  %v1115 = vmul.f32 %v859, %v859
  %v1116 = vmul.f32 %v860, %v860
  %v1117 = vmul.f32 %v861, %v861
  %v1118 = vmul.f32 %v862, %v862
  %v1119 = vmul.f32 %v863, %v863
  %v1120 = vmul.f32 %v864, %v864
  %v1121 = vmul.f32 %v865, %v865
  %v1122 = vmul.f32 %v866, %v866
  %v1123 = vmul.f32 %v867, %v867
  %v1124 = vmul.f32 %v868, %v868
  %v1125 = vmul.f32 %v869, %v869
  %v1126 = vmul.f32 %v870, %v870
  %v1127 = vmul.f32 %v871, %v871
  %v1128 = vmul.f32 %v872, %v872
  %v1129 = vmul.f32 %v873, %v873
  %v1130 = vmul.f32 %v874, %v874
  %v1131 = vmul.f32 %v875, %v875
  %v1132 = vmul.f32 %v876, %v876
  %v1133 = vmul.f32 %v877, %v877
  %v1134 = vmul.f32 %v878, %v878
  %v1135 = vmul.f32 %v879, %v879
  %v1136 = vmul.f32 %v880, %v880
  %v1137 = vmul.f32 %v881, %v881
  %v1138 = vmul.f32 %v882, %v882
  %v1139 = vmul.f32 %v883, %v883
  %v1140 = vmul.f32 %v884, %v884
  %v1141 = vmul.f32 %v885, %v885
  %v1142 = vmul.f32 %v886, %v886
  %v1143 = vmul.f32 %v887, %v887
  %v1144 = vmul.f32 %v888, %v888
  %v1145 = vmul.f32 %v889, %v889
  %v1146 = vmul.f32 %v890, %v890
  %v1147 = vmul.f32 %v891, %v891
  %v1148 = vmul.f32 %v892, %v892
  %v1149 = vmul.f32 %v893, %v893
  %v1150 = vmul.f32 %v894, %v894
  %v1151 = vmul.f32 %v895, %v895
  %v1152 = vmul.f32 %v896, %v896
  %v1153 = vmul.f32 %v897, %v897
  %v1154 = vmul.f32 %v898, %v898
  %v1155 = vmul.f32 %v899, %v899
  %v1156 = vmul.f32 %v900, %v900
  %v1157 = vmul.f32 %v901, %v901
  %v1158 = vmul.f32 %v902, %v902
  %v1159 = vmul.f32 %v903, %v903
  %v1160 = vmul.f32 %v904, %v904
  %v1161 = vmul.f32 %v905, %v905
  %v1162 = vmul.f32 %v906, %v906
  %v1163 = vmul.f32 %v907, %v907
  %v1164 = vmul.f32 %v908, %v908
  %v1165 = vmul.f32 %v909, %v909
  %v1166 = vmul.f32 %v910, %v910
  %v1167 = vmul.f32 %v911, %v911
  %v1168 = vmul.f32 %v912, %v912
  %v1169 = vmul.f32 %v913, %v913
  %v1170 = vmul.f32 %v914, %v914
  %v1171 = vmul.f32 %v915, %v915
  %v1172 = vmul.f32 %v916, %v916
  %v1173 = vmul.f32 %v917, %v917
  %v1174 = vmul.f32 %v918, %v918
  %v1175 = vmul.f32 %v919, %v919
  %v1176 = vmul.f32 %v920, %v920
  %v1177 = vmul.f32 %v921, %v921
  %v1178 = vmul.f32 %v922, %v922
  %v1179 = vmul.f32 %v923, %v923
  %v1180 = vmul.f32 %v924, %v924
  %v1181 = vmul.f32 %v925, %v925
  %v1182 = vmul.f32 %v926, %v926
  %v1183 = vmul.f32 %v927, %v927
  %v1184 = vmul.f32 %v928, %v928
  %v1185 = vmul.f32 %v929, %v929
  %v1186 = vmul.f32 %v930, %v930
  %v1187 = vmul.f32 %v931, %v931
  %v1188 = vmul.f32 %v932, %v932
  %v1189 = vmul.f32 %v933, %v933
  %v1190 = vmul.f32 %v934, %v934
  %v1191 = vmul.f32 %v935, %v935
  %v1192 = vmul.f32 %v936, %v936
  %v1193 = vmul.f32 %v937, %v937
  %v1194 = vmul.f32 %v938, %v938
  %v1195 = vmul.f32 %v939, %v939
  %v1196 = vmul.f32 %v940, %v940
  %v1197 = vmul.f32 %v941, %v941
  %v1198 = vmul.f32 %v942, %v942
  %v1199 = vmul.f32 %v943, %v943
  %v1200 = vmul.f32 %v944, %v944
  %v1201 = vmul.f32 %v945, %v945
  %v1202 = vmul.f32 %v946, %v946
  %v1203 = vmul.f32 %v947, %v947
  %v1204 = vmul.f32 %v948, %v948
  %v1205 = vmul.f32 %v949, %v949
  %v1206 = vmul.f32 %v950, %v950
  %v1207 = vmul.f32 %v951, %v951
  %v1208 = vmul.f32 %v952, %v952
  %v1209 = vmul.f32 %v953, %v953
  %v1210 = vmul.f32 %v954, %v954
  %v1211 = vmul.f32 %v955, %v955
  %v1212 = vmul.f32 %v956, %v956
  %v1213 = vmul.f32 %v957, %v957
  %v1214 = vmul.f32 %v958, %v958
  %v1215 = vmul.f32 %v959, %v959
  %v1216 = vmul.f32 %v960, %v960
  %v1217 = vmul.f32 %v961, %v961
  %v1218 = vmul.f32 %v962, %v962
  %v1219 = vmul.f32 %v963, %v963
  %v1220 = vmul.f32 %v964, %v964
  %v1221 = vmul.f32 %v965, %v965
  %v1222 = vmul.f32 %v966, %v966
  %v1223 = vmul.f32 %v967, %v967
  %v1224 = vmul.f32 %v968, %v968
  %v1225 = vmul.f32 %v969, %v969
  %v1226 = vmul.f32 %v970, %v970
  %v1227 = vmul.f32 %v971, %v971
  %v1228 = vmul.f32 %v972, %v972
  %v1229 = vmul.f32 %v973, %v973
  %v1230 = vmul.f32 %v974, %v974
  %v1231 = vmul.f32 %v975, %v975
  %v1232 = vmul.f32 %v976, %v976
  %v1233 = vmul.f32 %v977, %v977
  %v1234 = vmul.f32 %v978, %v978
  %v1235 = vmul.f32 %v979, %v979
  %v1236 = vmul.f32 %v980, %v980
  %v1237 = vmul.f32 %v981, %v981
  %v1238 = vmul.f32 %v982, %v982
  %v1239 = vmul.f32 %v983, %v983
  %v1240 = vmul.f32 %v984, %v984
  %v1241 = vmul.f32 %v985, %v985
  %v1242 = vmul.f32 %v986, %v986
  %v1243 = vmul.f32 %v987, %v987
  %v1244 = vmul.f32 %v988, %v988
  %v1245 = vmul.f32 %v989, %v989
  %v1246 = vmul.f32 %v990, %v990
  %v1247 = vmul.f32 %v991, %v991
  %v1248 = vmul.f32 %v992, %v992
  %v1249 = vmul.f32 %v993, %v993
  %v1250 = vmul.f32 %v994, %v994
  %v1251 = vmul.f32 %v995, %v995
  %v1252 = vmul.f32 %v996, %v996
  %v1253 = vmul.f32 %v997, %v997
  %v1254 = vmul.f32 %v998, %v998
  %v1255 = vmul.f32 %v999, %v999
  %v1256 = vmul.f32 %v1000, %v1000
  %v1257 = vmul.f32 %v1001, %v1001
  %v1258 = vmul.f32 %v1002, %v1002
  %v1259 = vmul.f32 %v1003, %v1003
  %v1260 = vmul.f32 %v1004, %v1004
  %v1261 = vmul.f32 %v1005, %v1005
  %v1262 = vmul.f32 %v1006, %v1006
  %v1263 = vmul.f32 %v1007, %v1007
  %v1264 = vmul.f32 %v1008, %v1008
  %v1265 = vmul.f32 %v1009, %v1009
  %v1266 = vmul.f32 %v1010, %v1010
  %v1267 = vmul.f32 %v1011, %v1011
  %v1268 = vmul.f32 %v1012, %v1012
  %v1269 = vmul.f32 %v1013, %v1013
  %v1270 = vmul.f32 %v1014, %v1014
  %v1271 = vmul.f32 %v1015, %v1015
  %v1272 = vmul.f32 %v1016, %v1016
  %v1273 = vmul.f32 %v1017, %v1017
  %v1274 = vmul.f32 %v1018, %v1018
  %v1275 = vmul.f32 %v1019, %v1019
  %v1276 = vmul.f32 %v1020, %v1020
  %v1277 = vmul.f32 %v1021, %v1021
  %v1278 = vmul.f32 %v1022, %v1022
  %v1279 = vmul.f32 %v1023, %v1023
  %v1280 = vmul.f32 %v1024, %v1024
  %v1281 = vmul.f32 %v1025, %v1025
  %v1282 = vmul.f32 %v1026, %v1026
  %v1283 = vmul.f32 %v1027, %v1027
  %v1284 = vmul.f32 %v1028, %v1028
  %v1285 = vmul.f32 %v1029, %v1029
  %v1286 = vmul.f32 %v1030, %v1030
  %v1287 = vmul.f32 %v1031, %v1031
  %v1288 = vmul.f32 %v1032, %v1032
  %v1289 = vmul.f32 %v1033, %v1033
  %v1290 = vmul.f32 %v1034, %v1034
  %v1291 = vmul.f32 %v1035, %v1035
  %v1292 = vmul.f32 %v1036, %v1036
  %v1293 = vmul.f32 %v1037, %v1037
  %v1294 = vmul.f32 %v1038, %v1038
  %v1295 = vmul.f32 %v1039, %v1039
  %v1296 = vmul.f32 %v1040, %v1040
  %v1297 = vmul.f32 %v1041, %v1041
  %v1298 = vmul.f32 %v1042, %v1042
  %v1299 = vmul.f32 %v1043, %v1043
  %v1300 = vmul.f32 %v1044, %v1044
  %v1301 = vmul.f32 %v1045, %v1045
  %v1302 = vmul.f32 %v1046, %v1046
  %v1303 = vmul.f32 %v1047, %v1047
  %v1304 = vmul.f32 %v1048, %v1048
  %v1305 = vmul.f32 %v1049, %v1049
  %v1306 = vmul.f32 %v1050, %v1050
  %v1307 = vmul.f32 %v1051, %v1051
  %v1308 = vsel %vm270, %v1052, 0.0
  %v1309 = vsel %vm270, %v1053, 0.0
  %v1310 = vadd.f32 %v1308, %v1309
  %v1311 = vsel %vm270, %v1054, 0.0
  %v1312 = vadd.f32 %v1310, %v1311
  %v1313 = vsel %vm270, %v1055, 0.0
  %v1314 = vadd.f32 %v1312, %v1313
  %v1315 = vsel %vm270, %v1056, 0.0
  %v1316 = vadd.f32 %v1314, %v1315
  %v1317 = vsel %vm270, %v1057, 0.0
  %v1318 = vadd.f32 %v1316, %v1317
  %v1319 = vsel %vm270, %v1058, 0.0
  %v1320 = vadd.f32 %v1318, %v1319
  %v1321 = vsel %vm270, %v1059, 0.0
  %v1322 = vadd.f32 %v1320, %v1321
  %v1323 = vsel %vm270, %v1060, 0.0
  %v1324 = vadd.f32 %v1322, %v1323
  %v1325 = vsel %vm270, %v1061, 0.0
  %v1326 = vadd.f32 %v1324, %v1325
  %v1327 = vsel %vm270, %v1062, 0.0
  %v1328 = vadd.f32 %v1326, %v1327
  %v1329 = vsel %vm270, %v1063, 0.0
  %v1330 = vadd.f32 %v1328, %v1329
  %v1331 = vsel %vm270, %v1064, 0.0
  %v1332 = vadd.f32 %v1330, %v1331
  %v1333 = vsel %vm270, %v1065, 0.0
  %v1334 = vadd.f32 %v1332, %v1333
  %v1335 = vsel %vm270, %v1066, 0.0
  %v1336 = vadd.f32 %v1334, %v1335
  %v1337 = vsel %vm270, %v1067, 0.0
  %v1338 = vadd.f32 %v1336, %v1337
  %v1339 = vsel %vm270, %v1068, 0.0
  %v1340 = vadd.f32 %v1338, %v1339
  %v1341 = vsel %vm270, %v1069, 0.0
  %v1342 = vadd.f32 %v1340, %v1341
  %v1343 = vsel %vm270, %v1070, 0.0
  %v1344 = vadd.f32 %v1342, %v1343
  %v1345 = vsel %vm270, %v1071, 0.0
  %v1346 = vadd.f32 %v1344, %v1345
  %v1347 = vsel %vm270, %v1072, 0.0
  %v1348 = vadd.f32 %v1346, %v1347
  %v1349 = vsel %vm270, %v1073, 0.0
  %v1350 = vadd.f32 %v1348, %v1349
  %v1351 = vsel %vm270, %v1074, 0.0
  %v1352 = vadd.f32 %v1350, %v1351
  %v1353 = vsel %vm270, %v1075, 0.0
  %v1354 = vadd.f32 %v1352, %v1353
  %v1355 = vsel %vm270, %v1076, 0.0
  %v1356 = vadd.f32 %v1354, %v1355
  %v1357 = vsel %vm270, %v1077, 0.0
  %v1358 = vadd.f32 %v1356, %v1357
  %v1359 = vsel %vm270, %v1078, 0.0
  %v1360 = vadd.f32 %v1358, %v1359
  %v1361 = vsel %vm270, %v1079, 0.0
  %v1362 = vadd.f32 %v1360, %v1361
  %v1363 = vsel %vm270, %v1080, 0.0
  %v1364 = vadd.f32 %v1362, %v1363
  %v1365 = vsel %vm270, %v1081, 0.0
  %v1366 = vadd.f32 %v1364, %v1365
  %v1367 = vsel %vm270, %v1082, 0.0
  %v1368 = vadd.f32 %v1366, %v1367
  %v1369 = vsel %vm270, %v1083, 0.0
  %v1370 = vadd.f32 %v1368, %v1369
  %v1371 = vsel %vm270, %v1084, 0.0
  %v1372 = vadd.f32 %v1370, %v1371
  %v1373 = vsel %vm270, %v1085, 0.0
  %v1374 = vadd.f32 %v1372, %v1373
  %v1375 = vsel %vm270, %v1086, 0.0
  %v1376 = vadd.f32 %v1374, %v1375
  %v1377 = vsel %vm270, %v1087, 0.0
  %v1378 = vadd.f32 %v1376, %v1377
  %v1379 = vsel %vm270, %v1088, 0.0
  %v1380 = vadd.f32 %v1378, %v1379
  %v1381 = vsel %vm270, %v1089, 0.0
  %v1382 = vadd.f32 %v1380, %v1381
  %v1383 = vsel %vm270, %v1090, 0.0
  %v1384 = vadd.f32 %v1382, %v1383
  %v1385 = vsel %vm270, %v1091, 0.0
  %v1386 = vadd.f32 %v1384, %v1385
  %v1387 = vsel %vm270, %v1092, 0.0
  %v1388 = vadd.f32 %v1386, %v1387
  %v1389 = vsel %vm270, %v1093, 0.0
  %v1390 = vadd.f32 %v1388, %v1389
  %v1391 = vsel %vm270, %v1094, 0.0
  %v1392 = vadd.f32 %v1390, %v1391
  %v1393 = vsel %vm270, %v1095, 0.0
  %v1394 = vadd.f32 %v1392, %v1393
  %v1395 = vsel %vm270, %v1096, 0.0
  %v1396 = vadd.f32 %v1394, %v1395
  %v1397 = vsel %vm270, %v1097, 0.0
  %v1398 = vadd.f32 %v1396, %v1397
  %v1399 = vsel %vm270, %v1098, 0.0
  %v1400 = vadd.f32 %v1398, %v1399
  %v1401 = vsel %vm270, %v1099, 0.0
  %v1402 = vadd.f32 %v1400, %v1401
  %v1403 = vsel %vm270, %v1100, 0.0
  %v1404 = vadd.f32 %v1402, %v1403
  %v1405 = vsel %vm270, %v1101, 0.0
  %v1406 = vadd.f32 %v1404, %v1405
  %v1407 = vsel %vm270, %v1102, 0.0
  %v1408 = vadd.f32 %v1406, %v1407
  %v1409 = vsel %vm270, %v1103, 0.0
  %v1410 = vadd.f32 %v1408, %v1409
  %v1411 = vsel %vm270, %v1104, 0.0
  %v1412 = vadd.f32 %v1410, %v1411
  %v1413 = vsel %vm270, %v1105, 0.0
  %v1414 = vadd.f32 %v1412, %v1413
  %v1415 = vsel %vm270, %v1106, 0.0
  %v1416 = vadd.f32 %v1414, %v1415
  %v1417 = vsel %vm270, %v1107, 0.0
  %v1418 = vadd.f32 %v1416, %v1417
  %v1419 = vsel %vm270, %v1108, 0.0
  %v1420 = vadd.f32 %v1418, %v1419
  %v1421 = vsel %vm270, %v1109, 0.0
  %v1422 = vadd.f32 %v1420, %v1421
  %v1423 = vsel %vm270, %v1110, 0.0
  %v1424 = vadd.f32 %v1422, %v1423
  %v1425 = vsel %vm270, %v1111, 0.0
  %v1426 = vadd.f32 %v1424, %v1425
  %v1427 = vsel %vm270, %v1112, 0.0
  %v1428 = vadd.f32 %v1426, %v1427
  %v1429 = vsel %vm270, %v1113, 0.0
  %v1430 = vadd.f32 %v1428, %v1429
  %v1431 = vsel %vm270, %v1114, 0.0
  %v1432 = vadd.f32 %v1430, %v1431
  %v1433 = vsel %vm270, %v1115, 0.0
  %v1434 = vadd.f32 %v1432, %v1433
  %v1435 = vsel %vm270, %v1116, 0.0
  %v1436 = vadd.f32 %v1434, %v1435
  %v1437 = vsel %vm270, %v1117, 0.0
  %v1438 = vadd.f32 %v1436, %v1437
  %v1439 = vsel %vm270, %v1118, 0.0
  %v1440 = vadd.f32 %v1438, %v1439
  %v1441 = vsel %vm270, %v1119, 0.0
  %v1442 = vadd.f32 %v1440, %v1441
  %v1443 = vsel %vm270, %v1120, 0.0
  %v1444 = vadd.f32 %v1442, %v1443
  %v1445 = vsel %vm270, %v1121, 0.0
  %v1446 = vadd.f32 %v1444, %v1445
  %v1447 = vsel %vm270, %v1122, 0.0
  %v1448 = vadd.f32 %v1446, %v1447
  %v1449 = vsel %vm270, %v1123, 0.0
  %v1450 = vadd.f32 %v1448, %v1449
  %v1451 = vsel %vm270, %v1124, 0.0
  %v1452 = vadd.f32 %v1450, %v1451
  %v1453 = vsel %vm270, %v1125, 0.0
  %v1454 = vadd.f32 %v1452, %v1453
  %v1455 = vsel %vm270, %v1126, 0.0
  %v1456 = vadd.f32 %v1454, %v1455
  %v1457 = vsel %vm270, %v1127, 0.0
  %v1458 = vadd.f32 %v1456, %v1457
  %v1459 = vsel %vm270, %v1128, 0.0
  %v1460 = vadd.f32 %v1458, %v1459
  %v1461 = vsel %vm270, %v1129, 0.0
  %v1462 = vadd.f32 %v1460, %v1461
  %v1463 = vsel %vm270, %v1130, 0.0
  %v1464 = vadd.f32 %v1462, %v1463
  %v1465 = vsel %vm270, %v1131, 0.0
  %v1466 = vadd.f32 %v1464, %v1465
  %v1467 = vsel %vm270, %v1132, 0.0
  %v1468 = vadd.f32 %v1466, %v1467
  %v1469 = vsel %vm270, %v1133, 0.0
  %v1470 = vadd.f32 %v1468, %v1469
  %v1471 = vsel %vm270, %v1134, 0.0
  %v1472 = vadd.f32 %v1470, %v1471
  %v1473 = vsel %vm270, %v1135, 0.0
  %v1474 = vadd.f32 %v1472, %v1473
  %v1475 = vsel %vm270, %v1136, 0.0
  %v1476 = vadd.f32 %v1474, %v1475
  %v1477 = vsel %vm270, %v1137, 0.0
  %v1478 = vadd.f32 %v1476, %v1477
  %v1479 = vsel %vm270, %v1138, 0.0
  %v1480 = vadd.f32 %v1478, %v1479
  %v1481 = vsel %vm270, %v1139, 0.0
  %v1482 = vadd.f32 %v1480, %v1481
  %v1483 = vsel %vm270, %v1140, 0.0
  %v1484 = vadd.f32 %v1482, %v1483
  %v1485 = vsel %vm270, %v1141, 0.0
  %v1486 = vadd.f32 %v1484, %v1485
  %v1487 = vsel %vm270, %v1142, 0.0
  %v1488 = vadd.f32 %v1486, %v1487
  %v1489 = vsel %vm270, %v1143, 0.0
  %v1490 = vadd.f32 %v1488, %v1489
  %v1491 = vsel %vm270, %v1144, 0.0
  %v1492 = vadd.f32 %v1490, %v1491
  %v1493 = vsel %vm270, %v1145, 0.0
  %v1494 = vadd.f32 %v1492, %v1493
  %v1495 = vsel %vm270, %v1146, 0.0
  %v1496 = vadd.f32 %v1494, %v1495
  %v1497 = vsel %vm270, %v1147, 0.0
  %v1498 = vadd.f32 %v1496, %v1497
  %v1499 = vsel %vm270, %v1148, 0.0
  %v1500 = vadd.f32 %v1498, %v1499
  %v1501 = vsel %vm270, %v1149, 0.0
  %v1502 = vadd.f32 %v1500, %v1501
  %v1503 = vsel %vm270, %v1150, 0.0
  %v1504 = vadd.f32 %v1502, %v1503
  %v1505 = vsel %vm270, %v1151, 0.0
  %v1506 = vadd.f32 %v1504, %v1505
  %v1507 = vsel %vm270, %v1152, 0.0
  %v1508 = vadd.f32 %v1506, %v1507
  %v1509 = vsel %vm270, %v1153, 0.0
  %v1510 = vadd.f32 %v1508, %v1509
  %v1511 = vsel %vm270, %v1154, 0.0
  %v1512 = vadd.f32 %v1510, %v1511
  %v1513 = vsel %vm270, %v1155, 0.0
  %v1514 = vadd.f32 %v1512, %v1513
  %v1515 = vsel %vm270, %v1156, 0.0
  %v1516 = vadd.f32 %v1514, %v1515
  %v1517 = vsel %vm270, %v1157, 0.0
  %v1518 = vadd.f32 %v1516, %v1517
  %v1519 = vsel %vm270, %v1158, 0.0
  %v1520 = vadd.f32 %v1518, %v1519
  %v1521 = vsel %vm270, %v1159, 0.0
  %v1522 = vadd.f32 %v1520, %v1521
  %v1523 = vsel %vm270, %v1160, 0.0
  %v1524 = vadd.f32 %v1522, %v1523
  %v1525 = vsel %vm270, %v1161, 0.0
  %v1526 = vadd.f32 %v1524, %v1525
  %v1527 = vsel %vm270, %v1162, 0.0
  %v1528 = vadd.f32 %v1526, %v1527
  %v1529 = vsel %vm270, %v1163, 0.0
  %v1530 = vadd.f32 %v1528, %v1529
  %v1531 = vsel %vm270, %v1164, 0.0
  %v1532 = vadd.f32 %v1530, %v1531
  %v1533 = vsel %vm270, %v1165, 0.0
  %v1534 = vadd.f32 %v1532, %v1533
  %v1535 = vsel %vm270, %v1166, 0.0
  %v1536 = vadd.f32 %v1534, %v1535
  %v1537 = vsel %vm270, %v1167, 0.0
  %v1538 = vadd.f32 %v1536, %v1537
  %v1539 = vsel %vm270, %v1168, 0.0
  %v1540 = vadd.f32 %v1538, %v1539
  %v1541 = vsel %vm270, %v1169, 0.0
  %v1542 = vadd.f32 %v1540, %v1541
  %v1543 = vsel %vm270, %v1170, 0.0
  %v1544 = vadd.f32 %v1542, %v1543
  %v1545 = vsel %vm270, %v1171, 0.0
  %v1546 = vadd.f32 %v1544, %v1545
  %v1547 = vsel %vm270, %v1172, 0.0
  %v1548 = vadd.f32 %v1546, %v1547
  %v1549 = vsel %vm270, %v1173, 0.0
  %v1550 = vadd.f32 %v1548, %v1549
  %v1551 = vsel %vm270, %v1174, 0.0
  %v1552 = vadd.f32 %v1550, %v1551
  %v1553 = vsel %vm270, %v1175, 0.0
  %v1554 = vadd.f32 %v1552, %v1553
  %v1555 = vsel %vm270, %v1176, 0.0
  %v1556 = vadd.f32 %v1554, %v1555
  %v1557 = vsel %vm270, %v1177, 0.0
  %v1558 = vadd.f32 %v1556, %v1557
  %v1559 = vsel %vm270, %v1178, 0.0
  %v1560 = vadd.f32 %v1558, %v1559
  %v1561 = vsel %vm270, %v1179, 0.0
  %v1562 = vadd.f32 %v1560, %v1561
  %v1563 = vsel %vm270, %v1180, 0.0
  %v1564 = vadd.f32 %v1562, %v1563
  %v1565 = vsel %vm270, %v1181, 0.0
  %v1566 = vadd.f32 %v1564, %v1565
  %v1567 = vsel %vm270, %v1182, 0.0
  %v1568 = vadd.f32 %v1566, %v1567
  %v1569 = vsel %vm270, %v1183, 0.0
  %v1570 = vadd.f32 %v1568, %v1569
  %v1571 = vsel %vm270, %v1184, 0.0
  %v1572 = vadd.f32 %v1570, %v1571
  %v1573 = vsel %vm270, %v1185, 0.0
  %v1574 = vadd.f32 %v1572, %v1573
  %v1575 = vsel %vm270, %v1186, 0.0
  %v1576 = vadd.f32 %v1574, %v1575
  %v1577 = vsel %vm270, %v1187, 0.0
  %v1578 = vadd.f32 %v1576, %v1577
  %v1579 = vsel %vm270, %v1188, 0.0
  %v1580 = vadd.f32 %v1578, %v1579
  %v1581 = vsel %vm270, %v1189, 0.0
  %v1582 = vadd.f32 %v1580, %v1581
  %v1583 = vsel %vm270, %v1190, 0.0
  %v1584 = vadd.f32 %v1582, %v1583
  %v1585 = vsel %vm270, %v1191, 0.0
  %v1586 = vadd.f32 %v1584, %v1585
  %v1587 = vsel %vm270, %v1192, 0.0
  %v1588 = vadd.f32 %v1586, %v1587
  %v1589 = vsel %vm270, %v1193, 0.0
  %v1590 = vadd.f32 %v1588, %v1589
  %v1591 = vsel %vm270, %v1194, 0.0
  %v1592 = vadd.f32 %v1590, %v1591
  %v1593 = vsel %vm270, %v1195, 0.0
  %v1594 = vadd.f32 %v1592, %v1593
  %v1595 = vsel %vm270, %v1196, 0.0
  %v1596 = vadd.f32 %v1594, %v1595
  %v1597 = vsel %vm270, %v1197, 0.0
  %v1598 = vadd.f32 %v1596, %v1597
  %v1599 = vsel %vm270, %v1198, 0.0
  %v1600 = vadd.f32 %v1598, %v1599
  %v1601 = vsel %vm270, %v1199, 0.0
  %v1602 = vadd.f32 %v1600, %v1601
  %v1603 = vsel %vm270, %v1200, 0.0
  %v1604 = vadd.f32 %v1602, %v1603
  %v1605 = vsel %vm270, %v1201, 0.0
  %v1606 = vadd.f32 %v1604, %v1605
  %v1607 = vsel %vm270, %v1202, 0.0
  %v1608 = vadd.f32 %v1606, %v1607
  %v1609 = vsel %vm270, %v1203, 0.0
  %v1610 = vadd.f32 %v1608, %v1609
  %v1611 = vsel %vm270, %v1204, 0.0
  %v1612 = vadd.f32 %v1610, %v1611
  %v1613 = vsel %vm270, %v1205, 0.0
  %v1614 = vadd.f32 %v1612, %v1613
  %v1615 = vsel %vm270, %v1206, 0.0
  %v1616 = vadd.f32 %v1614, %v1615
  %v1617 = vsel %vm270, %v1207, 0.0
  %v1618 = vadd.f32 %v1616, %v1617
  %v1619 = vsel %vm270, %v1208, 0.0
  %v1620 = vadd.f32 %v1618, %v1619
  %v1621 = vsel %vm270, %v1209, 0.0
  %v1622 = vadd.f32 %v1620, %v1621
  %v1623 = vsel %vm270, %v1210, 0.0
  %v1624 = vadd.f32 %v1622, %v1623
  %v1625 = vsel %vm270, %v1211, 0.0
  %v1626 = vadd.f32 %v1624, %v1625
  %v1627 = vsel %vm270, %v1212, 0.0
  %v1628 = vadd.f32 %v1626, %v1627
  %v1629 = vsel %vm270, %v1213, 0.0
  %v1630 = vadd.f32 %v1628, %v1629
  %v1631 = vsel %vm270, %v1214, 0.0
  %v1632 = vadd.f32 %v1630, %v1631
  %v1633 = vsel %vm270, %v1215, 0.0
  %v1634 = vadd.f32 %v1632, %v1633
  %v1635 = vsel %vm270, %v1216, 0.0
  %v1636 = vadd.f32 %v1634, %v1635
  %v1637 = vsel %vm270, %v1217, 0.0
  %v1638 = vadd.f32 %v1636, %v1637
  %v1639 = vsel %vm270, %v1218, 0.0
  %v1640 = vadd.f32 %v1638, %v1639
  %v1641 = vsel %vm270, %v1219, 0.0
  %v1642 = vadd.f32 %v1640, %v1641
  %v1643 = vsel %vm270, %v1220, 0.0
  %v1644 = vadd.f32 %v1642, %v1643
  %v1645 = vsel %vm270, %v1221, 0.0
  %v1646 = vadd.f32 %v1644, %v1645
  %v1647 = vsel %vm270, %v1222, 0.0
  %v1648 = vadd.f32 %v1646, %v1647
  %v1649 = vsel %vm270, %v1223, 0.0
  %v1650 = vadd.f32 %v1648, %v1649
  %v1651 = vsel %vm270, %v1224, 0.0
  %v1652 = vadd.f32 %v1650, %v1651
  %v1653 = vsel %vm270, %v1225, 0.0
  %v1654 = vadd.f32 %v1652, %v1653
  %v1655 = vsel %vm270, %v1226, 0.0
  %v1656 = vadd.f32 %v1654, %v1655
  %v1657 = vsel %vm270, %v1227, 0.0
  %v1658 = vadd.f32 %v1656, %v1657
  %v1659 = vsel %vm270, %v1228, 0.0
  %v1660 = vadd.f32 %v1658, %v1659
  %v1661 = vsel %vm270, %v1229, 0.0
  %v1662 = vadd.f32 %v1660, %v1661
  %v1663 = vsel %vm270, %v1230, 0.0
  %v1664 = vadd.f32 %v1662, %v1663
  %v1665 = vsel %vm270, %v1231, 0.0
  %v1666 = vadd.f32 %v1664, %v1665
  %v1667 = vsel %vm270, %v1232, 0.0
  %v1668 = vadd.f32 %v1666, %v1667
  %v1669 = vsel %vm270, %v1233, 0.0
  %v1670 = vadd.f32 %v1668, %v1669
  %v1671 = vsel %vm270, %v1234, 0.0
  %v1672 = vadd.f32 %v1670, %v1671
  %v1673 = vsel %vm270, %v1235, 0.0
  %v1674 = vadd.f32 %v1672, %v1673
  %v1675 = vsel %vm270, %v1236, 0.0
  %v1676 = vadd.f32 %v1674, %v1675
  %v1677 = vsel %vm270, %v1237, 0.0
  %v1678 = vadd.f32 %v1676, %v1677
  %v1679 = vsel %vm270, %v1238, 0.0
  %v1680 = vadd.f32 %v1678, %v1679
  %v1681 = vsel %vm270, %v1239, 0.0
  %v1682 = vadd.f32 %v1680, %v1681
  %v1683 = vsel %vm270, %v1240, 0.0
  %v1684 = vadd.f32 %v1682, %v1683
  %v1685 = vsel %vm270, %v1241, 0.0
  %v1686 = vadd.f32 %v1684, %v1685
  %v1687 = vsel %vm270, %v1242, 0.0
  %v1688 = vadd.f32 %v1686, %v1687
  %v1689 = vsel %vm270, %v1243, 0.0
  %v1690 = vadd.f32 %v1688, %v1689
  %v1691 = vsel %vm270, %v1244, 0.0
  %v1692 = vadd.f32 %v1690, %v1691
  %v1693 = vsel %vm270, %v1245, 0.0
  %v1694 = vadd.f32 %v1692, %v1693
  %v1695 = vsel %vm270, %v1246, 0.0
  %v1696 = vadd.f32 %v1694, %v1695
  %v1697 = vsel %vm270, %v1247, 0.0
  %v1698 = vadd.f32 %v1696, %v1697
  %v1699 = vsel %vm270, %v1248, 0.0
  %v1700 = vadd.f32 %v1698, %v1699
  %v1701 = vsel %vm270, %v1249, 0.0
  %v1702 = vadd.f32 %v1700, %v1701
  %v1703 = vsel %vm270, %v1250, 0.0
  %v1704 = vadd.f32 %v1702, %v1703
  %v1705 = vsel %vm270, %v1251, 0.0
  %v1706 = vadd.f32 %v1704, %v1705
  %v1707 = vsel %vm270, %v1252, 0.0
  %v1708 = vadd.f32 %v1706, %v1707
  %v1709 = vsel %vm270, %v1253, 0.0
  %v1710 = vadd.f32 %v1708, %v1709
  %v1711 = vsel %vm270, %v1254, 0.0
  %v1712 = vadd.f32 %v1710, %v1711
  %v1713 = vsel %vm270, %v1255, 0.0
  %v1714 = vadd.f32 %v1712, %v1713
  %v1715 = vsel %vm270, %v1256, 0.0
  %v1716 = vadd.f32 %v1714, %v1715
  %v1717 = vsel %vm270, %v1257, 0.0
  %v1718 = vadd.f32 %v1716, %v1717
  %v1719 = vsel %vm270, %v1258, 0.0
  %v1720 = vadd.f32 %v1718, %v1719
  %v1721 = vsel %vm270, %v1259, 0.0
  %v1722 = vadd.f32 %v1720, %v1721
  %v1723 = vsel %vm270, %v1260, 0.0
  %v1724 = vadd.f32 %v1722, %v1723
  %v1725 = vsel %vm270, %v1261, 0.0
  %v1726 = vadd.f32 %v1724, %v1725
  %v1727 = vsel %vm270, %v1262, 0.0
  %v1728 = vadd.f32 %v1726, %v1727
  %v1729 = vsel %vm270, %v1263, 0.0
  %v1730 = vadd.f32 %v1728, %v1729
  %v1731 = vsel %vm270, %v1264, 0.0
  %v1732 = vadd.f32 %v1730, %v1731
  %v1733 = vsel %vm270, %v1265, 0.0
  %v1734 = vadd.f32 %v1732, %v1733
  %v1735 = vsel %vm270, %v1266, 0.0
  %v1736 = vadd.f32 %v1734, %v1735
  %v1737 = vsel %vm270, %v1267, 0.0
  %v1738 = vadd.f32 %v1736, %v1737
  %v1739 = vsel %vm270, %v1268, 0.0
  %v1740 = vadd.f32 %v1738, %v1739
  %v1741 = vsel %vm270, %v1269, 0.0
  %v1742 = vadd.f32 %v1740, %v1741
  %v1743 = vsel %vm270, %v1270, 0.0
  %v1744 = vadd.f32 %v1742, %v1743
  %v1745 = vsel %vm270, %v1271, 0.0
  %v1746 = vadd.f32 %v1744, %v1745
  %v1747 = vsel %vm270, %v1272, 0.0
  %v1748 = vadd.f32 %v1746, %v1747
  %v1749 = vsel %vm270, %v1273, 0.0
  %v1750 = vadd.f32 %v1748, %v1749
  %v1751 = vsel %vm270, %v1274, 0.0
  %v1752 = vadd.f32 %v1750, %v1751
  %v1753 = vsel %vm270, %v1275, 0.0
  %v1754 = vadd.f32 %v1752, %v1753
  %v1755 = vsel %vm270, %v1276, 0.0
  %v1756 = vadd.f32 %v1754, %v1755
  %v1757 = vsel %vm270, %v1277, 0.0
  %v1758 = vadd.f32 %v1756, %v1757
  %v1759 = vsel %vm270, %v1278, 0.0
  %v1760 = vadd.f32 %v1758, %v1759
  %v1761 = vsel %vm270, %v1279, 0.0
  %v1762 = vadd.f32 %v1760, %v1761
  %v1763 = vsel %vm270, %v1280, 0.0
  %v1764 = vadd.f32 %v1762, %v1763
  %v1765 = vsel %vm270, %v1281, 0.0
  %v1766 = vadd.f32 %v1764, %v1765
  %v1767 = vsel %vm270, %v1282, 0.0
  %v1768 = vadd.f32 %v1766, %v1767
  %v1769 = vsel %vm270, %v1283, 0.0
  %v1770 = vadd.f32 %v1768, %v1769
  %v1771 = vsel %vm270, %v1284, 0.0
  %v1772 = vadd.f32 %v1770, %v1771
  %v1773 = vsel %vm270, %v1285, 0.0
  %v1774 = vadd.f32 %v1772, %v1773
  %v1775 = vsel %vm270, %v1286, 0.0
  %v1776 = vadd.f32 %v1774, %v1775
  %v1777 = vsel %vm270, %v1287, 0.0
  %v1778 = vadd.f32 %v1776, %v1777
  %v1779 = vsel %vm270, %v1288, 0.0
  %v1780 = vadd.f32 %v1778, %v1779
  %v1781 = vsel %vm270, %v1289, 0.0
  %v1782 = vadd.f32 %v1780, %v1781
  %v1783 = vsel %vm270, %v1290, 0.0
  %v1784 = vadd.f32 %v1782, %v1783
  %v1785 = vsel %vm270, %v1291, 0.0
  %v1786 = vadd.f32 %v1784, %v1785
  %v1787 = vsel %vm270, %v1292, 0.0
  %v1788 = vadd.f32 %v1786, %v1787
  %v1789 = vsel %vm270, %v1293, 0.0
  %v1790 = vadd.f32 %v1788, %v1789
  %v1791 = vsel %vm270, %v1294, 0.0
  %v1792 = vadd.f32 %v1790, %v1791
  %v1793 = vsel %vm270, %v1295, 0.0
  %v1794 = vadd.f32 %v1792, %v1793
  %v1795 = vsel %vm270, %v1296, 0.0
  %v1796 = vadd.f32 %v1794, %v1795
  %v1797 = vsel %vm270, %v1297, 0.0
  %v1798 = vadd.f32 %v1796, %v1797
  %v1799 = vsel %vm270, %v1298, 0.0
  %v1800 = vadd.f32 %v1798, %v1799
  %v1801 = vsel %vm270, %v1299, 0.0
  %v1802 = vadd.f32 %v1800, %v1801
  %v1803 = vsel %vm270, %v1300, 0.0
  %v1804 = vadd.f32 %v1802, %v1803
  %v1805 = vsel %vm270, %v1301, 0.0
  %v1806 = vadd.f32 %v1804, %v1805
  %v1807 = vsel %vm270, %v1302, 0.0
  %v1808 = vadd.f32 %v1806, %v1807
  %v1809 = vsel %vm270, %v1303, 0.0
  %v1810 = vadd.f32 %v1808, %v1809
  %v1811 = vsel %vm270, %v1304, 0.0
  %v1812 = vadd.f32 %v1810, %v1811
  %v1813 = vsel %vm270, %v1305, 0.0
  %v1814 = vadd.f32 %v1812, %v1813
  %v1815 = vsel %vm270, %v1306, 0.0
  %v1816 = vadd.f32 %v1814, %v1815
  %v1817 = vsel %vm270, %v1307, 0.0
  %v1818 = vadd.f32 %v1816, %v1817
  %v1819 = vrot.slane %v1818, 4
  %v1820 = vadd.f32 %v1818, %v1819
  %v1821 = vrot.slane %v1820, 2
  %v1822 = vadd.f32 %v1820, %v1821
  %v1823 = vrot.slane %v1822, 1
  %v1824 = vadd.f32 %v1822, %v1823
  %v1825 = vmul.f32 %v1824, %v794
  %v1826 = vadd.f32 %v1825, 1e-05
  %v1827 = vrsqrt.pop %v1826
  %v1828 = vmul.f32 %v1827, %v1826
  %v1829 = vmul.f32 %v1828, %v1827
  %v1830 = vmul.f32 0.5, %v1829
  %v1831 = vsub.f32 1.5, %v1830
  %v1832 = vmul.f32 %v1827, %v1831
  %vm1833 = vweird.f32 %v1826
  %vm1834 = vweird.f32 %v1827
  %vm1835 = vmor %vm1833, %vm1834
  %v1836 = vsel %vm1835, %v1827, %v1832
  %v1837 = vmul.f32 %v796, %v1836
  %v1838 = vmul.f32 %v797, %v1836
  %v1839 = vmul.f32 %v798, %v1836
  %v1840 = vmul.f32 %v799, %v1836
  %v1841 = vmul.f32 %v800, %v1836
  %v1842 = vmul.f32 %v801, %v1836
  %v1843 = vmul.f32 %v802, %v1836
  %v1844 = vmul.f32 %v803, %v1836
  %v1845 = vmul.f32 %v804, %v1836
  %v1846 = vmul.f32 %v805, %v1836
  %v1847 = vmul.f32 %v806, %v1836
  %v1848 = vmul.f32 %v807, %v1836
  %v1849 = vmul.f32 %v808, %v1836
  %v1850 = vmul.f32 %v809, %v1836
  %v1851 = vmul.f32 %v810, %v1836
  %v1852 = vmul.f32 %v811, %v1836
  %v1853 = vmul.f32 %v812, %v1836
  %v1854 = vmul.f32 %v813, %v1836
  %v1855 = vmul.f32 %v814, %v1836
  %v1856 = vmul.f32 %v815, %v1836
  %v1857 = vmul.f32 %v816, %v1836
  %v1858 = vmul.f32 %v817, %v1836
  %v1859 = vmul.f32 %v818, %v1836
  %v1860 = vmul.f32 %v819, %v1836
  %v1861 = vmul.f32 %v820, %v1836
  %v1862 = vmul.f32 %v821, %v1836
  %v1863 = vmul.f32 %v822, %v1836
  %v1864 = vmul.f32 %v823, %v1836
  %v1865 = vmul.f32 %v824, %v1836
  %v1866 = vmul.f32 %v825, %v1836
  %v1867 = vmul.f32 %v826, %v1836
  %v1868 = vmul.f32 %v827, %v1836
  %v1869 = vmul.f32 %v828, %v1836
  %v1870 = vmul.f32 %v829, %v1836
  %v1871 = vmul.f32 %v830, %v1836
  %v1872 = vmul.f32 %v831, %v1836
  %v1873 = vmul.f32 %v832, %v1836
  %v1874 = vmul.f32 %v833, %v1836
  %v1875 = vmul.f32 %v834, %v1836
  %v1876 = vmul.f32 %v835, %v1836
  %v1877 = vmul.f32 %v836, %v1836
  %v1878 = vmul.f32 %v837, %v1836
  %v1879 = vmul.f32 %v838, %v1836
  %v1880 = vmul.f32 %v839, %v1836
  %v1881 = vmul.f32 %v840, %v1836
  %v1882 = vmul.f32 %v841, %v1836
  %v1883 = vmul.f32 %v842, %v1836
  %v1884 = vmul.f32 %v843, %v1836
  %v1885 = vmul.f32 %v844, %v1836
  %v1886 = vmul.f32 %v845, %v1836
  %v1887 = vmul.f32 %v846, %v1836
  %v1888 = vmul.f32 %v847, %v1836
  %v1889 = vmul.f32 %v848, %v1836
  %v1890 = vmul.f32 %v849, %v1836
  %v1891 = vmul.f32 %v850, %v1836
  %v1892 = vmul.f32 %v851, %v1836
  %v1893 = vmul.f32 %v852, %v1836
  %v1894 = vmul.f32 %v853, %v1836
  %v1895 = vmul.f32 %v854, %v1836
  %v1896 = vmul.f32 %v855, %v1836
  %v1897 = vmul.f32 %v856, %v1836
  %v1898 = vmul.f32 %v857, %v1836
  %v1899 = vmul.f32 %v858, %v1836
  %v1900 = vmul.f32 %v859, %v1836
  %v1901 = vmul.f32 %v860, %v1836
  %v1902 = vmul.f32 %v861, %v1836
  %v1903 = vmul.f32 %v862, %v1836
  %v1904 = vmul.f32 %v863, %v1836
  %v1905 = vmul.f32 %v864, %v1836
  %v1906 = vmul.f32 %v865, %v1836
  %v1907 = vmul.f32 %v866, %v1836
  %v1908 = vmul.f32 %v867, %v1836
  %v1909 = vmul.f32 %v868, %v1836
  %v1910 = vmul.f32 %v869, %v1836
  %v1911 = vmul.f32 %v870, %v1836
  %v1912 = vmul.f32 %v871, %v1836
  %v1913 = vmul.f32 %v872, %v1836
  %v1914 = vmul.f32 %v873, %v1836
  %v1915 = vmul.f32 %v874, %v1836
  %v1916 = vmul.f32 %v875, %v1836
  %v1917 = vmul.f32 %v876, %v1836
  %v1918 = vmul.f32 %v877, %v1836
  %v1919 = vmul.f32 %v878, %v1836
  %v1920 = vmul.f32 %v879, %v1836
  %v1921 = vmul.f32 %v880, %v1836
  %v1922 = vmul.f32 %v881, %v1836
  %v1923 = vmul.f32 %v882, %v1836
  %v1924 = vmul.f32 %v883, %v1836
  %v1925 = vmul.f32 %v884, %v1836
  %v1926 = vmul.f32 %v885, %v1836
  %v1927 = vmul.f32 %v886, %v1836
  %v1928 = vmul.f32 %v887, %v1836
  %v1929 = vmul.f32 %v888, %v1836
  %v1930 = vmul.f32 %v889, %v1836
  %v1931 = vmul.f32 %v890, %v1836
  %v1932 = vmul.f32 %v891, %v1836
  %v1933 = vmul.f32 %v892, %v1836
  %v1934 = vmul.f32 %v893, %v1836
  %v1935 = vmul.f32 %v894, %v1836
  %v1936 = vmul.f32 %v895, %v1836
  %v1937 = vmul.f32 %v896, %v1836
  %v1938 = vmul.f32 %v897, %v1836
  %v1939 = vmul.f32 %v898, %v1836
  %v1940 = vmul.f32 %v899, %v1836
  %v1941 = vmul.f32 %v900, %v1836
  %v1942 = vmul.f32 %v901, %v1836
  %v1943 = vmul.f32 %v902, %v1836
  %v1944 = vmul.f32 %v903, %v1836
  %v1945 = vmul.f32 %v904, %v1836
  %v1946 = vmul.f32 %v905, %v1836
  %v1947 = vmul.f32 %v906, %v1836
  %v1948 = vmul.f32 %v907, %v1836
  %v1949 = vmul.f32 %v908, %v1836
  %v1950 = vmul.f32 %v909, %v1836
  %v1951 = vmul.f32 %v910, %v1836
  %v1952 = vmul.f32 %v911, %v1836
  %v1953 = vmul.f32 %v912, %v1836
  %v1954 = vmul.f32 %v913, %v1836
  %v1955 = vmul.f32 %v914, %v1836
  %v1956 = vmul.f32 %v915, %v1836
  %v1957 = vmul.f32 %v916, %v1836
  %v1958 = vmul.f32 %v917, %v1836
  %v1959 = vmul.f32 %v918, %v1836
  %v1960 = vmul.f32 %v919, %v1836
  %v1961 = vmul.f32 %v920, %v1836
  %v1962 = vmul.f32 %v921, %v1836
  %v1963 = vmul.f32 %v922, %v1836
  %v1964 = vmul.f32 %v923, %v1836
  %v1965 = vmul.f32 %v924, %v1836
  %v1966 = vmul.f32 %v925, %v1836
  %v1967 = vmul.f32 %v926, %v1836
  %v1968 = vmul.f32 %v927, %v1836
  %v1969 = vmul.f32 %v928, %v1836
  %v1970 = vmul.f32 %v929, %v1836
  %v1971 = vmul.f32 %v930, %v1836
  %v1972 = vmul.f32 %v931, %v1836
  %v1973 = vmul.f32 %v932, %v1836
  %v1974 = vmul.f32 %v933, %v1836
  %v1975 = vmul.f32 %v934, %v1836
  %v1976 = vmul.f32 %v935, %v1836
  %v1977 = vmul.f32 %v936, %v1836
  %v1978 = vmul.f32 %v937, %v1836
  %v1979 = vmul.f32 %v938, %v1836
  %v1980 = vmul.f32 %v939, %v1836
  %v1981 = vmul.f32 %v940, %v1836
  %v1982 = vmul.f32 %v941, %v1836
  %v1983 = vmul.f32 %v942, %v1836
  %v1984 = vmul.f32 %v943, %v1836
  %v1985 = vmul.f32 %v944, %v1836
  %v1986 = vmul.f32 %v945, %v1836
  %v1987 = vmul.f32 %v946, %v1836
  %v1988 = vmul.f32 %v947, %v1836
  %v1989 = vmul.f32 %v948, %v1836
  %v1990 = vmul.f32 %v949, %v1836
  %v1991 = vmul.f32 %v950, %v1836
  %v1992 = vmul.f32 %v951, %v1836
  %v1993 = vmul.f32 %v952, %v1836
  %v1994 = vmul.f32 %v953, %v1836
  %v1995 = vmul.f32 %v954, %v1836
  %v1996 = vmul.f32 %v955, %v1836
  %v1997 = vmul.f32 %v956, %v1836
  %v1998 = vmul.f32 %v957, %v1836
  %v1999 = vmul.f32 %v958, %v1836
  %v2000 = vmul.f32 %v959, %v1836
  %v2001 = vmul.f32 %v960, %v1836
  %v2002 = vmul.f32 %v961, %v1836
  %v2003 = vmul.f32 %v962, %v1836
  %v2004 = vmul.f32 %v963, %v1836
  %v2005 = vmul.f32 %v964, %v1836
  %v2006 = vmul.f32 %v965, %v1836
  %v2007 = vmul.f32 %v966, %v1836
  %v2008 = vmul.f32 %v967, %v1836
  %v2009 = vmul.f32 %v968, %v1836
  %v2010 = vmul.f32 %v969, %v1836
  %v2011 = vmul.f32 %v970, %v1836
  %v2012 = vmul.f32 %v971, %v1836
  %v2013 = vmul.f32 %v972, %v1836
  %v2014 = vmul.f32 %v973, %v1836
  %v2015 = vmul.f32 %v974, %v1836
  %v2016 = vmul.f32 %v975, %v1836
  %v2017 = vmul.f32 %v976, %v1836
  %v2018 = vmul.f32 %v977, %v1836
  %v2019 = vmul.f32 %v978, %v1836
  %v2020 = vmul.f32 %v979, %v1836
  %v2021 = vmul.f32 %v980, %v1836
  %v2022 = vmul.f32 %v981, %v1836
  %v2023 = vmul.f32 %v982, %v1836
  %v2024 = vmul.f32 %v983, %v1836
  %v2025 = vmul.f32 %v984, %v1836
  %v2026 = vmul.f32 %v985, %v1836
  %v2027 = vmul.f32 %v986, %v1836
  %v2028 = vmul.f32 %v987, %v1836
  %v2029 = vmul.f32 %v988, %v1836
  %v2030 = vmul.f32 %v989, %v1836
  %v2031 = vmul.f32 %v990, %v1836
  %v2032 = vmul.f32 %v991, %v1836
  %v2033 = vmul.f32 %v992, %v1836
  %v2034 = vmul.f32 %v993, %v1836
  %v2035 = vmul.f32 %v994, %v1836
  %v2036 = vmul.f32 %v995, %v1836
  %v2037 = vmul.f32 %v996, %v1836
  %v2038 = vmul.f32 %v997, %v1836
  %v2039 = vmul.f32 %v998, %v1836
  %v2040 = vmul.f32 %v999, %v1836
  %v2041 = vmul.f32 %v1000, %v1836
  %v2042 = vmul.f32 %v1001, %v1836
  %v2043 = vmul.f32 %v1002, %v1836
  %v2044 = vmul.f32 %v1003, %v1836
  %v2045 = vmul.f32 %v1004, %v1836
  %v2046 = vmul.f32 %v1005, %v1836
  %v2047 = vmul.f32 %v1006, %v1836
  %v2048 = vmul.f32 %v1007, %v1836
  %v2049 = vmul.f32 %v1008, %v1836
  %v2050 = vmul.f32 %v1009, %v1836
  %v2051 = vmul.f32 %v1010, %v1836
  %v2052 = vmul.f32 %v1011, %v1836
  %v2053 = vmul.f32 %v1012, %v1836
  %v2054 = vmul.f32 %v1013, %v1836
  %v2055 = vmul.f32 %v1014, %v1836
  %v2056 = vmul.f32 %v1015, %v1836
  %v2057 = vmul.f32 %v1016, %v1836
  %v2058 = vmul.f32 %v1017, %v1836
  %v2059 = vmul.f32 %v1018, %v1836
  %v2060 = vmul.f32 %v1019, %v1836
  %v2061 = vmul.f32 %v1020, %v1836
  %v2062 = vmul.f32 %v1021, %v1836
  %v2063 = vmul.f32 %v1022, %v1836
  %v2064 = vmul.f32 %v1023, %v1836
  %v2065 = vmul.f32 %v1024, %v1836
  %v2066 = vmul.f32 %v1025, %v1836
  %v2067 = vmul.f32 %v1026, %v1836
  %v2068 = vmul.f32 %v1027, %v1836
  %v2069 = vmul.f32 %v1028, %v1836
  %v2070 = vmul.f32 %v1029, %v1836
  %v2071 = vmul.f32 %v1030, %v1836
  %v2072 = vmul.f32 %v1031, %v1836
  %v2073 = vmul.f32 %v1032, %v1836
  %v2074 = vmul.f32 %v1033, %v1836
  %v2075 = vmul.f32 %v1034, %v1836
  %v2076 = vmul.f32 %v1035, %v1836
  %v2077 = vmul.f32 %v1036, %v1836
  %v2078 = vmul.f32 %v1037, %v1836
  %v2079 = vmul.f32 %v1038, %v1836
  %v2080 = vmul.f32 %v1039, %v1836
  %v2081 = vmul.f32 %v1040, %v1836
  %v2082 = vmul.f32 %v1041, %v1836
  %v2083 = vmul.f32 %v1042, %v1836
  %v2084 = vmul.f32 %v1043, %v1836
  %v2085 = vmul.f32 %v1044, %v1836
  %v2086 = vmul.f32 %v1045, %v1836
  %v2087 = vmul.f32 %v1046, %v1836
  %v2088 = vmul.f32 %v1047, %v1836
  %v2089 = vmul.f32 %v1048, %v1836
  %v2090 = vmul.f32 %v1049, %v1836
  %v2091 = vmul.f32 %v1050, %v1836
  %v2092 = vmul.f32 %v1051, %v1836
  %v2093 = vld [vmem:[%s1] sm:$0x1]
  %v2095 = vperm.slane %v2093, 0
  %v2097 = vmul.f32 %v1837, %v2095
  %v2098 = vmul.f32 %v1838, %v2095
  %v2099 = vmul.f32 %v1839, %v2095
  %v2100 = vmul.f32 %v1840, %v2095
  %v2101 = vmul.f32 %v1841, %v2095
  %v2102 = vmul.f32 %v1842, %v2095
  %v2103 = vmul.f32 %v1843, %v2095
  %v2104 = vmul.f32 %v1844, %v2095
  %v2105 = vmul.f32 %v1845, %v2095
  %v2106 = vmul.f32 %v1846, %v2095
  %v2107 = vmul.f32 %v1847, %v2095
  %v2108 = vmul.f32 %v1848, %v2095
  %v2109 = vmul.f32 %v1849, %v2095
  %v2110 = vmul.f32 %v1850, %v2095
  %v2111 = vmul.f32 %v1851, %v2095
  %v2112 = vmul.f32 %v1852, %v2095
  %v2113 = vmul.f32 %v1853, %v2095
  %v2114 = vmul.f32 %v1854, %v2095
  %v2115 = vmul.f32 %v1855, %v2095
  %v2116 = vmul.f32 %v1856, %v2095
  %v2117 = vmul.f32 %v1857, %v2095
  %v2118 = vmul.f32 %v1858, %v2095
  %v2119 = vmul.f32 %v1859, %v2095
  %v2120 = vmul.f32 %v1860, %v2095
  %v2121 = vmul.f32 %v1861, %v2095
  %v2122 = vmul.f32 %v1862, %v2095
  %v2123 = vmul.f32 %v1863, %v2095
  %v2124 = vmul.f32 %v1864, %v2095
  %v2125 = vmul.f32 %v1865, %v2095
  %v2126 = vmul.f32 %v1866, %v2095
  %v2127 = vmul.f32 %v1867, %v2095
  %v2128 = vmul.f32 %v1868, %v2095
  %v2129 = vmul.f32 %v1869, %v2095
  %v2130 = vmul.f32 %v1870, %v2095
  %v2131 = vmul.f32 %v1871, %v2095
  %v2132 = vmul.f32 %v1872, %v2095
  %v2133 = vmul.f32 %v1873, %v2095
  %v2134 = vmul.f32 %v1874, %v2095
  %v2135 = vmul.f32 %v1875, %v2095
  %v2136 = vmul.f32 %v1876, %v2095
  %v2137 = vmul.f32 %v1877, %v2095
  %v2138 = vmul.f32 %v1878, %v2095
  %v2139 = vmul.f32 %v1879, %v2095
  %v2140 = vmul.f32 %v1880, %v2095
  %v2141 = vmul.f32 %v1881, %v2095
  %v2142 = vmul.f32 %v1882, %v2095
  %v2143 = vmul.f32 %v1883, %v2095
  %v2144 = vmul.f32 %v1884, %v2095
  %v2145 = vmul.f32 %v1885, %v2095
  %v2146 = vmul.f32 %v1886, %v2095
  %v2147 = vmul.f32 %v1887, %v2095
  %v2148 = vmul.f32 %v1888, %v2095
  %v2149 = vmul.f32 %v1889, %v2095
  %v2150 = vmul.f32 %v1890, %v2095
  %v2151 = vmul.f32 %v1891, %v2095
  %v2152 = vmul.f32 %v1892, %v2095
  %v2153 = vmul.f32 %v1893, %v2095
  %v2154 = vmul.f32 %v1894, %v2095
  %v2155 = vmul.f32 %v1895, %v2095
  %v2156 = vmul.f32 %v1896, %v2095
  %v2157 = vmul.f32 %v1897, %v2095
  %v2158 = vmul.f32 %v1898, %v2095
  %v2159 = vmul.f32 %v1899, %v2095
  %v2160 = vmul.f32 %v1900, %v2095
  %v2161 = vmul.f32 %v1901, %v2095
  %v2162 = vmul.f32 %v1902, %v2095
  %v2163 = vmul.f32 %v1903, %v2095
  %v2164 = vmul.f32 %v1904, %v2095
  %v2165 = vmul.f32 %v1905, %v2095
  %v2166 = vmul.f32 %v1906, %v2095
  %v2167 = vmul.f32 %v1907, %v2095
  %v2168 = vmul.f32 %v1908, %v2095
  %v2169 = vmul.f32 %v1909, %v2095
  %v2170 = vmul.f32 %v1910, %v2095
  %v2171 = vmul.f32 %v1911, %v2095
  %v2172 = vmul.f32 %v1912, %v2095
  %v2173 = vmul.f32 %v1913, %v2095
  %v2174 = vmul.f32 %v1914, %v2095
  %v2175 = vmul.f32 %v1915, %v2095
  %v2176 = vmul.f32 %v1916, %v2095
  %v2177 = vmul.f32 %v1917, %v2095
  %v2178 = vmul.f32 %v1918, %v2095
  %v2179 = vmul.f32 %v1919, %v2095
  %v2180 = vmul.f32 %v1920, %v2095
  %v2181 = vmul.f32 %v1921, %v2095
  %v2182 = vmul.f32 %v1922, %v2095
  %v2183 = vmul.f32 %v1923, %v2095
  %v2184 = vmul.f32 %v1924, %v2095
  %v2185 = vmul.f32 %v1925, %v2095
  %v2186 = vmul.f32 %v1926, %v2095
  %v2187 = vmul.f32 %v1927, %v2095
  %v2188 = vmul.f32 %v1928, %v2095
  %v2189 = vmul.f32 %v1929, %v2095
  %v2190 = vmul.f32 %v1930, %v2095
  %v2191 = vmul.f32 %v1931, %v2095
  %v2192 = vmul.f32 %v1932, %v2095
  %v2193 = vmul.f32 %v1933, %v2095
  %v2194 = vmul.f32 %v1934, %v2095
  %v2195 = vmul.f32 %v1935, %v2095
  %v2196 = vmul.f32 %v1936, %v2095
  %v2197 = vmul.f32 %v1937, %v2095
  %v2198 = vmul.f32 %v1938, %v2095
  %v2199 = vmul.f32 %v1939, %v2095
  %v2200 = vmul.f32 %v1940, %v2095
  %v2201 = vmul.f32 %v1941, %v2095
  %v2202 = vmul.f32 %v1942, %v2095
  %v2203 = vmul.f32 %v1943, %v2095
  %v2204 = vmul.f32 %v1944, %v2095
  %v2205 = vmul.f32 %v1945, %v2095
  %v2206 = vmul.f32 %v1946, %v2095
  %v2207 = vmul.f32 %v1947, %v2095
  %v2208 = vmul.f32 %v1948, %v2095
  %v2209 = vmul.f32 %v1949, %v2095
  %v2210 = vmul.f32 %v1950, %v2095
  %v2211 = vmul.f32 %v1951, %v2095
  %v2212 = vmul.f32 %v1952, %v2095
  %v2213 = vmul.f32 %v1953, %v2095
  %v2214 = vmul.f32 %v1954, %v2095
  %v2215 = vmul.f32 %v1955, %v2095
  %v2216 = vmul.f32 %v1956, %v2095
  %v2217 = vmul.f32 %v1957, %v2095
  %v2218 = vmul.f32 %v1958, %v2095
  %v2219 = vmul.f32 %v1959, %v2095
  %v2220 = vmul.f32 %v1960, %v2095
  %v2221 = vmul.f32 %v1961, %v2095
  %v2222 = vmul.f32 %v1962, %v2095
  %v2223 = vmul.f32 %v1963, %v2095
  %v2224 = vmul.f32 %v1964, %v2095
  %v2225 = vmul.f32 %v1965, %v2095
  %v2226 = vmul.f32 %v1966, %v2095
  %v2227 = vmul.f32 %v1967, %v2095
  %v2228 = vmul.f32 %v1968, %v2095
  %v2229 = vmul.f32 %v1969, %v2095
  %v2230 = vmul.f32 %v1970, %v2095
  %v2231 = vmul.f32 %v1971, %v2095
  %v2232 = vmul.f32 %v1972, %v2095
  %v2233 = vmul.f32 %v1973, %v2095
  %v2234 = vmul.f32 %v1974, %v2095
  %v2235 = vmul.f32 %v1975, %v2095
  %v2236 = vmul.f32 %v1976, %v2095
  %v2237 = vmul.f32 %v1977, %v2095
  %v2238 = vmul.f32 %v1978, %v2095
  %v2239 = vmul.f32 %v1979, %v2095
  %v2240 = vmul.f32 %v1980, %v2095
  %v2241 = vmul.f32 %v1981, %v2095
  %v2242 = vmul.f32 %v1982, %v2095
  %v2243 = vmul.f32 %v1983, %v2095
  %v2244 = vmul.f32 %v1984, %v2095
  %v2245 = vmul.f32 %v1985, %v2095
  %v2246 = vmul.f32 %v1986, %v2095
  %v2247 = vmul.f32 %v1987, %v2095
  %v2248 = vmul.f32 %v1988, %v2095
  %v2249 = vmul.f32 %v1989, %v2095
  %v2250 = vmul.f32 %v1990, %v2095
  %v2251 = vmul.f32 %v1991, %v2095
  %v2252 = vmul.f32 %v1992, %v2095
  %v2253 = vmul.f32 %v1993, %v2095
  %v2254 = vmul.f32 %v1994, %v2095
  %v2255 = vmul.f32 %v1995, %v2095
  %v2256 = vmul.f32 %v1996, %v2095
  %v2257 = vmul.f32 %v1997, %v2095
  %v2258 = vmul.f32 %v1998, %v2095
  %v2259 = vmul.f32 %v1999, %v2095
  %v2260 = vmul.f32 %v2000, %v2095
  %v2261 = vmul.f32 %v2001, %v2095
  %v2262 = vmul.f32 %v2002, %v2095
  %v2263 = vmul.f32 %v2003, %v2095
  %v2264 = vmul.f32 %v2004, %v2095
  %v2265 = vmul.f32 %v2005, %v2095
  %v2266 = vmul.f32 %v2006, %v2095
  %v2267 = vmul.f32 %v2007, %v2095
  %v2268 = vmul.f32 %v2008, %v2095
  %v2269 = vmul.f32 %v2009, %v2095
  %v2270 = vmul.f32 %v2010, %v2095
  %v2271 = vmul.f32 %v2011, %v2095
  %v2272 = vmul.f32 %v2012, %v2095
  %v2273 = vmul.f32 %v2013, %v2095
  %v2274 = vmul.f32 %v2014, %v2095
  %v2275 = vmul.f32 %v2015, %v2095
  %v2276 = vmul.f32 %v2016, %v2095
  %v2277 = vmul.f32 %v2017, %v2095
  %v2278 = vmul.f32 %v2018, %v2095
  %v2279 = vmul.f32 %v2019, %v2095
  %v2280 = vmul.f32 %v2020, %v2095
  %v2281 = vmul.f32 %v2021, %v2095
  %v2282 = vmul.f32 %v2022, %v2095
  %v2283 = vmul.f32 %v2023, %v2095
  %v2284 = vmul.f32 %v2024, %v2095
  %v2285 = vmul.f32 %v2025, %v2095
  %v2286 = vmul.f32 %v2026, %v2095
  %v2287 = vmul.f32 %v2027, %v2095
  %v2288 = vmul.f32 %v2028, %v2095
  %v2289 = vmul.f32 %v2029, %v2095
  %v2290 = vmul.f32 %v2030, %v2095
  %v2291 = vmul.f32 %v2031, %v2095
  %v2292 = vmul.f32 %v2032, %v2095
  %v2293 = vmul.f32 %v2033, %v2095
  %v2294 = vmul.f32 %v2034, %v2095
  %v2295 = vmul.f32 %v2035, %v2095
  %v2296 = vmul.f32 %v2036, %v2095
  %v2297 = vmul.f32 %v2037, %v2095
  %v2298 = vmul.f32 %v2038, %v2095
  %v2299 = vmul.f32 %v2039, %v2095
  %v2300 = vmul.f32 %v2040, %v2095
  %v2301 = vmul.f32 %v2041, %v2095
  %v2302 = vmul.f32 %v2042, %v2095
  %v2303 = vmul.f32 %v2043, %v2095
  %v2304 = vmul.f32 %v2044, %v2095
  %v2305 = vmul.f32 %v2045, %v2095
  %v2306 = vmul.f32 %v2046, %v2095
  %v2307 = vmul.f32 %v2047, %v2095
  %v2308 = vmul.f32 %v2048, %v2095
  %v2309 = vmul.f32 %v2049, %v2095
  %v2310 = vmul.f32 %v2050, %v2095
  %v2311 = vmul.f32 %v2051, %v2095
  %v2312 = vmul.f32 %v2052, %v2095
  %v2313 = vmul.f32 %v2053, %v2095
  %v2314 = vmul.f32 %v2054, %v2095
  %v2315 = vmul.f32 %v2055, %v2095
  %v2316 = vmul.f32 %v2056, %v2095
  %v2317 = vmul.f32 %v2057, %v2095
  %v2318 = vmul.f32 %v2058, %v2095
  %v2319 = vmul.f32 %v2059, %v2095
  %v2320 = vmul.f32 %v2060, %v2095
  %v2321 = vmul.f32 %v2061, %v2095
  %v2322 = vmul.f32 %v2062, %v2095
  %v2323 = vmul.f32 %v2063, %v2095
  %v2324 = vmul.f32 %v2064, %v2095
  %v2325 = vmul.f32 %v2065, %v2095
  %v2326 = vmul.f32 %v2066, %v2095
  %v2327 = vmul.f32 %v2067, %v2095
  %v2328 = vmul.f32 %v2068, %v2095
  %v2329 = vmul.f32 %v2069, %v2095
  %v2330 = vmul.f32 %v2070, %v2095
  %v2331 = vmul.f32 %v2071, %v2095
  %v2332 = vmul.f32 %v2072, %v2095
  %v2333 = vmul.f32 %v2073, %v2095
  %v2334 = vmul.f32 %v2074, %v2095
  %v2335 = vmul.f32 %v2075, %v2095
  %v2336 = vmul.f32 %v2076, %v2095
  %v2337 = vmul.f32 %v2077, %v2095
  %v2338 = vmul.f32 %v2078, %v2095
  %v2339 = vmul.f32 %v2079, %v2095
  %v2340 = vmul.f32 %v2080, %v2095
  %v2341 = vmul.f32 %v2081, %v2095
  %v2342 = vmul.f32 %v2082, %v2095
  %v2343 = vmul.f32 %v2083, %v2095
  %v2344 = vmul.f32 %v2084, %v2095
  %v2345 = vmul.f32 %v2085, %v2095
  %v2346 = vmul.f32 %v2086, %v2095
  %v2347 = vmul.f32 %v2087, %v2095
  %v2348 = vmul.f32 %v2088, %v2095
  %v2349 = vmul.f32 %v2089, %v2095
  %v2350 = vmul.f32 %v2090, %v2095
  %v2351 = vmul.f32 %v2091, %v2095
  %v2352 = vmul.f32 %v2092, %v2095
  %v2353 = vld [vmem:[%s2] sm:$0x1]
  %v2355 = vperm.slane %v2353, 0
  %v2357 = vadd.f32 %v2097, %v2355
  %v2358 = vadd.f32 %v2098, %v2355
  %v2359 = vadd.f32 %v2099, %v2355
  %v2360 = vadd.f32 %v2100, %v2355
  %v2361 = vadd.f32 %v2101, %v2355
  %v2362 = vadd.f32 %v2102, %v2355
  %v2363 = vadd.f32 %v2103, %v2355
  %v2364 = vadd.f32 %v2104, %v2355
  %v2365 = vadd.f32 %v2105, %v2355
  %v2366 = vadd.f32 %v2106, %v2355
  %v2367 = vadd.f32 %v2107, %v2355
  %v2368 = vadd.f32 %v2108, %v2355
  %v2369 = vadd.f32 %v2109, %v2355
  %v2370 = vadd.f32 %v2110, %v2355
  %v2371 = vadd.f32 %v2111, %v2355
  %v2372 = vadd.f32 %v2112, %v2355
  %v2373 = vadd.f32 %v2113, %v2355
  %v2374 = vadd.f32 %v2114, %v2355
  %v2375 = vadd.f32 %v2115, %v2355
  %v2376 = vadd.f32 %v2116, %v2355
  %v2377 = vadd.f32 %v2117, %v2355
  %v2378 = vadd.f32 %v2118, %v2355
  %v2379 = vadd.f32 %v2119, %v2355
  %v2380 = vadd.f32 %v2120, %v2355
  %v2381 = vadd.f32 %v2121, %v2355
  %v2382 = vadd.f32 %v2122, %v2355
  %v2383 = vadd.f32 %v2123, %v2355
  %v2384 = vadd.f32 %v2124, %v2355
  %v2385 = vadd.f32 %v2125, %v2355
  %v2386 = vadd.f32 %v2126, %v2355
  %v2387 = vadd.f32 %v2127, %v2355
  %v2388 = vadd.f32 %v2128, %v2355
  %v2389 = vadd.f32 %v2129, %v2355
  %v2390 = vadd.f32 %v2130, %v2355
  %v2391 = vadd.f32 %v2131, %v2355
  %v2392 = vadd.f32 %v2132, %v2355
  %v2393 = vadd.f32 %v2133, %v2355
  %v2394 = vadd.f32 %v2134, %v2355
  %v2395 = vadd.f32 %v2135, %v2355
  %v2396 = vadd.f32 %v2136, %v2355
  %v2397 = vadd.f32 %v2137, %v2355
  %v2398 = vadd.f32 %v2138, %v2355
  %v2399 = vadd.f32 %v2139, %v2355
  %v2400 = vadd.f32 %v2140, %v2355
  %v2401 = vadd.f32 %v2141, %v2355
  %v2402 = vadd.f32 %v2142, %v2355
  %v2403 = vadd.f32 %v2143, %v2355
  %v2404 = vadd.f32 %v2144, %v2355
  %v2405 = vadd.f32 %v2145, %v2355
  %v2406 = vadd.f32 %v2146, %v2355
  %v2407 = vadd.f32 %v2147, %v2355
  %v2408 = vadd.f32 %v2148, %v2355
  %v2409 = vadd.f32 %v2149, %v2355
  %v2410 = vadd.f32 %v2150, %v2355
  %v2411 = vadd.f32 %v2151, %v2355
  %v2412 = vadd.f32 %v2152, %v2355
  %v2413 = vadd.f32 %v2153, %v2355
  %v2414 = vadd.f32 %v2154, %v2355
  %v2415 = vadd.f32 %v2155, %v2355
  %v2416 = vadd.f32 %v2156, %v2355
  %v2417 = vadd.f32 %v2157, %v2355
  %v2418 = vadd.f32 %v2158, %v2355
  %v2419 = vadd.f32 %v2159, %v2355
  %v2420 = vadd.f32 %v2160, %v2355
  %v2421 = vadd.f32 %v2161, %v2355
  %v2422 = vadd.f32 %v2162, %v2355
  %v2423 = vadd.f32 %v2163, %v2355
  %v2424 = vadd.f32 %v2164, %v2355
  %v2425 = vadd.f32 %v2165, %v2355
  %v2426 = vadd.f32 %v2166, %v2355
  %v2427 = vadd.f32 %v2167, %v2355
  %v2428 = vadd.f32 %v2168, %v2355
  %v2429 = vadd.f32 %v2169, %v2355
  %v2430 = vadd.f32 %v2170, %v2355
  %v2431 = vadd.f32 %v2171, %v2355
  %v2432 = vadd.f32 %v2172, %v2355
  %v2433 = vadd.f32 %v2173, %v2355
  %v2434 = vadd.f32 %v2174, %v2355
  %v2435 = vadd.f32 %v2175, %v2355
  %v2436 = vadd.f32 %v2176, %v2355
  %v2437 = vadd.f32 %v2177, %v2355
  %v2438 = vadd.f32 %v2178, %v2355
  %v2439 = vadd.f32 %v2179, %v2355
  %v2440 = vadd.f32 %v2180, %v2355
  %v2441 = vadd.f32 %v2181, %v2355
  %v2442 = vadd.f32 %v2182, %v2355
  %v2443 = vadd.f32 %v2183, %v2355
  %v2444 = vadd.f32 %v2184, %v2355
  %v2445 = vadd.f32 %v2185, %v2355
  %v2446 = vadd.f32 %v2186, %v2355
  %v2447 = vadd.f32 %v2187, %v2355
  %v2448 = vadd.f32 %v2188, %v2355
  %v2449 = vadd.f32 %v2189, %v2355
  %v2450 = vadd.f32 %v2190, %v2355
  %v2451 = vadd.f32 %v2191, %v2355
  %v2452 = vadd.f32 %v2192, %v2355
  %v2453 = vadd.f32 %v2193, %v2355
  %v2454 = vadd.f32 %v2194, %v2355
  %v2455 = vadd.f32 %v2195, %v2355
  %v2456 = vadd.f32 %v2196, %v2355
  %v2457 = vadd.f32 %v2197, %v2355
  %v2458 = vadd.f32 %v2198, %v2355
  %v2459 = vadd.f32 %v2199, %v2355
  %v2460 = vadd.f32 %v2200, %v2355
  %v2461 = vadd.f32 %v2201, %v2355
  %v2462 = vadd.f32 %v2202, %v2355
  %v2463 = vadd.f32 %v2203, %v2355
  %v2464 = vadd.f32 %v2204, %v2355
  %v2465 = vadd.f32 %v2205, %v2355
  %v2466 = vadd.f32 %v2206, %v2355
  %v2467 = vadd.f32 %v2207, %v2355
  %v2468 = vadd.f32 %v2208, %v2355
  %v2469 = vadd.f32 %v2209, %v2355
  %v2470 = vadd.f32 %v2210, %v2355
  %v2471 = vadd.f32 %v2211, %v2355
  %v2472 = vadd.f32 %v2212, %v2355
  %v2473 = vadd.f32 %v2213, %v2355
  %v2474 = vadd.f32 %v2214, %v2355
  %v2475 = vadd.f32 %v2215, %v2355
  %v2476 = vadd.f32 %v2216, %v2355
  %v2477 = vadd.f32 %v2217, %v2355
  %v2478 = vadd.f32 %v2218, %v2355
  %v2479 = vadd.f32 %v2219, %v2355
  %v2480 = vadd.f32 %v2220, %v2355
  %v2481 = vadd.f32 %v2221, %v2355
  %v2482 = vadd.f32 %v2222, %v2355
  %v2483 = vadd.f32 %v2223, %v2355
  %v2484 = vadd.f32 %v2224, %v2355
  %v2485 = vadd.f32 %v2225, %v2355
  %v2486 = vadd.f32 %v2226, %v2355
  %v2487 = vadd.f32 %v2227, %v2355
  %v2488 = vadd.f32 %v2228, %v2355
  %v2489 = vadd.f32 %v2229, %v2355
  %v2490 = vadd.f32 %v2230, %v2355
  %v2491 = vadd.f32 %v2231, %v2355
  %v2492 = vadd.f32 %v2232, %v2355
  %v2493 = vadd.f32 %v2233, %v2355
  %v2494 = vadd.f32 %v2234, %v2355
  %v2495 = vadd.f32 %v2235, %v2355
  %v2496 = vadd.f32 %v2236, %v2355
  %v2497 = vadd.f32 %v2237, %v2355
  %v2498 = vadd.f32 %v2238, %v2355
  %v2499 = vadd.f32 %v2239, %v2355
  %v2500 = vadd.f32 %v2240, %v2355
  %v2501 = vadd.f32 %v2241, %v2355
  %v2502 = vadd.f32 %v2242, %v2355
  %v2503 = vadd.f32 %v2243, %v2355
  %v2504 = vadd.f32 %v2244, %v2355
  %v2505 = vadd.f32 %v2245, %v2355
  %v2506 = vadd.f32 %v2246, %v2355
  %v2507 = vadd.f32 %v2247, %v2355
  %v2508 = vadd.f32 %v2248, %v2355
  %v2509 = vadd.f32 %v2249, %v2355
  %v2510 = vadd.f32 %v2250, %v2355
  %v2511 = vadd.f32 %v2251, %v2355
  %v2512 = vadd.f32 %v2252, %v2355
  %v2513 = vadd.f32 %v2253, %v2355
  %v2514 = vadd.f32 %v2254, %v2355
  %v2515 = vadd.f32 %v2255, %v2355
  %v2516 = vadd.f32 %v2256, %v2355
  %v2517 = vadd.f32 %v2257, %v2355
  %v2518 = vadd.f32 %v2258, %v2355
  %v2519 = vadd.f32 %v2259, %v2355
  %v2520 = vadd.f32 %v2260, %v2355
  %v2521 = vadd.f32 %v2261, %v2355
  %v2522 = vadd.f32 %v2262, %v2355
  %v2523 = vadd.f32 %v2263, %v2355
  %v2524 = vadd.f32 %v2264, %v2355
  %v2525 = vadd.f32 %v2265, %v2355
  %v2526 = vadd.f32 %v2266, %v2355
  %v2527 = vadd.f32 %v2267, %v2355
  %v2528 = vadd.f32 %v2268, %v2355
  %v2529 = vadd.f32 %v2269, %v2355
  %v2530 = vadd.f32 %v2270, %v2355
  %v2531 = vadd.f32 %v2271, %v2355
  %v2532 = vadd.f32 %v2272, %v2355
  %v2533 = vadd.f32 %v2273, %v2355
  %v2534 = vadd.f32 %v2274, %v2355
  %v2535 = vadd.f32 %v2275, %v2355
  %v2536 = vadd.f32 %v2276, %v2355
  %v2537 = vadd.f32 %v2277, %v2355
  %v2538 = vadd.f32 %v2278, %v2355
  %v2539 = vadd.f32 %v2279, %v2355
  %v2540 = vadd.f32 %v2280, %v2355
  %v2541 = vadd.f32 %v2281, %v2355
  %v2542 = vadd.f32 %v2282, %v2355
  %v2543 = vadd.f32 %v2283, %v2355
  %v2544 = vadd.f32 %v2284, %v2355
  %v2545 = vadd.f32 %v2285, %v2355
  %v2546 = vadd.f32 %v2286, %v2355
  %v2547 = vadd.f32 %v2287, %v2355
  %v2548 = vadd.f32 %v2288, %v2355
  %v2549 = vadd.f32 %v2289, %v2355
  %v2550 = vadd.f32 %v2290, %v2355
  %v2551 = vadd.f32 %v2291, %v2355
  %v2552 = vadd.f32 %v2292, %v2355
  %v2553 = vadd.f32 %v2293, %v2355
  %v2554 = vadd.f32 %v2294, %v2355
  %v2555 = vadd.f32 %v2295, %v2355
  %v2556 = vadd.f32 %v2296, %v2355
  %v2557 = vadd.f32 %v2297, %v2355
  %v2558 = vadd.f32 %v2298, %v2355
  %v2559 = vadd.f32 %v2299, %v2355
  %v2560 = vadd.f32 %v2300, %v2355
  %v2561 = vadd.f32 %v2301, %v2355
  %v2562 = vadd.f32 %v2302, %v2355
  %v2563 = vadd.f32 %v2303, %v2355
  %v2564 = vadd.f32 %v2304, %v2355
  %v2565 = vadd.f32 %v2305, %v2355
  %v2566 = vadd.f32 %v2306, %v2355
  %v2567 = vadd.f32 %v2307, %v2355
  %v2568 = vadd.f32 %v2308, %v2355
  %v2569 = vadd.f32 %v2309, %v2355
  %v2570 = vadd.f32 %v2310, %v2355
  %v2571 = vadd.f32 %v2311, %v2355
  %v2572 = vadd.f32 %v2312, %v2355
  %v2573 = vadd.f32 %v2313, %v2355
  %v2574 = vadd.f32 %v2314, %v2355
  %v2575 = vadd.f32 %v2315, %v2355
  %v2576 = vadd.f32 %v2316, %v2355
  %v2577 = vadd.f32 %v2317, %v2355
  %v2578 = vadd.f32 %v2318, %v2355
  %v2579 = vadd.f32 %v2319, %v2355
  %v2580 = vadd.f32 %v2320, %v2355
  %v2581 = vadd.f32 %v2321, %v2355
  %v2582 = vadd.f32 %v2322, %v2355
  %v2583 = vadd.f32 %v2323, %v2355
  %v2584 = vadd.f32 %v2324, %v2355
  %v2585 = vadd.f32 %v2325, %v2355
  %v2586 = vadd.f32 %v2326, %v2355
  %v2587 = vadd.f32 %v2327, %v2355
  %v2588 = vadd.f32 %v2328, %v2355
  %v2589 = vadd.f32 %v2329, %v2355
  %v2590 = vadd.f32 %v2330, %v2355
  %v2591 = vadd.f32 %v2331, %v2355
  %v2592 = vadd.f32 %v2332, %v2355
  %v2593 = vadd.f32 %v2333, %v2355
  %v2594 = vadd.f32 %v2334, %v2355
  %v2595 = vadd.f32 %v2335, %v2355
  %v2596 = vadd.f32 %v2336, %v2355
  %v2597 = vadd.f32 %v2337, %v2355
  %v2598 = vadd.f32 %v2338, %v2355
  %v2599 = vadd.f32 %v2339, %v2355
  %v2600 = vadd.f32 %v2340, %v2355
  %v2601 = vadd.f32 %v2341, %v2355
  %v2602 = vadd.f32 %v2342, %v2355
  %v2603 = vadd.f32 %v2343, %v2355
  %v2604 = vadd.f32 %v2344, %v2355
  %v2605 = vadd.f32 %v2345, %v2355
  %v2606 = vadd.f32 %v2346, %v2355
  %v2607 = vadd.f32 %v2347, %v2355
  %v2608 = vadd.f32 %v2348, %v2355
  %v2609 = vadd.f32 %v2349, %v2355
  %v2610 = vadd.f32 %v2350, %v2355
  %v2611 = vadd.f32 %v2351, %v2355
  %v2612 = vadd.f32 %v2352, %v2355
  %v2613 = vmax.f32 %v2357, 0.0
  %v2614 = vmax.f32 %v2358, 0.0
  %v2615 = vmax.f32 %v2359, 0.0
  %v2616 = vmax.f32 %v2360, 0.0
  %v2617 = vmax.f32 %v2361, 0.0
  %v2618 = vmax.f32 %v2362, 0.0
  %v2619 = vmax.f32 %v2363, 0.0
  %v2620 = vmax.f32 %v2364, 0.0
  %v2621 = vmax.f32 %v2365, 0.0
  %v2622 = vmax.f32 %v2366, 0.0
  %v2623 = vmax.f32 %v2367, 0.0
  %v2624 = vmax.f32 %v2368, 0.0
  %v2625 = vmax.f32 %v2369, 0.0
  %v2626 = vmax.f32 %v2370, 0.0
  %v2627 = vmax.f32 %v2371, 0.0
  %v2628 = vmax.f32 %v2372, 0.0
  %v2629 = vmax.f32 %v2373, 0.0
  %v2630 = vmax.f32 %v2374, 0.0
  %v2631 = vmax.f32 %v2375, 0.0
  %v2632 = vmax.f32 %v2376, 0.0
  %v2633 = vmax.f32 %v2377, 0.0
  %v2634 = vmax.f32 %v2378, 0.0
  %v2635 = vmax.f32 %v2379, 0.0
  %v2636 = vmax.f32 %v2380, 0.0
  %v2637 = vmax.f32 %v2381, 0.0
  %v2638 = vmax.f32 %v2382, 0.0
  %v2639 = vmax.f32 %v2383, 0.0
  %v2640 = vmax.f32 %v2384, 0.0
  %v2641 = vmax.f32 %v2385, 0.0
  %v2642 = vmax.f32 %v2386, 0.0
  %v2643 = vmax.f32 %v2387, 0.0
  %v2644 = vmax.f32 %v2388, 0.0
  %v2645 = vmax.f32 %v2389, 0.0
  %v2646 = vmax.f32 %v2390, 0.0
  %v2647 = vmax.f32 %v2391, 0.0
  %v2648 = vmax.f32 %v2392, 0.0
  %v2649 = vmax.f32 %v2393, 0.0
  %v2650 = vmax.f32 %v2394, 0.0
  %v2651 = vmax.f32 %v2395, 0.0
  %v2652 = vmax.f32 %v2396, 0.0
  %v2653 = vmax.f32 %v2397, 0.0
  %v2654 = vmax.f32 %v2398, 0.0
  %v2655 = vmax.f32 %v2399, 0.0
  %v2656 = vmax.f32 %v2400, 0.0
  %v2657 = vmax.f32 %v2401, 0.0
  %v2658 = vmax.f32 %v2402, 0.0
  %v2659 = vmax.f32 %v2403, 0.0
  %v2660 = vmax.f32 %v2404, 0.0
  %v2661 = vmax.f32 %v2405, 0.0
  %v2662 = vmax.f32 %v2406, 0.0
  %v2663 = vmax.f32 %v2407, 0.0
  %v2664 = vmax.f32 %v2408, 0.0
  %v2665 = vmax.f32 %v2409, 0.0
  %v2666 = vmax.f32 %v2410, 0.0
  %v2667 = vmax.f32 %v2411, 0.0
  %v2668 = vmax.f32 %v2412, 0.0
  %v2669 = vmax.f32 %v2413, 0.0
  %v2670 = vmax.f32 %v2414, 0.0
  %v2671 = vmax.f32 %v2415, 0.0
  %v2672 = vmax.f32 %v2416, 0.0
  %v2673 = vmax.f32 %v2417, 0.0
  %v2674 = vmax.f32 %v2418, 0.0
  %v2675 = vmax.f32 %v2419, 0.0
  %v2676 = vmax.f32 %v2420, 0.0
  %v2677 = vmax.f32 %v2421, 0.0
  %v2678 = vmax.f32 %v2422, 0.0
  %v2679 = vmax.f32 %v2423, 0.0
  %v2680 = vmax.f32 %v2424, 0.0
  %v2681 = vmax.f32 %v2425, 0.0
  %v2682 = vmax.f32 %v2426, 0.0
  %v2683 = vmax.f32 %v2427, 0.0
  %v2684 = vmax.f32 %v2428, 0.0
  %v2685 = vmax.f32 %v2429, 0.0
  %v2686 = vmax.f32 %v2430, 0.0
  %v2687 = vmax.f32 %v2431, 0.0
  %v2688 = vmax.f32 %v2432, 0.0
  %v2689 = vmax.f32 %v2433, 0.0
  %v2690 = vmax.f32 %v2434, 0.0
  %v2691 = vmax.f32 %v2435, 0.0
  %v2692 = vmax.f32 %v2436, 0.0
  %v2693 = vmax.f32 %v2437, 0.0
  %v2694 = vmax.f32 %v2438, 0.0
  %v2695 = vmax.f32 %v2439, 0.0
  %v2696 = vmax.f32 %v2440, 0.0
  %v2697 = vmax.f32 %v2441, 0.0
  %v2698 = vmax.f32 %v2442, 0.0
  %v2699 = vmax.f32 %v2443, 0.0
  %v2700 = vmax.f32 %v2444, 0.0
  %v2701 = vmax.f32 %v2445, 0.0
  %v2702 = vmax.f32 %v2446, 0.0
  %v2703 = vmax.f32 %v2447, 0.0
  %v2704 = vmax.f32 %v2448, 0.0
  %v2705 = vmax.f32 %v2449, 0.0
  %v2706 = vmax.f32 %v2450, 0.0
  %v2707 = vmax.f32 %v2451, 0.0
  %v2708 = vmax.f32 %v2452, 0.0
  %v2709 = vmax.f32 %v2453, 0.0
  %v2710 = vmax.f32 %v2454, 0.0
  %v2711 = vmax.f32 %v2455, 0.0
  %v2712 = vmax.f32 %v2456, 0.0
  %v2713 = vmax.f32 %v2457, 0.0
  %v2714 = vmax.f32 %v2458, 0.0
  %v2715 = vmax.f32 %v2459, 0.0
  %v2716 = vmax.f32 %v2460, 0.0
  %v2717 = vmax.f32 %v2461, 0.0
  %v2718 = vmax.f32 %v2462, 0.0
  %v2719 = vmax.f32 %v2463, 0.0
  %v2720 = vmax.f32 %v2464, 0.0
  %v2721 = vmax.f32 %v2465, 0.0
  %v2722 = vmax.f32 %v2466, 0.0
  %v2723 = vmax.f32 %v2467, 0.0
  %v2724 = vmax.f32 %v2468, 0.0
  %v2725 = vmax.f32 %v2469, 0.0
  %v2726 = vmax.f32 %v2470, 0.0
  %v2727 = vmax.f32 %v2471, 0.0
  %v2728 = vmax.f32 %v2472, 0.0
  %v2729 = vmax.f32 %v2473, 0.0
  %v2730 = vmax.f32 %v2474, 0.0
  %v2731 = vmax.f32 %v2475, 0.0
  %v2732 = vmax.f32 %v2476, 0.0
  %v2733 = vmax.f32 %v2477, 0.0
  %v2734 = vmax.f32 %v2478, 0.0
  %v2735 = vmax.f32 %v2479, 0.0
  %v2736 = vmax.f32 %v2480, 0.0
  %v2737 = vmax.f32 %v2481, 0.0
  %v2738 = vmax.f32 %v2482, 0.0
  %v2739 = vmax.f32 %v2483, 0.0
  %v2740 = vmax.f32 %v2484, 0.0
  %v2741 = vmax.f32 %v2485, 0.0
  %v2742 = vmax.f32 %v2486, 0.0
  %v2743 = vmax.f32 %v2487, 0.0
  %v2744 = vmax.f32 %v2488, 0.0
  %v2745 = vmax.f32 %v2489, 0.0
  %v2746 = vmax.f32 %v2490, 0.0
  %v2747 = vmax.f32 %v2491, 0.0
  %v2748 = vmax.f32 %v2492, 0.0
  %v2749 = vmax.f32 %v2493, 0.0
  %v2750 = vmax.f32 %v2494, 0.0
  %v2751 = vmax.f32 %v2495, 0.0
  %v2752 = vmax.f32 %v2496, 0.0
  %v2753 = vmax.f32 %v2497, 0.0
  %v2754 = vmax.f32 %v2498, 0.0
  %v2755 = vmax.f32 %v2499, 0.0
  %v2756 = vmax.f32 %v2500, 0.0
  %v2757 = vmax.f32 %v2501, 0.0
  %v2758 = vmax.f32 %v2502, 0.0
  %v2759 = vmax.f32 %v2503, 0.0
  %v2760 = vmax.f32 %v2504, 0.0
  %v2761 = vmax.f32 %v2505, 0.0
  %v2762 = vmax.f32 %v2506, 0.0
  %v2763 = vmax.f32 %v2507, 0.0
  %v2764 = vmax.f32 %v2508, 0.0
  %v2765 = vmax.f32 %v2509, 0.0
  %v2766 = vmax.f32 %v2510, 0.0
  %v2767 = vmax.f32 %v2511, 0.0
  %v2768 = vmax.f32 %v2512, 0.0
  %v2769 = vmax.f32 %v2513, 0.0
  %v2770 = vmax.f32 %v2514, 0.0
  %v2771 = vmax.f32 %v2515, 0.0
  %v2772 = vmax.f32 %v2516, 0.0
  %v2773 = vmax.f32 %v2517, 0.0
  %v2774 = vmax.f32 %v2518, 0.0
  %v2775 = vmax.f32 %v2519, 0.0
  %v2776 = vmax.f32 %v2520, 0.0
  %v2777 = vmax.f32 %v2521, 0.0
  %v2778 = vmax.f32 %v2522, 0.0
  %v2779 = vmax.f32 %v2523, 0.0
  %v2780 = vmax.f32 %v2524, 0.0
  %v2781 = vmax.f32 %v2525, 0.0
  %v2782 = vmax.f32 %v2526, 0.0
  %v2783 = vmax.f32 %v2527, 0.0
  %v2784 = vmax.f32 %v2528, 0.0
  %v2785 = vmax.f32 %v2529, 0.0
  %v2786 = vmax.f32 %v2530, 0.0
  %v2787 = vmax.f32 %v2531, 0.0
  %v2788 = vmax.f32 %v2532, 0.0
  %v2789 = vmax.f32 %v2533, 0.0
  %v2790 = vmax.f32 %v2534, 0.0
  %v2791 = vmax.f32 %v2535, 0.0
  %v2792 = vmax.f32 %v2536, 0.0
  %v2793 = vmax.f32 %v2537, 0.0
  %v2794 = vmax.f32 %v2538, 0.0
  %v2795 = vmax.f32 %v2539, 0.0
  %v2796 = vmax.f32 %v2540, 0.0
  %v2797 = vmax.f32 %v2541, 0.0
  %v2798 = vmax.f32 %v2542, 0.0
  %v2799 = vmax.f32 %v2543, 0.0
  %v2800 = vmax.f32 %v2544, 0.0
  %v2801 = vmax.f32 %v2545, 0.0
  %v2802 = vmax.f32 %v2546, 0.0
  %v2803 = vmax.f32 %v2547, 0.0
  %v2804 = vmax.f32 %v2548, 0.0
  %v2805 = vmax.f32 %v2549, 0.0
  %v2806 = vmax.f32 %v2550, 0.0
  %v2807 = vmax.f32 %v2551, 0.0
  %v2808 = vmax.f32 %v2552, 0.0
  %v2809 = vmax.f32 %v2553, 0.0
  %v2810 = vmax.f32 %v2554, 0.0
  %v2811 = vmax.f32 %v2555, 0.0
  %v2812 = vmax.f32 %v2556, 0.0
  %v2813 = vmax.f32 %v2557, 0.0
  %v2814 = vmax.f32 %v2558, 0.0
  %v2815 = vmax.f32 %v2559, 0.0
  %v2816 = vmax.f32 %v2560, 0.0
  %v2817 = vmax.f32 %v2561, 0.0
  %v2818 = vmax.f32 %v2562, 0.0
  %v2819 = vmax.f32 %v2563, 0.0
  %v2820 = vmax.f32 %v2564, 0.0
  %v2821 = vmax.f32 %v2565, 0.0
  %v2822 = vmax.f32 %v2566, 0.0
  %v2823 = vmax.f32 %v2567, 0.0
  %v2824 = vmax.f32 %v2568, 0.0
  %v2825 = vmax.f32 %v2569, 0.0
  %v2826 = vmax.f32 %v2570, 0.0
  %v2827 = vmax.f32 %v2571, 0.0
  %v2828 = vmax.f32 %v2572, 0.0
  %v2829 = vmax.f32 %v2573, 0.0
  %v2830 = vmax.f32 %v2574, 0.0
  %v2831 = vmax.f32 %v2575, 0.0
  %v2832 = vmax.f32 %v2576, 0.0
  %v2833 = vmax.f32 %v2577, 0.0
  %v2834 = vmax.f32 %v2578, 0.0
  %v2835 = vmax.f32 %v2579, 0.0
  %v2836 = vmax.f32 %v2580, 0.0
  %v2837 = vmax.f32 %v2581, 0.0
  %v2838 = vmax.f32 %v2582, 0.0
  %v2839 = vmax.f32 %v2583, 0.0
  %v2840 = vmax.f32 %v2584, 0.0
  %v2841 = vmax.f32 %v2585, 0.0
  %v2842 = vmax.f32 %v2586, 0.0
  %v2843 = vmax.f32 %v2587, 0.0
  %v2844 = vmax.f32 %v2588, 0.0
  %v2845 = vmax.f32 %v2589, 0.0
  %v2846 = vmax.f32 %v2590, 0.0
  %v2847 = vmax.f32 %v2591, 0.0
  %v2848 = vmax.f32 %v2592, 0.0
  %v2849 = vmax.f32 %v2593, 0.0
  %v2850 = vmax.f32 %v2594, 0.0
  %v2851 = vmax.f32 %v2595, 0.0
  %v2852 = vmax.f32 %v2596, 0.0
  %v2853 = vmax.f32 %v2597, 0.0
  %v2854 = vmax.f32 %v2598, 0.0
  %v2855 = vmax.f32 %v2599, 0.0
  %v2856 = vmax.f32 %v2600, 0.0
  %v2857 = vmax.f32 %v2601, 0.0
  %v2858 = vmax.f32 %v2602, 0.0
  %v2859 = vmax.f32 %v2603, 0.0
  %v2860 = vmax.f32 %v2604, 0.0
  %v2861 = vmax.f32 %v2605, 0.0
  %v2862 = vmax.f32 %v2606, 0.0
  %v2863 = vmax.f32 %v2607, 0.0
  %v2864 = vmax.f32 %v2608, 0.0
  %v2865 = vmax.f32 %v2609, 0.0
  %v2866 = vmax.f32 %v2610, 0.0
  %v2867 = vmax.f32 %v2611, 0.0
  %v2868 = vmax.f32 %v2612, 0.0
  %2869 = vst.msk [vmem:[%s3] sm:$0xff] %vm270, %v2613
  %2870 = vst.msk [vmem:[%s3 + $0x8] sm:$0xff] %vm270, %v2614
  %2871 = vst.msk [vmem:[%s3 + $0x10] sm:$0xff] %vm270, %v2615
  %2872 = vst.msk [vmem:[%s3 + $0x18] sm:$0xff] %vm270, %v2616
  %2873 = vst.msk [vmem:[%s3 + $0x20] sm:$0xff] %vm270, %v2617
  %2874 = vst.msk [vmem:[%s3 + $0x28] sm:$0xff] %vm270, %v2618
  %2875 = vst.msk [vmem:[%s3 + $0x30] sm:$0xff] %vm270, %v2619
  %2876 = vst.msk [vmem:[%s3 + $0x38] sm:$0xff] %vm270, %v2620
  %2877 = vst.msk [vmem:[%s3 + $0x40] sm:$0xff] %vm270, %v2621
  %2878 = vst.msk [vmem:[%s3 + $0x48] sm:$0xff] %vm270, %v2622
  %2879 = vst.msk [vmem:[%s3 + $0x50] sm:$0xff] %vm270, %v2623
  %2880 = vst.msk [vmem:[%s3 + $0x58] sm:$0xff] %vm270, %v2624
  %2881 = vst.msk [vmem:[%s3 + $0x60] sm:$0xff] %vm270, %v2625
  %2882 = vst.msk [vmem:[%s3 + $0x68] sm:$0xff] %vm270, %v2626
  %2883 = vst.msk [vmem:[%s3 + $0x70] sm:$0xff] %vm270, %v2627
  %2884 = vst.msk [vmem:[%s3 + $0x78] sm:$0xff] %vm270, %v2628
  %2885 = vst.msk [vmem:[%s3 + $0x80] sm:$0xff] %vm270, %v2629
  %2886 = vst.msk [vmem:[%s3 + $0x88] sm:$0xff] %vm270, %v2630
  %2887 = vst.msk [vmem:[%s3 + $0x90] sm:$0xff] %vm270, %v2631
  %2888 = vst.msk [vmem:[%s3 + $0x98] sm:$0xff] %vm270, %v2632
  %2889 = vst.msk [vmem:[%s3 + $0xa0] sm:$0xff] %vm270, %v2633
  %2890 = vst.msk [vmem:[%s3 + $0xa8] sm:$0xff] %vm270, %v2634
  %2891 = vst.msk [vmem:[%s3 + $0xb0] sm:$0xff] %vm270, %v2635
  %2892 = vst.msk [vmem:[%s3 + $0xb8] sm:$0xff] %vm270, %v2636
  %2893 = vst.msk [vmem:[%s3 + $0xc0] sm:$0xff] %vm270, %v2637
  %2894 = vst.msk [vmem:[%s3 + $0xc8] sm:$0xff] %vm270, %v2638
  %2895 = vst.msk [vmem:[%s3 + $0xd0] sm:$0xff] %vm270, %v2639
  %2896 = vst.msk [vmem:[%s3 + $0xd8] sm:$0xff] %vm270, %v2640
  %2897 = vst.msk [vmem:[%s3 + $0xe0] sm:$0xff] %vm270, %v2641
  %2898 = vst.msk [vmem:[%s3 + $0xe8] sm:$0xff] %vm270, %v2642
  %2899 = vst.msk [vmem:[%s3 + $0xf0] sm:$0xff] %vm270, %v2643
  %2900 = vst.msk [vmem:[%s3 + $0xf8] sm:$0xff] %vm270, %v2644
  %2901 = vst.msk [vmem:[%s3 + $0x100] sm:$0xff] %vm270, %v2645
  %2902 = vst.msk [vmem:[%s3 + $0x108] sm:$0xff] %vm270, %v2646
  %2903 = vst.msk [vmem:[%s3 + $0x110] sm:$0xff] %vm270, %v2647
  %2904 = vst.msk [vmem:[%s3 + $0x118] sm:$0xff] %vm270, %v2648
  %2905 = vst.msk [vmem:[%s3 + $0x120] sm:$0xff] %vm270, %v2649
  %2906 = vst.msk [vmem:[%s3 + $0x128] sm:$0xff] %vm270, %v2650
  %2907 = vst.msk [vmem:[%s3 + $0x130] sm:$0xff] %vm270, %v2651
  %2908 = vst.msk [vmem:[%s3 + $0x138] sm:$0xff] %vm270, %v2652
  %2909 = vst.msk [vmem:[%s3 + $0x140] sm:$0xff] %vm270, %v2653
  %2910 = vst.msk [vmem:[%s3 + $0x148] sm:$0xff] %vm270, %v2654
  %2911 = vst.msk [vmem:[%s3 + $0x150] sm:$0xff] %vm270, %v2655
  %2912 = vst.msk [vmem:[%s3 + $0x158] sm:$0xff] %vm270, %v2656
  %2913 = vst.msk [vmem:[%s3 + $0x160] sm:$0xff] %vm270, %v2657
  %2914 = vst.msk [vmem:[%s3 + $0x168] sm:$0xff] %vm270, %v2658
  %2915 = vst.msk [vmem:[%s3 + $0x170] sm:$0xff] %vm270, %v2659
  %2916 = vst.msk [vmem:[%s3 + $0x178] sm:$0xff] %vm270, %v2660
  %2917 = vst.msk [vmem:[%s3 + $0x180] sm:$0xff] %vm270, %v2661
  %2918 = vst.msk [vmem:[%s3 + $0x188] sm:$0xff] %vm270, %v2662
  %2919 = vst.msk [vmem:[%s3 + $0x190] sm:$0xff] %vm270, %v2663
  %2920 = vst.msk [vmem:[%s3 + $0x198] sm:$0xff] %vm270, %v2664
  %2921 = vst.msk [vmem:[%s3 + $0x1a0] sm:$0xff] %vm270, %v2665
  %2922 = vst.msk [vmem:[%s3 + $0x1a8] sm:$0xff] %vm270, %v2666
  %2923 = vst.msk [vmem:[%s3 + $0x1b0] sm:$0xff] %vm270, %v2667
  %2924 = vst.msk [vmem:[%s3 + $0x1b8] sm:$0xff] %vm270, %v2668
  %2925 = vst.msk [vmem:[%s3 + $0x1c0] sm:$0xff] %vm270, %v2669
  %2926 = vst.msk [vmem:[%s3 + $0x1c8] sm:$0xff] %vm270, %v2670
  %2927 = vst.msk [vmem:[%s3 + $0x1d0] sm:$0xff] %vm270, %v2671
  %2928 = vst.msk [vmem:[%s3 + $0x1d8] sm:$0xff] %vm270, %v2672
  %2929 = vst.msk [vmem:[%s3 + $0x1e0] sm:$0xff] %vm270, %v2673
  %2930 = vst.msk [vmem:[%s3 + $0x1e8] sm:$0xff] %vm270, %v2674
  %2931 = vst.msk [vmem:[%s3 + $0x1f0] sm:$0xff] %vm270, %v2675
  %2932 = vst.msk [vmem:[%s3 + $0x1f8] sm:$0xff] %vm270, %v2676
  %2933 = vst.msk [vmem:[%s3 + $0x200] sm:$0xff] %vm270, %v2677
  %2934 = vst.msk [vmem:[%s3 + $0x208] sm:$0xff] %vm270, %v2678
  %2935 = vst.msk [vmem:[%s3 + $0x210] sm:$0xff] %vm270, %v2679
  %2936 = vst.msk [vmem:[%s3 + $0x218] sm:$0xff] %vm270, %v2680
  %2937 = vst.msk [vmem:[%s3 + $0x220] sm:$0xff] %vm270, %v2681
  %2938 = vst.msk [vmem:[%s3 + $0x228] sm:$0xff] %vm270, %v2682
  %2939 = vst.msk [vmem:[%s3 + $0x230] sm:$0xff] %vm270, %v2683
  %2940 = vst.msk [vmem:[%s3 + $0x238] sm:$0xff] %vm270, %v2684
  %2941 = vst.msk [vmem:[%s3 + $0x240] sm:$0xff] %vm270, %v2685
  %2942 = vst.msk [vmem:[%s3 + $0x248] sm:$0xff] %vm270, %v2686
  %2943 = vst.msk [vmem:[%s3 + $0x250] sm:$0xff] %vm270, %v2687
  %2944 = vst.msk [vmem:[%s3 + $0x258] sm:$0xff] %vm270, %v2688
  %2945 = vst.msk [vmem:[%s3 + $0x260] sm:$0xff] %vm270, %v2689
  %2946 = vst.msk [vmem:[%s3 + $0x268] sm:$0xff] %vm270, %v2690
  %2947 = vst.msk [vmem:[%s3 + $0x270] sm:$0xff] %vm270, %v2691
  %2948 = vst.msk [vmem:[%s3 + $0x278] sm:$0xff] %vm270, %v2692
  %2949 = vst.msk [vmem:[%s3 + $0x280] sm:$0xff] %vm270, %v2693
  %2950 = vst.msk [vmem:[%s3 + $0x288] sm:$0xff] %vm270, %v2694
  %2951 = vst.msk [vmem:[%s3 + $0x290] sm:$0xff] %vm270, %v2695
  %2952 = vst.msk [vmem:[%s3 + $0x298] sm:$0xff] %vm270, %v2696
  %2953 = vst.msk [vmem:[%s3 + $0x2a0] sm:$0xff] %vm270, %v2697
  %2954 = vst.msk [vmem:[%s3 + $0x2a8] sm:$0xff] %vm270, %v2698
  %2955 = vst.msk [vmem:[%s3 + $0x2b0] sm:$0xff] %vm270, %v2699
  %2956 = vst.msk [vmem:[%s3 + $0x2b8] sm:$0xff] %vm270, %v2700
  %2957 = vst.msk [vmem:[%s3 + $0x2c0] sm:$0xff] %vm270, %v2701
  %2958 = vst.msk [vmem:[%s3 + $0x2c8] sm:$0xff] %vm270, %v2702
  %2959 = vst.msk [vmem:[%s3 + $0x2d0] sm:$0xff] %vm270, %v2703
  %2960 = vst.msk [vmem:[%s3 + $0x2d8] sm:$0xff] %vm270, %v2704
  %2961 = vst.msk [vmem:[%s3 + $0x2e0] sm:$0xff] %vm270, %v2705
  %2962 = vst.msk [vmem:[%s3 + $0x2e8] sm:$0xff] %vm270, %v2706
  %2963 = vst.msk [vmem:[%s3 + $0x2f0] sm:$0xff] %vm270, %v2707
  %2964 = vst.msk [vmem:[%s3 + $0x2f8] sm:$0xff] %vm270, %v2708
  %2965 = vst.msk [vmem:[%s3 + $0x300] sm:$0xff] %vm270, %v2709
  %2966 = vst.msk [vmem:[%s3 + $0x308] sm:$0xff] %vm270, %v2710
  %2967 = vst.msk [vmem:[%s3 + $0x310] sm:$0xff] %vm270, %v2711
  %2968 = vst.msk [vmem:[%s3 + $0x318] sm:$0xff] %vm270, %v2712
  %2969 = vst.msk [vmem:[%s3 + $0x320] sm:$0xff] %vm270, %v2713
  %2970 = vst.msk [vmem:[%s3 + $0x328] sm:$0xff] %vm270, %v2714
  %2971 = vst.msk [vmem:[%s3 + $0x330] sm:$0xff] %vm270, %v2715
  %2972 = vst.msk [vmem:[%s3 + $0x338] sm:$0xff] %vm270, %v2716
  %2973 = vst.msk [vmem:[%s3 + $0x340] sm:$0xff] %vm270, %v2717
  %2974 = vst.msk [vmem:[%s3 + $0x348] sm:$0xff] %vm270, %v2718
  %2975 = vst.msk [vmem:[%s3 + $0x350] sm:$0xff] %vm270, %v2719
  %2976 = vst.msk [vmem:[%s3 + $0x358] sm:$0xff] %vm270, %v2720
  %2977 = vst.msk [vmem:[%s3 + $0x360] sm:$0xff] %vm270, %v2721
  %2978 = vst.msk [vmem:[%s3 + $0x368] sm:$0xff] %vm270, %v2722
  %2979 = vst.msk [vmem:[%s3 + $0x370] sm:$0xff] %vm270, %v2723
  %2980 = vst.msk [vmem:[%s3 + $0x378] sm:$0xff] %vm270, %v2724
  %2981 = vst.msk [vmem:[%s3 + $0x380] sm:$0xff] %vm270, %v2725
  %2982 = vst.msk [vmem:[%s3 + $0x388] sm:$0xff] %vm270, %v2726
  %2983 = vst.msk [vmem:[%s3 + $0x390] sm:$0xff] %vm270, %v2727
  %2984 = vst.msk [vmem:[%s3 + $0x398] sm:$0xff] %vm270, %v2728
  %2985 = vst.msk [vmem:[%s3 + $0x3a0] sm:$0xff] %vm270, %v2729
  %2986 = vst.msk [vmem:[%s3 + $0x3a8] sm:$0xff] %vm270, %v2730
  %2987 = vst.msk [vmem:[%s3 + $0x3b0] sm:$0xff] %vm270, %v2731
  %2988 = vst.msk [vmem:[%s3 + $0x3b8] sm:$0xff] %vm270, %v2732
  %2989 = vst.msk [vmem:[%s3 + $0x3c0] sm:$0xff] %vm270, %v2733
  %2990 = vst.msk [vmem:[%s3 + $0x3c8] sm:$0xff] %vm270, %v2734
  %2991 = vst.msk [vmem:[%s3 + $0x3d0] sm:$0xff] %vm270, %v2735
  %2992 = vst.msk [vmem:[%s3 + $0x3d8] sm:$0xff] %vm270, %v2736
  %2993 = vst.msk [vmem:[%s3 + $0x3e0] sm:$0xff] %vm270, %v2737
  %2994 = vst.msk [vmem:[%s3 + $0x3e8] sm:$0xff] %vm270, %v2738
  %2995 = vst.msk [vmem:[%s3 + $0x3f0] sm:$0xff] %vm270, %v2739
  %2996 = vst.msk [vmem:[%s3 + $0x3f8] sm:$0xff] %vm270, %v2740
  %2997 = vst.msk [vmem:[%s3 + $0x400] sm:$0xff] %vm270, %v2741
  %2998 = vst.msk [vmem:[%s3 + $0x408] sm:$0xff] %vm270, %v2742
  %2999 = vst.msk [vmem:[%s3 + $0x410] sm:$0xff] %vm270, %v2743
  %3000 = vst.msk [vmem:[%s3 + $0x418] sm:$0xff] %vm270, %v2744
  %3001 = vst.msk [vmem:[%s3 + $0x420] sm:$0xff] %vm270, %v2745
  %3002 = vst.msk [vmem:[%s3 + $0x428] sm:$0xff] %vm270, %v2746
  %3003 = vst.msk [vmem:[%s3 + $0x430] sm:$0xff] %vm270, %v2747
  %3004 = vst.msk [vmem:[%s3 + $0x438] sm:$0xff] %vm270, %v2748
  %3005 = vst.msk [vmem:[%s3 + $0x440] sm:$0xff] %vm270, %v2749
  %3006 = vst.msk [vmem:[%s3 + $0x448] sm:$0xff] %vm270, %v2750
  %3007 = vst.msk [vmem:[%s3 + $0x450] sm:$0xff] %vm270, %v2751
  %3008 = vst.msk [vmem:[%s3 + $0x458] sm:$0xff] %vm270, %v2752
  %3009 = vst.msk [vmem:[%s3 + $0x460] sm:$0xff] %vm270, %v2753
  %3010 = vst.msk [vmem:[%s3 + $0x468] sm:$0xff] %vm270, %v2754
  %3011 = vst.msk [vmem:[%s3 + $0x470] sm:$0xff] %vm270, %v2755
  %3012 = vst.msk [vmem:[%s3 + $0x478] sm:$0xff] %vm270, %v2756
  %3013 = vst.msk [vmem:[%s3 + $0x480] sm:$0xff] %vm270, %v2757
  %3014 = vst.msk [vmem:[%s3 + $0x488] sm:$0xff] %vm270, %v2758
  %3015 = vst.msk [vmem:[%s3 + $0x490] sm:$0xff] %vm270, %v2759
  %3016 = vst.msk [vmem:[%s3 + $0x498] sm:$0xff] %vm270, %v2760
  %3017 = vst.msk [vmem:[%s3 + $0x4a0] sm:$0xff] %vm270, %v2761
  %3018 = vst.msk [vmem:[%s3 + $0x4a8] sm:$0xff] %vm270, %v2762
  %3019 = vst.msk [vmem:[%s3 + $0x4b0] sm:$0xff] %vm270, %v2763
  %3020 = vst.msk [vmem:[%s3 + $0x4b8] sm:$0xff] %vm270, %v2764
  %3021 = vst.msk [vmem:[%s3 + $0x4c0] sm:$0xff] %vm270, %v2765
  %3022 = vst.msk [vmem:[%s3 + $0x4c8] sm:$0xff] %vm270, %v2766
  %3023 = vst.msk [vmem:[%s3 + $0x4d0] sm:$0xff] %vm270, %v2767
  %3024 = vst.msk [vmem:[%s3 + $0x4d8] sm:$0xff] %vm270, %v2768
  %3025 = vst.msk [vmem:[%s3 + $0x4e0] sm:$0xff] %vm270, %v2769
  %3026 = vst.msk [vmem:[%s3 + $0x4e8] sm:$0xff] %vm270, %v2770
  %3027 = vst.msk [vmem:[%s3 + $0x4f0] sm:$0xff] %vm270, %v2771
  %3028 = vst.msk [vmem:[%s3 + $0x4f8] sm:$0xff] %vm270, %v2772
  %3029 = vst.msk [vmem:[%s3 + $0x500] sm:$0xff] %vm270, %v2773
  %3030 = vst.msk [vmem:[%s3 + $0x508] sm:$0xff] %vm270, %v2774
  %3031 = vst.msk [vmem:[%s3 + $0x510] sm:$0xff] %vm270, %v2775
  %3032 = vst.msk [vmem:[%s3 + $0x518] sm:$0xff] %vm270, %v2776
  %3033 = vst.msk [vmem:[%s3 + $0x520] sm:$0xff] %vm270, %v2777
  %3034 = vst.msk [vmem:[%s3 + $0x528] sm:$0xff] %vm270, %v2778
  %3035 = vst.msk [vmem:[%s3 + $0x530] sm:$0xff] %vm270, %v2779
  %3036 = vst.msk [vmem:[%s3 + $0x538] sm:$0xff] %vm270, %v2780
  %3037 = vst.msk [vmem:[%s3 + $0x540] sm:$0xff] %vm270, %v2781
  %3038 = vst.msk [vmem:[%s3 + $0x548] sm:$0xff] %vm270, %v2782
  %3039 = vst.msk [vmem:[%s3 + $0x550] sm:$0xff] %vm270, %v2783
  %3040 = vst.msk [vmem:[%s3 + $0x558] sm:$0xff] %vm270, %v2784
  %3041 = vst.msk [vmem:[%s3 + $0x560] sm:$0xff] %vm270, %v2785
  %3042 = vst.msk [vmem:[%s3 + $0x568] sm:$0xff] %vm270, %v2786
  %3043 = vst.msk [vmem:[%s3 + $0x570] sm:$0xff] %vm270, %v2787
  %3044 = vst.msk [vmem:[%s3 + $0x578] sm:$0xff] %vm270, %v2788
  %3045 = vst.msk [vmem:[%s3 + $0x580] sm:$0xff] %vm270, %v2789
  %3046 = vst.msk [vmem:[%s3 + $0x588] sm:$0xff] %vm270, %v2790
  %3047 = vst.msk [vmem:[%s3 + $0x590] sm:$0xff] %vm270, %v2791
  %3048 = vst.msk [vmem:[%s3 + $0x598] sm:$0xff] %vm270, %v2792
  %3049 = vst.msk [vmem:[%s3 + $0x5a0] sm:$0xff] %vm270, %v2793
  %3050 = vst.msk [vmem:[%s3 + $0x5a8] sm:$0xff] %vm270, %v2794
  %3051 = vst.msk [vmem:[%s3 + $0x5b0] sm:$0xff] %vm270, %v2795
  %3052 = vst.msk [vmem:[%s3 + $0x5b8] sm:$0xff] %vm270, %v2796
  %3053 = vst.msk [vmem:[%s3 + $0x5c0] sm:$0xff] %vm270, %v2797
  %3054 = vst.msk [vmem:[%s3 + $0x5c8] sm:$0xff] %vm270, %v2798
  %3055 = vst.msk [vmem:[%s3 + $0x5d0] sm:$0xff] %vm270, %v2799
  %3056 = vst.msk [vmem:[%s3 + $0x5d8] sm:$0xff] %vm270, %v2800
  %3057 = vst.msk [vmem:[%s3 + $0x5e0] sm:$0xff] %vm270, %v2801
  %3058 = vst.msk [vmem:[%s3 + $0x5e8] sm:$0xff] %vm270, %v2802
  %3059 = vst.msk [vmem:[%s3 + $0x5f0] sm:$0xff] %vm270, %v2803
  %3060 = vst.msk [vmem:[%s3 + $0x5f8] sm:$0xff] %vm270, %v2804
  %3061 = vst.msk [vmem:[%s3 + $0x600] sm:$0xff] %vm270, %v2805
  %3062 = vst.msk [vmem:[%s3 + $0x608] sm:$0xff] %vm270, %v2806
  %3063 = vst.msk [vmem:[%s3 + $0x610] sm:$0xff] %vm270, %v2807
  %3064 = vst.msk [vmem:[%s3 + $0x618] sm:$0xff] %vm270, %v2808
  %3065 = vst.msk [vmem:[%s3 + $0x620] sm:$0xff] %vm270, %v2809
  %3066 = vst.msk [vmem:[%s3 + $0x628] sm:$0xff] %vm270, %v2810
  %3067 = vst.msk [vmem:[%s3 + $0x630] sm:$0xff] %vm270, %v2811
  %3068 = vst.msk [vmem:[%s3 + $0x638] sm:$0xff] %vm270, %v2812
  %3069 = vst.msk [vmem:[%s3 + $0x640] sm:$0xff] %vm270, %v2813
  %3070 = vst.msk [vmem:[%s3 + $0x648] sm:$0xff] %vm270, %v2814
  %3071 = vst.msk [vmem:[%s3 + $0x650] sm:$0xff] %vm270, %v2815
  %3072 = vst.msk [vmem:[%s3 + $0x658] sm:$0xff] %vm270, %v2816
  %3073 = vst.msk [vmem:[%s3 + $0x660] sm:$0xff] %vm270, %v2817
  %3074 = vst.msk [vmem:[%s3 + $0x668] sm:$0xff] %vm270, %v2818
  %3075 = vst.msk [vmem:[%s3 + $0x670] sm:$0xff] %vm270, %v2819
  %3076 = vst.msk [vmem:[%s3 + $0x678] sm:$0xff] %vm270, %v2820
  %3077 = vst.msk [vmem:[%s3 + $0x680] sm:$0xff] %vm270, %v2821
  %3078 = vst.msk [vmem:[%s3 + $0x688] sm:$0xff] %vm270, %v2822
  %3079 = vst.msk [vmem:[%s3 + $0x690] sm:$0xff] %vm270, %v2823
  %3080 = vst.msk [vmem:[%s3 + $0x698] sm:$0xff] %vm270, %v2824
  %3081 = vst.msk [vmem:[%s3 + $0x6a0] sm:$0xff] %vm270, %v2825
  %3082 = vst.msk [vmem:[%s3 + $0x6a8] sm:$0xff] %vm270, %v2826
  %3083 = vst.msk [vmem:[%s3 + $0x6b0] sm:$0xff] %vm270, %v2827
  %3084 = vst.msk [vmem:[%s3 + $0x6b8] sm:$0xff] %vm270, %v2828
  %3085 = vst.msk [vmem:[%s3 + $0x6c0] sm:$0xff] %vm270, %v2829
  %3086 = vst.msk [vmem:[%s3 + $0x6c8] sm:$0xff] %vm270, %v2830
  %3087 = vst.msk [vmem:[%s3 + $0x6d0] sm:$0xff] %vm270, %v2831
  %3088 = vst.msk [vmem:[%s3 + $0x6d8] sm:$0xff] %vm270, %v2832
  %3089 = vst.msk [vmem:[%s3 + $0x6e0] sm:$0xff] %vm270, %v2833
  %3090 = vst.msk [vmem:[%s3 + $0x6e8] sm:$0xff] %vm270, %v2834
  %3091 = vst.msk [vmem:[%s3 + $0x6f0] sm:$0xff] %vm270, %v2835
  %3092 = vst.msk [vmem:[%s3 + $0x6f8] sm:$0xff] %vm270, %v2836
  %3093 = vst.msk [vmem:[%s3 + $0x700] sm:$0xff] %vm270, %v2837
  %3094 = vst.msk [vmem:[%s3 + $0x708] sm:$0xff] %vm270, %v2838
  %3095 = vst.msk [vmem:[%s3 + $0x710] sm:$0xff] %vm270, %v2839
  %3096 = vst.msk [vmem:[%s3 + $0x718] sm:$0xff] %vm270, %v2840
  %3097 = vst.msk [vmem:[%s3 + $0x720] sm:$0xff] %vm270, %v2841
  %3098 = vst.msk [vmem:[%s3 + $0x728] sm:$0xff] %vm270, %v2842
  %3099 = vst.msk [vmem:[%s3 + $0x730] sm:$0xff] %vm270, %v2843
  %3100 = vst.msk [vmem:[%s3 + $0x738] sm:$0xff] %vm270, %v2844
  %3101 = vst.msk [vmem:[%s3 + $0x740] sm:$0xff] %vm270, %v2845
  %3102 = vst.msk [vmem:[%s3 + $0x748] sm:$0xff] %vm270, %v2846
  %3103 = vst.msk [vmem:[%s3 + $0x750] sm:$0xff] %vm270, %v2847
  %3104 = vst.msk [vmem:[%s3 + $0x758] sm:$0xff] %vm270, %v2848
  %3105 = vst.msk [vmem:[%s3 + $0x760] sm:$0xff] %vm270, %v2849
  %3106 = vst.msk [vmem:[%s3 + $0x768] sm:$0xff] %vm270, %v2850
  %3107 = vst.msk [vmem:[%s3 + $0x770] sm:$0xff] %vm270, %v2851
  %3108 = vst.msk [vmem:[%s3 + $0x778] sm:$0xff] %vm270, %v2852
  %3109 = vst.msk [vmem:[%s3 + $0x780] sm:$0xff] %vm270, %v2853
  %3110 = vst.msk [vmem:[%s3 + $0x788] sm:$0xff] %vm270, %v2854
  %3111 = vst.msk [vmem:[%s3 + $0x790] sm:$0xff] %vm270, %v2855
  %3112 = vst.msk [vmem:[%s3 + $0x798] sm:$0xff] %vm270, %v2856
  %3113 = vst.msk [vmem:[%s3 + $0x7a0] sm:$0xff] %vm270, %v2857
  %3114 = vst.msk [vmem:[%s3 + $0x7a8] sm:$0xff] %vm270, %v2858
  %3115 = vst.msk [vmem:[%s3 + $0x7b0] sm:$0xff] %vm270, %v2859
  %3116 = vst.msk [vmem:[%s3 + $0x7b8] sm:$0xff] %vm270, %v2860
  %3117 = vst.msk [vmem:[%s3 + $0x7c0] sm:$0xff] %vm270, %v2861
  %3118 = vst.msk [vmem:[%s3 + $0x7c8] sm:$0xff] %vm270, %v2862
  %3119 = vst.msk [vmem:[%s3 + $0x7d0] sm:$0xff] %vm270, %v2863
  %3120 = vst.msk [vmem:[%s3 + $0x7d8] sm:$0xff] %vm270, %v2864
  %3121 = vst.msk [vmem:[%s3 + $0x7e0] sm:$0xff] %vm270, %v2865
  %3122 = vst.msk [vmem:[%s3 + $0x7e8] sm:$0xff] %vm270, %v2866
  %3123 = vst.msk [vmem:[%s3 + $0x7f0] sm:$0xff] %vm270, %v2867
  %3124 = vst.msk [vmem:[%s3 + $0x7f8] sm:$0xff] %vm270, %v2868
  // Predicated region
  $region14: #{wgan_generator_forward.17} parent=0 // pred_check
    _
  $region15: #{wgan_generator_forward.17} parent=0 // pred_check_branch
    %3126 = sbr.rel (0) target = $region17
  $region16: #{wgan_generator_forward.17} parent=0 // pred_region
    _
  $region17: #{wgan_generator_forward.17} parent=0 // pred_fallthru
    _
  // Predicated region
  $region18: #{wgan_generator_forward.17} parent=0 // pred_check
    _
  $region19: #{wgan_generator_forward.17} parent=0 // pred_check_branch
    %3128 = sbr.rel (0) target = $region21
  $region20: #{wgan_generator_forward.17} parent=0 // pred_region
    _
  $region21: #{wgan_generator_forward.17} parent=0 // pred_fallthru
    _

// kernel: wgan_generator_forward.19
$region0: #{wgan_generator_forward.19}
  #allocation0 [shape = 'u32[]', space=smem, size = 0x4, offset = 0x4, fixed_abs, tag = 'smem constant byte address 0x4 - core index']
  #allocation1 [shape = 'u32[72,128]{1,0:T(1,128)}', space=vmem, size = 0x9000, scoped, tag = 'internal scratch']
  %s0 = inlined_call_operand.vmem [shape: f32[192,128], index: 0, kind: input, shape index: {}]
  %s1 = inlined_call_operand.vmem [shape: f32[192,128], index: 1, kind: output, shape index: {}]
  %s2 = sld [smem:[#allocation0]]
  $region14: #{wgan_generator_forward.19} parent=0
    _
  %s4 = ssub.s32 1, %s2
  %s5 = scalar_select 0, %s4, %s2
  // Predicated region
  $region2: #{wgan_generator_forward.19} parent=0 // pred_check
    _
  $region3: #{wgan_generator_forward.19} parent=0 // pred_check_branch
    %7 = sbr.rel (0) target = $region5
  $region4: #{wgan_generator_forward.19} parent=0 // pred_region
    _
  $region5: #{wgan_generator_forward.19} parent=0 // pred_fallthru
    _
  %v8 = vld [vmem:[%s0] sm:$0xff]
  %v9 = vld [vmem:[%s0 + $0x8] sm:$0xff]
  %v10 = vld [vmem:[%s0 + $0x10] sm:$0xff]
  %v11 = vld [vmem:[%s0 + $0x18] sm:$0xff]
  %v12 = vld [vmem:[%s0 + $0x20] sm:$0xff]
  %v13 = vld [vmem:[%s0 + $0x28] sm:$0xff]
  %v14 = vld [vmem:[%s0 + $0x30] sm:$0xff]
  %v15 = vld [vmem:[%s0 + $0x38] sm:$0xff]
  %v16 = vld [vmem:[%s0 + $0x40] sm:$0xff]
  %v17 = vld [vmem:[%s0 + $0x48] sm:$0xff]
  %v18 = vld [vmem:[%s0 + $0x50] sm:$0xff]
  %v19 = vld [vmem:[%s0 + $0x58] sm:$0xff]
  %v20 = vld [vmem:[%s0 + $0x60] sm:$0xff]
  %v21 = vld [vmem:[%s0 + $0x68] sm:$0xff]
  %v22 = vld [vmem:[%s0 + $0x70] sm:$0xff]
  %v23 = vld [vmem:[%s0 + $0x78] sm:$0xff]
  %v24 = vld [vmem:[%s0 + $0x80] sm:$0xff]
  %v25 = vld [vmem:[%s0 + $0x88] sm:$0xff]
  %v26 = vld [vmem:[%s0 + $0x90] sm:$0xff]
  %v27 = vld [vmem:[%s0 + $0x98] sm:$0xff]
  %v28 = vld [vmem:[%s0 + $0xa0] sm:$0xff]
  %v29 = vld [vmem:[%s0 + $0xa8] sm:$0xff]
  %v30 = vld [vmem:[%s0 + $0xb0] sm:$0xff]
  %v31 = vld [vmem:[%s0 + $0xb8] sm:$0xff]
  %v32 = vtanh.pop %v8
  %v33 = vtanh.pop %v9
  %v34 = vtanh.pop %v10
  %v35 = vtanh.pop %v11
  %v36 = vtanh.pop %v12
  %v37 = vtanh.pop %v13
  %v38 = vtanh.pop %v14
  %v39 = vtanh.pop %v15
  %v40 = vtanh.pop %v16
  %v41 = vtanh.pop %v17
  %v42 = vtanh.pop %v18
  %v43 = vtanh.pop %v19
  %v44 = vtanh.pop %v20
  %v45 = vtanh.pop %v21
  %v46 = vtanh.pop %v22
  %v47 = vtanh.pop %v23
  %v48 = vtanh.pop %v24
  %v49 = vtanh.pop %v25
  %v50 = vtanh.pop %v26
  %v51 = vtanh.pop %v27
  %v52 = vtanh.pop %v28
  %v53 = vtanh.pop %v29
  %v54 = vtanh.pop %v30
  %v55 = vtanh.pop %v31
  %56 = vst [vmem:[%s1] sm:$0xff] %v32
  %57 = vst [vmem:[%s1 + $0x8] sm:$0xff] %v33
  %58 = vst [vmem:[%s1 + $0x10] sm:$0xff] %v34
  %59 = vst [vmem:[%s1 + $0x18] sm:$0xff] %v35
  %60 = vst [vmem:[%s1 + $0x20] sm:$0xff] %v36
  %61 = vst [vmem:[%s1 + $0x28] sm:$0xff] %v37
  %62 = vst [vmem:[%s1 + $0x30] sm:$0xff] %v38
  %63 = vst [vmem:[%s1 + $0x38] sm:$0xff] %v39
  %64 = vst [vmem:[%s1 + $0x40] sm:$0xff] %v40
  %65 = vst [vmem:[%s1 + $0x48] sm:$0xff] %v41
  %66 = vst [vmem:[%s1 + $0x50] sm:$0xff] %v42
  %67 = vst [vmem:[%s1 + $0x58] sm:$0xff] %v43
  %68 = vst [vmem:[%s1 + $0x60] sm:$0xff] %v44
  %69 = vst [vmem:[%s1 + $0x68] sm:$0xff] %v45
  %70 = vst [vmem:[%s1 + $0x70] sm:$0xff] %v46
  %71 = vst [vmem:[%s1 + $0x78] sm:$0xff] %v47
  %72 = vst [vmem:[%s1 + $0x80] sm:$0xff] %v48
  %73 = vst [vmem:[%s1 + $0x88] sm:$0xff] %v49
  %74 = vst [vmem:[%s1 + $0x90] sm:$0xff] %v50
  %75 = vst [vmem:[%s1 + $0x98] sm:$0xff] %v51
  %76 = vst [vmem:[%s1 + $0xa0] sm:$0xff] %v52
  %77 = vst [vmem:[%s1 + $0xa8] sm:$0xff] %v53
  %78 = vst [vmem:[%s1 + $0xb0] sm:$0xff] %v54
  %79 = vst [vmem:[%s1 + $0xb8] sm:$0xff] %v55
  // Predicated region
  $region6: #{wgan_generator_forward.19} parent=0 // pred_check
    _
  $region7: #{wgan_generator_forward.19} parent=0 // pred_check_branch
    %81 = sbr.rel (0) target = $region9
  $region8: #{wgan_generator_forward.19} parent=0 // pred_region
    _
  $region9: #{wgan_generator_forward.19} parent=0 // pred_fallthru
    _
  // Predicated region
  $region10: #{wgan_generator_forward.19} parent=0 // pred_check
    _
  $region11: #{wgan_generator_forward.19} parent=0 // pred_check_branch
    %83 = sbr.rel (0) target = $region13
  $region12: #{wgan_generator_forward.19} parent=0 // pred_region
    _
  $region13: #{wgan_generator_forward.19} parent=0 // pred_fallthru
    _

</llo_original>
